<compile_context>
chip_gen: v7x
topology: tpu7x:2x2x1
jax: 0.10.0
libtpu: 0.0.40
codegen_flags: <defaults>
</compile_context>

<pallas_src>
import functools

import jax
import jax.numpy as jnp
from jax import lax
from jax.experimental import pallas as pl
from jax.experimental.pallas import tpu as pltpu

NEG = -1.0e30            # finite "-inf" (avoids inf-inf NaNs)


def _round_up(a, m):
    return (a + m - 1) // m * m


@functools.lru_cache(maxsize=None)
def _vmem_budget():
    """Generation-aware VMEM request: ~44 MiB on v7x (64 MiB), ~96 MiB on v5e/v6e (128 MiB)."""
    try:
        cap = int(pltpu.get_tpu_info().vmem_capacity_bytes)
    except Exception:
        cap = 64 * 1024 * 1024
    return int(max(32 * 1024 * 1024, min(cap * 3 // 4, cap - 20 * 1024 * 1024)))


# ----------------------------------------------------------------------------
# Tiled linear (encoder / predictor projections, Linear folded into them), bf16 out.
# ----------------------------------------------------------------------------
def _linear_kernel(x_ref, w_ref, b_ref, o_ref):
    # x: (1, tL, Din) f32   w: (Din, Dout) bf16   b: (1, Dout) f32   o: (1, tL, Dout) bf16
    x = x_ref[0].astype(jnp.bfloat16)
    y = jnp.dot(x, w_ref[...], preferred_element_type=jnp.float32) + b_ref[...]
    o_ref[0] = y.astype(jnp.bfloat16)


def linear_bf16(x, w_bf16, b, tL):
    N, L, Din = x.shape
    Dout = w_bf16.shape[1]
    assert L % tL == 0
    return pl.pallas_call(
        _linear_kernel,
        out_shape=jax.ShapeDtypeStruct((N, L, Dout), jnp.bfloat16),
        grid=(N, L // tL),
        in_specs=[
            pl.BlockSpec((1, tL, Din), lambda n, l: (n, l, 0)),
            pl.BlockSpec((Din, Dout), lambda n, l: (0, 0)),
            pl.BlockSpec((1, Dout), lambda n, l: (0, 0)),
        ],
        out_specs=pl.BlockSpec((1, tL, Dout), lambda n, l: (n, l, 0)),
        compiler_params=pltpu.CompilerParams(
            dimension_semantics=("parallel", "parallel"),
            vmem_limit_bytes=_vmem_budget()),
    )(x, w_bf16, b.reshape(1, Dout))


# ----------------------------------------------------------------------------
# Fused joiner (tanh joint + log-softmax + blank/label-emission gathers).
# ----------------------------------------------------------------------------
def _joint_fused_kernel(enc_ref, pred_ref, wy_ref, wo_ref, blank_ref, emit_ref):
    # enc: (1,tT,Hjp) bf16   pred: (1,tU,Hjp) bf16   wy: (1,tU,Hjp) f32   wo: (Hjp,Vp) bf16
    # blank/emit: (1,tT,tU) f32
    enc = enc_ref[0].astype(jnp.float32)
    pred = pred_ref[0].astype(jnp.float32)
    h = jnp.tanh(enc[:, None, :] + pred[None, :, :])      # (tT,tU,Hjp); lane Hj == 1.0 (bias lane)
    tT, tU, Hjp = h.shape

    # label-emission logit: h . wo[:, y[u]]  (output bias rides on the ==1 lane of h/wy)
    emit_logit = jnp.sum(h * wy_ref[...], axis=-1)        # (tT, tU)

    # full-vocab logits on the MXU; bias folded into wo row Hj, padded vocab cols == NEG
    logits = jnp.dot(h.astype(jnp.bfloat16).reshape(tT * tU, Hjp), wo_ref[...],
                     preferred_element_type=jnp.float32).reshape(tT, tU, -1)
    m = jnp.max(logits, axis=-1)                                             # (tT, tU)
    lse = jnp.log(jnp.sum(jnp.exp(logits - m[..., None]), axis=-1)) + m      # (tT, tU)
    blank_logit = jnp.max(logits[:, :, 0:1], axis=-1)      # static lane-0 slice (blank id = 0)

    blank_ref[0] = blank_logit - lse
    emit_ref[0] = emit_logit - lse


def joint_fused(enc_proj, pred_proj, wy, wo_bf16, *, tT, tU):
    N, Tp, Hjp = enc_proj.shape
    U1p = pred_proj.shape[1]
    Vp = wo_bf16.shape[1]
    return pl.pallas_call(
        _joint_fused_kernel,
        out_shape=(jax.ShapeDtypeStruct((N, Tp, U1p), jnp.float32),
                   jax.ShapeDtypeStruct((N, Tp, U1p), jnp.float32)),
        grid=(N, Tp // tT, U1p // tU),
        in_specs=[
            pl.BlockSpec((1, tT, Hjp), lambda n, ti, uj: (n, ti, 0)),
            pl.BlockSpec((1, tU, Hjp), lambda n, ti, uj: (n, uj, 0)),
            pl.BlockSpec((1, tU, Hjp), lambda n, ti, uj: (n, uj, 0)),
            pl.BlockSpec((Hjp, Vp), lambda n, ti, uj: (0, 0)),
        ],
        out_specs=(pl.BlockSpec((1, tT, tU), lambda n, ti, uj: (n, ti, uj)),
                   pl.BlockSpec((1, tT, tU), lambda n, ti, uj: (n, ti, uj))),
        compiler_params=pltpu.CompilerParams(
            dimension_semantics=("parallel", "parallel", "parallel"),
            vmem_limit_bytes=_vmem_budget()),
    )(enc_proj, pred_proj, wy, wo_bf16)


# ----------------------------------------------------------------------------
# RNN-T loss (warp_rnnt.rnnt_loss equivalent, reduction='mean') as a Pallas kernel.
# Anti-diagonal wavefront with alpha resident on-chip; blank/emit slabs skewed once so
# every diagonal is a contiguous scratch row.
# TODO(synk): very long T (slab > ~30 MiB) would need T-blocking of the skewed scratch.
# ----------------------------------------------------------------------------
def _rnnt_loss_kernel(lx_ref, ly_ref, blank_ref, emit_ref, out_ref, sb_ref, se_ref):
    n = pl.program_id(0)
    Tp = blank_ref.shape[1]
    U1p = blank_ref.shape[2]
    R = Tp + U1p

    negpad = jnp.full((U1p, U1p), NEG, jnp.float32)
    sb_ref[pl.ds(0, Tp), :] = blank_ref[0]
    sb_ref[pl.ds(Tp, U1p), :] = negpad
    se_ref[pl.ds(0, Tp), :] = emit_ref[0]
    se_ref[pl.ds(Tp, U1p), :] = negpad

    # skew: column u shifted down by u (binary decomposition), so S[r,u] = slab[r-u,u]
    lane_r = lax.broadcasted_iota(jnp.int32, (R, U1p), 1)
    for k in range((U1p - 1).bit_length()):
        s = 1 << k
        sel = ((lane_r >> k) & 1) == 1
        pad = jnp.full((s, U1p), NEG, jnp.float32)
        cur = sb_ref[...]
        sb_ref[...] = jnp.where(sel, jnp.concatenate([pad, cur[:R - s]], axis=0), cur)
        cur = se_ref[...]
        se_ref[...] = jnp.where(sel, jnp.concatenate([pad, cur[:R - s]], axis=0), cur)

    lxv = lx_ref[n]
    lyv = ly_ref[n]
    dstar = lxv - 1 + lyv

    lane_u = lax.broadcasted_iota(jnp.int32, (1, U1p), 1)
    alpha0 = jnp.where(lane_u == 0,
                       jnp.zeros((1, U1p), jnp.float32),
                       jnp.full((1, U1p), NEG, jnp.float32))
    final0 = jnp.where(dstar == 0, jnp.array(0.0, jnp.float32), jnp.array(NEG, jnp.float32))

    def body(d, carry):
        alpha, final = carry
        b_row = sb_ref[pl.ds(d - 1, 1), :]                  # blank_lp[d-1-u, u]
        e_row = se_ref[pl.ds(d - 1, 1), :]                  # emit_lp[d-1-u, u]
        t_blank = alpha + b_row
        w = pltpu.roll(alpha + e_row, shift=1, axis=1)      # (alpha + emit)[u-1]
        t_emit = jnp.where(lane_u == 0, NEG, w)
        mx = jnp.maximum(t_blank, t_emit)
        alpha = mx + jnp.log(jnp.exp(t_blank - mx) + jnp.exp(t_emit - mx))
        a_ly = jnp.max(jnp.where(lane_u == lyv, alpha, NEG))
        final = jnp.where(d == dstar, a_ly, final)
        return alpha, final

    _, final = lax.fori_loop(1, Tp + U1p - 1, body, (alpha0, final0))

    b_last_row = sb_ref[pl.ds(dstar, 1), :]                 # blank_lp[lx-1, ly]
    b_last = jnp.max(jnp.where(lane_u == lyv, b_last_row, NEG))
    out_ref[...] = jnp.full(out_ref.shape, -(final + b_last), jnp.float32)


def rnnt_loss_pallas(blank_lp, emit_lp, lx, ly):
    N, Tp, U1p = blank_lp.shape
    R = Tp + U1p
    out = pl.pallas_call(
        _rnnt_loss_kernel,
        out_shape=jax.ShapeDtypeStruct((N, 1, 128), jnp.float32),
        grid_spec=pltpu.PrefetchScalarGridSpec(
            num_scalar_prefetch=2,
            grid=(N,),
            in_specs=[pl.BlockSpec((1, Tp, U1p), lambda n, lx_r, ly_r: (n, 0, 0)),
                      pl.BlockSpec((1, Tp, U1p), lambda n, lx_r, ly_r: (n, 0, 0))],
            out_specs=pl.BlockSpec((1, 1, 128), lambda n, lx_r, ly_r: (n, 0, 0)),
            scratch_shapes=[pltpu.VMEM((R, U1p), jnp.float32),
                            pltpu.VMEM((R, U1p), jnp.float32)]),
        compiler_params=pltpu.CompilerParams(
            dimension_semantics=("parallel",),
            vmem_limit_bytes=_vmem_budget()),
    )(lx, ly, blank_lp, emit_lp)
    return out[:, 0, 0]


# ----------------------------------------------------------------------------
# TransducerTrainer.forward
# ----------------------------------------------------------------------------
def transducer_forward(p, x, lx, y, ly):
    N, T, F = x.shape
    y = y.astype(jnp.int32)
    U = y.shape[1]
    U1 = U + 1
    Hj = p['join_we'].shape[1]
    V = p['join_wo'].shape[1]

    Hjp = _round_up(Hj + 1, 128)        # >=1 spare contraction row for the folded bias
    Vp = _round_up(V, 128)
    tU = 128
    U1p = _round_up(U1, tU)

    # tT sizing: resident wo (x2 buffers), pred/wy blocks (x2), and per-tT-row:
    # h(f32+bf16), logits + one exp temp, double-buffered enc block and both outputs.
    vmem = _vmem_budget()
    fixed = 4 * Hjp * Vp + 12 * tU * Hjp
    per_t = tU * (6 * Hjp + 8 * Vp + 16) + 4 * Hjp
    tT = (max(vmem - fixed, 8 * per_t) // per_t) // 8 * 8
    tT = int(max(8, min(128, tT)))
    tT = min(tT, _round_up(T, 8))
    Tp = _round_up(T, tT)

    # fold encoder Linear into the joiner enc-projection (no nonlinearity in between)
    join_we = jnp.pad(p['join_we'], ((0, 0), (0, Hjp - Hj)))
    join_be = jnp.pad(p['join_be'], (0, Hjp - Hj))
    w_enc = p['enc_w'] @ join_we                          # (F, Hjp)
    b_enc = p['enc_b'] @ join_we + join_be                # (Hjp,)
    b_enc = b_enc.at[Hj].set(30.0)                        # tanh(30) == 1 -> bias lane of h
    # fold predictor Linear into the joiner pred-projection
    join_wp = jnp.pad(p['join_wp'], ((0, 0), (0, Hjp - Hj)))
    join_bp = jnp.pad(p['join_bp'], (0, Hjp - Hj))
    w_pred = p['pred_w'] @ join_wp                        # (Hp, Hjp)
    b_pred = p['pred_b'] @ join_wp + join_bp              # (Hjp,)
    # folded output weights: row Hj carries bo (real vocab) / NEG (padded vocab columns)
    wo = jnp.zeros((Hjp, Vp), jnp.float32).at[:Hj, :V].set(p['join_wo'])
    bias_row = jnp.full((Vp,), NEG, jnp.float32).at[:V].set(p['join_bo'])
    wo = wo.at[Hj, :].set(bias_row)

    # encoder(x, lx) -> enc_proj  (no subsampling in this synthetic encoder; lsub == lx)
    x_pad = jnp.pad(x, ((0, 0), (0, Tp - T), (0, 0)))
    enc_proj = linear_bf16(x_pad, w_enc.astype(jnp.bfloat16), b_enc, tL=tT)    # (N,Tp,Hjp) bf16

    # SeqExtractor(bos=0): ypad = [<bos>] + y ; predictor = Embedding -> (folded) Linear
    ypad = jnp.pad(y, ((0, 0), (1, 0)), constant_values=0)                     # (N, U1)
    emb = jnp.take(p['emb'], ypad, axis=0)                                     # gather glue
    emb = jnp.pad(emb, ((0, 0), (0, U1p - U1), (0, 0)))
    pred_proj = linear_bf16(emb, w_pred.astype(jnp.bfloat16), b_pred, tL=tU)   # (N,U1p,Hjp) bf16

    # per-u output columns for the label emission (bias included via row Hj); labels never
    # enter the kernel and the (N,T,U1,V) log-prob tensor is never materialized.
    emit_labels = jnp.pad(y, ((0, 0), (0, U1p - U)))                           # (N, U1p)
    wy = jnp.take(wo.T, emit_labels, axis=0)                                   # (N, U1p, Hjp) f32

    blank_lp, emit_lp = joint_fused(enc_proj, pred_proj, wy, wo.astype(jnp.bfloat16),
                                    tT=tT, tU=tU)

    # warp_rnnt.rnnt_loss(xys, y, lsub, ly) equivalent (mean-reduced NLL); padded frames /
    # labels are finite and can never reach the (lx-1, ly) readout, so no slicing needed.
    loss_n = rnnt_loss_pallas(blank_lp, emit_lp, lx.astype(jnp.int32), ly.astype(jnp.int32))
    return jnp.mean(loss_n)


def init_params(key, F, He, Hp, Hj, V):
    ks = jax.random.split(key, 6)
    s = 0.1
    return {
        'enc_w': s * jax.random.normal(ks[0], (F, He), jnp.float32),
        'enc_b': jnp.zeros((He,), jnp.float32),
        'emb': s * jax.random.normal(ks[1], (V, Hp), jnp.float32),
        'pred_w': s * jax.random.normal(ks[2], (Hp, Hp), jnp.float32),
        'pred_b': jnp.zeros((Hp,), jnp.float32),
        'join_we': s * jax.random.normal(ks[3], (He, Hj), jnp.float32),
        'join_be': jnp.zeros((Hj,), jnp.float32),
        'join_wp': s * jax.random.normal(ks[4], (Hp, Hj), jnp.float32),
        'join_bp': jnp.zeros((Hj,), jnp.float32),
        'join_wo': s * jax.random.normal(ks[5], (Hj, V), jnp.float32),
        'join_bo': jnp.zeros((V,), jnp.float32),
    }


if __name__ == "__main__":
    N, T, F, U, V = 2, 8, 16, 4, 16        # batch, frames, feat dim, label len, vocab
    He = Hp = Hj = 32

    key = jax.random.PRNGKey(0)
    k_par, k_x, k_y = jax.random.split(key, 3)

    params = init_params(k_par, F, He, Hp, Hj, V)
    x = jax.random.normal(k_x, (N, T, F), jnp.float32)
    lx = jnp.full((N,), T, jnp.int32)
    y = jax.random.randint(k_y, (N, U), 1, V, dtype=jnp.int32)   # labels in [1, V), 0 = blank/bos
    ly = jnp.full((N,), U, jnp.int32)

    loss = jax.jit(transducer_forward)(params, x, lx, y, ly)
    jax.block_until_ready(loss)
    assert loss.shape == () and bool(jnp.isfinite(loss))
    print("KERNEL_OK")
</pallas_src>

<mosaic_0001>
module attributes {stable_mosaic.version = 11 : i64} {
  func.func @_linear_kernel(%arg0: i32, %arg1: i32, %arg2: memref<1x128x32xf32, #tpu.memory_space<vmem>>, %arg3: memref<32x128xbf16, #tpu.memory_space<vmem>>, %arg4: memref<1x128xf32, #tpu.memory_space<vmem>>, %arg5: memref<1x128x128xbf16, #tpu.memory_space<vmem>>) attributes {dimension_semantics = [#tpu.dimension_semantics<parallel>, #tpu.dimension_semantics<parallel>], iteration_bounds = array<i64: 2, 1>, scalar_prefetch = 0 : i64, scratch_operands = 0 : i64, tpu.core_type = #tpu.core_type<tc>, window_params = [{transform_indices = @transform_0, window_bounds = array<i64: 1, 128, 32>}, {pipeline_mode = #tpu.pipeline_mode<synchronous>, transform_indices = @transform_1, window_bounds = array<i64: 32, 128>}, {pipeline_mode = #tpu.pipeline_mode<synchronous>, transform_indices = @transform_2, window_bounds = array<i64: 1, 128>}, {transform_indices = @transform_3, window_bounds = array<i64: 1, 128, 128>}]} {
    %c0 = arith.constant 0 : index
    %c0_0 = arith.constant 0 : index
    %c0_1 = arith.constant 0 : index
    %0 = vector.load %arg2[%c0, %c0_0, %c0_1] : memref<1x128x32xf32, #tpu.memory_space<vmem>>, vector<1x128x32xf32>
    %1 = vector.shape_cast %0 : vector<1x128x32xf32> to vector<128x32xf32>
    %2 = arith.truncf %1 : vector<128x32xf32> to vector<128x32xbf16>
    %c0_2 = arith.constant 0 : index
    %c0_3 = arith.constant 0 : index
    %3 = vector.load %arg3[%c0_2, %c0_3] : memref<32x128xbf16, #tpu.memory_space<vmem>>, vector<32x128xbf16>
    %cst = arith.constant dense<0.000000e+00> : vector<128x128xf32>
    %4 = tpu.matmul %2, %3, %cst {dimension_numbers = #tpu.dot_dimension_numbers<[1], [0], [0], [1], [0, 0, 1, 1], [], []>} : vector<128x32xbf16>, vector<32x128xbf16>, vector<128x128xf32> -> vector<128x128xf32>
    %c0_4 = arith.constant 0 : index
    %c0_5 = arith.constant 0 : index
    %5 = vector.load %arg4[%c0_4, %c0_5] : memref<1x128xf32, #tpu.memory_space<vmem>>, vector<1x128xf32>
    %6 = vector.broadcast %5 : vector<1x128xf32> to vector<128x128xf32>
    %7 = arith.addf %4, %6 : vector<128x128xf32>
    %8 = arith.truncf %7 : vector<128x128xf32> to vector<128x128xbf16>
    %c0_6 = arith.constant 0 : index
    %c0_7 = arith.constant 0 : index
    %c0_8 = arith.constant 0 : index
    %9 = vector.load %arg5[%c0_6, %c0_7, %c0_8] : memref<1x128x128xbf16, #tpu.memory_space<vmem>>, vector<1x128x128xbf16>
    %10 = vector.shape_cast %9 : vector<1x128x128xbf16> to vector<128x128xbf16>
    %11 = vector.shape_cast %8 : vector<128x128xbf16> to vector<1x128x128xbf16>
    tpu.vector_store %arg5[%c0_6, %c0_7, %c0_8], %11 {strides = array<i32>} : memref<1x128x128xbf16, #tpu.memory_space<vmem>>, vector<1x128x128xbf16>,
    return
  }
  func.func @transform_0(%arg0: i32, %arg1: i32) -> (i32, i32, i32) {
    %c0_i32 = arith.constant 0 : i32
    %c0_i32_0 = arith.constant 0 : i32
    return %arg0, %arg1, %c0_i32 : i32, i32, i32
  }
  func.func @transform_1(%arg0: i32, %arg1: i32) -> (i32, i32) {
    %c0_i32 = arith.constant 0 : i32
    %c0_i32_0 = arith.constant 0 : i32
    %c0_i32_1 = arith.constant 0 : i32
    return %c0_i32, %c0_i32_0 : i32, i32
  }
  func.func @transform_2(%arg0: i32, %arg1: i32) -> (i32, i32) {
    %c0_i32 = arith.constant 0 : i32
    %c0_i32_0 = arith.constant 0 : i32
    %c0_i32_1 = arith.constant 0 : i32
    return %c0_i32, %c0_i32_0 : i32, i32
  }
  func.func @transform_3(%arg0: i32, %arg1: i32) -> (i32, i32, i32) {
    %c0_i32 = arith.constant 0 : i32
    %c0_i32_0 = arith.constant 0 : i32
    return %arg0, %arg1, %c0_i32 : i32, i32, i32
  }
}

module attributes {stable_mosaic.version = 11 : i64} {
  func.func @_joint_fused_kernel(%arg0: i32, %arg1: i32, %arg2: i32, %arg3: memref<1x8x128xbf16, #tpu.memory_space<vmem>>, %arg4: memref<1x128x128xbf16, #tpu.memory_space<vmem>>, %arg5: memref<1x128x128xf32, #tpu.memory_space<vmem>>, %arg6: memref<128x128xbf16, #tpu.memory_space<vmem>>, %arg7: memref<1x8x128xf32, #tpu.memory_space<vmem>>, %arg8: memref<1x8x128xf32, #tpu.memory_space<vmem>>) attributes {dimension_semantics = [#tpu.dimension_semantics<parallel>, #tpu.dimension_semantics<parallel>, #tpu.dimension_semantics<parallel>], iteration_bounds = array<i64: 2, 1, 1>, scalar_prefetch = 0 : i64, scratch_operands = 0 : i64, tpu.core_type = #tpu.core_type<tc>, window_params = [{transform_indices = @transform_0, window_bounds = array<i64: 1, 8, 128>}, {transform_indices = @transform_1, window_bounds = array<i64: 1, 128, 128>}, {transform_indices = @transform_2, window_bounds = array<i64: 1, 128, 128>}, {pipeline_mode = #tpu.pipeline_mode<synchronous>, transform_indices = @transform_3, window_bounds = array<i64: 128, 128>}, {transform_indices = @transform_4, window_bounds = array<i64: 1, 8, 128>}, {transform_indices = @transform_5, window_bounds = array<i64: 1, 8, 128>}]} {
    %c0 = arith.constant 0 : index
    %c0_0 = arith.constant 0 : index
    %c0_1 = arith.constant 0 : index
    %0 = vector.load %arg3[%c0, %c0_0, %c0_1] : memref<1x8x128xbf16, #tpu.memory_space<vmem>>, vector<1x8x128xbf16>
    %1 = vector.shape_cast %0 : vector<1x8x128xbf16> to vector<8x128xbf16>
    %2 = arith.extf %1 : vector<8x128xbf16> to vector<8x128xf32>
    %c0_2 = arith.constant 0 : index
    %c0_3 = arith.constant 0 : index
    %c0_4 = arith.constant 0 : index
    %3 = vector.load %arg4[%c0_2, %c0_3, %c0_4] : memref<1x128x128xbf16, #tpu.memory_space<vmem>>, vector<1x128x128xbf16>
    %4 = vector.shape_cast %3 : vector<1x128x128xbf16> to vector<128x128xbf16>
    %5 = arith.extf %4 : vector<128x128xbf16> to vector<128x128xf32>
    %6 = vector.shape_cast %2 : vector<8x128xf32> to vector<8x1x128xf32>
    %7 = vector.shape_cast %5 : vector<128x128xf32> to vector<1x128x128xf32>
    %8 = vector.broadcast %6 : vector<8x1x128xf32> to vector<8x128x128xf32>
    %9 = vector.broadcast %7 : vector<1x128x128xf32> to vector<8x128x128xf32>
    %10 = arith.addf %8, %9 : vector<8x128x128xf32>
    %11 = math.tanh %10 : vector<8x128x128xf32>
    %c0_5 = arith.constant 0 : index
    %c0_6 = arith.constant 0 : index
    %c0_7 = arith.constant 0 : index
    %12 = vector.load %arg5[%c0_5, %c0_6, %c0_7] : memref<1x128x128xf32, #tpu.memory_space<vmem>>, vector<1x128x128xf32>
    %13 = vector.broadcast %12 : vector<1x128x128xf32> to vector<8x128x128xf32>
    %14 = arith.mulf %11, %13 : vector<8x128x128xf32>
    %cst = arith.constant dense<0.000000e+00> : vector<8x128xf32>
    %15 = vector.multi_reduction <add>, %14, %cst [2] : vector<8x128x128xf32> to vector<8x128xf32>
    %16 = arith.truncf %11 : vector<8x128x128xf32> to vector<8x128x128xbf16>
    %17 = vector.shape_cast %16 : vector<8x128x128xbf16> to vector<1024x128xbf16>
    %c0_8 = arith.constant 0 : index
    %c0_9 = arith.constant 0 : index
    %18 = vector.load %arg6[%c0_8, %c0_9] : memref<128x128xbf16, #tpu.memory_space<vmem>>, vector<128x128xbf16>
    %cst_10 = arith.constant dense<0.000000e+00> : vector<1024x128xf32>
    %19 = tpu.matmul %17, %18, %cst_10 {dimension_numbers = #tpu.dot_dimension_numbers<[1], [0], [0], [1], [0, 0, 1, 1], [], []>} : vector<1024x128xbf16>, vector<128x128xbf16>, vector<1024x128xf32> -> vector<1024x128xf32>
    %20 = vector.shape_cast %19 : vector<1024x128xf32> to vector<8x128x128xf32>
    %cst_11 = arith.constant dense<0xFF800000> : vector<8x128xf32>
    %21 = vector.multi_reduction <maximumf>, %20, %cst_11 [2] : vector<8x128x128xf32> to vector<8x128xf32>
    %22 = vector.shape_cast %21 : vector<8x128xf32> to vector<8x128x1xf32>
    %23 = vector.broadcast %22 : vector<8x128x1xf32> to vector<8x128x128xf32>
    %24 = arith.subf %20, %23 : vector<8x128x128xf32>
    %25 = math.exp %24 : vector<8x128x128xf32>
    %cst_12 = arith.constant dense<0.000000e+00> : vector<8x128xf32>
    %26 = vector.multi_reduction <add>, %25, %cst_12 [2] : vector<8x128x128xf32> to vector<8x128xf32>
    %27 = math.log %26 : vector<8x128xf32>
    %28 = arith.addf %27, %21 : vector<8x128xf32>
    %29 = vector.extract_strided_slice %20 {offsets = [0, 0, 0], sizes = [8, 128, 1], strides = [1, 1, 1]} : vector<8x128x128xf32> to vector<8x128x1xf32>
    %cst_13 = arith.constant dense<0xFF800000> : vector<8x128xf32>
    %30 = vector.multi_reduction <maximumf>, %29, %cst_13 [2] : vector<8x128x1xf32> to vector<8x128xf32>
    %31 = arith.subf %30, %28 : vector<8x128xf32>
    %c0_14 = arith.constant 0 : index
    %c0_15 = arith.constant 0 : index
    %c0_16 = arith.constant 0 : index
    %32 = vector.load %arg7[%c0_14, %c0_15, %c0_16] : memref<1x8x128xf32, #tpu.memory_space<vmem>>, vector<1x8x128xf32>
    %33 = vector.shape_cast %32 : vector<1x8x128xf32> to vector<8x128xf32>
    %34 = vector.shape_cast %31 : vector<8x128xf32> to vector<1x8x128xf32>
    tpu.vector_store %arg7[%c0_14, %c0_15, %c0_16], %34 {strides = array<i32>} : memref<1x8x128xf32, #tpu.memory_space<vmem>>, vector<1x8x128xf32>,
    %35 = arith.subf %15, %28 : vector<8x128xf32>
    %c0_17 = arith.constant 0 : index
    %c0_18 = arith.constant 0 : index
    %c0_19 = arith.constant 0 : index
    %36 = vector.load %arg8[%c0_17, %c0_18, %c0_19] : memref<1x8x128xf32, #tpu.memory_space<vmem>>, vector<1x8x128xf32>
    %37 = vector.shape_cast %36 : vector<1x8x128xf32> to vector<8x128xf32>
    %38 = vector.shape_cast %35 : vector<8x128xf32> to vector<1x8x128xf32>
    tpu.vector_store %arg8[%c0_17, %c0_18, %c0_19], %38 {strides = array<i32>} : memref<1x8x128xf32, #tpu.memory_space<vmem>>, vector<1x8x128xf32>,
    return
  }
  func.func @transform_0(%arg0: i32, %arg1: i32, %arg2: i32) -> (i32, i32, i32) {
    %c0_i32 = arith.constant 0 : i32
    %c0_i32_0 = arith.constant 0 : i32
    return %arg0, %arg1, %c0_i32 : i32, i32, i32
  }
  func.func @transform_1(%arg0: i32, %arg1: i32, %arg2: i32) -> (i32, i32, i32) {
    %c0_i32 = arith.constant 0 : i32
    %c0_i32_0 = arith.constant 0 : i32
    return %arg0, %arg2, %c0_i32 : i32, i32, i32
  }
  func.func @transform_2(%arg0: i32, %arg1: i32, %arg2: i32) -> (i32, i32, i32) {
    %c0_i32 = arith.constant 0 : i32
    %c0_i32_0 = arith.constant 0 : i32
    return %arg0, %arg2, %c0_i32 : i32, i32, i32
  }
  func.func @transform_3(%arg0: i32, %arg1: i32, %arg2: i32) -> (i32, i32) {
    %c0_i32 = arith.constant 0 : i32
    %c0_i32_0 = arith.constant 0 : i32
    %c0_i32_1 = arith.constant 0 : i32
    return %c0_i32, %c0_i32_0 : i32, i32
  }
  func.func @transform_4(%arg0: i32, %arg1: i32, %arg2: i32) -> (i32, i32, i32) {
    %c0_i32 = arith.constant 0 : i32
    return %arg0, %arg1, %arg2 : i32, i32, i32
  }
  func.func @transform_5(%arg0: i32, %arg1: i32, %arg2: i32) -> (i32, i32, i32) {
    %c0_i32 = arith.constant 0 : i32
    return %arg0, %arg1, %arg2 : i32, i32, i32
  }
}

module attributes {stable_mosaic.version = 11 : i64} {
  func.func @_linear_kernel(%arg0: i32, %arg1: i32, %arg2: memref<1x8x16xf32, #tpu.memory_space<vmem>>, %arg3: memref<16x128xbf16, #tpu.memory_space<vmem>>, %arg4: memref<1x128xf32, #tpu.memory_space<vmem>>, %arg5: memref<1x8x128xbf16, #tpu.memory_space<vmem>>) attributes {dimension_semantics = [#tpu.dimension_semantics<parallel>, #tpu.dimension_semantics<parallel>], iteration_bounds = array<i64: 2, 1>, scalar_prefetch = 0 : i64, scratch_operands = 0 : i64, tpu.core_type = #tpu.core_type<tc>, window_params = [{transform_indices = @transform_0, window_bounds = array<i64: 1, 8, 16>}, {pipeline_mode = #tpu.pipeline_mode<synchronous>, transform_indices = @transform_1, window_bounds = array<i64: 16, 128>}, {pipeline_mode = #tpu.pipeline_mode<synchronous>, transform_indices = @transform_2, window_bounds = array<i64: 1, 128>}, {transform_indices = @transform_3, window_bounds = array<i64: 1, 8, 128>}]} {
    %c0 = arith.constant 0 : index
    %c0_0 = arith.constant 0 : index
    %c0_1 = arith.constant 0 : index
    %0 = vector.load %arg2[%c0, %c0_0, %c0_1] : memref<1x8x16xf32, #tpu.memory_space<vmem>>, vector<1x8x16xf32>
    %1 = vector.shape_cast %0 : vector<1x8x16xf32> to vector<8x16xf32>
    %2 = arith.truncf %1 : vector<8x16xf32> to vector<8x16xbf16>
    %c0_2 = arith.constant 0 : index
    %c0_3 = arith.constant 0 : index
    %3 = vector.load %arg3[%c0_2, %c0_3] : memref<16x128xbf16, #tpu.memory_space<vmem>>, vector<16x128xbf16>
    %cst = arith.constant dense<0.000000e+00> : vector<8x128xf32>
    %4 = tpu.matmul %2, %3, %cst {dimension_numbers = #tpu.dot_dimension_numbers<[1], [0], [0], [1], [0, 0, 1, 1], [], []>} : vector<8x16xbf16>, vector<16x128xbf16>, vector<8x128xf32> -> vector<8x128xf32>
    %c0_4 = arith.constant 0 : index
    %c0_5 = arith.constant 0 : index
    %5 = vector.load %arg4[%c0_4, %c0_5] : memref<1x128xf32, #tpu.memory_space<vmem>>, vector<1x128xf32>
    %6 = vector.broadcast %5 : vector<1x128xf32> to vector<8x128xf32>
    %7 = arith.addf %4, %6 : vector<8x128xf32>
    %8 = arith.truncf %7 : vector<8x128xf32> to vector<8x128xbf16>
    %c0_6 = arith.constant 0 : index
    %c0_7 = arith.constant 0 : index
    %c0_8 = arith.constant 0 : index
    %9 = vector.load %arg5[%c0_6, %c0_7, %c0_8] : memref<1x8x128xbf16, #tpu.memory_space<vmem>>, vector<1x8x128xbf16>
    %10 = vector.shape_cast %9 : vector<1x8x128xbf16> to vector<8x128xbf16>
    %11 = vector.shape_cast %8 : vector<8x128xbf16> to vector<1x8x128xbf16>
    tpu.vector_store %arg5[%c0_6, %c0_7, %c0_8], %11 {strides = array<i32>} : memref<1x8x128xbf16, #tpu.memory_space<vmem>>, vector<1x8x128xbf16>,
    return
  }
  func.func @transform_0(%arg0: i32, %arg1: i32) -> (i32, i32, i32) {
    %c0_i32 = arith.constant 0 : i32
    %c0_i32_0 = arith.constant 0 : i32
    return %arg0, %arg1, %c0_i32 : i32, i32, i32
  }
  func.func @transform_1(%arg0: i32, %arg1: i32) -> (i32, i32) {
    %c0_i32 = arith.constant 0 : i32
    %c0_i32_0 = arith.constant 0 : i32
    %c0_i32_1 = arith.constant 0 : i32
    return %c0_i32, %c0_i32_0 : i32, i32
  }
  func.func @transform_2(%arg0: i32, %arg1: i32) -> (i32, i32) {
    %c0_i32 = arith.constant 0 : i32
    %c0_i32_0 = arith.constant 0 : i32
    %c0_i32_1 = arith.constant 0 : i32
    return %c0_i32, %c0_i32_0 : i32, i32
  }
  func.func @transform_3(%arg0: i32, %arg1: i32) -> (i32, i32, i32) {
    %c0_i32 = arith.constant 0 : i32
    %c0_i32_0 = arith.constant 0 : i32
    return %arg0, %arg1, %c0_i32 : i32, i32, i32
  }
}

module attributes {stable_mosaic.version = 11 : i64} {
  func.func @_rnnt_loss_kernel(%arg0: i32, %arg1: memref<2xi32, #tpu.memory_space<smem>>, %arg2: memref<2xi32, #tpu.memory_space<smem>>, %arg3: memref<1x8x128xf32, #tpu.memory_space<vmem>>, %arg4: memref<1x8x128xf32, #tpu.memory_space<vmem>>, %arg5: memref<1x1x128xf32, #tpu.memory_space<vmem>>, %arg6: memref<136x128xf32, #tpu.memory_space<vmem>>, %arg7: memref<136x128xf32, #tpu.memory_space<vmem>>) attributes {dimension_semantics = [#tpu.dimension_semantics<parallel>], iteration_bounds = array<i64: 2>, scalar_prefetch = 2 : i64, scratch_operands = 2 : i64, tpu.core_type = #tpu.core_type<tc>, window_params = [{transform_indices = @transform_0, window_bounds = array<i64: 1, 8, 128>}, {transform_indices = @transform_1, window_bounds = array<i64: 1, 8, 128>}, {transform_indices = @transform_2, window_bounds = array<i64: 1, 1, 128>}]} {
    %cst = arith.constant -1.000000e+30 : f32
    %0 = vector.broadcast %cst : f32 to vector<128x128xf32>
    %c0 = arith.constant 0 : index
    %c0_0 = arith.constant 0 : index
    %c0_1 = arith.constant 0 : index
    %1 = vector.load %arg3[%c0, %c0_0, %c0_1] : memref<1x8x128xf32, #tpu.memory_space<vmem>>, vector<1x8x128xf32>
    %2 = vector.shape_cast %1 : vector<1x8x128xf32> to vector<8x128xf32>
    %c0_2 = arith.constant 0 : index
    %c0_3 = arith.constant 0 : index
    %3 = vector.load %arg6[%c0_2, %c0_3] : memref<136x128xf32, #tpu.memory_space<vmem>>, vector<8x128xf32>
    tpu.vector_store %arg6[%c0_2, %c0_3], %2 {strides = array<i32>} : memref<136x128xf32, #tpu.memory_space<vmem>>, vector<8x128xf32>,
    %c8 = arith.constant 8 : index
    %c0_4 = arith.constant 0 : index
    %4 = vector.load %arg6[%c8, %c0_4] : memref<136x128xf32, #tpu.memory_space<vmem>>, vector<128x128xf32>
    tpu.vector_store %arg6[%c8, %c0_4], %0 {strides = array<i32>} : memref<136x128xf32, #tpu.memory_space<vmem>>, vector<128x128xf32>,
    %c0_5 = arith.constant 0 : index
    %c0_6 = arith.constant 0 : index
    %c0_7 = arith.constant 0 : index
    %5 = vector.load %arg4[%c0_5, %c0_6, %c0_7] : memref<1x8x128xf32, #tpu.memory_space<vmem>>, vector<1x8x128xf32>
    %6 = vector.shape_cast %5 : vector<1x8x128xf32> to vector<8x128xf32>
    %c0_8 = arith.constant 0 : index
    %c0_9 = arith.constant 0 : index
    %7 = vector.load %arg7[%c0_8, %c0_9] : memref<136x128xf32, #tpu.memory_space<vmem>>, vector<8x128xf32>
    tpu.vector_store %arg7[%c0_8, %c0_9], %6 {strides = array<i32>} : memref<136x128xf32, #tpu.memory_space<vmem>>, vector<8x128xf32>,
    %c8_10 = arith.constant 8 : index
    %c0_11 = arith.constant 0 : index
    %8 = vector.load %arg7[%c8_10, %c0_11] : memref<136x128xf32, #tpu.memory_space<vmem>>, vector<128x128xf32>
    tpu.vector_store %arg7[%c8_10, %c0_11], %0 {strides = array<i32>} : memref<136x128xf32, #tpu.memory_space<vmem>>, vector<128x128xf32>,
    %9 = tpu.iota {dimensions = array<i32: 1>} : vector<136x128xi32>
    %c0_i32 = arith.constant 0 : i32
    %10 = vector.broadcast %c0_i32 : i32 to vector<136x128xi32>
    %11 = arith.shrsi %9, %10 : vector<136x128xi32>
    %c1_i32 = arith.constant 1 : i32
    %12 = vector.broadcast %c1_i32 : i32 to vector<136x128xi32>
    %13 = arith.andi %11, %12 : vector<136x128xi32>
    %c1_i32_12 = arith.constant 1 : i32
    %14 = vector.broadcast %c1_i32_12 : i32 to vector<136x128xi32>
    %15 = arith.cmpi eq, %13, %14 : vector<136x128xi32>
    %cst_13 = arith.constant -1.000000e+30 : f32
    %16 = vector.broadcast %cst_13 : f32 to vector<1x128xf32>
    %c0_14 = arith.constant 0 : index
    %c0_15 = arith.constant 0 : index
    %17 = vector.load %arg6[%c0_14, %c0_15] : memref<136x128xf32, #tpu.memory_space<vmem>>, vector<136x128xf32>
    %18 = vector.extract_strided_slice %17 {offsets = [0, 0], sizes = [135, 128], strides = [1, 1]} : vector<136x128xf32> to vector<135x128xf32>
    %19 = tpu.concatenate %16, %18 in 0 : vector<1x128xf32>, vector<135x128xf32> -> vector<136x128xf32>
    %20 = arith.select %15, %19, %17 : vector<136x128xi1>, vector<136x128xf32>
    %c0_16 = arith.constant 0 : index
    %c0_17 = arith.constant 0 : index
    %21 = vector.load %arg6[%c0_16, %c0_17] : memref<136x128xf32, #tpu.memory_space<vmem>>, vector<136x128xf32>
    tpu.vector_store %arg6[%c0_16, %c0_17], %20 {strides = array<i32>} : memref<136x128xf32, #tpu.memory_space<vmem>>, vector<136x128xf32>,
    %c0_18 = arith.constant 0 : index
    %c0_19 = arith.constant 0 : index
    %22 = vector.load %arg7[%c0_18, %c0_19] : memref<136x128xf32, #tpu.memory_space<vmem>>, vector<136x128xf32>
    %23 = vector.extract_strided_slice %22 {offsets = [0, 0], sizes = [135, 128], strides = [1, 1]} : vector<136x128xf32> to vector<135x128xf32>
    %24 = tpu.concatenate %16, %23 in 0 : vector<1x128xf32>, vector<135x128xf32> -> vector<136x128xf32>
    %25 = arith.select %15, %24, %22 : vector<136x128xi1>, vector<136x128xf32>
    %c0_20 = arith.constant 0 : index
    %c0_21 = arith.constant 0 : index
    %26 = vector.load %arg7[%c0_20, %c0_21] : memref<136x128xf32, #tpu.memory_space<vmem>>, vector<136x128xf32>
    tpu.vector_store %arg7[%c0_20, %c0_21], %25 {strides = array<i32>} : memref<136x128xf32, #tpu.memory_space<vmem>>, vector<136x128xf32>,
    %c1_i32_22 = arith.constant 1 : i32
    %27 = vector.broadcast %c1_i32_22 : i32 to vector<136x128xi32>
    %28 = arith.shrsi %9, %27 : vector<136x128xi32>
    %c1_i32_23 = arith.constant 1 : i32
    %29 = vector.broadcast %c1_i32_23 : i32 to vector<136x128xi32>
    %30 = arith.andi %28, %29 : vector<136x128xi32>
    %c1_i32_24 = arith.constant 1 : i32
    %31 = vector.broadcast %c1_i32_24 : i32 to vector<136x128xi32>
    %32 = arith.cmpi eq, %30, %31 : vector<136x128xi32>
    %cst_25 = arith.constant -1.000000e+30 : f32
    %33 = vector.broadcast %cst_25 : f32 to vector<2x128xf32>
    %c0_26 = arith.constant 0 : index
    %c0_27 = arith.constant 0 : index
    %34 = vector.load %arg6[%c0_26, %c0_27] : memref<136x128xf32, #tpu.memory_space<vmem>>, vector<136x128xf32>
    %35 = vector.extract_strided_slice %34 {offsets = [0, 0], sizes = [134, 128], strides = [1, 1]} : vector<136x128xf32> to vector<134x128xf32>
    %36 = tpu.concatenate %33, %35 in 0 : vector<2x128xf32>, vector<134x128xf32> -> vector<136x128xf32>
    %37 = arith.select %32, %36, %34 : vector<136x128xi1>, vector<136x128xf32>
    %c0_28 = arith.constant 0 : index
    %c0_29 = arith.constant 0 : index
    %38 = vector.load %arg6[%c0_28, %c0_29] : memref<136x128xf32, #tpu.memory_space<vmem>>, vector<136x128xf32>
    tpu.vector_store %arg6[%c0_28, %c0_29], %37 {strides = array<i32>} : memref<136x128xf32, #tpu.memory_space<vmem>>, vector<136x128xf32>,
    %c0_30 = arith.constant 0 : index
    %c0_31 = arith.constant 0 : index
    %39 = vector.load %arg7[%c0_30, %c0_31] : memref<136x128xf32, #tpu.memory_space<vmem>>, vector<136x128xf32>
    %40 = vector.extract_strided_slice %39 {offsets = [0, 0], sizes = [134, 128], strides = [1, 1]} : vector<136x128xf32> to vector<134x128xf32>
    %41 = tpu.concatenate %33, %40 in 0 : vector<2x128xf32>, vector<134x128xf32> -> vector<136x128xf32>
    %42 = arith.select %32, %41, %39 : vector<136x128xi1>, vector<136x128xf32>
    %c0_32 = arith.constant 0 : index
    %c0_33 = arith.constant 0 : index
    %43 = vector.load %arg7[%c0_32, %c0_33] : memref<136x128xf32, #tpu.memory_space<vmem>>, vector<136x128xf32>
    tpu.vector_store %arg7[%c0_32, %c0_33], %42 {strides = array<i32>} : memref<136x128xf32, #tpu.memory_space<vmem>>, vector<136x128xf32>,
    %c2_i32 = arith.constant 2 : i32
    %44 = vector.broadcast %c2_i32 : i32 to vector<136x128xi32>
    %45 = arith.shrsi %9, %44 : vector<136x128xi32>
    %c1_i32_34 = arith.constant 1 : i32
    %46 = vector.broadcast %c1_i32_34 : i32 to vector<136x128xi32>
    %47 = arith.andi %45, %46 : vector<136x128xi32>
    %c1_i32_35 = arith.constant 1 : i32
    %48 = vector.broadcast %c1_i32_35 : i32 to vector<136x128xi32>
    %49 = arith.cmpi eq, %47, %48 : vector<136x128xi32>
    %cst_36 = arith.constant -1.000000e+30 : f32
    %50 = vector.broadcast %cst_36 : f32 to vector<4x128xf32>
    %c0_37 = arith.constant 0 : index
    %c0_38 = arith.constant 0 : index
    %51 = vector.load %arg6[%c0_37, %c0_38] : memref<136x128xf32, #tpu.memory_space<vmem>>, vector<136x128xf32>
    %52 = vector.extract_strided_slice %51 {offsets = [0, 0], sizes = [132, 128], strides = [1, 1]} : vector<136x128xf32> to vector<132x128xf32>
    %53 = tpu.concatenate %50, %52 in 0 : vector<4x128xf32>, vector<132x128xf32> -> vector<136x128xf32>
    %54 = arith.select %49, %53, %51 : vector<136x128xi1>, vector<136x128xf32>
    %c0_39 = arith.constant 0 : index
    %c0_40 = arith.constant 0 : index
    %55 = vector.load %arg6[%c0_39, %c0_40] : memref<136x128xf32, #tpu.memory_space<vmem>>, vector<136x128xf32>
    tpu.vector_store %arg6[%c0_39, %c0_40], %54 {strides = array<i32>} : memref<136x128xf32, #tpu.memory_space<vmem>>, vector<136x128xf32>,
    %c0_41 = arith.constant 0 : index
    %c0_42 = arith.constant 0 : index
    %56 = vector.load %arg7[%c0_41, %c0_42] : memref<136x128xf32, #tpu.memory_space<vmem>>, vector<136x128xf32>
    %57 = vector.extract_strided_slice %56 {offsets = [0, 0], sizes = [132, 128], strides = [1, 1]} : vector<136x128xf32> to vector<132x128xf32>
    %58 = tpu.concatenate %50, %57 in 0 : vector<4x128xf32>, vector<132x128xf32> -> vector<136x128xf32>
    %59 = arith.select %49, %58, %56 : vector<136x128xi1>, vector<136x128xf32>
    %c0_43 = arith.constant 0 : index
    %c0_44 = arith.constant 0 : index
    %60 = vector.load %arg7[%c0_43, %c0_44] : memref<136x128xf32, #tpu.memory_space<vmem>>, vector<136x128xf32>
    tpu.vector_store %arg7[%c0_43, %c0_44], %59 {strides = array<i32>} : memref<136x128xf32, #tpu.memory_space<vmem>>, vector<136x128xf32>,
    %c3_i32 = arith.constant 3 : i32
    %61 = vector.broadcast %c3_i32 : i32 to vector<136x128xi32>
    %62 = arith.shrsi %9, %61 : vector<136x128xi32>
    %c1_i32_45 = arith.constant 1 : i32
    %63 = vector.broadcast %c1_i32_45 : i32 to vector<136x128xi32>
    %64 = arith.andi %62, %63 : vector<136x128xi32>
    %c1_i32_46 = arith.constant 1 : i32
    %65 = vector.broadcast %c1_i32_46 : i32 to vector<136x128xi32>
    %66 = arith.cmpi eq, %64, %65 : vector<136x128xi32>
    %cst_47 = arith.constant -1.000000e+30 : f32
    %67 = vector.broadcast %cst_47 : f32 to vector<8x128xf32>
    %c0_48 = arith.constant 0 : index
    %c0_49 = arith.constant 0 : index
    %68 = vector.load %arg6[%c0_48, %c0_49] : memref<136x128xf32, #tpu.memory_space<vmem>>, vector<136x128xf32>
    %69 = vector.extract_strided_slice %68 {offsets = [0, 0], sizes = [128, 128], strides = [1, 1]} : vector<136x128xf32> to vector<128x128xf32>
    %70 = tpu.concatenate %67, %69 in 0 : vector<8x128xf32>, vector<128x128xf32> -> vector<136x128xf32>
    %71 = arith.select %66, %70, %68 : vector<136x128xi1>, vector<136x128xf32>
    %c0_50 = arith.constant 0 : index
    %c0_51 = arith.constant 0 : index
    %72 = vector.load %arg6[%c0_50, %c0_51] : memref<136x128xf32, #tpu.memory_space<vmem>>, vector<136x128xf32>
    tpu.vector_store %arg6[%c0_50, %c0_51], %71 {strides = array<i32>} : memref<136x128xf32, #tpu.memory_space<vmem>>, vector<136x128xf32>,
    %c0_52 = arith.constant 0 : index
    %c0_53 = arith.constant 0 : index
    %73 = vector.load %arg7[%c0_52, %c0_53] : memref<136x128xf32, #tpu.memory_space<vmem>>, vector<136x128xf32>
    %74 = vector.extract_strided_slice %73 {offsets = [0, 0], sizes = [128, 128], strides = [1, 1]} : vector<136x128xf32> to vector<128x128xf32>
    %75 = tpu.concatenate %67, %74 in 0 : vector<8x128xf32>, vector<128x128xf32> -> vector<136x128xf32>
    %76 = arith.select %66, %75, %73 : vector<136x128xi1>, vector<136x128xf32>
    %c0_54 = arith.constant 0 : index
    %c0_55 = arith.constant 0 : index
    %77 = vector.load %arg7[%c0_54, %c0_55] : memref<136x128xf32, #tpu.memory_space<vmem>>, vector<136x128xf32>
    tpu.vector_store %arg7[%c0_54, %c0_55], %76 {strides = array<i32>} : memref<136x128xf32, #tpu.memory_space<vmem>>, vector<136x128xf32>,
    %c4_i32 = arith.constant 4 : i32
    %78 = vector.broadcast %c4_i32 : i32 to vector<136x128xi32>
    %79 = arith.shrsi %9, %78 : vector<136x128xi32>
    %c1_i32_56 = arith.constant 1 : i32
    %80 = vector.broadcast %c1_i32_56 : i32 to vector<136x128xi32>
    %81 = arith.andi %79, %80 : vector<136x128xi32>
    %c1_i32_57 = arith.constant 1 : i32
    %82 = vector.broadcast %c1_i32_57 : i32 to vector<136x128xi32>
    %83 = arith.cmpi eq, %81, %82 : vector<136x128xi32>
    %cst_58 = arith.constant -1.000000e+30 : f32
    %84 = vector.broadcast %cst_58 : f32 to vector<16x128xf32>
    %c0_59 = arith.constant 0 : index
    %c0_60 = arith.constant 0 : index
    %85 = vector.load %arg6[%c0_59, %c0_60] : memref<136x128xf32, #tpu.memory_space<vmem>>, vector<136x128xf32>
    %86 = vector.extract_strided_slice %85 {offsets = [0, 0], sizes = [120, 128], strides = [1, 1]} : vector<136x128xf32> to vector<120x128xf32>
    %87 = tpu.concatenate %84, %86 in 0 : vector<16x128xf32>, vector<120x128xf32> -> vector<136x128xf32>
    %88 = arith.select %83, %87, %85 : vector<136x128xi1>, vector<136x128xf32>
    %c0_61 = arith.constant 0 : index
    %c0_62 = arith.constant 0 : index
    %89 = vector.load %arg6[%c0_61, %c0_62] : memref<136x128xf32, #tpu.memory_space<vmem>>, vector<136x128xf32>
    tpu.vector_store %arg6[%c0_61, %c0_62], %88 {strides = array<i32>} : memref<136x128xf32, #tpu.memory_space<vmem>>, vector<136x128xf32>,
    %c0_63 = arith.constant 0 : index
    %c0_64 = arith.constant 0 : index
    %90 = vector.load %arg7[%c0_63, %c0_64] : memref<136x128xf32, #tpu.memory_space<vmem>>, vector<136x128xf32>
    %91 = vector.extract_strided_slice %90 {offsets = [0, 0], sizes = [120, 128], strides = [1, 1]} : vector<136x128xf32> to vector<120x128xf32>
    %92 = tpu.concatenate %84, %91 in 0 : vector<16x128xf32>, vector<120x128xf32> -> vector<136x128xf32>
    %93 = arith.select %83, %92, %90 : vector<136x128xi1>, vector<136x128xf32>
    %c0_65 = arith.constant 0 : index
    %c0_66 = arith.constant 0 : index
    %94 = vector.load %arg7[%c0_65, %c0_66] : memref<136x128xf32, #tpu.memory_space<vmem>>, vector<136x128xf32>
    tpu.vector_store %arg7[%c0_65, %c0_66], %93 {strides = array<i32>} : memref<136x128xf32, #tpu.memory_space<vmem>>, vector<136x128xf32>,
    %c5_i32 = arith.constant 5 : i32
    %95 = vector.broadcast %c5_i32 : i32 to vector<136x128xi32>
    %96 = arith.shrsi %9, %95 : vector<136x128xi32>
    %c1_i32_67 = arith.constant 1 : i32
    %97 = vector.broadcast %c1_i32_67 : i32 to vector<136x128xi32>
    %98 = arith.andi %96, %97 : vector<136x128xi32>
    %c1_i32_68 = arith.constant 1 : i32
    %99 = vector.broadcast %c1_i32_68 : i32 to vector<136x128xi32>
    %100 = arith.cmpi eq, %98, %99 : vector<136x128xi32>
    %cst_69 = arith.constant -1.000000e+30 : f32
    %101 = vector.broadcast %cst_69 : f32 to vector<32x128xf32>
    %c0_70 = arith.constant 0 : index
    %c0_71 = arith.constant 0 : index
    %102 = vector.load %arg6[%c0_70, %c0_71] : memref<136x128xf32, #tpu.memory_space<vmem>>, vector<136x128xf32>
    %103 = vector.extract_strided_slice %102 {offsets = [0, 0], sizes = [104, 128], strides = [1, 1]} : vector<136x128xf32> to vector<104x128xf32>
    %104 = tpu.concatenate %101, %103 in 0 : vector<32x128xf32>, vector<104x128xf32> -> vector<136x128xf32>
    %105 = arith.select %100, %104, %102 : vector<136x128xi1>, vector<136x128xf32>
    %c0_72 = arith.constant 0 : index
    %c0_73 = arith.constant 0 : index
    %106 = vector.load %arg6[%c0_72, %c0_73] : memref<136x128xf32, #tpu.memory_space<vmem>>, vector<136x128xf32>
    tpu.vector_store %arg6[%c0_72, %c0_73], %105 {strides = array<i32>} : memref<136x128xf32, #tpu.memory_space<vmem>>, vector<136x128xf32>,
    %c0_74 = arith.constant 0 : index
    %c0_75 = arith.constant 0 : index
    %107 = vector.load %arg7[%c0_74, %c0_75] : memref<136x128xf32, #tpu.memory_space<vmem>>, vector<136x128xf32>
    %108 = vector.extract_strided_slice %107 {offsets = [0, 0], sizes = [104, 128], strides = [1, 1]} : vector<136x128xf32> to vector<104x128xf32>
    %109 = tpu.concatenate %101, %108 in 0 : vector<32x128xf32>, vector<104x128xf32> -> vector<136x128xf32>
    %110 = arith.select %100, %109, %107 : vector<136x128xi1>, vector<136x128xf32>
    %c0_76 = arith.constant 0 : index
    %c0_77 = arith.constant 0 : index
    %111 = vector.load %arg7[%c0_76, %c0_77] : memref<136x128xf32, #tpu.memory_space<vmem>>, vector<136x128xf32>
    tpu.vector_store %arg7[%c0_76, %c0_77], %110 {strides = array<i32>} : memref<136x128xf32, #tpu.memory_space<vmem>>, vector<136x128xf32>,
    %c6_i32 = arith.constant 6 : i32
    %112 = vector.broadcast %c6_i32 : i32 to vector<136x128xi32>
    %113 = arith.shrsi %9, %112 : vector<136x128xi32>
    %c1_i32_78 = arith.constant 1 : i32
    %114 = vector.broadcast %c1_i32_78 : i32 to vector<136x128xi32>
    %115 = arith.andi %113, %114 : vector<136x128xi32>
    %c1_i32_79 = arith.constant 1 : i32
    %116 = vector.broadcast %c1_i32_79 : i32 to vector<136x128xi32>
    %117 = arith.cmpi eq, %115, %116 : vector<136x128xi32>
    %cst_80 = arith.constant -1.000000e+30 : f32
    %118 = vector.broadcast %cst_80 : f32 to vector<64x128xf32>
    %c0_81 = arith.constant 0 : index
    %c0_82 = arith.constant 0 : index
    %119 = vector.load %arg6[%c0_81, %c0_82] : memref<136x128xf32, #tpu.memory_space<vmem>>, vector<136x128xf32>
    %120 = vector.extract_strided_slice %119 {offsets = [0, 0], sizes = [72, 128], strides = [1, 1]} : vector<136x128xf32> to vector<72x128xf32>
    %121 = tpu.concatenate %118, %120 in 0 : vector<64x128xf32>, vector<72x128xf32> -> vector<136x128xf32>
    %122 = arith.select %117, %121, %119 : vector<136x128xi1>, vector<136x128xf32>
    %c0_83 = arith.constant 0 : index
    %c0_84 = arith.constant 0 : index
    %123 = vector.load %arg6[%c0_83, %c0_84] : memref<136x128xf32, #tpu.memory_space<vmem>>, vector<136x128xf32>
    tpu.vector_store %arg6[%c0_83, %c0_84], %122 {strides = array<i32>} : memref<136x128xf32, #tpu.memory_space<vmem>>, vector<136x128xf32>,
    %c0_85 = arith.constant 0 : index
    %c0_86 = arith.constant 0 : index
    %124 = vector.load %arg7[%c0_85, %c0_86] : memref<136x128xf32, #tpu.memory_space<vmem>>, vector<136x128xf32>
    %125 = vector.extract_strided_slice %124 {offsets = [0, 0], sizes = [72, 128], strides = [1, 1]} : vector<136x128xf32> to vector<72x128xf32>
    %126 = tpu.concatenate %118, %125 in 0 : vector<64x128xf32>, vector<72x128xf32> -> vector<136x128xf32>
    %127 = arith.select %117, %126, %124 : vector<136x128xi1>, vector<136x128xf32>
    %c0_87 = arith.constant 0 : index
    %c0_88 = arith.constant 0 : index
    %128 = vector.load %arg7[%c0_87, %c0_88] : memref<136x128xf32, #tpu.memory_space<vmem>>, vector<136x128xf32>
    tpu.vector_store %arg7[%c0_87, %c0_88], %127 {strides = array<i32>} : memref<136x128xf32, #tpu.memory_space<vmem>>, vector<136x128xf32>,
    %129 = arith.index_cast %arg0 : i32 to index
    %130 = memref.load %arg1[%129] : memref<2xi32, #tpu.memory_space<smem>>
    %131 = arith.index_cast %arg0 : i32 to index
    %132 = memref.load %arg2[%131] : memref<2xi32, #tpu.memory_space<smem>>
    %c1_i32_89 = arith.constant 1 : i32
    %133 = arith.subi %130, %c1_i32_89 : i32
    %134 = arith.addi %133, %132 : i32
    %135 = tpu.iota {dimensions = array<i32: 1>} : vector<1x128xi32>
    %c0_i32_90 = arith.constant 0 : i32
    %136 = vector.broadcast %c0_i32_90 : i32 to vector<1x128xi32>
    %137 = arith.cmpi eq, %135, %136 : vector<1x128xi32>
    %cst_91 = arith.constant 0.000000e+00 : f32
    %138 = vector.broadcast %cst_91 : f32 to vector<1x128xf32>
    %cst_92 = arith.constant -1.000000e+30 : f32
    %139 = vector.broadcast %cst_92 : f32 to vector<1x128xf32>
    %140 = arith.select %137, %138, %139 : vector<1x128xi1>, vector<1x128xf32>
    %c0_i32_93 = arith.constant 0 : i32
    %141 = arith.cmpi eq, %134, %c0_i32_93 : i32
    %cst_94 = arith.constant 0.000000e+00 : f32
    %cst_95 = arith.constant -1.000000e+30 : f32
    %142 = arith.select %141, %cst_94, %cst_95 : f32
    %c1_i32_96 = arith.constant 1 : i32
    %c134_i32 = arith.constant 134 : i32
    %143 = arith.addi %c1_i32_96, %c134_i32 : i32
    %c1_i32_97 = arith.constant 1 : i32
    %144:2 = scf.for %arg8 = %c1_i32_96 to %143 step %c1_i32_97 iter_args(%arg9 = %140, %arg10 = %142) -> (vector<1x128xf32>, f32)  : i32 {
      %c1_i32_106 = arith.constant 1 : i32
      %159 = arith.subi %arg8, %c1_i32_106 : i32
      %160 = arith.index_cast %159 : i32 to index
      %c0_107 = arith.constant 0 : index
      %161 = vector.load %arg6[%160, %c0_107] : memref<136x128xf32, #tpu.memory_space<vmem>>, vector<1x128xf32>
      %c1_i32_108 = arith.constant 1 : i32
      %162 = arith.subi %arg8, %c1_i32_108 : i32
      %163 = arith.index_cast %162 : i32 to index
      %c0_109 = arith.constant 0 : index
      %164 = vector.load %arg7[%163, %c0_109] : memref<136x128xf32, #tpu.memory_space<vmem>>, vector<1x128xf32>
      %165 = arith.addf %arg9, %161 : vector<1x128xf32>
      %166 = arith.addf %arg9, %164 : vector<1x128xf32>
      %c1_i32_110 = arith.constant 1 : i32
      %167 = tpu.dynamic_rotate %166 by %c1_i32_110 dim 1 : vector<1x128xf32>, i32 -> vector<1x128xf32>
      %c0_i32_111 = arith.constant 0 : i32
      %168 = vector.broadcast %c0_i32_111 : i32 to vector<1x128xi32>
      %169 = arith.cmpi eq, %135, %168 : vector<1x128xi32>
      %cst_112 = arith.constant -1.000000e+30 : f32
      %170 = vector.broadcast %cst_112 : f32 to vector<1x128xf32>
      %171 = arith.select %169, %170, %167 : vector<1x128xi1>, vector<1x128xf32>
      %172 = arith.maximumf %165, %171 : vector<1x128xf32>
      %173 = arith.subf %165, %172 : vector<1x128xf32>
      %174 = math.exp %173 : vector<1x128xf32>
      %175 = arith.subf %171, %172 : vector<1x128xf32>
      %176 = math.exp %175 : vector<1x128xf32>
      %177 = arith.addf %174, %176 : vector<1x128xf32>
      %178 = math.log %177 : vector<1x128xf32>
      %179 = arith.addf %172, %178 : vector<1x128xf32>
      %180 = vector.broadcast %132 : i32 to vector<1x128xi32>
      %181 = arith.cmpi eq, %135, %180 : vector<1x128xi32>
      %cst_113 = arith.constant -1.000000e+30 : f32
      %182 = vector.broadcast %cst_113 : f32 to vector<1x128xf32>
      %183 = arith.select %181, %179, %182 : vector<1x128xi1>, vector<1x128xf32>
      %184 = vector.shape_cast %183 : vector<1x128xf32> to vector<1x1x128xf32>
      %cst_114 = arith.constant dense<0xFF800000> : vector<1xf32>
      %185 = vector.multi_reduction <maximumf>, %184, %cst_114 [1, 2] : vector<1x1x128xf32> to vector<1xf32>
      %186 = vector.shape_cast %185 : vector<1xf32> to vector<1x1x1xf32>
      %187 = vector.extract %186[0, 0, 0] : f32 from vector<1x1x1xf32>
      %188 = arith.cmpi eq, %arg8, %134 : i32
      %189 = arith.select %188, %187, %arg10 : f32
      scf.yield %179, %189 : vector<1x128xf32>, f32
    }
    %c134_i32_98 = arith.constant 134 : i32
    %145 = arith.index_cast %134 : i32 to index
    %c0_99 = arith.constant 0 : index
    %146 = vector.load %arg6[%145, %c0_99] : memref<136x128xf32, #tpu.memory_space<vmem>>, vector<1x128xf32>
    %147 = vector.broadcast %132 : i32 to vector<1x128xi32>
    %148 = arith.cmpi eq, %135, %147 : vector<1x128xi32>
    %cst_100 = arith.constant -1.000000e+30 : f32
    %149 = vector.broadcast %cst_100 : f32 to vector<1x128xf32>
    %150 = arith.select %148, %146, %149 : vector<1x128xi1>, vector<1x128xf32>
    %151 = vector.shape_cast %150 : vector<1x128xf32> to vector<1x1x128xf32>
    %cst_101 = arith.constant dense<0xFF800000> : vector<1xf32>
    %152 = vector.multi_reduction <maximumf>, %151, %cst_101 [1, 2] : vector<1x1x128xf32> to vector<1xf32>
    %153 = vector.shape_cast %152 : vector<1xf32> to vector<1x1x1xf32>
    %154 = vector.extract %153[0, 0, 0] : f32 from vector<1x1x1xf32>
    %155 = arith.addf %144#1, %154 : f32
    %cst_102 = arith.constant 0.000000e+00 : f32
    %156 = arith.subf %cst_102, %155 : f32
    %157 = vector.broadcast %156 : f32 to vector<1x1x128xf32>
    %c0_103 = arith.constant 0 : index
    %c0_104 = arith.constant 0 : index
    %c0_105 = arith.constant 0 : index
    %158 = vector.load %arg5[%c0_103, %c0_104, %c0_105] : memref<1x1x128xf32, #tpu.memory_space<vmem>>, vector<1x1x128xf32>
    tpu.vector_store %arg5[%c0_103, %c0_104, %c0_105], %157 {strides = array<i32>} : memref<1x1x128xf32, #tpu.memory_space<vmem>>, vector<1x1x128xf32>,
    return
  }
  func.func @transform_0(%arg0: i32, %arg1: memref<2xi32, #tpu.memory_space<smem>>, %arg2: memref<2xi32, #tpu.memory_space<smem>>) -> (i32, i32, i32) {
    %c0_i32 = arith.constant 0 : i32
    %c0_i32_0 = arith.constant 0 : i32
    %c0_i32_1 = arith.constant 0 : i32
    return %arg0, %c0_i32, %c0_i32_0 : i32, i32, i32
  }
  func.func @transform_1(%arg0: i32, %arg1: memref<2xi32, #tpu.memory_space<smem>>, %arg2: memref<2xi32, #tpu.memory_space<smem>>) -> (i32, i32, i32) {
    %c0_i32 = arith.constant 0 : i32
    %c0_i32_0 = arith.constant 0 : i32
    %c0_i32_1 = arith.constant 0 : i32
    return %arg0, %c0_i32, %c0_i32_0 : i32, i32, i32
  }
  func.func @transform_2(%arg0: i32, %arg1: memref<2xi32, #tpu.memory_space<smem>>, %arg2: memref<2xi32, #tpu.memory_space<smem>>) -> (i32, i32, i32) {
    %c0_i32 = arith.constant 0 : i32
    %c0_i32_0 = arith.constant 0 : i32
    %c0_i32_1 = arith.constant 0 : i32
    return %arg0, %c0_i32, %c0_i32_0 : i32, i32, i32
  }
}

</mosaic_0001>

<llo_original>
// kernel: transducer_forward.4
$region0: #{transducer_forward.4}
  #allocation0 [shape = 'u32[]', space=smem, size = 0x4, offset = 0x4, fixed_abs, tag = 'smem constant byte address 0x4 - core index']
  #allocation1 [shape = 'u32[144,128]{1,0:T(1,128)}', space=vmem, size = 0x12000, scoped, tag = 'internal scratch']
  %s0 = inlined_call_operand.vmem [shape: f32[2,8,16], index: 0, kind: input, shape index: {}]
  %s1 = inlined_call_operand.vmem [shape: bf16[16,128], index: 1, kind: input, shape index: {}]
  %s2 = inlined_call_operand.vmem [shape: f32[1,128], index: 2, kind: input, shape index: {}]
  %s3 = inlined_call_operand.vmem [shape: bf16[2,8,128], index: 3, kind: output, shape index: {}]
  %s4 = sld [smem:[#allocation0]]
  $region45: #{transducer_forward.4} parent=0
    _
  %s6 = ssub.s32 1, %s4
  %s7 = scalar_select 0, %s6, %s4
  loop: start=0, step=1, limit=4
  $region2: #{transducer_forward.4} parent=0 // loop_pre_header
    _
  $region3: #{transducer_forward.4} parent=0 // loop_header
    %s9 = sphi 0, %s13
    %p10 = scmp.ge.s32.totalorder %s9, 4
    %s16 = sphi 0, %s28
    %s17 = sphi 0, %s24
    %s18 = sphi 0, %s16
    %s19 = sphi 0, %s17
    %s20 = sphi 0, %s18
    %s21 = sphi 0, %s19
    %s33 = sphi 0, %s35
    %s36 = sphi 0, %s33
    %s37 = sphi 0, %s36
    %s53 = sphi 0, %s37
    %s57 = sphi 0, %s57
    %s59 = sphi 0, %s57
    %s60 = sphi 0, %s59
    %s74 = sphi 0, %s60
    %s78 = sphi 0, %s78
    %s80 = sphi 0, %s78
    %s81 = sphi 0, %s80
    %s95 = sphi 0, %s81
    %s103 = sphi 0, %s105
    %s106 = sphi 0, %s103
    %s107 = sphi 0, %s106
    %s123 = sphi 0, %s107
  $region4: #{transducer_forward.4} parent=0 // loop_header_branch
    %12 = sbr.rel (%p10) target = $region8
  $region5: #{transducer_forward.4} parent=0 // loop_body
    %s14 = ssub.s32 %s9, 1
    %s15 = ssub.s32 %s9, 2
    %s22 = sadd.s32 1, %s17
    %p23 = scmp.ge.s32.totalorder %s22, 1
    %s24 = scalar_select %p23, 0, %s22
    %s25 = sadd.s32 1, %s16
    %s26 = scalar_select %p23, %s25, %s16
    %p27 = scmp.ge.s32.totalorder %s26, 2
    %s28 = scalar_select %p27, 0, %s26
    %s29 = ssub.s32 %s16, %s28
    %s30 = ssub.s32 %s17, %s24
    %s31 = sor.u32 %s29, %s30
    %p32 = scmp.eq.s32.totalorder %s31, 0
    %s34 = sadd.s32 %s33, 1
    %s35 = scalar_select %p32, %s33, %s34
    %p38 = pneg %p32
    %p39 = scmp.eq.s32.totalorder %s9, 1
    %p40 = por %p38, %p39
    %p41 = scmp.ne.s32.totalorder %s33, %s36
    %p42 = scmp.eq.s32.totalorder %s9, 0
    %p43 = por %p41, %p42
    %p44 = scmp.ne.s32.totalorder %s33, %s36
    %p45 = scmp.eq.s32.totalorder %s14, 1
    %p46 = por %p44, %p45
    %p47 = scmp.ne.s32.totalorder %s36, %s37
    %p48 = scmp.eq.s32.totalorder %s14, 0
    %p49 = por %p47, %p48
    %p50 = scmp.ne.s32.totalorder %s36, %s37
    %p51 = scmp.eq.s32.totalorder %s15, 1
    %p52 = por %p50, %p51
    %p54 = scmp.ne.s32.totalorder %s37, %s53
    %p55 = scmp.eq.s32.totalorder %s15, 0
    %p56 = por %p54, %p55
    %s58 = sadd.s32 %s57, 1
    %p61 = scmp.eq.s32.totalorder %s9, 1
    %p62 = scmp.ne.s32.totalorder %s57, %s59
    %p63 = scmp.eq.s32.totalorder %s9, 0
    %p64 = por %p62, %p63
    %p65 = scmp.ne.s32.totalorder %s57, %s59
    %p66 = scmp.eq.s32.totalorder %s14, 1
    %p67 = por %p65, %p66
    %p68 = scmp.ne.s32.totalorder %s59, %s60
    %p69 = scmp.eq.s32.totalorder %s14, 0
    %p70 = por %p68, %p69
    %p71 = scmp.ne.s32.totalorder %s59, %s60
    %p72 = scmp.eq.s32.totalorder %s15, 1
    %p73 = por %p71, %p72
    %p75 = scmp.ne.s32.totalorder %s60, %s74
    %p76 = scmp.eq.s32.totalorder %s15, 0
    %p77 = por %p75, %p76
    %s79 = sadd.s32 %s78, 1
    %p82 = scmp.eq.s32.totalorder %s9, 1
    %p83 = scmp.ne.s32.totalorder %s78, %s80
    %p84 = scmp.eq.s32.totalorder %s9, 0
    %p85 = por %p83, %p84
    %p86 = scmp.ne.s32.totalorder %s78, %s80
    %p87 = scmp.eq.s32.totalorder %s14, 1
    %p88 = por %p86, %p87
    %p89 = scmp.ne.s32.totalorder %s80, %s81
    %p90 = scmp.eq.s32.totalorder %s14, 0
    %p91 = por %p89, %p90
    %p92 = scmp.ne.s32.totalorder %s80, %s81
    %p93 = scmp.eq.s32.totalorder %s15, 1
    %p94 = por %p92, %p93
    %p96 = scmp.ne.s32.totalorder %s81, %s95
    %p97 = scmp.eq.s32.totalorder %s15, 0
    %p98 = por %p96, %p97
    %s99 = ssub.s32 %s16, %s28
    %s100 = ssub.s32 %s17, %s24
    %s101 = sor.u32 %s99, %s100
    %p102 = scmp.eq.s32.totalorder %s101, 0
    %s104 = sadd.s32 %s103, 1
    %s105 = scalar_select %p102, %s103, %s104
    %p108 = pneg %p102
    %p109 = scmp.eq.s32.totalorder %s9, 1
    %p110 = por %p108, %p109
    %p111 = scmp.ne.s32.totalorder %s103, %s106
    %p112 = scmp.eq.s32.totalorder %s9, 0
    %p113 = por %p111, %p112
    %p114 = scmp.ne.s32.totalorder %s103, %s106
    %p115 = scmp.eq.s32.totalorder %s14, 1
    %p116 = por %p114, %p115
    %p117 = scmp.ne.s32.totalorder %s106, %s107
    %p118 = scmp.eq.s32.totalorder %s14, 0
    %p119 = por %p117, %p118
    %p120 = scmp.ne.s32.totalorder %s106, %s107
    %p121 = scmp.eq.s32.totalorder %s15, 1
    %p122 = por %p120, %p121
    %p124 = scmp.ne.s32.totalorder %s107, %s123
    %p125 = scmp.eq.s32.totalorder %s15, 0
    %p126 = por %p124, %p125
    %p127 = scmp.le.s32.totalorder 1, %s9
    %p128 = scmp.lt.s32.totalorder %s9, 3
    %p129 = pnand %p127, %p128
    %p130 = pneg %p129
    // Predicated region
    $region9: #{transducer_forward.4} parent=5 // pred_check
      _
    $region10: #{transducer_forward.4} parent=5 // pred_check_branch
      %132 = sbr.rel (%p129) target = $region12
    $region11: #{transducer_forward.4} parent=5 // pred_region
      %s133 = ssub.s32 %s9, 1
      // Predicated region
      $region13: #{transducer_forward.4} parent=11 // pred_check
        %p134 = pneg %p70
      $region14: #{transducer_forward.4} parent=11 // pred_check_branch
        %136 = sbr.rel (%p134) target = $region16
      $region15: #{transducer_forward.4} parent=11 // pred_region
        _
      $region16: #{transducer_forward.4} parent=11 // pred_fallthru
        _
      // Predicated region
      $region17: #{transducer_forward.4} parent=11 // pred_check
        %p137 = pneg %p91
      $region18: #{transducer_forward.4} parent=11 // pred_check_branch
        %139 = sbr.rel (%p137) target = $region20
      $region19: #{transducer_forward.4} parent=11 // pred_region
        _
      $region20: #{transducer_forward.4} parent=11 // pred_fallthru
        _
    $region12: #{transducer_forward.4} parent=5 // pred_fallthru
      _
    %p140 = scmp.lt.s32.totalorder %s9, 2
    // Predicated region
    $region21: #{transducer_forward.4} parent=5 // pred_check
      %p141 = pneg %p140
    $region22: #{transducer_forward.4} parent=5 // pred_check_branch
      %143 = sbr.rel (%p141) target = $region24
    $region23: #{transducer_forward.4} parent=5 // pred_region
      // Predicated region
      $region25: #{transducer_forward.4} parent=23 // pred_check
        %p144 = pneg %p43
      $region26: #{transducer_forward.4} parent=23 // pred_check_branch
        %146 = sbr.rel (%p144) target = $region28
      $region27: #{transducer_forward.4} parent=23 // pred_region
        %p147 = scmp.lt.s32.totalorder %s16, 1
        %s148 = scalar_select %p147, %s16, 1
        %p149 = scmp.lt.s32.totalorder %s17, 0
        %s150 = scalar_select %p149, %s17, 0
        %s151 = sadd.s32 %s150, %s148
        %s152 = smul.addr %s151, 8
        %s153 = scalar_lea.vmem %s0, %s152
      $region28: #{transducer_forward.4} parent=23 // pred_fallthru
        _
    $region24: #{transducer_forward.4} parent=5 // pred_fallthru
      _
    %p154 = scmp.le.s32.totalorder 1, %s9
    %p155 = scmp.lt.s32.totalorder %s9, 3
    %p156 = pnand %p154, %p155
    %p157 = pneg %p156
    // Predicated region
    $region29: #{transducer_forward.4} parent=5 // pred_check
      _
    $region30: #{transducer_forward.4} parent=5 // pred_check_branch
      %159 = sbr.rel (%p156) target = $region32
    $region31: #{transducer_forward.4} parent=5 // pred_region
      %s160 = ssub.s32 %s9, 1
      %p161 = scmp.lt.s32.totalorder %s18, 1
      %s162 = scalar_select %p161, %s18, 1
      %p163 = scmp.lt.s32.totalorder %s19, 0
      %s164 = scalar_select %p163, %s19, 0
      %s165 = sadd.s32 %s164, %s162
      %s166 = smul.addr %s165, 8
      %s167 = scalar_lea.vmem %s0, %s166
      %p168 = pneg %p49
      %p169 = pneg %p46
      %p170 = pneg %p70
      %p171 = pneg %p67
      %p172 = pneg %p91
      %p173 = pneg %p88
      %p174 = pneg %p119
      %p175 = pneg %p116
      %p176 = scmp.lt.s32.totalorder %s18, 1
      %s177 = scalar_select %p176, %s18, 1
      %p178 = scmp.lt.s32.totalorder %s19, 0
      %s179 = scalar_select %p178, %s19, 0
      %s180 = sadd.s32 %s179, %s177
      %s181 = smul.addr %s180, 4
      %s182 = scalar_lea.vmem %s3, %s181
      %p183 = scmp.lt.s32.totalorder %s18, 1
      %s184 = scalar_select %p183, %s18, 1
      %p185 = scmp.lt.s32.totalorder %s19, 0
      %s186 = scalar_select %p185, %s19, 0
      %s187 = sadd.s32 %s186, %s184
      %s188 = smul.addr %s187, 8
      %s189 = scalar_lea.vmem %s0, %s188
      %p190 = scmp.lt.s32.totalorder %s18, 1
      %s191 = scalar_select %p190, %s18, 1
      %p192 = scmp.lt.s32.totalorder %s19, 0
      %s193 = scalar_select %p192, %s19, 0
      %s194 = sadd.s32 %s193, %s191
      %s195 = smul.addr %s194, 4
      %s196 = scalar_lea.vmem %s3, %s195
      %v198 = vld [vmem:[%s189] sm:$0xff]
      %v199 = vpack.c.bf16 %v198, %v198
      %v200 = vld [vmem:[%s1] sm:$0xf]
      %v201 = vld [vmem:[%s1 + $0x4] sm:$0xf]
      %v202 = vld [vmem:[%s2] sm:$0x1]
      %v204 = vlaneseq
      %v205 = vshrl.u32 %v204, 7
      %v206 = vsub.s32 0, %v205
      %v207 = vrot.slane %v202, %v206
      %v211 = vunpack.c.l.b16 %v200
      %v212 = vunpack.c.l.b16 %v201
      %v213 = vpack.c.b16 %v212, %v211
      %vm215 = vcmask 130048
      %v217 = vsel %vm215, %v199, 0
      %219 = vmatprep.subr.bf16.mxu0 0
      %220 = vmatpush1.bf16.msra.mxu0 %v213
      %221 = vmatprep.subr.bf16.mxu0 0
      %222 = vmatpush1.bf16.msra.mxu0 0
      %223 = vmatprep.subr.bf16.mxu0 0
      %224 = vmatpush1.bf16.msra.mxu0 0
      %225 = vmatprep.subr.bf16.mxu0 0
      %226 = vmatpush1.bf16.msra.mxu0 0
      %227 = vmatprep.subr.bf16.mxu0 0
      %228 = vmatpush1.bf16.msra.mxu0 0
      %229 = vmatprep.subr.bf16.mxu0 0
      %230 = vmatpush1.bf16.msra.mxu0 0
      %231 = vmatprep.subr.bf16.mxu0 0
      %232 = vmatpush1.bf16.msra.mxu0 0
      %233 = vmatprep.subr.bf16.mxu0 0
      %234 = vmatpush1.bf16.msra.mxu0 0
      %235 = vmatprep.subr.bf16.mxu0 0
      %236 = vmatpush1.bf16.msra.mxu0 0
      %237 = vmatprep.subr.bf16.mxu0 0
      %238 = vmatpush1.bf16.msra.mxu0 0
      %239 = vmatprep.subr.bf16.mxu0 0
      %240 = vmatpush1.bf16.msra.mxu0 0
      %241 = vmatprep.subr.bf16.mxu0 0
      %242 = vmatpush1.bf16.msra.mxu0 0
      %243 = vmatprep.subr.bf16.mxu0 0
      %244 = vmatpush1.bf16.msra.mxu0 0
      %245 = vmatprep.subr.bf16.mxu0 0
      %246 = vmatpush1.bf16.msra.mxu0 0
      %247 = vmatprep.subr.bf16.mxu0 0
      %248 = vmatpush1.bf16.msra.mxu0 0
      %249 = vmatprep.subr.bf16.mxu0 0
      %250 = vmatpush1.bf16.msra.mxu0 0
      %251 = vmatprep.mubr.bf16.mxu0 0
      %252 = vmatmul.mubr.bf16.gmra.mrb[0].mxu0 %v217
      %v253 = vpop.f32.mrb[0].mxu0
      %v254 = vadd.f32 %v207, %v253
      %v255 = vpop.f32.mrb[0].mxu0
      %v256 = vpop.f32.mrb[0].mxu0
      %v257 = vpop.f32.mrb[0].mxu0
      %258 = vdwg.mxu0
      %v259 = vpack.c.bf16 %v254, %v254
      %260 = vst [vmem:[%s196] sm:$0xf] %v259
      %p261 = scmp.lt.s32.totalorder %s18, 1
      %s262 = scalar_select %p261, %s18, 1
      %p263 = scmp.lt.s32.totalorder %s19, 0
      %s264 = scalar_select %p263, %s19, 0
      %s265 = sadd.s32 %s264, %s262
      %s266 = smul.addr %s265, 4
      %s267 = scalar_lea.vmem %s3, %s266
      // Predicated region
      $region33: #{transducer_forward.4} parent=31 // pred_check
        %p268 = pneg %p116
      $region34: #{transducer_forward.4} parent=31 // pred_check_branch
        %270 = sbr.rel (%p268) target = $region36
      $region35: #{transducer_forward.4} parent=31 // pred_region
        _
      $region36: #{transducer_forward.4} parent=31 // pred_fallthru
        _
    $region32: #{transducer_forward.4} parent=5 // pred_fallthru
      _
    %p271 = scmp.le.s32.totalorder 2, %s9
    // Predicated region
    $region37: #{transducer_forward.4} parent=5 // pred_check
      %p272 = pneg %p271
    $region38: #{transducer_forward.4} parent=5 // pred_check_branch
      %274 = sbr.rel (%p272) target = $region40
    $region39: #{transducer_forward.4} parent=5 // pred_region
      %s275 = ssub.s32 %s9, 2
      // Predicated region
      $region41: #{transducer_forward.4} parent=39 // pred_check
        %p276 = pneg %p122
      $region42: #{transducer_forward.4} parent=39 // pred_check_branch
        %278 = sbr.rel (%p276) target = $region44
      $region43: #{transducer_forward.4} parent=39 // pred_region
        %p279 = scmp.lt.s32.totalorder %s20, 1
        %s280 = scalar_select %p279, %s20, 1
        %p281 = scmp.lt.s32.totalorder %s21, 0
        %s282 = scalar_select %p281, %s21, 0
        %s283 = sadd.s32 %s282, %s280
        %s284 = smul.addr %s283, 4
        %s285 = scalar_lea.vmem %s3, %s284
      $region44: #{transducer_forward.4} parent=39 // pred_fallthru
        _
    $region40: #{transducer_forward.4} parent=5 // pred_fallthru
      _
  $region6: #{transducer_forward.4} parent=0 // loop_footer
    %s13 = sadd.s32 1, %s9
  $region7: #{transducer_forward.4} parent=0 // loop_footer_branch
    %8 = sbr.rel target = $region3
  $region8: #{transducer_forward.4} parent=0 // loop_exit
    _

// kernel: transducer_forward.5
$region0: #{transducer_forward.5}
  #allocation0 [shape = 'u32[]', space=smem, size = 0x4, offset = 0x4, fixed_abs, tag = 'smem constant byte address 0x4 - core index']
  #allocation1 [shape = 'u32[144,128]{1,0:T(1,128)}', space=vmem, size = 0x12000, scoped, tag = 'internal scratch']
  %s0 = inlined_call_operand.vmem [shape: f32[2,128,32], index: 0, kind: input, shape index: {}]
  %s1 = inlined_call_operand.vmem [shape: bf16[32,128], index: 1, kind: input, shape index: {}]
  %s2 = inlined_call_operand.vmem [shape: f32[1,128], index: 2, kind: input, shape index: {}]
  %s3 = inlined_call_operand.vmem [shape: bf16[2,128,128], index: 3, kind: output, shape index: {}]
  %s4 = sld [smem:[#allocation0]]
  $region45: #{transducer_forward.5} parent=0
    _
  %s6 = ssub.s32 1, %s4
  %s7 = scalar_select 0, %s6, %s4
  loop: start=0, step=1, limit=4
  $region2: #{transducer_forward.5} parent=0 // loop_pre_header
    _
  $region3: #{transducer_forward.5} parent=0 // loop_header
    %s9 = sphi 0, %s13
    %p10 = scmp.ge.s32.totalorder %s9, 4
    %s16 = sphi 0, %s28
    %s17 = sphi 0, %s24
    %s18 = sphi 0, %s16
    %s19 = sphi 0, %s17
    %s20 = sphi 0, %s18
    %s21 = sphi 0, %s19
    %s33 = sphi 0, %s35
    %s36 = sphi 0, %s33
    %s37 = sphi 0, %s36
    %s53 = sphi 0, %s37
    %s57 = sphi 0, %s57
    %s59 = sphi 0, %s57
    %s60 = sphi 0, %s59
    %s74 = sphi 0, %s60
    %s78 = sphi 0, %s78
    %s80 = sphi 0, %s78
    %s81 = sphi 0, %s80
    %s95 = sphi 0, %s81
    %s103 = sphi 0, %s105
    %s106 = sphi 0, %s103
    %s107 = sphi 0, %s106
    %s123 = sphi 0, %s107
  $region4: #{transducer_forward.5} parent=0 // loop_header_branch
    %12 = sbr.rel (%p10) target = $region8
  $region5: #{transducer_forward.5} parent=0 // loop_body
    %s14 = ssub.s32 %s9, 1
    %s15 = ssub.s32 %s9, 2
    %s22 = sadd.s32 1, %s17
    %p23 = scmp.ge.s32.totalorder %s22, 1
    %s24 = scalar_select %p23, 0, %s22
    %s25 = sadd.s32 1, %s16
    %s26 = scalar_select %p23, %s25, %s16
    %p27 = scmp.ge.s32.totalorder %s26, 2
    %s28 = scalar_select %p27, 0, %s26
    %s29 = ssub.s32 %s16, %s28
    %s30 = ssub.s32 %s17, %s24
    %s31 = sor.u32 %s29, %s30
    %p32 = scmp.eq.s32.totalorder %s31, 0
    %s34 = sadd.s32 %s33, 1
    %s35 = scalar_select %p32, %s33, %s34
    %p38 = pneg %p32
    %p39 = scmp.eq.s32.totalorder %s9, 1
    %p40 = por %p38, %p39
    %p41 = scmp.ne.s32.totalorder %s33, %s36
    %p42 = scmp.eq.s32.totalorder %s9, 0
    %p43 = por %p41, %p42
    %p44 = scmp.ne.s32.totalorder %s33, %s36
    %p45 = scmp.eq.s32.totalorder %s14, 1
    %p46 = por %p44, %p45
    %p47 = scmp.ne.s32.totalorder %s36, %s37
    %p48 = scmp.eq.s32.totalorder %s14, 0
    %p49 = por %p47, %p48
    %p50 = scmp.ne.s32.totalorder %s36, %s37
    %p51 = scmp.eq.s32.totalorder %s15, 1
    %p52 = por %p50, %p51
    %p54 = scmp.ne.s32.totalorder %s37, %s53
    %p55 = scmp.eq.s32.totalorder %s15, 0
    %p56 = por %p54, %p55
    %s58 = sadd.s32 %s57, 1
    %p61 = scmp.eq.s32.totalorder %s9, 1
    %p62 = scmp.ne.s32.totalorder %s57, %s59
    %p63 = scmp.eq.s32.totalorder %s9, 0
    %p64 = por %p62, %p63
    %p65 = scmp.ne.s32.totalorder %s57, %s59
    %p66 = scmp.eq.s32.totalorder %s14, 1
    %p67 = por %p65, %p66
    %p68 = scmp.ne.s32.totalorder %s59, %s60
    %p69 = scmp.eq.s32.totalorder %s14, 0
    %p70 = por %p68, %p69
    %p71 = scmp.ne.s32.totalorder %s59, %s60
    %p72 = scmp.eq.s32.totalorder %s15, 1
    %p73 = por %p71, %p72
    %p75 = scmp.ne.s32.totalorder %s60, %s74
    %p76 = scmp.eq.s32.totalorder %s15, 0
    %p77 = por %p75, %p76
    %s79 = sadd.s32 %s78, 1
    %p82 = scmp.eq.s32.totalorder %s9, 1
    %p83 = scmp.ne.s32.totalorder %s78, %s80
    %p84 = scmp.eq.s32.totalorder %s9, 0
    %p85 = por %p83, %p84
    %p86 = scmp.ne.s32.totalorder %s78, %s80
    %p87 = scmp.eq.s32.totalorder %s14, 1
    %p88 = por %p86, %p87
    %p89 = scmp.ne.s32.totalorder %s80, %s81
    %p90 = scmp.eq.s32.totalorder %s14, 0
    %p91 = por %p89, %p90
    %p92 = scmp.ne.s32.totalorder %s80, %s81
    %p93 = scmp.eq.s32.totalorder %s15, 1
    %p94 = por %p92, %p93
    %p96 = scmp.ne.s32.totalorder %s81, %s95
    %p97 = scmp.eq.s32.totalorder %s15, 0
    %p98 = por %p96, %p97
    %s99 = ssub.s32 %s16, %s28
    %s100 = ssub.s32 %s17, %s24
    %s101 = sor.u32 %s99, %s100
    %p102 = scmp.eq.s32.totalorder %s101, 0
    %s104 = sadd.s32 %s103, 1
    %s105 = scalar_select %p102, %s103, %s104
    %p108 = pneg %p102
    %p109 = scmp.eq.s32.totalorder %s9, 1
    %p110 = por %p108, %p109
    %p111 = scmp.ne.s32.totalorder %s103, %s106
    %p112 = scmp.eq.s32.totalorder %s9, 0
    %p113 = por %p111, %p112
    %p114 = scmp.ne.s32.totalorder %s103, %s106
    %p115 = scmp.eq.s32.totalorder %s14, 1
    %p116 = por %p114, %p115
    %p117 = scmp.ne.s32.totalorder %s106, %s107
    %p118 = scmp.eq.s32.totalorder %s14, 0
    %p119 = por %p117, %p118
    %p120 = scmp.ne.s32.totalorder %s106, %s107
    %p121 = scmp.eq.s32.totalorder %s15, 1
    %p122 = por %p120, %p121
    %p124 = scmp.ne.s32.totalorder %s107, %s123
    %p125 = scmp.eq.s32.totalorder %s15, 0
    %p126 = por %p124, %p125
    %p127 = scmp.le.s32.totalorder 1, %s9
    %p128 = scmp.lt.s32.totalorder %s9, 3
    %p129 = pnand %p127, %p128
    %p130 = pneg %p129
    // Predicated region
    $region9: #{transducer_forward.5} parent=5 // pred_check
      _
    $region10: #{transducer_forward.5} parent=5 // pred_check_branch
      %132 = sbr.rel (%p129) target = $region12
    $region11: #{transducer_forward.5} parent=5 // pred_region
      %s133 = ssub.s32 %s9, 1
      // Predicated region
      $region13: #{transducer_forward.5} parent=11 // pred_check
        %p134 = pneg %p70
      $region14: #{transducer_forward.5} parent=11 // pred_check_branch
        %136 = sbr.rel (%p134) target = $region16
      $region15: #{transducer_forward.5} parent=11 // pred_region
        _
      $region16: #{transducer_forward.5} parent=11 // pred_fallthru
        _
      // Predicated region
      $region17: #{transducer_forward.5} parent=11 // pred_check
        %p137 = pneg %p91
      $region18: #{transducer_forward.5} parent=11 // pred_check_branch
        %139 = sbr.rel (%p137) target = $region20
      $region19: #{transducer_forward.5} parent=11 // pred_region
        _
      $region20: #{transducer_forward.5} parent=11 // pred_fallthru
        _
    $region12: #{transducer_forward.5} parent=5 // pred_fallthru
      _
    %p140 = scmp.lt.s32.totalorder %s9, 2
    // Predicated region
    $region21: #{transducer_forward.5} parent=5 // pred_check
      %p141 = pneg %p140
    $region22: #{transducer_forward.5} parent=5 // pred_check_branch
      %143 = sbr.rel (%p141) target = $region24
    $region23: #{transducer_forward.5} parent=5 // pred_region
      // Predicated region
      $region25: #{transducer_forward.5} parent=23 // pred_check
        %p144 = pneg %p43
      $region26: #{transducer_forward.5} parent=23 // pred_check_branch
        %146 = sbr.rel (%p144) target = $region28
      $region27: #{transducer_forward.5} parent=23 // pred_region
        %s147 = smul.u32 16, %s17
        %p148 = scmp.lt.s32.totalorder %s16, 1
        %s149 = scalar_select %p148, %s16, 1
        %p150 = scmp.lt.s32.totalorder %s147, 15
        %s151 = scalar_select %p150, %s147, 15
        %s152 = smul.addr %s149, 16
        %s153 = sadd.s32 %s151, %s152
        %s154 = smul.addr %s153, 8
        %s155 = scalar_lea.vmem %s0, %s154
        %s156 = smul.u32 16, %s17
      $region28: #{transducer_forward.5} parent=23 // pred_fallthru
        _
    $region24: #{transducer_forward.5} parent=5 // pred_fallthru
      _
    %p157 = scmp.le.s32.totalorder 1, %s9
    %p158 = scmp.lt.s32.totalorder %s9, 3
    %p159 = pnand %p157, %p158
    %p160 = pneg %p159
    // Predicated region
    $region29: #{transducer_forward.5} parent=5 // pred_check
      _
    $region30: #{transducer_forward.5} parent=5 // pred_check_branch
      %162 = sbr.rel (%p159) target = $region32
    $region31: #{transducer_forward.5} parent=5 // pred_region
      %s163 = ssub.s32 %s9, 1
      %s164 = smul.u32 16, %s19
      %p165 = scmp.lt.s32.totalorder %s18, 1
      %s166 = scalar_select %p165, %s18, 1
      %p167 = scmp.lt.s32.totalorder %s164, 15
      %s168 = scalar_select %p167, %s164, 15
      %s169 = smul.addr %s166, 16
      %s170 = sadd.s32 %s168, %s169
      %s171 = smul.addr %s170, 8
      %s172 = scalar_lea.vmem %s0, %s171
      %p173 = pneg %p49
      %p174 = pneg %p46
      %p175 = pneg %p70
      %p176 = pneg %p67
      %p177 = pneg %p91
      %p178 = pneg %p88
      %p179 = pneg %p119
      %p180 = pneg %p116
      %s181 = smul.u32 16, %s19
      %p182 = scmp.lt.s32.totalorder %s18, 1
      %s183 = scalar_select %p182, %s18, 1
      %p184 = scmp.lt.s32.totalorder %s181, 15
      %s185 = scalar_select %p184, %s181, 15
      %s186 = smul.addr %s183, 16
      %s187 = sadd.s32 %s185, %s186
      %s188 = smul.addr %s187, 4
      %s189 = scalar_lea.vmem %s3, %s188
      %s190 = smul.u32 16, %s19
      %p191 = scmp.lt.s32.totalorder %s18, 1
      %s192 = scalar_select %p191, %s18, 1
      %p193 = scmp.lt.s32.totalorder %s190, 15
      %s194 = scalar_select %p193, %s190, 15
      %s195 = smul.addr %s192, 16
      %s196 = sadd.s32 %s194, %s195
      %s197 = smul.addr %s196, 8
      %s198 = scalar_lea.vmem %s0, %s197
      %s199 = smul.u32 16, %s19
      %s200 = smul.u32 16, %s19
      %p201 = scmp.lt.s32.totalorder %s18, 1
      %s202 = scalar_select %p201, %s18, 1
      %p203 = scmp.lt.s32.totalorder %s200, 15
      %s204 = scalar_select %p203, %s200, 15
      %s205 = smul.addr %s202, 16
      %s206 = sadd.s32 %s204, %s205
      %s207 = smul.addr %s206, 4
      %s208 = scalar_lea.vmem %s3, %s207
      %s209 = smul.u32 16, %s19
      %v211 = vld [vmem:[%s198] sm:$0xff]
      %v212 = vld [vmem:[%s198 + $0x8] sm:$0xff]
      %v213 = vld [vmem:[%s198 + $0x10] sm:$0xff]
      %v214 = vld [vmem:[%s198 + $0x18] sm:$0xff]
      %v215 = vld [vmem:[%s198 + $0x20] sm:$0xff]
      %v216 = vld [vmem:[%s198 + $0x28] sm:$0xff]
      %v217 = vld [vmem:[%s198 + $0x30] sm:$0xff]
      %v218 = vld [vmem:[%s198 + $0x38] sm:$0xff]
      %v219 = vld [vmem:[%s198 + $0x40] sm:$0xff]
      %v220 = vld [vmem:[%s198 + $0x48] sm:$0xff]
      %v221 = vld [vmem:[%s198 + $0x50] sm:$0xff]
      %v222 = vld [vmem:[%s198 + $0x58] sm:$0xff]
      %v223 = vld [vmem:[%s198 + $0x60] sm:$0xff]
      %v224 = vld [vmem:[%s198 + $0x68] sm:$0xff]
      %v225 = vld [vmem:[%s198 + $0x70] sm:$0xff]
      %v226 = vld [vmem:[%s198 + $0x78] sm:$0xff]
      %v227 = vpack.c.bf16 %v212, %v211
      %v228 = vpack.c.bf16 %v214, %v213
      %v229 = vpack.c.bf16 %v216, %v215
      %v230 = vpack.c.bf16 %v218, %v217
      %v231 = vpack.c.bf16 %v220, %v219
      %v232 = vpack.c.bf16 %v222, %v221
      %v233 = vpack.c.bf16 %v224, %v223
      %v234 = vpack.c.bf16 %v226, %v225
      %v235 = vld [vmem:[%s1] sm:$0xf]
      %v236 = vld [vmem:[%s1 + $0x4] sm:$0xf]
      %v237 = vld [vmem:[%s1 + $0x8] sm:$0xf]
      %v238 = vld [vmem:[%s1 + $0xc] sm:$0xf]
      %v239 = vld [vmem:[%s2] sm:$0x1]
      %v241 = vlaneseq
      %v242 = vshrl.u32 %v241, 7
      %v243 = vsub.s32 0, %v242
      %v244 = vrot.slane %v239, %v243
      %v250 = vunpack.c.l.b16 %v235
      %v251 = vunpack.c.l.b16 %v236
      %v252 = vunpack.c.l.b16 %v237
      %v253 = vunpack.c.l.b16 %v238
      %v254 = vpack.c.b16 %v251, %v250
      %v255 = vpack.c.b16 %v253, %v252
      %vm258 = vcmask 261120
      %v260 = vsel %vm258, %v227, 0
      %v263 = vsel %vm258, %v228, 0
      %v266 = vsel %vm258, %v229, 0
      %v269 = vsel %vm258, %v230, 0
      %v272 = vsel %vm258, %v231, 0
      %v275 = vsel %vm258, %v232, 0
      %v278 = vsel %vm258, %v233, 0
      %v281 = vsel %vm258, %v234, 0
      %283 = vmatprep.subr.bf16.mxu0 0
      %284 = vmatpush1.bf16.msra.mxu0 %v254
      %285 = vmatprep.subr.bf16.mxu0 0
      %286 = vmatpush1.bf16.msra.mxu0 %v255
      %287 = vmatprep.subr.bf16.mxu0 0
      %288 = vmatpush1.bf16.msra.mxu0 0
      %289 = vmatprep.subr.bf16.mxu0 0
      %290 = vmatpush1.bf16.msra.mxu0 0
      %291 = vmatprep.subr.bf16.mxu0 0
      %292 = vmatpush1.bf16.msra.mxu0 0
      %293 = vmatprep.subr.bf16.mxu0 0
      %294 = vmatpush1.bf16.msra.mxu0 0
      %295 = vmatprep.subr.bf16.mxu0 0
      %296 = vmatpush1.bf16.msra.mxu0 0
      %297 = vmatprep.subr.bf16.mxu0 0
      %298 = vmatpush1.bf16.msra.mxu0 0
      %299 = vmatprep.subr.bf16.mxu0 0
      %300 = vmatpush1.bf16.msra.mxu0 0
      %301 = vmatprep.subr.bf16.mxu0 0
      %302 = vmatpush1.bf16.msra.mxu0 0
      %303 = vmatprep.subr.bf16.mxu0 0
      %304 = vmatpush1.bf16.msra.mxu0 0
      %305 = vmatprep.subr.bf16.mxu0 0
      %306 = vmatpush1.bf16.msra.mxu0 0
      %307 = vmatprep.subr.bf16.mxu0 0
      %308 = vmatpush1.bf16.msra.mxu0 0
      %309 = vmatprep.subr.bf16.mxu0 0
      %310 = vmatpush1.bf16.msra.mxu0 0
      %311 = vmatprep.subr.bf16.mxu0 0
      %312 = vmatpush1.bf16.msra.mxu0 0
      %313 = vmatprep.subr.bf16.mxu0 0
      %314 = vmatpush1.bf16.msra.mxu0 0
      %315 = vmatprep.mubr.bf16.mxu0 0
      %316 = vmatmul.mubr.bf16.gmra.mrb[0].mxu0 %v260
      %v317 = vpop.f32.mrb[0].mxu0
      %v318 = vadd.f32 %v244, %v317
      %v319 = vpop.f32.mrb[0].mxu0
      %v320 = vpop.f32.mrb[0].mxu0
      %v321 = vadd.f32 %v244, %v320
      %v322 = vpop.f32.mrb[0].mxu0
      %323 = vmatprep.mubr.bf16.mxu0 0
      %324 = vmatmul.mubr.bf16.gmra.mrb[0].mxu0 %v263
      %v325 = vpop.f32.mrb[0].mxu0
      %v326 = vadd.f32 %v244, %v325
      %v327 = vpop.f32.mrb[0].mxu0
      %v328 = vpop.f32.mrb[0].mxu0
      %v329 = vadd.f32 %v244, %v328
      %v330 = vpop.f32.mrb[0].mxu0
      %331 = vmatprep.mubr.bf16.mxu0 0
      %332 = vmatmul.mubr.bf16.gmra.mrb[0].mxu0 %v266
      %v333 = vpop.f32.mrb[0].mxu0
      %v334 = vadd.f32 %v244, %v333
      %v335 = vpop.f32.mrb[0].mxu0
      %v336 = vpop.f32.mrb[0].mxu0
      %v337 = vadd.f32 %v244, %v336
      %v338 = vpop.f32.mrb[0].mxu0
      %339 = vmatprep.mubr.bf16.mxu0 0
      %340 = vmatmul.mubr.bf16.gmra.mrb[0].mxu0 %v269
      %v341 = vpop.f32.mrb[0].mxu0
      %v342 = vadd.f32 %v244, %v341
      %v343 = vpop.f32.mrb[0].mxu0
      %v344 = vpop.f32.mrb[0].mxu0
      %v345 = vadd.f32 %v244, %v344
      %v346 = vpop.f32.mrb[0].mxu0
      %347 = vmatprep.mubr.bf16.mxu0 0
      %348 = vmatmul.mubr.bf16.gmra.mrb[0].mxu0 %v272
      %v349 = vpop.f32.mrb[0].mxu0
      %v350 = vadd.f32 %v244, %v349
      %v351 = vpop.f32.mrb[0].mxu0
      %v352 = vpop.f32.mrb[0].mxu0
      %v353 = vadd.f32 %v244, %v352
      %v354 = vpop.f32.mrb[0].mxu0
      %355 = vmatprep.mubr.bf16.mxu0 0
      %356 = vmatmul.mubr.bf16.gmra.mrb[0].mxu0 %v275
      %v357 = vpop.f32.mrb[0].mxu0
      %v358 = vadd.f32 %v244, %v357
      %v359 = vpop.f32.mrb[0].mxu0
      %v360 = vpop.f32.mrb[0].mxu0
      %v361 = vadd.f32 %v244, %v360
      %v362 = vpop.f32.mrb[0].mxu0
      %363 = vmatprep.mubr.bf16.mxu0 0
      %364 = vmatmul.mubr.bf16.gmra.mrb[0].mxu0 %v278
      %v365 = vpop.f32.mrb[0].mxu0
      %v366 = vadd.f32 %v244, %v365
      %v367 = vpop.f32.mrb[0].mxu0
      %v368 = vpop.f32.mrb[0].mxu0
      %v369 = vadd.f32 %v244, %v368
      %v370 = vpop.f32.mrb[0].mxu0
      %371 = vmatprep.mubr.bf16.mxu0 0
      %372 = vmatmul.mubr.bf16.gmra.mrb[0].mxu0 %v281
      %v373 = vpop.f32.mrb[0].mxu0
      %v374 = vadd.f32 %v244, %v373
      %v375 = vpop.f32.mrb[0].mxu0
      %v376 = vpop.f32.mrb[0].mxu0
      %v377 = vadd.f32 %v244, %v376
      %v378 = vpop.f32.mrb[0].mxu0
      %379 = vdwg.mxu0
      %v380 = vpack.c.bf16 %v321, %v318
      %v381 = vpack.c.bf16 %v329, %v326
      %v382 = vpack.c.bf16 %v337, %v334
      %v383 = vpack.c.bf16 %v345, %v342
      %v384 = vpack.c.bf16 %v353, %v350
      %v385 = vpack.c.bf16 %v361, %v358
      %v386 = vpack.c.bf16 %v369, %v366
      %v387 = vpack.c.bf16 %v377, %v374
      %v396 = vunpack.c.l.b16 %v380
      %v397 = vunpack.c.h.b16 %v380
      %v398 = vunpack.c.l.b16 %v381
      %v399 = vunpack.c.h.b16 %v381
      %v400 = vunpack.c.l.b16 %v382
      %v401 = vunpack.c.h.b16 %v382
      %v402 = vunpack.c.l.b16 %v383
      %v403 = vunpack.c.h.b16 %v383
      %v404 = vunpack.c.l.b16 %v384
      %v405 = vunpack.c.h.b16 %v384
      %v406 = vunpack.c.l.b16 %v385
      %v407 = vunpack.c.h.b16 %v385
      %v408 = vunpack.c.l.b16 %v386
      %v409 = vunpack.c.h.b16 %v386
      %v410 = vunpack.c.l.b16 %v387
      %v411 = vunpack.c.h.b16 %v387
      %v412 = vpack.c.b16 %v396, %v396
      %v413 = vpack.c.b16 %v397, %v397
      %v414 = vpack.c.b16 %v398, %v398
      %v415 = vpack.c.b16 %v399, %v399
      %v416 = vpack.c.b16 %v400, %v400
      %v417 = vpack.c.b16 %v401, %v401
      %v418 = vpack.c.b16 %v402, %v402
      %v419 = vpack.c.b16 %v403, %v403
      %v420 = vpack.c.b16 %v404, %v404
      %v421 = vpack.c.b16 %v405, %v405
      %v422 = vpack.c.b16 %v406, %v406
      %v423 = vpack.c.b16 %v407, %v407
      %v424 = vpack.c.b16 %v408, %v408
      %v425 = vpack.c.b16 %v409, %v409
      %v426 = vpack.c.b16 %v410, %v410
      %v427 = vpack.c.b16 %v411, %v411
      %444 = vst [vmem:[%s208] sm:$0xf] %v412
      %445 = vst [vmem:[%s208 + $0x4] sm:$0xf] %v413
      %446 = vst [vmem:[%s208 + $0x8] sm:$0xf] %v414
      %447 = vst [vmem:[%s208 + $0xc] sm:$0xf] %v415
      %448 = vst [vmem:[%s208 + $0x10] sm:$0xf] %v416
      %449 = vst [vmem:[%s208 + $0x14] sm:$0xf] %v417
      %450 = vst [vmem:[%s208 + $0x18] sm:$0xf] %v418
      %451 = vst [vmem:[%s208 + $0x1c] sm:$0xf] %v419
      %452 = vst [vmem:[%s208 + $0x20] sm:$0xf] %v420
      %453 = vst [vmem:[%s208 + $0x24] sm:$0xf] %v421
      %454 = vst [vmem:[%s208 + $0x28] sm:$0xf] %v422
      %455 = vst [vmem:[%s208 + $0x2c] sm:$0xf] %v423
      %456 = vst [vmem:[%s208 + $0x30] sm:$0xf] %v424
      %457 = vst [vmem:[%s208 + $0x34] sm:$0xf] %v425
      %458 = vst [vmem:[%s208 + $0x38] sm:$0xf] %v426
      %459 = vst [vmem:[%s208 + $0x3c] sm:$0xf] %v427
      %s460 = smul.u32 16, %s19
      %p461 = scmp.lt.s32.totalorder %s18, 1
      %s462 = scalar_select %p461, %s18, 1
      %p463 = scmp.lt.s32.totalorder %s460, 15
      %s464 = scalar_select %p463, %s460, 15
      %s465 = smul.addr %s462, 16
      %s466 = sadd.s32 %s464, %s465
      %s467 = smul.addr %s466, 4
      %s468 = scalar_lea.vmem %s3, %s467
      // Predicated region
      $region33: #{transducer_forward.5} parent=31 // pred_check
        %p469 = pneg %p116
      $region34: #{transducer_forward.5} parent=31 // pred_check_branch
        %471 = sbr.rel (%p469) target = $region36
      $region35: #{transducer_forward.5} parent=31 // pred_region
        %s472 = smul.u32 16, %s19
      $region36: #{transducer_forward.5} parent=31 // pred_fallthru
        _
    $region32: #{transducer_forward.5} parent=5 // pred_fallthru
      _
    %p473 = scmp.le.s32.totalorder 2, %s9
    // Predicated region
    $region37: #{transducer_forward.5} parent=5 // pred_check
      %p474 = pneg %p473
    $region38: #{transducer_forward.5} parent=5 // pred_check_branch
      %476 = sbr.rel (%p474) target = $region40
    $region39: #{transducer_forward.5} parent=5 // pred_region
      %s477 = ssub.s32 %s9, 2
      // Predicated region
      $region41: #{transducer_forward.5} parent=39 // pred_check
        %p478 = pneg %p122
      $region42: #{transducer_forward.5} parent=39 // pred_check_branch
        %480 = sbr.rel (%p478) target = $region44
      $region43: #{transducer_forward.5} parent=39 // pred_region
        %s481 = smul.u32 16, %s21
        %p482 = scmp.lt.s32.totalorder %s20, 1
        %s483 = scalar_select %p482, %s20, 1
        %p484 = scmp.lt.s32.totalorder %s481, 15
        %s485 = scalar_select %p484, %s481, 15
        %s486 = smul.addr %s483, 16
        %s487 = sadd.s32 %s485, %s486
        %s488 = smul.addr %s487, 4
        %s489 = scalar_lea.vmem %s3, %s488
      $region44: #{transducer_forward.5} parent=39 // pred_fallthru
        _
    $region40: #{transducer_forward.5} parent=5 // pred_fallthru
      _
  $region6: #{transducer_forward.5} parent=0 // loop_footer
    %s13 = sadd.s32 1, %s9
  $region7: #{transducer_forward.5} parent=0 // loop_footer_branch
    %8 = sbr.rel target = $region3
  $region8: #{transducer_forward.5} parent=0 // loop_exit
    _

// kernel: transducer_forward.6
$region0: #{transducer_forward.6}
  #allocation0 [shape = 'u32[]', space=smem, size = 0x4, offset = 0x4, fixed_abs, tag = 'smem constant byte address 0x4 - core index']
  #allocation1 [shape = 'u32[144,128]{1,0:T(1,128)}', space=vmem, size = 0x12000, scoped, tag = 'internal scratch']
  %s0 = inlined_call_operand.vmem [shape: bf16[2,8,128], index: 0, kind: input, shape index: {}]
  %s1 = inlined_call_operand.vmem [shape: bf16[2,128,128], index: 1, kind: input, shape index: {}]
  %s2 = inlined_call_operand.vmem [shape: f32[2,128,128], index: 2, kind: input, shape index: {}]
  %s3 = inlined_call_operand.vmem [shape: bf16[128,128], index: 3, kind: input, shape index: {}]
  %s4 = inlined_call_operand.vmem [shape: f32[2,8,128], index: 4, kind: output, shape index: {0}]
  %s5 = inlined_call_operand.vmem [shape: f32[2,8,128], index: 5, kind: output, shape index: {1}]
  %6 = xla_tuple %s4, %s5
  %s7 = sld [smem:[#allocation0]]
  $region57: #{transducer_forward.6} parent=0
    _
  %s9 = ssub.s32 1, %s7
  %s10 = scalar_select 0, %s9, %s7
  loop: start=0, step=1, limit=4
  $region2: #{transducer_forward.6} parent=0 // loop_pre_header
    _
  $region3: #{transducer_forward.6} parent=0 // loop_header
    %s12 = sphi 0, %s16
    %p13 = scmp.ge.s32.totalorder %s12, 4
    %s19 = sphi 0, %s38
    %s20 = sphi 0, %s34
    %s21 = sphi 0, %s30
    %s22 = sphi 0, %s19
    %s23 = sphi 0, %s20
    %s24 = sphi 0, %s21
    %s25 = sphi 0, %s22
    %s26 = sphi 0, %s23
    %s27 = sphi 0, %s24
    %s43 = sphi 0, %s45
    %s46 = sphi 0, %s43
    %s47 = sphi 0, %s46
    %s63 = sphi 0, %s47
    %s71 = sphi 0, %s73
    %s74 = sphi 0, %s71
    %s75 = sphi 0, %s74
    %s91 = sphi 0, %s75
    %s99 = sphi 0, %s101
    %s102 = sphi 0, %s99
    %s103 = sphi 0, %s102
    %s119 = sphi 0, %s103
    %s123 = sphi 0, %s123
    %s125 = sphi 0, %s123
    %s126 = sphi 0, %s125
    %s140 = sphi 0, %s126
    %s150 = sphi 0, %s152
    %s153 = sphi 0, %s150
    %s154 = sphi 0, %s153
    %s170 = sphi 0, %s154
    %s180 = sphi 0, %s182
    %s183 = sphi 0, %s180
    %s184 = sphi 0, %s183
    %s200 = sphi 0, %s184
  $region4: #{transducer_forward.6} parent=0 // loop_header_branch
    %15 = sbr.rel (%p13) target = $region8
  $region5: #{transducer_forward.6} parent=0 // loop_body
    %s17 = ssub.s32 %s12, 1
    %s18 = ssub.s32 %s12, 2
    %s28 = sadd.s32 1, %s21
    %p29 = scmp.ge.s32.totalorder %s28, 1
    %s30 = scalar_select %p29, 0, %s28
    %s31 = sadd.s32 1, %s20
    %s32 = scalar_select %p29, %s31, %s20
    %p33 = scmp.ge.s32.totalorder %s32, 1
    %s34 = scalar_select %p33, 0, %s32
    %s35 = sadd.s32 1, %s19
    %s36 = scalar_select %p33, %s35, %s19
    %p37 = scmp.ge.s32.totalorder %s36, 2
    %s38 = scalar_select %p37, 0, %s36
    %s39 = ssub.s32 %s19, %s38
    %s40 = ssub.s32 %s20, %s34
    %s41 = sor.u32 %s39, %s40
    %p42 = scmp.eq.s32.totalorder %s41, 0
    %s44 = sadd.s32 %s43, 1
    %s45 = scalar_select %p42, %s43, %s44
    %p48 = pneg %p42
    %p49 = scmp.eq.s32.totalorder %s12, 1
    %p50 = por %p48, %p49
    %p51 = scmp.ne.s32.totalorder %s43, %s46
    %p52 = scmp.eq.s32.totalorder %s12, 0
    %p53 = por %p51, %p52
    %p54 = scmp.ne.s32.totalorder %s43, %s46
    %p55 = scmp.eq.s32.totalorder %s17, 1
    %p56 = por %p54, %p55
    %p57 = scmp.ne.s32.totalorder %s46, %s47
    %p58 = scmp.eq.s32.totalorder %s17, 0
    %p59 = por %p57, %p58
    %p60 = scmp.ne.s32.totalorder %s46, %s47
    %p61 = scmp.eq.s32.totalorder %s18, 1
    %p62 = por %p60, %p61
    %p64 = scmp.ne.s32.totalorder %s47, %s63
    %p65 = scmp.eq.s32.totalorder %s18, 0
    %p66 = por %p64, %p65
    %s67 = ssub.s32 %s19, %s38
    %s68 = ssub.s32 %s21, %s30
    %s69 = sor.u32 %s67, %s68
    %p70 = scmp.eq.s32.totalorder %s69, 0
    %s72 = sadd.s32 %s71, 1
    %s73 = scalar_select %p70, %s71, %s72
    %p76 = pneg %p70
    %p77 = scmp.eq.s32.totalorder %s12, 1
    %p78 = por %p76, %p77
    %p79 = scmp.ne.s32.totalorder %s71, %s74
    %p80 = scmp.eq.s32.totalorder %s12, 0
    %p81 = por %p79, %p80
    %p82 = scmp.ne.s32.totalorder %s71, %s74
    %p83 = scmp.eq.s32.totalorder %s17, 1
    %p84 = por %p82, %p83
    %p85 = scmp.ne.s32.totalorder %s74, %s75
    %p86 = scmp.eq.s32.totalorder %s17, 0
    %p87 = por %p85, %p86
    %p88 = scmp.ne.s32.totalorder %s74, %s75
    %p89 = scmp.eq.s32.totalorder %s18, 1
    %p90 = por %p88, %p89
    %p92 = scmp.ne.s32.totalorder %s75, %s91
    %p93 = scmp.eq.s32.totalorder %s18, 0
    %p94 = por %p92, %p93
    %s95 = ssub.s32 %s19, %s38
    %s96 = ssub.s32 %s21, %s30
    %s97 = sor.u32 %s95, %s96
    %p98 = scmp.eq.s32.totalorder %s97, 0
    %s100 = sadd.s32 %s99, 1
    %s101 = scalar_select %p98, %s99, %s100
    %p104 = pneg %p98
    %p105 = scmp.eq.s32.totalorder %s12, 1
    %p106 = por %p104, %p105
    %p107 = scmp.ne.s32.totalorder %s99, %s102
    %p108 = scmp.eq.s32.totalorder %s12, 0
    %p109 = por %p107, %p108
    %p110 = scmp.ne.s32.totalorder %s99, %s102
    %p111 = scmp.eq.s32.totalorder %s17, 1
    %p112 = por %p110, %p111
    %p113 = scmp.ne.s32.totalorder %s102, %s103
    %p114 = scmp.eq.s32.totalorder %s17, 0
    %p115 = por %p113, %p114
    %p116 = scmp.ne.s32.totalorder %s102, %s103
    %p117 = scmp.eq.s32.totalorder %s18, 1
    %p118 = por %p116, %p117
    %p120 = scmp.ne.s32.totalorder %s103, %s119
    %p121 = scmp.eq.s32.totalorder %s18, 0
    %p122 = por %p120, %p121
    %s124 = sadd.s32 %s123, 1
    %p127 = scmp.eq.s32.totalorder %s12, 1
    %p128 = scmp.ne.s32.totalorder %s123, %s125
    %p129 = scmp.eq.s32.totalorder %s12, 0
    %p130 = por %p128, %p129
    %p131 = scmp.ne.s32.totalorder %s123, %s125
    %p132 = scmp.eq.s32.totalorder %s17, 1
    %p133 = por %p131, %p132
    %p134 = scmp.ne.s32.totalorder %s125, %s126
    %p135 = scmp.eq.s32.totalorder %s17, 0
    %p136 = por %p134, %p135
    %p137 = scmp.ne.s32.totalorder %s125, %s126
    %p138 = scmp.eq.s32.totalorder %s18, 1
    %p139 = por %p137, %p138
    %p141 = scmp.ne.s32.totalorder %s126, %s140
    %p142 = scmp.eq.s32.totalorder %s18, 0
    %p143 = por %p141, %p142
    %s144 = ssub.s32 %s19, %s38
    %s145 = ssub.s32 %s20, %s34
    %s146 = sor.u32 %s144, %s145
    %s147 = ssub.s32 %s21, %s30
    %s148 = sor.u32 %s146, %s147
    %p149 = scmp.eq.s32.totalorder %s148, 0
    %s151 = sadd.s32 %s150, 1
    %s152 = scalar_select %p149, %s150, %s151
    %p155 = pneg %p149
    %p156 = scmp.eq.s32.totalorder %s12, 1
    %p157 = por %p155, %p156
    %p158 = scmp.ne.s32.totalorder %s150, %s153
    %p159 = scmp.eq.s32.totalorder %s12, 0
    %p160 = por %p158, %p159
    %p161 = scmp.ne.s32.totalorder %s150, %s153
    %p162 = scmp.eq.s32.totalorder %s17, 1
    %p163 = por %p161, %p162
    %p164 = scmp.ne.s32.totalorder %s153, %s154
    %p165 = scmp.eq.s32.totalorder %s17, 0
    %p166 = por %p164, %p165
    %p167 = scmp.ne.s32.totalorder %s153, %s154
    %p168 = scmp.eq.s32.totalorder %s18, 1
    %p169 = por %p167, %p168
    %p171 = scmp.ne.s32.totalorder %s154, %s170
    %p172 = scmp.eq.s32.totalorder %s18, 0
    %p173 = por %p171, %p172
    %s174 = ssub.s32 %s19, %s38
    %s175 = ssub.s32 %s20, %s34
    %s176 = sor.u32 %s174, %s175
    %s177 = ssub.s32 %s21, %s30
    %s178 = sor.u32 %s176, %s177
    %p179 = scmp.eq.s32.totalorder %s178, 0
    %s181 = sadd.s32 %s180, 1
    %s182 = scalar_select %p179, %s180, %s181
    %p185 = pneg %p179
    %p186 = scmp.eq.s32.totalorder %s12, 1
    %p187 = por %p185, %p186
    %p188 = scmp.ne.s32.totalorder %s180, %s183
    %p189 = scmp.eq.s32.totalorder %s12, 0
    %p190 = por %p188, %p189
    %p191 = scmp.ne.s32.totalorder %s180, %s183
    %p192 = scmp.eq.s32.totalorder %s17, 1
    %p193 = por %p191, %p192
    %p194 = scmp.ne.s32.totalorder %s183, %s184
    %p195 = scmp.eq.s32.totalorder %s17, 0
    %p196 = por %p194, %p195
    %p197 = scmp.ne.s32.totalorder %s183, %s184
    %p198 = scmp.eq.s32.totalorder %s18, 1
    %p199 = por %p197, %p198
    %p201 = scmp.ne.s32.totalorder %s184, %s200
    %p202 = scmp.eq.s32.totalorder %s18, 0
    %p203 = por %p201, %p202
    %p204 = scmp.le.s32.totalorder 1, %s12
    %p205 = scmp.lt.s32.totalorder %s12, 3
    %p206 = pnand %p204, %p205
    %p207 = pneg %p206
    // Predicated region
    $region9: #{transducer_forward.6} parent=5 // pred_check
      _
    $region10: #{transducer_forward.6} parent=5 // pred_check_branch
      %209 = sbr.rel (%p206) target = $region12
    $region11: #{transducer_forward.6} parent=5 // pred_region
      %s210 = ssub.s32 %s12, 1
      // Predicated region
      $region13: #{transducer_forward.6} parent=11 // pred_check
        %p211 = pneg %p136
      $region14: #{transducer_forward.6} parent=11 // pred_check_branch
        %213 = sbr.rel (%p211) target = $region16
      $region15: #{transducer_forward.6} parent=11 // pred_region
        _
      $region16: #{transducer_forward.6} parent=11 // pred_fallthru
        _
    $region12: #{transducer_forward.6} parent=5 // pred_fallthru
      _
    %p214 = scmp.lt.s32.totalorder %s12, 2
    // Predicated region
    $region17: #{transducer_forward.6} parent=5 // pred_check
      %p215 = pneg %p214
    $region18: #{transducer_forward.6} parent=5 // pred_check_branch
      %217 = sbr.rel (%p215) target = $region20
    $region19: #{transducer_forward.6} parent=5 // pred_region
      // Predicated region
      $region21: #{transducer_forward.6} parent=19 // pred_check
        %p218 = pneg %p53
      $region22: #{transducer_forward.6} parent=19 // pred_check_branch
        %220 = sbr.rel (%p218) target = $region24
      $region23: #{transducer_forward.6} parent=19 // pred_region
        %p221 = scmp.lt.s32.totalorder %s19, 1
        %s222 = scalar_select %p221, %s19, 1
        %p223 = scmp.lt.s32.totalorder %s20, 0
        %s224 = scalar_select %p223, %s20, 0
        %s225 = sadd.s32 %s224, %s222
        %s226 = smul.addr %s225, 4
        %s227 = scalar_lea.vmem %s0, %s226
      $region24: #{transducer_forward.6} parent=19 // pred_fallthru
        _
      // Predicated region
      $region25: #{transducer_forward.6} parent=19 // pred_check
        %p228 = pneg %p81
      $region26: #{transducer_forward.6} parent=19 // pred_check_branch
        %230 = sbr.rel (%p228) target = $region28
      $region27: #{transducer_forward.6} parent=19 // pred_region
        %s231 = smul.u32 16, %s21
        %p232 = scmp.lt.s32.totalorder %s19, 1
        %s233 = scalar_select %p232, %s19, 1
        %p234 = scmp.lt.s32.totalorder %s231, 15
        %s235 = scalar_select %p234, %s231, 15
        %s236 = smul.addr %s233, 16
        %s237 = sadd.s32 %s235, %s236
        %s238 = smul.addr %s237, 4
        %s239 = scalar_lea.vmem %s1, %s238
        %s240 = smul.u32 16, %s21
      $region28: #{transducer_forward.6} parent=19 // pred_fallthru
        _
      // Predicated region
      $region29: #{transducer_forward.6} parent=19 // pred_check
        %p241 = pneg %p109
      $region30: #{transducer_forward.6} parent=19 // pred_check_branch
        %243 = sbr.rel (%p241) target = $region32
      $region31: #{transducer_forward.6} parent=19 // pred_region
        %s244 = smul.u32 16, %s21
        %p245 = scmp.lt.s32.totalorder %s19, 1
        %s246 = scalar_select %p245, %s19, 1
        %p247 = scmp.lt.s32.totalorder %s244, 15
        %s248 = scalar_select %p247, %s244, 15
        %s249 = smul.addr %s246, 16
        %s250 = sadd.s32 %s248, %s249
        %s251 = smul.addr %s250, 8
        %s252 = scalar_lea.vmem %s2, %s251
        %s253 = smul.u32 16, %s21
      $region32: #{transducer_forward.6} parent=19 // pred_fallthru
        _
    $region20: #{transducer_forward.6} parent=5 // pred_fallthru
      _
    %p254 = scmp.le.s32.totalorder 1, %s12
    %p255 = scmp.lt.s32.totalorder %s12, 3
    %p256 = pnand %p254, %p255
    %p257 = pneg %p256
    // Predicated region
    $region33: #{transducer_forward.6} parent=5 // pred_check
      _
    $region34: #{transducer_forward.6} parent=5 // pred_check_branch
      %259 = sbr.rel (%p256) target = $region36
    $region35: #{transducer_forward.6} parent=5 // pred_region
      %s260 = ssub.s32 %s12, 1
      %p261 = scmp.lt.s32.totalorder %s22, 1
      %s262 = scalar_select %p261, %s22, 1
      %p263 = scmp.lt.s32.totalorder %s23, 0
      %s264 = scalar_select %p263, %s23, 0
      %s265 = sadd.s32 %s264, %s262
      %s266 = smul.addr %s265, 4
      %s267 = scalar_lea.vmem %s0, %s266
      %p268 = pneg %p59
      %p269 = pneg %p56
      %s270 = smul.u32 16, %s24
      %p271 = scmp.lt.s32.totalorder %s22, 1
      %s272 = scalar_select %p271, %s22, 1
      %p273 = scmp.lt.s32.totalorder %s270, 15
      %s274 = scalar_select %p273, %s270, 15
      %s275 = smul.addr %s272, 16
      %s276 = sadd.s32 %s274, %s275
      %s277 = smul.addr %s276, 4
      %s278 = scalar_lea.vmem %s1, %s277
      %p279 = pneg %p87
      %p280 = pneg %p84
      %s281 = smul.u32 16, %s24
      %p282 = scmp.lt.s32.totalorder %s22, 1
      %s283 = scalar_select %p282, %s22, 1
      %p284 = scmp.lt.s32.totalorder %s281, 15
      %s285 = scalar_select %p284, %s281, 15
      %s286 = smul.addr %s283, 16
      %s287 = sadd.s32 %s285, %s286
      %s288 = smul.addr %s287, 8
      %s289 = scalar_lea.vmem %s2, %s288
      %p290 = pneg %p115
      %p291 = pneg %p112
      %p292 = pneg %p136
      %p293 = pneg %p133
      %p294 = pneg %p166
      %p295 = pneg %p163
      %p296 = scmp.lt.s32.totalorder %s22, 1
      %s297 = scalar_select %p296, %s22, 1
      %p298 = scmp.lt.s32.totalorder %s23, 0
      %s299 = scalar_select %p298, %s23, 0
      %p300 = scmp.lt.s32.totalorder %s24, 0
      %s301 = scalar_select %p300, %s24, 0
      %s302 = sadd.s32 %s301, %s299
      %s303 = sadd.s32 %s302, %s297
      %s304 = smul.addr %s303, 8
      %s305 = scalar_lea.vmem %s4, %s304
      %p306 = pneg %p196
      %p307 = pneg %p193
      %p308 = scmp.lt.s32.totalorder %s22, 1
      %s309 = scalar_select %p308, %s22, 1
      %p310 = scmp.lt.s32.totalorder %s23, 0
      %s311 = scalar_select %p310, %s23, 0
      %p312 = scmp.lt.s32.totalorder %s24, 0
      %s313 = scalar_select %p312, %s24, 0
      %s314 = sadd.s32 %s313, %s311
      %s315 = sadd.s32 %s314, %s309
      %s316 = smul.addr %s315, 8
      %s317 = scalar_lea.vmem %s5, %s316
      %p318 = scmp.lt.s32.totalorder %s22, 1
      %s319 = scalar_select %p318, %s22, 1
      %p320 = scmp.lt.s32.totalorder %s23, 0
      %s321 = scalar_select %p320, %s23, 0
      %s322 = sadd.s32 %s321, %s319
      %s323 = smul.addr %s322, 4
      %s324 = scalar_lea.vmem %s0, %s323
      %s325 = smul.u32 16, %s24
      %p326 = scmp.lt.s32.totalorder %s22, 1
      %s327 = scalar_select %p326, %s22, 1
      %p328 = scmp.lt.s32.totalorder %s325, 15
      %s329 = scalar_select %p328, %s325, 15
      %s330 = smul.addr %s327, 16
      %s331 = sadd.s32 %s329, %s330
      %s332 = smul.addr %s331, 4
      %s333 = scalar_lea.vmem %s1, %s332
      %s334 = smul.u32 16, %s24
      %s335 = smul.u32 16, %s24
      %p336 = scmp.lt.s32.totalorder %s22, 1
      %s337 = scalar_select %p336, %s22, 1
      %p338 = scmp.lt.s32.totalorder %s335, 15
      %s339 = scalar_select %p338, %s335, 15
      %s340 = smul.addr %s337, 16
      %s341 = sadd.s32 %s339, %s340
      %s342 = smul.addr %s341, 8
      %s343 = scalar_lea.vmem %s2, %s342
      %s344 = smul.u32 16, %s24
      %p345 = scmp.lt.s32.totalorder %s22, 1
      %s346 = scalar_select %p345, %s22, 1
      %p347 = scmp.lt.s32.totalorder %s23, 0
      %s348 = scalar_select %p347, %s23, 0
      %p349 = scmp.lt.s32.totalorder %s24, 0
      %s350 = scalar_select %p349, %s24, 0
      %s351 = sadd.s32 %s350, %s348
      %s352 = sadd.s32 %s351, %s346
      %s353 = smul.addr %s352, 8
      %s354 = scalar_lea.vmem %s4, %s353
      %p355 = scmp.lt.s32.totalorder %s22, 1
      %s356 = scalar_select %p355, %s22, 1
      %p357 = scmp.lt.s32.totalorder %s23, 0
      %s358 = scalar_select %p357, %s23, 0
      %p359 = scmp.lt.s32.totalorder %s24, 0
      %s360 = scalar_select %p359, %s24, 0
      %s361 = sadd.s32 %s360, %s358
      %s362 = sadd.s32 %s361, %s356
      %s363 = smul.addr %s362, 8
      %s364 = scalar_lea.vmem %s5, %s363
      %v366 = vld [vmem:[%s324] sm:$0xf]
      %v367 = vunpack.c.l.bf16 %v366
      %v368 = vld [vmem:[%s333] sm:$0xf]
      %v369 = vld [vmem:[%s333 + $0x4] sm:$0xf]
      %v370 = vld [vmem:[%s333 + $0x8] sm:$0xf]
      %v371 = vld [vmem:[%s333 + $0xc] sm:$0xf]
      %v372 = vld [vmem:[%s333 + $0x10] sm:$0xf]
      %v373 = vld [vmem:[%s333 + $0x14] sm:$0xf]
      %v374 = vld [vmem:[%s333 + $0x18] sm:$0xf]
      %v375 = vld [vmem:[%s333 + $0x1c] sm:$0xf]
      %v376 = vld [vmem:[%s333 + $0x20] sm:$0xf]
      %v377 = vld [vmem:[%s333 + $0x24] sm:$0xf]
      %v378 = vld [vmem:[%s333 + $0x28] sm:$0xf]
      %v379 = vld [vmem:[%s333 + $0x2c] sm:$0xf]
      %v380 = vld [vmem:[%s333 + $0x30] sm:$0xf]
      %v381 = vld [vmem:[%s333 + $0x34] sm:$0xf]
      %v382 = vld [vmem:[%s333 + $0x38] sm:$0xf]
      %v383 = vld [vmem:[%s333 + $0x3c] sm:$0xf]
      %v384 = vunpack.c.l.bf16 %v368
      %v385 = vunpack.c.l.bf16 %v369
      %v386 = vunpack.c.l.bf16 %v370
      %v387 = vunpack.c.l.bf16 %v371
      %v388 = vunpack.c.l.bf16 %v372
      %v389 = vunpack.c.l.bf16 %v373
      %v390 = vunpack.c.l.bf16 %v374
      %v391 = vunpack.c.l.bf16 %v375
      %v392 = vunpack.c.l.bf16 %v376
      %v393 = vunpack.c.l.bf16 %v377
      %v394 = vunpack.c.l.bf16 %v378
      %v395 = vunpack.c.l.bf16 %v379
      %v396 = vunpack.c.l.bf16 %v380
      %v397 = vunpack.c.l.bf16 %v381
      %v398 = vunpack.c.l.bf16 %v382
      %v399 = vunpack.c.l.bf16 %v383
      %v401 = vcombine.high %v367, %v367
      %v403 = vunpack.c.l.s4 1966171168
      %v404 = vunpack.c.0.s8 %v403
      %v405 = vlaneseq
      %v406 = vshrl.u32 %v405, 7
      %v407 = vsub.s32 %v404, %v406
      %v408 = vrot.slane %v367, %v407
      %v410 = vunpack.c.l.s4 1966171168
      %v411 = vunpack.c.0.s8 %v410
      %v412 = vlaneseq
      %v413 = vshrl.u32 %v412, 7
      %v414 = vsub.s32 %v411, %v413
      %v415 = vrot.slane %v401, %v414
      %v416 = vcombine.high %v408, %v408
      %v417 = vcombine.high %v415, %v415
      %v419 = vunpack.c.l.s4 1966171168
      %v420 = vunpack.c.0.s8 %v419
      %v421 = vlaneseq
      %v422 = vshrl.u32 %v421, 7
      %v423 = vsub.s32 %v420, %v422
      %v424 = vrot.slane %v408, %v423
      %v426 = vunpack.c.l.s4 1966171168
      %v427 = vunpack.c.0.s8 %v426
      %v428 = vlaneseq
      %v429 = vshrl.u32 %v428, 7
      %v430 = vsub.s32 %v427, %v429
      %v431 = vrot.slane %v415, %v430
      %v433 = vunpack.c.l.s4 1966171168
      %v434 = vunpack.c.0.s8 %v433
      %v435 = vlaneseq
      %v436 = vshrl.u32 %v435, 7
      %v437 = vsub.s32 %v434, %v436
      %v438 = vrot.slane %v416, %v437
      %v440 = vunpack.c.l.s4 1966171168
      %v441 = vunpack.c.0.s8 %v440
      %v442 = vlaneseq
      %v443 = vshrl.u32 %v442, 7
      %v444 = vsub.s32 %v441, %v443
      %v445 = vrot.slane %v417, %v444
      %v446 = vcombine.high %v424, %v424
      %v447 = vcombine.high %v431, %v431
      %v448 = vcombine.high %v438, %v438
      %v449 = vcombine.high %v445, %v445
      %v450 = vlaneseq
      %v451 = vshrl.u32 %v450, 7
      %v452 = vsub.s32 0, %v451
      %v453 = vrot.slane %v424, %v452
      %v454 = vlaneseq
      %v455 = vshrl.u32 %v454, 7
      %v456 = vsub.s32 0, %v455
      %v457 = vrot.slane %v438, %v456
      %v458 = vlaneseq
      %v459 = vshrl.u32 %v458, 7
      %v460 = vsub.s32 0, %v459
      %v461 = vrot.slane %v446, %v460
      %v462 = vlaneseq
      %v463 = vshrl.u32 %v462, 7
      %v464 = vsub.s32 0, %v463
      %v465 = vrot.slane %v448, %v464
      %v466 = vlaneseq
      %v467 = vshrl.u32 %v466, 7
      %v468 = vsub.s32 0, %v467
      %v469 = vrot.slane %v431, %v468
      %v470 = vlaneseq
      %v471 = vshrl.u32 %v470, 7
      %v472 = vsub.s32 0, %v471
      %v473 = vrot.slane %v445, %v472
      %v474 = vlaneseq
      %v475 = vshrl.u32 %v474, 7
      %v476 = vsub.s32 0, %v475
      %v477 = vrot.slane %v447, %v476
      %v478 = vlaneseq
      %v479 = vshrl.u32 %v478, 7
      %v480 = vsub.s32 0, %v479
      %v481 = vrot.slane %v449, %v480
      %v490 = vadd.f32 %v453, %v384
      %v491 = vadd.f32 %v453, %v385
      %v492 = vadd.f32 %v453, %v386
      %v493 = vadd.f32 %v453, %v387
      %v494 = vadd.f32 %v453, %v388
      %v495 = vadd.f32 %v453, %v389
      %v496 = vadd.f32 %v453, %v390
      %v497 = vadd.f32 %v453, %v391
      %v498 = vadd.f32 %v453, %v392
      %v499 = vadd.f32 %v453, %v393
      %v500 = vadd.f32 %v453, %v394
      %v501 = vadd.f32 %v453, %v395
      %v502 = vadd.f32 %v453, %v396
      %v503 = vadd.f32 %v453, %v397
      %v504 = vadd.f32 %v453, %v398
      %v505 = vadd.f32 %v453, %v399
      %v506 = vadd.f32 %v457, %v384
      %v507 = vadd.f32 %v457, %v385
      %v508 = vadd.f32 %v457, %v386
      %v509 = vadd.f32 %v457, %v387
      %v510 = vadd.f32 %v457, %v388
      %v511 = vadd.f32 %v457, %v389
      %v512 = vadd.f32 %v457, %v390
      %v513 = vadd.f32 %v457, %v391
      %v514 = vadd.f32 %v457, %v392
      %v515 = vadd.f32 %v457, %v393
      %v516 = vadd.f32 %v457, %v394
      %v517 = vadd.f32 %v457, %v395
      %v518 = vadd.f32 %v457, %v396
      %v519 = vadd.f32 %v457, %v397
      %v520 = vadd.f32 %v457, %v398
      %v521 = vadd.f32 %v457, %v399
      %v522 = vadd.f32 %v461, %v384
      %v523 = vadd.f32 %v461, %v385
      %v524 = vadd.f32 %v461, %v386
      %v525 = vadd.f32 %v461, %v387
      %v526 = vadd.f32 %v461, %v388
      %v527 = vadd.f32 %v461, %v389
      %v528 = vadd.f32 %v461, %v390
      %v529 = vadd.f32 %v461, %v391
      %v530 = vadd.f32 %v461, %v392
      %v531 = vadd.f32 %v461, %v393
      %v532 = vadd.f32 %v461, %v394
      %v533 = vadd.f32 %v461, %v395
      %v534 = vadd.f32 %v461, %v396
      %v535 = vadd.f32 %v461, %v397
      %v536 = vadd.f32 %v461, %v398
      %v537 = vadd.f32 %v461, %v399
      %v538 = vadd.f32 %v465, %v384
      %v539 = vadd.f32 %v465, %v385
      %v540 = vadd.f32 %v465, %v386
      %v541 = vadd.f32 %v465, %v387
      %v542 = vadd.f32 %v465, %v388
      %v543 = vadd.f32 %v465, %v389
      %v544 = vadd.f32 %v465, %v390
      %v545 = vadd.f32 %v465, %v391
      %v546 = vadd.f32 %v465, %v392
      %v547 = vadd.f32 %v465, %v393
      %v548 = vadd.f32 %v465, %v394
      %v549 = vadd.f32 %v465, %v395
      %v550 = vadd.f32 %v465, %v396
      %v551 = vadd.f32 %v465, %v397
      %v552 = vadd.f32 %v465, %v398
      %v553 = vadd.f32 %v465, %v399
      %v554 = vadd.f32 %v469, %v384
      %v555 = vadd.f32 %v469, %v385
      %v556 = vadd.f32 %v469, %v386
      %v557 = vadd.f32 %v469, %v387
      %v558 = vadd.f32 %v469, %v388
      %v559 = vadd.f32 %v469, %v389
      %v560 = vadd.f32 %v469, %v390
      %v561 = vadd.f32 %v469, %v391
      %v562 = vadd.f32 %v469, %v392
      %v563 = vadd.f32 %v469, %v393
      %v564 = vadd.f32 %v469, %v394
      %v565 = vadd.f32 %v469, %v395
      %v566 = vadd.f32 %v469, %v396
      %v567 = vadd.f32 %v469, %v397
      %v568 = vadd.f32 %v469, %v398
      %v569 = vadd.f32 %v469, %v399
      %v570 = vadd.f32 %v473, %v384
      %v571 = vadd.f32 %v473, %v385
      %v572 = vadd.f32 %v473, %v386
      %v573 = vadd.f32 %v473, %v387
      %v574 = vadd.f32 %v473, %v388
      %v575 = vadd.f32 %v473, %v389
      %v576 = vadd.f32 %v473, %v390
      %v577 = vadd.f32 %v473, %v391
      %v578 = vadd.f32 %v473, %v392
      %v579 = vadd.f32 %v473, %v393
      %v580 = vadd.f32 %v473, %v394
      %v581 = vadd.f32 %v473, %v395
      %v582 = vadd.f32 %v473, %v396
      %v583 = vadd.f32 %v473, %v397
      %v584 = vadd.f32 %v473, %v398
      %v585 = vadd.f32 %v473, %v399
      %v586 = vadd.f32 %v477, %v384
      %v587 = vadd.f32 %v477, %v385
      %v588 = vadd.f32 %v477, %v386
      %v589 = vadd.f32 %v477, %v387
      %v590 = vadd.f32 %v477, %v388
      %v591 = vadd.f32 %v477, %v389
      %v592 = vadd.f32 %v477, %v390
      %v593 = vadd.f32 %v477, %v391
      %v594 = vadd.f32 %v477, %v392
      %v595 = vadd.f32 %v477, %v393
      %v596 = vadd.f32 %v477, %v394
      %v597 = vadd.f32 %v477, %v395
      %v598 = vadd.f32 %v477, %v396
      %v599 = vadd.f32 %v477, %v397
      %v600 = vadd.f32 %v477, %v398
      %v601 = vadd.f32 %v477, %v399
      %v602 = vadd.f32 %v481, %v384
      %v603 = vadd.f32 %v481, %v385
      %v604 = vadd.f32 %v481, %v386
      %v605 = vadd.f32 %v481, %v387
      %v606 = vadd.f32 %v481, %v388
      %v607 = vadd.f32 %v481, %v389
      %v608 = vadd.f32 %v481, %v390
      %v609 = vadd.f32 %v481, %v391
      %v610 = vadd.f32 %v481, %v392
      %v611 = vadd.f32 %v481, %v393
      %v612 = vadd.f32 %v481, %v394
      %v613 = vadd.f32 %v481, %v395
      %v614 = vadd.f32 %v481, %v396
      %v615 = vadd.f32 %v481, %v397
      %v616 = vadd.f32 %v481, %v398
      %v617 = vadd.f32 %v481, %v399
      %v618 = vtanh.pop %v490
      %v619 = vtanh.pop %v491
      %v620 = vtanh.pop %v492
      %v621 = vtanh.pop %v493
      %v622 = vtanh.pop %v494
      %v623 = vtanh.pop %v495
      %v624 = vtanh.pop %v496
      %v625 = vtanh.pop %v497
      %v626 = vtanh.pop %v498
      %v627 = vtanh.pop %v499
      %v628 = vtanh.pop %v500
      %v629 = vtanh.pop %v501
      %v630 = vtanh.pop %v502
      %v631 = vtanh.pop %v503
      %v632 = vtanh.pop %v504
      %v633 = vtanh.pop %v505
      %v634 = vtanh.pop %v506
      %v635 = vtanh.pop %v507
      %v636 = vtanh.pop %v508
      %v637 = vtanh.pop %v509
      %v638 = vtanh.pop %v510
      %v639 = vtanh.pop %v511
      %v640 = vtanh.pop %v512
      %v641 = vtanh.pop %v513
      %v642 = vtanh.pop %v514
      %v643 = vtanh.pop %v515
      %v644 = vtanh.pop %v516
      %v645 = vtanh.pop %v517
      %v646 = vtanh.pop %v518
      %v647 = vtanh.pop %v519
      %v648 = vtanh.pop %v520
      %v649 = vtanh.pop %v521
      %v650 = vtanh.pop %v522
      %v651 = vtanh.pop %v523
      %v652 = vtanh.pop %v524
      %v653 = vtanh.pop %v525
      %v654 = vtanh.pop %v526
      %v655 = vtanh.pop %v527
      %v656 = vtanh.pop %v528
      %v657 = vtanh.pop %v529
      %v658 = vtanh.pop %v530
      %v659 = vtanh.pop %v531
      %v660 = vtanh.pop %v532
      %v661 = vtanh.pop %v533
      %v662 = vtanh.pop %v534
      %v663 = vtanh.pop %v535
      %v664 = vtanh.pop %v536
      %v665 = vtanh.pop %v537
      %v666 = vtanh.pop %v538
      %v667 = vtanh.pop %v539
      %v668 = vtanh.pop %v540
      %v669 = vtanh.pop %v541
      %v670 = vtanh.pop %v542
      %v671 = vtanh.pop %v543
      %v672 = vtanh.pop %v544
      %v673 = vtanh.pop %v545
      %v674 = vtanh.pop %v546
      %v675 = vtanh.pop %v547
      %v676 = vtanh.pop %v548
      %v677 = vtanh.pop %v549
      %v678 = vtanh.pop %v550
      %v679 = vtanh.pop %v551
      %v680 = vtanh.pop %v552
      %v681 = vtanh.pop %v553
      %v682 = vtanh.pop %v554
      %v683 = vtanh.pop %v555
      %v684 = vtanh.pop %v556
      %v685 = vtanh.pop %v557
      %v686 = vtanh.pop %v558
      %v687 = vtanh.pop %v559
      %v688 = vtanh.pop %v560
      %v689 = vtanh.pop %v561
      %v690 = vtanh.pop %v562
      %v691 = vtanh.pop %v563
      %v692 = vtanh.pop %v564
      %v693 = vtanh.pop %v565
      %v694 = vtanh.pop %v566
      %v695 = vtanh.pop %v567
      %v696 = vtanh.pop %v568
      %v697 = vtanh.pop %v569
      %v698 = vtanh.pop %v570
      %v699 = vtanh.pop %v571
      %v700 = vtanh.pop %v572
      %v701 = vtanh.pop %v573
      %v702 = vtanh.pop %v574
      %v703 = vtanh.pop %v575
      %v704 = vtanh.pop %v576
      %v705 = vtanh.pop %v577
      %v706 = vtanh.pop %v578
      %v707 = vtanh.pop %v579
      %v708 = vtanh.pop %v580
      %v709 = vtanh.pop %v581
      %v710 = vtanh.pop %v582
      %v711 = vtanh.pop %v583
      %v712 = vtanh.pop %v584
      %v713 = vtanh.pop %v585
      %v714 = vtanh.pop %v586
      %v715 = vtanh.pop %v587
      %v716 = vtanh.pop %v588
      %v717 = vtanh.pop %v589
      %v718 = vtanh.pop %v590
      %v719 = vtanh.pop %v591
      %v720 = vtanh.pop %v592
      %v721 = vtanh.pop %v593
      %v722 = vtanh.pop %v594
      %v723 = vtanh.pop %v595
      %v724 = vtanh.pop %v596
      %v725 = vtanh.pop %v597
      %v726 = vtanh.pop %v598
      %v727 = vtanh.pop %v599
      %v728 = vtanh.pop %v600
      %v729 = vtanh.pop %v601
      %v730 = vtanh.pop %v602
      %v731 = vtanh.pop %v603
      %v732 = vtanh.pop %v604
      %v733 = vtanh.pop %v605
      %v734 = vtanh.pop %v606
      %v735 = vtanh.pop %v607
      %v736 = vtanh.pop %v608
      %v737 = vtanh.pop %v609
      %v738 = vtanh.pop %v610
      %v739 = vtanh.pop %v611
      %v740 = vtanh.pop %v612
      %v741 = vtanh.pop %v613
      %v742 = vtanh.pop %v614
      %v743 = vtanh.pop %v615
      %v744 = vtanh.pop %v616
      %v745 = vtanh.pop %v617
      %v746 = vld [vmem:[%s343] sm:$0xff]
      %v747 = vld [vmem:[%s343 + $0x8] sm:$0xff]
      %v748 = vld [vmem:[%s343 + $0x10] sm:$0xff]
      %v749 = vld [vmem:[%s343 + $0x18] sm:$0xff]
      %v750 = vld [vmem:[%s343 + $0x20] sm:$0xff]
      %v751 = vld [vmem:[%s343 + $0x28] sm:$0xff]
      %v752 = vld [vmem:[%s343 + $0x30] sm:$0xff]
      %v753 = vld [vmem:[%s343 + $0x38] sm:$0xff]
      %v754 = vld [vmem:[%s343 + $0x40] sm:$0xff]
      %v755 = vld [vmem:[%s343 + $0x48] sm:$0xff]
      %v756 = vld [vmem:[%s343 + $0x50] sm:$0xff]
      %v757 = vld [vmem:[%s343 + $0x58] sm:$0xff]
      %v758 = vld [vmem:[%s343 + $0x60] sm:$0xff]
      %v759 = vld [vmem:[%s343 + $0x68] sm:$0xff]
      %v760 = vld [vmem:[%s343 + $0x70] sm:$0xff]
      %v761 = vld [vmem:[%s343 + $0x78] sm:$0xff]
      %v762 = vmul.f32 %v618, %v746
      %v763 = vmul.f32 %v619, %v747
      %v764 = vmul.f32 %v620, %v748
      %v765 = vmul.f32 %v621, %v749
      %v766 = vmul.f32 %v622, %v750
      %v767 = vmul.f32 %v623, %v751
      %v768 = vmul.f32 %v624, %v752
      %v769 = vmul.f32 %v625, %v753
      %v770 = vmul.f32 %v626, %v754
      %v771 = vmul.f32 %v627, %v755
      %v772 = vmul.f32 %v628, %v756
      %v773 = vmul.f32 %v629, %v757
      %v774 = vmul.f32 %v630, %v758
      %v775 = vmul.f32 %v631, %v759
      %v776 = vmul.f32 %v632, %v760
      %v777 = vmul.f32 %v633, %v761
      %v778 = vmul.f32 %v634, %v746
      %v779 = vmul.f32 %v635, %v747
      %v780 = vmul.f32 %v636, %v748
      %v781 = vmul.f32 %v637, %v749
      %v782 = vmul.f32 %v638, %v750
      %v783 = vmul.f32 %v639, %v751
      %v784 = vmul.f32 %v640, %v752
      %v785 = vmul.f32 %v641, %v753
      %v786 = vmul.f32 %v642, %v754
      %v787 = vmul.f32 %v643, %v755
      %v788 = vmul.f32 %v644, %v756
      %v789 = vmul.f32 %v645, %v757
      %v790 = vmul.f32 %v646, %v758
      %v791 = vmul.f32 %v647, %v759
      %v792 = vmul.f32 %v648, %v760
      %v793 = vmul.f32 %v649, %v761
      %v794 = vmul.f32 %v650, %v746
      %v795 = vmul.f32 %v651, %v747
      %v796 = vmul.f32 %v652, %v748
      %v797 = vmul.f32 %v653, %v749
      %v798 = vmul.f32 %v654, %v750
      %v799 = vmul.f32 %v655, %v751
      %v800 = vmul.f32 %v656, %v752
      %v801 = vmul.f32 %v657, %v753
      %v802 = vmul.f32 %v658, %v754
      %v803 = vmul.f32 %v659, %v755
      %v804 = vmul.f32 %v660, %v756
      %v805 = vmul.f32 %v661, %v757
      %v806 = vmul.f32 %v662, %v758
      %v807 = vmul.f32 %v663, %v759
      %v808 = vmul.f32 %v664, %v760
      %v809 = vmul.f32 %v665, %v761
      %v810 = vmul.f32 %v666, %v746
      %v811 = vmul.f32 %v667, %v747
      %v812 = vmul.f32 %v668, %v748
      %v813 = vmul.f32 %v669, %v749
      %v814 = vmul.f32 %v670, %v750
      %v815 = vmul.f32 %v671, %v751
      %v816 = vmul.f32 %v672, %v752
      %v817 = vmul.f32 %v673, %v753
      %v818 = vmul.f32 %v674, %v754
      %v819 = vmul.f32 %v675, %v755
      %v820 = vmul.f32 %v676, %v756
      %v821 = vmul.f32 %v677, %v757
      %v822 = vmul.f32 %v678, %v758
      %v823 = vmul.f32 %v679, %v759
      %v824 = vmul.f32 %v680, %v760
      %v825 = vmul.f32 %v681, %v761
      %v826 = vmul.f32 %v682, %v746
      %v827 = vmul.f32 %v683, %v747
      %v828 = vmul.f32 %v684, %v748
      %v829 = vmul.f32 %v685, %v749
      %v830 = vmul.f32 %v686, %v750
      %v831 = vmul.f32 %v687, %v751
      %v832 = vmul.f32 %v688, %v752
      %v833 = vmul.f32 %v689, %v753
      %v834 = vmul.f32 %v690, %v754
      %v835 = vmul.f32 %v691, %v755
      %v836 = vmul.f32 %v692, %v756
      %v837 = vmul.f32 %v693, %v757
      %v838 = vmul.f32 %v694, %v758
      %v839 = vmul.f32 %v695, %v759
      %v840 = vmul.f32 %v696, %v760
      %v841 = vmul.f32 %v697, %v761
      %v842 = vmul.f32 %v698, %v746
      %v843 = vmul.f32 %v699, %v747
      %v844 = vmul.f32 %v700, %v748
      %v845 = vmul.f32 %v701, %v749
      %v846 = vmul.f32 %v702, %v750
      %v847 = vmul.f32 %v703, %v751
      %v848 = vmul.f32 %v704, %v752
      %v849 = vmul.f32 %v705, %v753
      %v850 = vmul.f32 %v706, %v754
      %v851 = vmul.f32 %v707, %v755
      %v852 = vmul.f32 %v708, %v756
      %v853 = vmul.f32 %v709, %v757
      %v854 = vmul.f32 %v710, %v758
      %v855 = vmul.f32 %v711, %v759
      %v856 = vmul.f32 %v712, %v760
      %v857 = vmul.f32 %v713, %v761
      %v858 = vmul.f32 %v714, %v746
      %v859 = vmul.f32 %v715, %v747
      %v860 = vmul.f32 %v716, %v748
      %v861 = vmul.f32 %v717, %v749
      %v862 = vmul.f32 %v718, %v750
      %v863 = vmul.f32 %v719, %v751
      %v864 = vmul.f32 %v720, %v752
      %v865 = vmul.f32 %v721, %v753
      %v866 = vmul.f32 %v722, %v754
      %v867 = vmul.f32 %v723, %v755
      %v868 = vmul.f32 %v724, %v756
      %v869 = vmul.f32 %v725, %v757
      %v870 = vmul.f32 %v726, %v758
      %v871 = vmul.f32 %v727, %v759
      %v872 = vmul.f32 %v728, %v760
      %v873 = vmul.f32 %v729, %v761
      %v874 = vmul.f32 %v730, %v746
      %v875 = vmul.f32 %v731, %v747
      %v876 = vmul.f32 %v732, %v748
      %v877 = vmul.f32 %v733, %v749
      %v878 = vmul.f32 %v734, %v750
      %v879 = vmul.f32 %v735, %v751
      %v880 = vmul.f32 %v736, %v752
      %v881 = vmul.f32 %v737, %v753
      %v882 = vmul.f32 %v738, %v754
      %v883 = vmul.f32 %v739, %v755
      %v884 = vmul.f32 %v740, %v756
      %v885 = vmul.f32 %v741, %v757
      %v886 = vmul.f32 %v742, %v758
      %v887 = vmul.f32 %v743, %v759
      %v888 = vmul.f32 %v744, %v760
      %v889 = vmul.f32 %v745, %v761
      %890 = vadd.xlane.f32.xlu0 %v762
      %v891 = vpop.xlane.xlu0 %890
      %892 = vadd.xlane.f32.xlu0 %v763
      %v893 = vpop.xlane.xlu0 %892
      %894 = vadd.xlane.f32.xlu0 %v764
      %v895 = vpop.xlane.xlu0 %894
      %896 = vadd.xlane.f32.xlu0 %v765
      %v897 = vpop.xlane.xlu0 %896
      %898 = vadd.xlane.f32.xlu0 %v766
      %v899 = vpop.xlane.xlu0 %898
      %900 = vadd.xlane.f32.xlu0 %v767
      %v901 = vpop.xlane.xlu0 %900
      %902 = vadd.xlane.f32.xlu0 %v768
      %v903 = vpop.xlane.xlu0 %902
      %904 = vadd.xlane.f32.xlu0 %v769
      %v905 = vpop.xlane.xlu0 %904
      %906 = vadd.xlane.f32.xlu0 %v770
      %v907 = vpop.xlane.xlu0 %906
      %908 = vadd.xlane.f32.xlu0 %v771
      %v909 = vpop.xlane.xlu0 %908
      %910 = vadd.xlane.f32.xlu0 %v772
      %v911 = vpop.xlane.xlu0 %910
      %912 = vadd.xlane.f32.xlu0 %v773
      %v913 = vpop.xlane.xlu0 %912
      %914 = vadd.xlane.f32.xlu0 %v774
      %v915 = vpop.xlane.xlu0 %914
      %916 = vadd.xlane.f32.xlu0 %v775
      %v917 = vpop.xlane.xlu0 %916
      %918 = vadd.xlane.f32.xlu0 %v776
      %v919 = vpop.xlane.xlu0 %918
      %920 = vadd.xlane.f32.xlu0 %v777
      %v921 = vpop.xlane.xlu0 %920
      %922 = vadd.xlane.f32.xlu0 %v778
      %v923 = vpop.xlane.xlu0 %922
      %924 = vadd.xlane.f32.xlu0 %v779
      %v925 = vpop.xlane.xlu0 %924
      %926 = vadd.xlane.f32.xlu0 %v780
      %v927 = vpop.xlane.xlu0 %926
      %928 = vadd.xlane.f32.xlu0 %v781
      %v929 = vpop.xlane.xlu0 %928
      %930 = vadd.xlane.f32.xlu0 %v782
      %v931 = vpop.xlane.xlu0 %930
      %932 = vadd.xlane.f32.xlu0 %v783
      %v933 = vpop.xlane.xlu0 %932
      %934 = vadd.xlane.f32.xlu0 %v784
      %v935 = vpop.xlane.xlu0 %934
      %936 = vadd.xlane.f32.xlu0 %v785
      %v937 = vpop.xlane.xlu0 %936
      %938 = vadd.xlane.f32.xlu0 %v786
      %v939 = vpop.xlane.xlu0 %938
      %940 = vadd.xlane.f32.xlu0 %v787
      %v941 = vpop.xlane.xlu0 %940
      %942 = vadd.xlane.f32.xlu0 %v788
      %v943 = vpop.xlane.xlu0 %942
      %944 = vadd.xlane.f32.xlu0 %v789
      %v945 = vpop.xlane.xlu0 %944
      %946 = vadd.xlane.f32.xlu0 %v790
      %v947 = vpop.xlane.xlu0 %946
      %948 = vadd.xlane.f32.xlu0 %v791
      %v949 = vpop.xlane.xlu0 %948
      %950 = vadd.xlane.f32.xlu0 %v792
      %v951 = vpop.xlane.xlu0 %950
      %952 = vadd.xlane.f32.xlu0 %v793
      %v953 = vpop.xlane.xlu0 %952
      %954 = vadd.xlane.f32.xlu0 %v794
      %v955 = vpop.xlane.xlu0 %954
      %956 = vadd.xlane.f32.xlu0 %v795
      %v957 = vpop.xlane.xlu0 %956
      %958 = vadd.xlane.f32.xlu0 %v796
      %v959 = vpop.xlane.xlu0 %958
      %960 = vadd.xlane.f32.xlu0 %v797
      %v961 = vpop.xlane.xlu0 %960
      %962 = vadd.xlane.f32.xlu0 %v798
      %v963 = vpop.xlane.xlu0 %962
      %964 = vadd.xlane.f32.xlu0 %v799
      %v965 = vpop.xlane.xlu0 %964
      %966 = vadd.xlane.f32.xlu0 %v800
      %v967 = vpop.xlane.xlu0 %966
      %968 = vadd.xlane.f32.xlu0 %v801
      %v969 = vpop.xlane.xlu0 %968
      %970 = vadd.xlane.f32.xlu0 %v802
      %v971 = vpop.xlane.xlu0 %970
      %972 = vadd.xlane.f32.xlu0 %v803
      %v973 = vpop.xlane.xlu0 %972
      %974 = vadd.xlane.f32.xlu0 %v804
      %v975 = vpop.xlane.xlu0 %974
      %976 = vadd.xlane.f32.xlu0 %v805
      %v977 = vpop.xlane.xlu0 %976
      %978 = vadd.xlane.f32.xlu0 %v806
      %v979 = vpop.xlane.xlu0 %978
      %980 = vadd.xlane.f32.xlu0 %v807
      %v981 = vpop.xlane.xlu0 %980
      %982 = vadd.xlane.f32.xlu0 %v808
      %v983 = vpop.xlane.xlu0 %982
      %984 = vadd.xlane.f32.xlu0 %v809
      %v985 = vpop.xlane.xlu0 %984
      %986 = vadd.xlane.f32.xlu0 %v810
      %v987 = vpop.xlane.xlu0 %986
      %988 = vadd.xlane.f32.xlu0 %v811
      %v989 = vpop.xlane.xlu0 %988
      %990 = vadd.xlane.f32.xlu0 %v812
      %v991 = vpop.xlane.xlu0 %990
      %992 = vadd.xlane.f32.xlu0 %v813
      %v993 = vpop.xlane.xlu0 %992
      %994 = vadd.xlane.f32.xlu0 %v814
      %v995 = vpop.xlane.xlu0 %994
      %996 = vadd.xlane.f32.xlu0 %v815
      %v997 = vpop.xlane.xlu0 %996
      %998 = vadd.xlane.f32.xlu0 %v816
      %v999 = vpop.xlane.xlu0 %998
      %1000 = vadd.xlane.f32.xlu0 %v817
      %v1001 = vpop.xlane.xlu0 %1000
      %1002 = vadd.xlane.f32.xlu0 %v818
      %v1003 = vpop.xlane.xlu0 %1002
      %1004 = vadd.xlane.f32.xlu0 %v819
      %v1005 = vpop.xlane.xlu0 %1004
      %1006 = vadd.xlane.f32.xlu0 %v820
      %v1007 = vpop.xlane.xlu0 %1006
      %1008 = vadd.xlane.f32.xlu0 %v821
      %v1009 = vpop.xlane.xlu0 %1008
      %1010 = vadd.xlane.f32.xlu0 %v822
      %v1011 = vpop.xlane.xlu0 %1010
      %1012 = vadd.xlane.f32.xlu0 %v823
      %v1013 = vpop.xlane.xlu0 %1012
      %1014 = vadd.xlane.f32.xlu0 %v824
      %v1015 = vpop.xlane.xlu0 %1014
      %1016 = vadd.xlane.f32.xlu0 %v825
      %v1017 = vpop.xlane.xlu0 %1016
      %1018 = vadd.xlane.f32.xlu0 %v826
      %v1019 = vpop.xlane.xlu0 %1018
      %1020 = vadd.xlane.f32.xlu0 %v827
      %v1021 = vpop.xlane.xlu0 %1020
      %1022 = vadd.xlane.f32.xlu0 %v828
      %v1023 = vpop.xlane.xlu0 %1022
      %1024 = vadd.xlane.f32.xlu0 %v829
      %v1025 = vpop.xlane.xlu0 %1024
      %1026 = vadd.xlane.f32.xlu0 %v830
      %v1027 = vpop.xlane.xlu0 %1026
      %1028 = vadd.xlane.f32.xlu0 %v831
      %v1029 = vpop.xlane.xlu0 %1028
      %1030 = vadd.xlane.f32.xlu0 %v832
      %v1031 = vpop.xlane.xlu0 %1030
      %1032 = vadd.xlane.f32.xlu0 %v833
      %v1033 = vpop.xlane.xlu0 %1032
      %1034 = vadd.xlane.f32.xlu0 %v834
      %v1035 = vpop.xlane.xlu0 %1034
      %1036 = vadd.xlane.f32.xlu0 %v835
      %v1037 = vpop.xlane.xlu0 %1036
      %1038 = vadd.xlane.f32.xlu0 %v836
      %v1039 = vpop.xlane.xlu0 %1038
      %1040 = vadd.xlane.f32.xlu0 %v837
      %v1041 = vpop.xlane.xlu0 %1040
      %1042 = vadd.xlane.f32.xlu0 %v838
      %v1043 = vpop.xlane.xlu0 %1042
      %1044 = vadd.xlane.f32.xlu0 %v839
      %v1045 = vpop.xlane.xlu0 %1044
      %1046 = vadd.xlane.f32.xlu0 %v840
      %v1047 = vpop.xlane.xlu0 %1046
      %1048 = vadd.xlane.f32.xlu0 %v841
      %v1049 = vpop.xlane.xlu0 %1048
      %1050 = vadd.xlane.f32.xlu0 %v842
      %v1051 = vpop.xlane.xlu0 %1050
      %1052 = vadd.xlane.f32.xlu0 %v843
      %v1053 = vpop.xlane.xlu0 %1052
      %1054 = vadd.xlane.f32.xlu0 %v844
      %v1055 = vpop.xlane.xlu0 %1054
      %1056 = vadd.xlane.f32.xlu0 %v845
      %v1057 = vpop.xlane.xlu0 %1056
      %1058 = vadd.xlane.f32.xlu0 %v846
      %v1059 = vpop.xlane.xlu0 %1058
      %1060 = vadd.xlane.f32.xlu0 %v847
      %v1061 = vpop.xlane.xlu0 %1060
      %1062 = vadd.xlane.f32.xlu0 %v848
      %v1063 = vpop.xlane.xlu0 %1062
      %1064 = vadd.xlane.f32.xlu0 %v849
      %v1065 = vpop.xlane.xlu0 %1064
      %1066 = vadd.xlane.f32.xlu0 %v850
      %v1067 = vpop.xlane.xlu0 %1066
      %1068 = vadd.xlane.f32.xlu0 %v851
      %v1069 = vpop.xlane.xlu0 %1068
      %1070 = vadd.xlane.f32.xlu0 %v852
      %v1071 = vpop.xlane.xlu0 %1070
      %1072 = vadd.xlane.f32.xlu0 %v853
      %v1073 = vpop.xlane.xlu0 %1072
      %1074 = vadd.xlane.f32.xlu0 %v854
      %v1075 = vpop.xlane.xlu0 %1074
      %1076 = vadd.xlane.f32.xlu0 %v855
      %v1077 = vpop.xlane.xlu0 %1076
      %1078 = vadd.xlane.f32.xlu0 %v856
      %v1079 = vpop.xlane.xlu0 %1078
      %1080 = vadd.xlane.f32.xlu0 %v857
      %v1081 = vpop.xlane.xlu0 %1080
      %1082 = vadd.xlane.f32.xlu0 %v858
      %v1083 = vpop.xlane.xlu0 %1082
      %1084 = vadd.xlane.f32.xlu0 %v859
      %v1085 = vpop.xlane.xlu0 %1084
      %1086 = vadd.xlane.f32.xlu0 %v860
      %v1087 = vpop.xlane.xlu0 %1086
      %1088 = vadd.xlane.f32.xlu0 %v861
      %v1089 = vpop.xlane.xlu0 %1088
      %1090 = vadd.xlane.f32.xlu0 %v862
      %v1091 = vpop.xlane.xlu0 %1090
      %1092 = vadd.xlane.f32.xlu0 %v863
      %v1093 = vpop.xlane.xlu0 %1092
      %1094 = vadd.xlane.f32.xlu0 %v864
      %v1095 = vpop.xlane.xlu0 %1094
      %1096 = vadd.xlane.f32.xlu0 %v865
      %v1097 = vpop.xlane.xlu0 %1096
      %1098 = vadd.xlane.f32.xlu0 %v866
      %v1099 = vpop.xlane.xlu0 %1098
      %1100 = vadd.xlane.f32.xlu0 %v867
      %v1101 = vpop.xlane.xlu0 %1100
      %1102 = vadd.xlane.f32.xlu0 %v868
      %v1103 = vpop.xlane.xlu0 %1102
      %1104 = vadd.xlane.f32.xlu0 %v869
      %v1105 = vpop.xlane.xlu0 %1104
      %1106 = vadd.xlane.f32.xlu0 %v870
      %v1107 = vpop.xlane.xlu0 %1106
      %1108 = vadd.xlane.f32.xlu0 %v871
      %v1109 = vpop.xlane.xlu0 %1108
      %1110 = vadd.xlane.f32.xlu0 %v872
      %v1111 = vpop.xlane.xlu0 %1110
      %1112 = vadd.xlane.f32.xlu0 %v873
      %v1113 = vpop.xlane.xlu0 %1112
      %1114 = vadd.xlane.f32.xlu0 %v874
      %v1115 = vpop.xlane.xlu0 %1114
      %1116 = vadd.xlane.f32.xlu0 %v875
      %v1117 = vpop.xlane.xlu0 %1116
      %1118 = vadd.xlane.f32.xlu0 %v876
      %v1119 = vpop.xlane.xlu0 %1118
      %1120 = vadd.xlane.f32.xlu0 %v877
      %v1121 = vpop.xlane.xlu0 %1120
      %1122 = vadd.xlane.f32.xlu0 %v878
      %v1123 = vpop.xlane.xlu0 %1122
      %1124 = vadd.xlane.f32.xlu0 %v879
      %v1125 = vpop.xlane.xlu0 %1124
      %1126 = vadd.xlane.f32.xlu0 %v880
      %v1127 = vpop.xlane.xlu0 %1126
      %1128 = vadd.xlane.f32.xlu0 %v881
      %v1129 = vpop.xlane.xlu0 %1128
      %1130 = vadd.xlane.f32.xlu0 %v882
      %v1131 = vpop.xlane.xlu0 %1130
      %1132 = vadd.xlane.f32.xlu0 %v883
      %v1133 = vpop.xlane.xlu0 %1132
      %1134 = vadd.xlane.f32.xlu0 %v884
      %v1135 = vpop.xlane.xlu0 %1134
      %1136 = vadd.xlane.f32.xlu0 %v885
      %v1137 = vpop.xlane.xlu0 %1136
      %1138 = vadd.xlane.f32.xlu0 %v886
      %v1139 = vpop.xlane.xlu0 %1138
      %1140 = vadd.xlane.f32.xlu0 %v887
      %v1141 = vpop.xlane.xlu0 %1140
      %1142 = vadd.xlane.f32.xlu0 %v888
      %v1143 = vpop.xlane.xlu0 %1142
      %1144 = vadd.xlane.f32.xlu0 %v889
      %v1145 = vpop.xlane.xlu0 %1144
      %v1146 = vpack.c.bf16 %v619, %v618
      %v1147 = vpack.c.bf16 %v621, %v620
      %v1148 = vpack.c.bf16 %v623, %v622
      %v1149 = vpack.c.bf16 %v625, %v624
      %v1150 = vpack.c.bf16 %v627, %v626
      %v1151 = vpack.c.bf16 %v629, %v628
      %v1152 = vpack.c.bf16 %v631, %v630
      %v1153 = vpack.c.bf16 %v633, %v632
      %v1154 = vpack.c.bf16 %v635, %v634
      %v1155 = vpack.c.bf16 %v637, %v636
      %v1156 = vpack.c.bf16 %v639, %v638
      %v1157 = vpack.c.bf16 %v641, %v640
      %v1158 = vpack.c.bf16 %v643, %v642
      %v1159 = vpack.c.bf16 %v645, %v644
      %v1160 = vpack.c.bf16 %v647, %v646
      %v1161 = vpack.c.bf16 %v649, %v648
      %v1162 = vpack.c.bf16 %v651, %v650
      %v1163 = vpack.c.bf16 %v653, %v652
      %v1164 = vpack.c.bf16 %v655, %v654
      %v1165 = vpack.c.bf16 %v657, %v656
      %v1166 = vpack.c.bf16 %v659, %v658
      %v1167 = vpack.c.bf16 %v661, %v660
      %v1168 = vpack.c.bf16 %v663, %v662
      %v1169 = vpack.c.bf16 %v665, %v664
      %v1170 = vpack.c.bf16 %v667, %v666
      %v1171 = vpack.c.bf16 %v669, %v668
      %v1172 = vpack.c.bf16 %v671, %v670
      %v1173 = vpack.c.bf16 %v673, %v672
      %v1174 = vpack.c.bf16 %v675, %v674
      %v1175 = vpack.c.bf16 %v677, %v676
      %v1176 = vpack.c.bf16 %v679, %v678
      %v1177 = vpack.c.bf16 %v681, %v680
      %v1178 = vpack.c.bf16 %v683, %v682
      %v1179 = vpack.c.bf16 %v685, %v684
      %v1180 = vpack.c.bf16 %v687, %v686
      %v1181 = vpack.c.bf16 %v689, %v688
      %v1182 = vpack.c.bf16 %v691, %v690
      %v1183 = vpack.c.bf16 %v693, %v692
      %v1184 = vpack.c.bf16 %v695, %v694
      %v1185 = vpack.c.bf16 %v697, %v696
      %v1186 = vpack.c.bf16 %v699, %v698
      %v1187 = vpack.c.bf16 %v701, %v700
      %v1188 = vpack.c.bf16 %v703, %v702
      %v1189 = vpack.c.bf16 %v705, %v704
      %v1190 = vpack.c.bf16 %v707, %v706
      %v1191 = vpack.c.bf16 %v709, %v708
      %v1192 = vpack.c.bf16 %v711, %v710
      %v1193 = vpack.c.bf16 %v713, %v712
      %v1194 = vpack.c.bf16 %v715, %v714
      %v1195 = vpack.c.bf16 %v717, %v716
      %v1196 = vpack.c.bf16 %v719, %v718
      %v1197 = vpack.c.bf16 %v721, %v720
      %v1198 = vpack.c.bf16 %v723, %v722
      %v1199 = vpack.c.bf16 %v725, %v724
      %v1200 = vpack.c.bf16 %v727, %v726
      %v1201 = vpack.c.bf16 %v729, %v728
      %v1202 = vpack.c.bf16 %v731, %v730
      %v1203 = vpack.c.bf16 %v733, %v732
      %v1204 = vpack.c.bf16 %v735, %v734
      %v1205 = vpack.c.bf16 %v737, %v736
      %v1206 = vpack.c.bf16 %v739, %v738
      %v1207 = vpack.c.bf16 %v741, %v740
      %v1208 = vpack.c.bf16 %v743, %v742
      %v1209 = vpack.c.bf16 %v745, %v744
      %v1210 = vld [vmem:[%s3] sm:$0xf]
      %v1211 = vld [vmem:[%s3 + $0x4] sm:$0xf]
      %v1212 = vld [vmem:[%s3 + $0x8] sm:$0xf]
      %v1213 = vld [vmem:[%s3 + $0xc] sm:$0xf]
      %v1214 = vld [vmem:[%s3 + $0x10] sm:$0xf]
      %v1215 = vld [vmem:[%s3 + $0x14] sm:$0xf]
      %v1216 = vld [vmem:[%s3 + $0x18] sm:$0xf]
      %v1217 = vld [vmem:[%s3 + $0x1c] sm:$0xf]
      %v1218 = vld [vmem:[%s3 + $0x20] sm:$0xf]
      %v1219 = vld [vmem:[%s3 + $0x24] sm:$0xf]
      %v1220 = vld [vmem:[%s3 + $0x28] sm:$0xf]
      %v1221 = vld [vmem:[%s3 + $0x2c] sm:$0xf]
      %v1222 = vld [vmem:[%s3 + $0x30] sm:$0xf]
      %v1223 = vld [vmem:[%s3 + $0x34] sm:$0xf]
      %v1224 = vld [vmem:[%s3 + $0x38] sm:$0xf]
      %v1225 = vld [vmem:[%s3 + $0x3c] sm:$0xf]
      %v1242 = vunpack.c.l.b16 %v1210
      %v1243 = vunpack.c.l.b16 %v1211
      %v1244 = vunpack.c.l.b16 %v1212
      %v1245 = vunpack.c.l.b16 %v1213
      %v1246 = vunpack.c.l.b16 %v1214
      %v1247 = vunpack.c.l.b16 %v1215
      %v1248 = vunpack.c.l.b16 %v1216
      %v1249 = vunpack.c.l.b16 %v1217
      %v1250 = vunpack.c.l.b16 %v1218
      %v1251 = vunpack.c.l.b16 %v1219
      %v1252 = vunpack.c.l.b16 %v1220
      %v1253 = vunpack.c.l.b16 %v1221
      %v1254 = vunpack.c.l.b16 %v1222
      %v1255 = vunpack.c.l.b16 %v1223
      %v1256 = vunpack.c.l.b16 %v1224
      %v1257 = vunpack.c.l.b16 %v1225
      %v1258 = vpack.c.b16 %v1243, %v1242
      %v1259 = vpack.c.b16 %v1245, %v1244
      %v1260 = vpack.c.b16 %v1247, %v1246
      %v1261 = vpack.c.b16 %v1249, %v1248
      %v1262 = vpack.c.b16 %v1251, %v1250
      %v1263 = vpack.c.b16 %v1253, %v1252
      %v1264 = vpack.c.b16 %v1255, %v1254
      %v1265 = vpack.c.b16 %v1257, %v1256
      %1274 = vmatprep.subr.bf16.mxu0 0
      %1275 = vmatpush1.bf16.msra.mxu0 %v1258
      %1276 = vmatprep.subr.bf16.mxu0 0
      %1277 = vmatpush1.bf16.msra.mxu0 %v1259
      %1278 = vmatprep.subr.bf16.mxu0 0
      %1279 = vmatpush1.bf16.msra.mxu0 %v1260
      %1280 = vmatprep.subr.bf16.mxu0 0
      %1281 = vmatpush1.bf16.msra.mxu0 %v1261
      %1282 = vmatprep.subr.bf16.mxu0 0
      %1283 = vmatpush1.bf16.msra.mxu0 %v1262
      %1284 = vmatprep.subr.bf16.mxu0 0
      %1285 = vmatpush1.bf16.msra.mxu0 %v1263
      %1286 = vmatprep.subr.bf16.mxu0 0
      %1287 = vmatpush1.bf16.msra.mxu0 %v1264
      %1288 = vmatprep.subr.bf16.mxu0 0
      %1289 = vmatpush1.bf16.msra.mxu0 %v1265
      %1290 = vmatprep.subr.bf16.mxu0 0
      %1291 = vmatpush1.bf16.msra.mxu0 0
      %1292 = vmatprep.subr.bf16.mxu0 0
      %1293 = vmatpush1.bf16.msra.mxu0 0
      %1294 = vmatprep.subr.bf16.mxu0 0
      %1295 = vmatpush1.bf16.msra.mxu0 0
      %1296 = vmatprep.subr.bf16.mxu0 0
      %1297 = vmatpush1.bf16.msra.mxu0 0
      %1298 = vmatprep.subr.bf16.mxu0 0
      %1299 = vmatpush1.bf16.msra.mxu0 0
      %1300 = vmatprep.subr.bf16.mxu0 0
      %1301 = vmatpush1.bf16.msra.mxu0 0
      %1302 = vmatprep.subr.bf16.mxu0 0
      %1303 = vmatpush1.bf16.msra.mxu0 0
      %1304 = vmatprep.subr.bf16.mxu0 0
      %1305 = vmatpush1.bf16.msra.mxu0 0
      %1306 = vmatprep.mubr.bf16.mxu0 0
      %1307 = vmatmul.mubr.bf16.gmra.mrb[0].mxu0 %v1146
      %v1308 = vpop.f32.mrb[0].mxu0
      %v1309 = vadd.f32 0.0, %v1308
      %v1310 = vpop.f32.mrb[0].mxu0
      %v1311 = vpop.f32.mrb[0].mxu0
      %v1312 = vadd.f32 0.0, %v1311
      %v1313 = vpop.f32.mrb[0].mxu0
      %1314 = vmatprep.mubr.bf16.mxu0 0
      %1315 = vmatmul.mubr.bf16.gmra.mrb[0].mxu0 %v1147
      %v1316 = vpop.f32.mrb[0].mxu0
      %v1317 = vadd.f32 0.0, %v1316
      %v1318 = vpop.f32.mrb[0].mxu0
      %v1319 = vpop.f32.mrb[0].mxu0
      %v1320 = vadd.f32 0.0, %v1319
      %v1321 = vpop.f32.mrb[0].mxu0
      %1322 = vmatprep.mubr.bf16.mxu0 0
      %1323 = vmatmul.mubr.bf16.gmra.mrb[0].mxu0 %v1148
      %v1324 = vpop.f32.mrb[0].mxu0
      %v1325 = vadd.f32 0.0, %v1324
      %v1326 = vpop.f32.mrb[0].mxu0
      %v1327 = vpop.f32.mrb[0].mxu0
      %v1328 = vadd.f32 0.0, %v1327
      %v1329 = vpop.f32.mrb[0].mxu0
      %1330 = vmatprep.mubr.bf16.mxu0 0
      %1331 = vmatmul.mubr.bf16.gmra.mrb[0].mxu0 %v1149
      %v1332 = vpop.f32.mrb[0].mxu0
      %v1333 = vadd.f32 0.0, %v1332
      %v1334 = vpop.f32.mrb[0].mxu0
      %v1335 = vpop.f32.mrb[0].mxu0
      %v1336 = vadd.f32 0.0, %v1335
      %v1337 = vpop.f32.mrb[0].mxu0
      %1338 = vmatprep.mubr.bf16.mxu0 0
      %1339 = vmatmul.mubr.bf16.gmra.mrb[0].mxu0 %v1150
      %v1340 = vpop.f32.mrb[0].mxu0
      %v1341 = vadd.f32 0.0, %v1340
      %v1342 = vpop.f32.mrb[0].mxu0
      %v1343 = vpop.f32.mrb[0].mxu0
      %v1344 = vadd.f32 0.0, %v1343
      %v1345 = vpop.f32.mrb[0].mxu0
      %1346 = vmatprep.mubr.bf16.mxu0 0
      %1347 = vmatmul.mubr.bf16.gmra.mrb[0].mxu0 %v1151
      %v1348 = vpop.f32.mrb[0].mxu0
      %v1349 = vadd.f32 0.0, %v1348
      %v1350 = vpop.f32.mrb[0].mxu0
      %v1351 = vpop.f32.mrb[0].mxu0
      %v1352 = vadd.f32 0.0, %v1351
      %v1353 = vpop.f32.mrb[0].mxu0
      %1354 = vmatprep.mubr.bf16.mxu0 0
      %1355 = vmatmul.mubr.bf16.gmra.mrb[0].mxu0 %v1152
      %v1356 = vpop.f32.mrb[0].mxu0
      %v1357 = vadd.f32 0.0, %v1356
      %v1358 = vpop.f32.mrb[0].mxu0
      %v1359 = vpop.f32.mrb[0].mxu0
      %v1360 = vadd.f32 0.0, %v1359
      %v1361 = vpop.f32.mrb[0].mxu0
      %1362 = vmatprep.mubr.bf16.mxu0 0
      %1363 = vmatmul.mubr.bf16.gmra.mrb[0].mxu0 %v1153
      %v1364 = vpop.f32.mrb[0].mxu0
      %v1365 = vadd.f32 0.0, %v1364
      %v1366 = vpop.f32.mrb[0].mxu0
      %v1367 = vpop.f32.mrb[0].mxu0
      %v1368 = vadd.f32 0.0, %v1367
      %v1369 = vpop.f32.mrb[0].mxu0
      %1370 = vmatprep.mubr.bf16.mxu0 0
      %1371 = vmatmul.mubr.bf16.gmra.mrb[0].mxu0 %v1154
      %v1372 = vpop.f32.mrb[0].mxu0
      %v1373 = vadd.f32 0.0, %v1372
      %v1374 = vpop.f32.mrb[0].mxu0
      %v1375 = vpop.f32.mrb[0].mxu0
      %v1376 = vadd.f32 0.0, %v1375
      %v1377 = vpop.f32.mrb[0].mxu0
      %1378 = vmatprep.mubr.bf16.mxu0 0
      %1379 = vmatmul.mubr.bf16.gmra.mrb[0].mxu0 %v1155
      %v1380 = vpop.f32.mrb[0].mxu0
      %v1381 = vadd.f32 0.0, %v1380
      %v1382 = vpop.f32.mrb[0].mxu0
      %v1383 = vpop.f32.mrb[0].mxu0
      %v1384 = vadd.f32 0.0, %v1383
      %v1385 = vpop.f32.mrb[0].mxu0
      %1386 = vmatprep.mubr.bf16.mxu0 0
      %1387 = vmatmul.mubr.bf16.gmra.mrb[0].mxu0 %v1156
      %v1388 = vpop.f32.mrb[0].mxu0
      %v1389 = vadd.f32 0.0, %v1388
      %v1390 = vpop.f32.mrb[0].mxu0
      %v1391 = vpop.f32.mrb[0].mxu0
      %v1392 = vadd.f32 0.0, %v1391
      %v1393 = vpop.f32.mrb[0].mxu0
      %1394 = vmatprep.mubr.bf16.mxu0 0
      %1395 = vmatmul.mubr.bf16.gmra.mrb[0].mxu0 %v1157
      %v1396 = vpop.f32.mrb[0].mxu0
      %v1397 = vadd.f32 0.0, %v1396
      %v1398 = vpop.f32.mrb[0].mxu0
      %v1399 = vpop.f32.mrb[0].mxu0
      %v1400 = vadd.f32 0.0, %v1399
      %v1401 = vpop.f32.mrb[0].mxu0
      %1402 = vmatprep.mubr.bf16.mxu0 0
      %1403 = vmatmul.mubr.bf16.gmra.mrb[0].mxu0 %v1158
      %v1404 = vpop.f32.mrb[0].mxu0
      %v1405 = vadd.f32 0.0, %v1404
      %v1406 = vpop.f32.mrb[0].mxu0
      %v1407 = vpop.f32.mrb[0].mxu0
      %v1408 = vadd.f32 0.0, %v1407
      %v1409 = vpop.f32.mrb[0].mxu0
      %1410 = vmatprep.mubr.bf16.mxu0 0
      %1411 = vmatmul.mubr.bf16.gmra.mrb[0].mxu0 %v1159
      %v1412 = vpop.f32.mrb[0].mxu0
      %v1413 = vadd.f32 0.0, %v1412
      %v1414 = vpop.f32.mrb[0].mxu0
      %v1415 = vpop.f32.mrb[0].mxu0
      %v1416 = vadd.f32 0.0, %v1415
      %v1417 = vpop.f32.mrb[0].mxu0
      %1418 = vmatprep.mubr.bf16.mxu0 0
      %1419 = vmatmul.mubr.bf16.gmra.mrb[0].mxu0 %v1160
      %v1420 = vpop.f32.mrb[0].mxu0
      %v1421 = vadd.f32 0.0, %v1420
      %v1422 = vpop.f32.mrb[0].mxu0
      %v1423 = vpop.f32.mrb[0].mxu0
      %v1424 = vadd.f32 0.0, %v1423
      %v1425 = vpop.f32.mrb[0].mxu0
      %1426 = vmatprep.mubr.bf16.mxu0 0
      %1427 = vmatmul.mubr.bf16.gmra.mrb[0].mxu0 %v1161
      %v1428 = vpop.f32.mrb[0].mxu0
      %v1429 = vadd.f32 0.0, %v1428
      %v1430 = vpop.f32.mrb[0].mxu0
      %v1431 = vpop.f32.mrb[0].mxu0
      %v1432 = vadd.f32 0.0, %v1431
      %v1433 = vpop.f32.mrb[0].mxu0
      %1434 = vmatprep.mubr.bf16.mxu0 0
      %1435 = vmatmul.mubr.bf16.gmra.mrb[0].mxu0 %v1162
      %v1436 = vpop.f32.mrb[0].mxu0
      %v1437 = vadd.f32 0.0, %v1436
      %v1438 = vpop.f32.mrb[0].mxu0
      %v1439 = vpop.f32.mrb[0].mxu0
      %v1440 = vadd.f32 0.0, %v1439
      %v1441 = vpop.f32.mrb[0].mxu0
      %1442 = vmatprep.mubr.bf16.mxu0 0
      %1443 = vmatmul.mubr.bf16.gmra.mrb[0].mxu0 %v1163
      %v1444 = vpop.f32.mrb[0].mxu0
      %v1445 = vadd.f32 0.0, %v1444
      %v1446 = vpop.f32.mrb[0].mxu0
      %v1447 = vpop.f32.mrb[0].mxu0
      %v1448 = vadd.f32 0.0, %v1447
      %v1449 = vpop.f32.mrb[0].mxu0
      %1450 = vmatprep.mubr.bf16.mxu0 0
      %1451 = vmatmul.mubr.bf16.gmra.mrb[0].mxu0 %v1164
      %v1452 = vpop.f32.mrb[0].mxu0
      %v1453 = vadd.f32 0.0, %v1452
      %v1454 = vpop.f32.mrb[0].mxu0
      %v1455 = vpop.f32.mrb[0].mxu0
      %v1456 = vadd.f32 0.0, %v1455
      %v1457 = vpop.f32.mrb[0].mxu0
      %1458 = vmatprep.mubr.bf16.mxu0 0
      %1459 = vmatmul.mubr.bf16.gmra.mrb[0].mxu0 %v1165
      %v1460 = vpop.f32.mrb[0].mxu0
      %v1461 = vadd.f32 0.0, %v1460
      %v1462 = vpop.f32.mrb[0].mxu0
      %v1463 = vpop.f32.mrb[0].mxu0
      %v1464 = vadd.f32 0.0, %v1463
      %v1465 = vpop.f32.mrb[0].mxu0
      %1466 = vmatprep.mubr.bf16.mxu0 0
      %1467 = vmatmul.mubr.bf16.gmra.mrb[0].mxu0 %v1166
      %v1468 = vpop.f32.mrb[0].mxu0
      %v1469 = vadd.f32 0.0, %v1468
      %v1470 = vpop.f32.mrb[0].mxu0
      %v1471 = vpop.f32.mrb[0].mxu0
      %v1472 = vadd.f32 0.0, %v1471
      %v1473 = vpop.f32.mrb[0].mxu0
      %1474 = vmatprep.mubr.bf16.mxu0 0
      %1475 = vmatmul.mubr.bf16.gmra.mrb[0].mxu0 %v1167
      %v1476 = vpop.f32.mrb[0].mxu0
      %v1477 = vadd.f32 0.0, %v1476
      %v1478 = vpop.f32.mrb[0].mxu0
      %v1479 = vpop.f32.mrb[0].mxu0
      %v1480 = vadd.f32 0.0, %v1479
      %v1481 = vpop.f32.mrb[0].mxu0
      %1482 = vmatprep.mubr.bf16.mxu0 0
      %1483 = vmatmul.mubr.bf16.gmra.mrb[0].mxu0 %v1168
      %v1484 = vpop.f32.mrb[0].mxu0
      %v1485 = vadd.f32 0.0, %v1484
      %v1486 = vpop.f32.mrb[0].mxu0
      %v1487 = vpop.f32.mrb[0].mxu0
      %v1488 = vadd.f32 0.0, %v1487
      %v1489 = vpop.f32.mrb[0].mxu0
      %1490 = vmatprep.mubr.bf16.mxu0 0
      %1491 = vmatmul.mubr.bf16.gmra.mrb[0].mxu0 %v1169
      %v1492 = vpop.f32.mrb[0].mxu0
      %v1493 = vadd.f32 0.0, %v1492
      %v1494 = vpop.f32.mrb[0].mxu0
      %v1495 = vpop.f32.mrb[0].mxu0
      %v1496 = vadd.f32 0.0, %v1495
      %v1497 = vpop.f32.mrb[0].mxu0
      %1498 = vmatprep.mubr.bf16.mxu0 0
      %1499 = vmatmul.mubr.bf16.gmra.mrb[0].mxu0 %v1170
      %v1500 = vpop.f32.mrb[0].mxu0
      %v1501 = vadd.f32 0.0, %v1500
      %v1502 = vpop.f32.mrb[0].mxu0
      %v1503 = vpop.f32.mrb[0].mxu0
      %v1504 = vadd.f32 0.0, %v1503
      %v1505 = vpop.f32.mrb[0].mxu0
      %1506 = vmatprep.mubr.bf16.mxu0 0
      %1507 = vmatmul.mubr.bf16.gmra.mrb[0].mxu0 %v1171
      %v1508 = vpop.f32.mrb[0].mxu0
      %v1509 = vadd.f32 0.0, %v1508
      %v1510 = vpop.f32.mrb[0].mxu0
      %v1511 = vpop.f32.mrb[0].mxu0
      %v1512 = vadd.f32 0.0, %v1511
      %v1513 = vpop.f32.mrb[0].mxu0
      %1514 = vmatprep.mubr.bf16.mxu0 0
      %1515 = vmatmul.mubr.bf16.gmra.mrb[0].mxu0 %v1172
      %v1516 = vpop.f32.mrb[0].mxu0
      %v1517 = vadd.f32 0.0, %v1516
      %v1518 = vpop.f32.mrb[0].mxu0
      %v1519 = vpop.f32.mrb[0].mxu0
      %v1520 = vadd.f32 0.0, %v1519
      %v1521 = vpop.f32.mrb[0].mxu0
      %1522 = vmatprep.mubr.bf16.mxu0 0
      %1523 = vmatmul.mubr.bf16.gmra.mrb[0].mxu0 %v1173
      %v1524 = vpop.f32.mrb[0].mxu0
      %v1525 = vadd.f32 0.0, %v1524
      %v1526 = vpop.f32.mrb[0].mxu0
      %v1527 = vpop.f32.mrb[0].mxu0
      %v1528 = vadd.f32 0.0, %v1527
      %v1529 = vpop.f32.mrb[0].mxu0
      %1530 = vmatprep.mubr.bf16.mxu0 0
      %1531 = vmatmul.mubr.bf16.gmra.mrb[0].mxu0 %v1174
      %v1532 = vpop.f32.mrb[0].mxu0
      %v1533 = vadd.f32 0.0, %v1532
      %v1534 = vpop.f32.mrb[0].mxu0
      %v1535 = vpop.f32.mrb[0].mxu0
      %v1536 = vadd.f32 0.0, %v1535
      %v1537 = vpop.f32.mrb[0].mxu0
      %1538 = vmatprep.mubr.bf16.mxu0 0
      %1539 = vmatmul.mubr.bf16.gmra.mrb[0].mxu0 %v1175
      %v1540 = vpop.f32.mrb[0].mxu0
      %v1541 = vadd.f32 0.0, %v1540
      %v1542 = vpop.f32.mrb[0].mxu0
      %v1543 = vpop.f32.mrb[0].mxu0
      %v1544 = vadd.f32 0.0, %v1543
      %v1545 = vpop.f32.mrb[0].mxu0
      %1546 = vmatprep.mubr.bf16.mxu0 0
      %1547 = vmatmul.mubr.bf16.gmra.mrb[0].mxu0 %v1176
      %v1548 = vpop.f32.mrb[0].mxu0
      %v1549 = vadd.f32 0.0, %v1548
      %v1550 = vpop.f32.mrb[0].mxu0
      %v1551 = vpop.f32.mrb[0].mxu0
      %v1552 = vadd.f32 0.0, %v1551
      %v1553 = vpop.f32.mrb[0].mxu0
      %1554 = vmatprep.mubr.bf16.mxu0 0
      %1555 = vmatmul.mubr.bf16.gmra.mrb[0].mxu0 %v1177
      %v1556 = vpop.f32.mrb[0].mxu0
      %v1557 = vadd.f32 0.0, %v1556
      %v1558 = vpop.f32.mrb[0].mxu0
      %v1559 = vpop.f32.mrb[0].mxu0
      %v1560 = vadd.f32 0.0, %v1559
      %v1561 = vpop.f32.mrb[0].mxu0
      %1562 = vmatprep.mubr.bf16.mxu0 0
      %1563 = vmatmul.mubr.bf16.gmra.mrb[0].mxu0 %v1178
      %v1564 = vpop.f32.mrb[0].mxu0
      %v1565 = vadd.f32 0.0, %v1564
      %v1566 = vpop.f32.mrb[0].mxu0
      %v1567 = vpop.f32.mrb[0].mxu0
      %v1568 = vadd.f32 0.0, %v1567
      %v1569 = vpop.f32.mrb[0].mxu0
      %1570 = vmatprep.mubr.bf16.mxu0 0
      %1571 = vmatmul.mubr.bf16.gmra.mrb[0].mxu0 %v1179
      %v1572 = vpop.f32.mrb[0].mxu0
      %v1573 = vadd.f32 0.0, %v1572
      %v1574 = vpop.f32.mrb[0].mxu0
      %v1575 = vpop.f32.mrb[0].mxu0
      %v1576 = vadd.f32 0.0, %v1575
      %v1577 = vpop.f32.mrb[0].mxu0
      %1578 = vmatprep.mubr.bf16.mxu0 0
      %1579 = vmatmul.mubr.bf16.gmra.mrb[0].mxu0 %v1180
      %v1580 = vpop.f32.mrb[0].mxu0
      %v1581 = vadd.f32 0.0, %v1580
      %v1582 = vpop.f32.mrb[0].mxu0
      %v1583 = vpop.f32.mrb[0].mxu0
      %v1584 = vadd.f32 0.0, %v1583
      %v1585 = vpop.f32.mrb[0].mxu0
      %1586 = vmatprep.mubr.bf16.mxu0 0
      %1587 = vmatmul.mubr.bf16.gmra.mrb[0].mxu0 %v1181
      %v1588 = vpop.f32.mrb[0].mxu0
      %v1589 = vadd.f32 0.0, %v1588
      %v1590 = vpop.f32.mrb[0].mxu0
      %v1591 = vpop.f32.mrb[0].mxu0
      %v1592 = vadd.f32 0.0, %v1591
      %v1593 = vpop.f32.mrb[0].mxu0
      %1594 = vmatprep.mubr.bf16.mxu0 0
      %1595 = vmatmul.mubr.bf16.gmra.mrb[0].mxu0 %v1182
      %v1596 = vpop.f32.mrb[0].mxu0
      %v1597 = vadd.f32 0.0, %v1596
      %v1598 = vpop.f32.mrb[0].mxu0
      %v1599 = vpop.f32.mrb[0].mxu0
      %v1600 = vadd.f32 0.0, %v1599
      %v1601 = vpop.f32.mrb[0].mxu0
      %1602 = vmatprep.mubr.bf16.mxu0 0
      %1603 = vmatmul.mubr.bf16.gmra.mrb[0].mxu0 %v1183
      %v1604 = vpop.f32.mrb[0].mxu0
      %v1605 = vadd.f32 0.0, %v1604
      %v1606 = vpop.f32.mrb[0].mxu0
      %v1607 = vpop.f32.mrb[0].mxu0
      %v1608 = vadd.f32 0.0, %v1607
      %v1609 = vpop.f32.mrb[0].mxu0
      %1610 = vmatprep.mubr.bf16.mxu0 0
      %1611 = vmatmul.mubr.bf16.gmra.mrb[0].mxu0 %v1184
      %v1612 = vpop.f32.mrb[0].mxu0
      %v1613 = vadd.f32 0.0, %v1612
      %v1614 = vpop.f32.mrb[0].mxu0
      %v1615 = vpop.f32.mrb[0].mxu0
      %v1616 = vadd.f32 0.0, %v1615
      %v1617 = vpop.f32.mrb[0].mxu0
      %1618 = vmatprep.mubr.bf16.mxu0 0
      %1619 = vmatmul.mubr.bf16.gmra.mrb[0].mxu0 %v1185
      %v1620 = vpop.f32.mrb[0].mxu0
      %v1621 = vadd.f32 0.0, %v1620
      %v1622 = vpop.f32.mrb[0].mxu0
      %v1623 = vpop.f32.mrb[0].mxu0
      %v1624 = vadd.f32 0.0, %v1623
      %v1625 = vpop.f32.mrb[0].mxu0
      %1626 = vmatprep.mubr.bf16.mxu0 0
      %1627 = vmatmul.mubr.bf16.gmra.mrb[0].mxu0 %v1186
      %v1628 = vpop.f32.mrb[0].mxu0
      %v1629 = vadd.f32 0.0, %v1628
      %v1630 = vpop.f32.mrb[0].mxu0
      %v1631 = vpop.f32.mrb[0].mxu0
      %v1632 = vadd.f32 0.0, %v1631
      %v1633 = vpop.f32.mrb[0].mxu0
      %1634 = vmatprep.mubr.bf16.mxu0 0
      %1635 = vmatmul.mubr.bf16.gmra.mrb[0].mxu0 %v1187
      %v1636 = vpop.f32.mrb[0].mxu0
      %v1637 = vadd.f32 0.0, %v1636
      %v1638 = vpop.f32.mrb[0].mxu0
      %v1639 = vpop.f32.mrb[0].mxu0
      %v1640 = vadd.f32 0.0, %v1639
      %v1641 = vpop.f32.mrb[0].mxu0
      %1642 = vmatprep.mubr.bf16.mxu0 0
      %1643 = vmatmul.mubr.bf16.gmra.mrb[0].mxu0 %v1188
      %v1644 = vpop.f32.mrb[0].mxu0
      %v1645 = vadd.f32 0.0, %v1644
      %v1646 = vpop.f32.mrb[0].mxu0
      %v1647 = vpop.f32.mrb[0].mxu0
      %v1648 = vadd.f32 0.0, %v1647
      %v1649 = vpop.f32.mrb[0].mxu0
      %1650 = vmatprep.mubr.bf16.mxu0 0
      %1651 = vmatmul.mubr.bf16.gmra.mrb[0].mxu0 %v1189
      %v1652 = vpop.f32.mrb[0].mxu0
      %v1653 = vadd.f32 0.0, %v1652
      %v1654 = vpop.f32.mrb[0].mxu0
      %v1655 = vpop.f32.mrb[0].mxu0
      %v1656 = vadd.f32 0.0, %v1655
      %v1657 = vpop.f32.mrb[0].mxu0
      %1658 = vmatprep.mubr.bf16.mxu0 0
      %1659 = vmatmul.mubr.bf16.gmra.mrb[0].mxu0 %v1190
      %v1660 = vpop.f32.mrb[0].mxu0
      %v1661 = vadd.f32 0.0, %v1660
      %v1662 = vpop.f32.mrb[0].mxu0
      %v1663 = vpop.f32.mrb[0].mxu0
      %v1664 = vadd.f32 0.0, %v1663
      %v1665 = vpop.f32.mrb[0].mxu0
      %1666 = vmatprep.mubr.bf16.mxu0 0
      %1667 = vmatmul.mubr.bf16.gmra.mrb[0].mxu0 %v1191
      %v1668 = vpop.f32.mrb[0].mxu0
      %v1669 = vadd.f32 0.0, %v1668
      %v1670 = vpop.f32.mrb[0].mxu0
      %v1671 = vpop.f32.mrb[0].mxu0
      %v1672 = vadd.f32 0.0, %v1671
      %v1673 = vpop.f32.mrb[0].mxu0
      %1674 = vmatprep.mubr.bf16.mxu0 0
      %1675 = vmatmul.mubr.bf16.gmra.mrb[0].mxu0 %v1192
      %v1676 = vpop.f32.mrb[0].mxu0
      %v1677 = vadd.f32 0.0, %v1676
      %v1678 = vpop.f32.mrb[0].mxu0
      %v1679 = vpop.f32.mrb[0].mxu0
      %v1680 = vadd.f32 0.0, %v1679
      %v1681 = vpop.f32.mrb[0].mxu0
      %1682 = vmatprep.mubr.bf16.mxu0 0
      %1683 = vmatmul.mubr.bf16.gmra.mrb[0].mxu0 %v1193
      %v1684 = vpop.f32.mrb[0].mxu0
      %v1685 = vadd.f32 0.0, %v1684
      %v1686 = vpop.f32.mrb[0].mxu0
      %v1687 = vpop.f32.mrb[0].mxu0
      %v1688 = vadd.f32 0.0, %v1687
      %v1689 = vpop.f32.mrb[0].mxu0
      %1690 = vmatprep.mubr.bf16.mxu0 0
      %1691 = vmatmul.mubr.bf16.gmra.mrb[0].mxu0 %v1194
      %v1692 = vpop.f32.mrb[0].mxu0
      %v1693 = vadd.f32 0.0, %v1692
      %v1694 = vpop.f32.mrb[0].mxu0
      %v1695 = vpop.f32.mrb[0].mxu0
      %v1696 = vadd.f32 0.0, %v1695
      %v1697 = vpop.f32.mrb[0].mxu0
      %1698 = vmatprep.mubr.bf16.mxu0 0
      %1699 = vmatmul.mubr.bf16.gmra.mrb[0].mxu0 %v1195
      %v1700 = vpop.f32.mrb[0].mxu0
      %v1701 = vadd.f32 0.0, %v1700
      %v1702 = vpop.f32.mrb[0].mxu0
      %v1703 = vpop.f32.mrb[0].mxu0
      %v1704 = vadd.f32 0.0, %v1703
      %v1705 = vpop.f32.mrb[0].mxu0
      %1706 = vmatprep.mubr.bf16.mxu0 0
      %1707 = vmatmul.mubr.bf16.gmra.mrb[0].mxu0 %v1196
      %v1708 = vpop.f32.mrb[0].mxu0
      %v1709 = vadd.f32 0.0, %v1708
      %v1710 = vpop.f32.mrb[0].mxu0
      %v1711 = vpop.f32.mrb[0].mxu0
      %v1712 = vadd.f32 0.0, %v1711
      %v1713 = vpop.f32.mrb[0].mxu0
      %1714 = vmatprep.mubr.bf16.mxu0 0
      %1715 = vmatmul.mubr.bf16.gmra.mrb[0].mxu0 %v1197
      %v1716 = vpop.f32.mrb[0].mxu0
      %v1717 = vadd.f32 0.0, %v1716
      %v1718 = vpop.f32.mrb[0].mxu0
      %v1719 = vpop.f32.mrb[0].mxu0
      %v1720 = vadd.f32 0.0, %v1719
      %v1721 = vpop.f32.mrb[0].mxu0
      %1722 = vmatprep.mubr.bf16.mxu0 0
      %1723 = vmatmul.mubr.bf16.gmra.mrb[0].mxu0 %v1198
      %v1724 = vpop.f32.mrb[0].mxu0
      %v1725 = vadd.f32 0.0, %v1724
      %v1726 = vpop.f32.mrb[0].mxu0
      %v1727 = vpop.f32.mrb[0].mxu0
      %v1728 = vadd.f32 0.0, %v1727
      %v1729 = vpop.f32.mrb[0].mxu0
      %1730 = vmatprep.mubr.bf16.mxu0 0
      %1731 = vmatmul.mubr.bf16.gmra.mrb[0].mxu0 %v1199
      %v1732 = vpop.f32.mrb[0].mxu0
      %v1733 = vadd.f32 0.0, %v1732
      %v1734 = vpop.f32.mrb[0].mxu0
      %v1735 = vpop.f32.mrb[0].mxu0
      %v1736 = vadd.f32 0.0, %v1735
      %v1737 = vpop.f32.mrb[0].mxu0
      %1738 = vmatprep.mubr.bf16.mxu0 0
      %1739 = vmatmul.mubr.bf16.gmra.mrb[0].mxu0 %v1200
      %v1740 = vpop.f32.mrb[0].mxu0
      %v1741 = vadd.f32 0.0, %v1740
      %v1742 = vpop.f32.mrb[0].mxu0
      %v1743 = vpop.f32.mrb[0].mxu0
      %v1744 = vadd.f32 0.0, %v1743
      %v1745 = vpop.f32.mrb[0].mxu0
      %1746 = vmatprep.mubr.bf16.mxu0 0
      %1747 = vmatmul.mubr.bf16.gmra.mrb[0].mxu0 %v1201
      %v1748 = vpop.f32.mrb[0].mxu0
      %v1749 = vadd.f32 0.0, %v1748
      %v1750 = vpop.f32.mrb[0].mxu0
      %v1751 = vpop.f32.mrb[0].mxu0
      %v1752 = vadd.f32 0.0, %v1751
      %v1753 = vpop.f32.mrb[0].mxu0
      %1754 = vmatprep.mubr.bf16.mxu0 0
      %1755 = vmatmul.mubr.bf16.gmra.mrb[0].mxu0 %v1202
      %v1756 = vpop.f32.mrb[0].mxu0
      %v1757 = vadd.f32 0.0, %v1756
      %v1758 = vpop.f32.mrb[0].mxu0
      %v1759 = vpop.f32.mrb[0].mxu0
      %v1760 = vadd.f32 0.0, %v1759
      %v1761 = vpop.f32.mrb[0].mxu0
      %1762 = vmatprep.mubr.bf16.mxu0 0
      %1763 = vmatmul.mubr.bf16.gmra.mrb[0].mxu0 %v1203
      %v1764 = vpop.f32.mrb[0].mxu0
      %v1765 = vadd.f32 0.0, %v1764
      %v1766 = vpop.f32.mrb[0].mxu0
      %v1767 = vpop.f32.mrb[0].mxu0
      %v1768 = vadd.f32 0.0, %v1767
      %v1769 = vpop.f32.mrb[0].mxu0
      %1770 = vmatprep.mubr.bf16.mxu0 0
      %1771 = vmatmul.mubr.bf16.gmra.mrb[0].mxu0 %v1204
      %v1772 = vpop.f32.mrb[0].mxu0
      %v1773 = vadd.f32 0.0, %v1772
      %v1774 = vpop.f32.mrb[0].mxu0
      %v1775 = vpop.f32.mrb[0].mxu0
      %v1776 = vadd.f32 0.0, %v1775
      %v1777 = vpop.f32.mrb[0].mxu0
      %1778 = vmatprep.mubr.bf16.mxu0 0
      %1779 = vmatmul.mubr.bf16.gmra.mrb[0].mxu0 %v1205
      %v1780 = vpop.f32.mrb[0].mxu0
      %v1781 = vadd.f32 0.0, %v1780
      %v1782 = vpop.f32.mrb[0].mxu0
      %v1783 = vpop.f32.mrb[0].mxu0
      %v1784 = vadd.f32 0.0, %v1783
      %v1785 = vpop.f32.mrb[0].mxu0
      %1786 = vmatprep.mubr.bf16.mxu0 0
      %1787 = vmatmul.mubr.bf16.gmra.mrb[0].mxu0 %v1206
      %v1788 = vpop.f32.mrb[0].mxu0
      %v1789 = vadd.f32 0.0, %v1788
      %v1790 = vpop.f32.mrb[0].mxu0
      %v1791 = vpop.f32.mrb[0].mxu0
      %v1792 = vadd.f32 0.0, %v1791
      %v1793 = vpop.f32.mrb[0].mxu0
      %1794 = vmatprep.mubr.bf16.mxu0 0
      %1795 = vmatmul.mubr.bf16.gmra.mrb[0].mxu0 %v1207
      %v1796 = vpop.f32.mrb[0].mxu0
      %v1797 = vadd.f32 0.0, %v1796
      %v1798 = vpop.f32.mrb[0].mxu0
      %v1799 = vpop.f32.mrb[0].mxu0
      %v1800 = vadd.f32 0.0, %v1799
      %v1801 = vpop.f32.mrb[0].mxu0
      %1802 = vmatprep.mubr.bf16.mxu0 0
      %1803 = vmatmul.mubr.bf16.gmra.mrb[0].mxu0 %v1208
      %v1804 = vpop.f32.mrb[0].mxu0
      %v1805 = vadd.f32 0.0, %v1804
      %v1806 = vpop.f32.mrb[0].mxu0
      %v1807 = vpop.f32.mrb[0].mxu0
      %v1808 = vadd.f32 0.0, %v1807
      %v1809 = vpop.f32.mrb[0].mxu0
      %1810 = vmatprep.mubr.bf16.mxu0 0
      %1811 = vmatmul.mubr.bf16.gmra.mrb[0].mxu0 %v1209
      %v1812 = vpop.f32.mrb[0].mxu0
      %v1813 = vadd.f32 0.0, %v1812
      %v1814 = vpop.f32.mrb[0].mxu0
      %v1815 = vpop.f32.mrb[0].mxu0
      %v1816 = vadd.f32 0.0, %v1815
      %v1817 = vpop.f32.mrb[0].mxu0
      %1818 = vdwg.mxu0
      %1819 = vmax.xlane.f32.xlu0 %v1309
      %v1820 = vpop.xlane.xlu0 %1819
      %1821 = vmax.xlane.f32.xlu0 %v1312
      %v1822 = vpop.xlane.xlu0 %1821
      %1823 = vmax.xlane.f32.xlu0 %v1317
      %v1824 = vpop.xlane.xlu0 %1823
      %1825 = vmax.xlane.f32.xlu0 %v1320
      %v1826 = vpop.xlane.xlu0 %1825
      %1827 = vmax.xlane.f32.xlu0 %v1325
      %v1828 = vpop.xlane.xlu0 %1827
      %1829 = vmax.xlane.f32.xlu0 %v1328
      %v1830 = vpop.xlane.xlu0 %1829
      %1831 = vmax.xlane.f32.xlu0 %v1333
      %v1832 = vpop.xlane.xlu0 %1831
      %1833 = vmax.xlane.f32.xlu0 %v1336
      %v1834 = vpop.xlane.xlu0 %1833
      %1835 = vmax.xlane.f32.xlu0 %v1341
      %v1836 = vpop.xlane.xlu0 %1835
      %1837 = vmax.xlane.f32.xlu0 %v1344
      %v1838 = vpop.xlane.xlu0 %1837
      %1839 = vmax.xlane.f32.xlu0 %v1349
      %v1840 = vpop.xlane.xlu0 %1839
      %1841 = vmax.xlane.f32.xlu0 %v1352
      %v1842 = vpop.xlane.xlu0 %1841
      %1843 = vmax.xlane.f32.xlu0 %v1357
      %v1844 = vpop.xlane.xlu0 %1843
      %1845 = vmax.xlane.f32.xlu0 %v1360
      %v1846 = vpop.xlane.xlu0 %1845
      %1847 = vmax.xlane.f32.xlu0 %v1365
      %v1848 = vpop.xlane.xlu0 %1847
      %1849 = vmax.xlane.f32.xlu0 %v1368
      %v1850 = vpop.xlane.xlu0 %1849
      %1851 = vmax.xlane.f32.xlu0 %v1373
      %v1852 = vpop.xlane.xlu0 %1851
      %1853 = vmax.xlane.f32.xlu0 %v1376
      %v1854 = vpop.xlane.xlu0 %1853
      %1855 = vmax.xlane.f32.xlu0 %v1381
      %v1856 = vpop.xlane.xlu0 %1855
      %1857 = vmax.xlane.f32.xlu0 %v1384
      %v1858 = vpop.xlane.xlu0 %1857
      %1859 = vmax.xlane.f32.xlu0 %v1389
      %v1860 = vpop.xlane.xlu0 %1859
      %1861 = vmax.xlane.f32.xlu0 %v1392
      %v1862 = vpop.xlane.xlu0 %1861
      %1863 = vmax.xlane.f32.xlu0 %v1397
      %v1864 = vpop.xlane.xlu0 %1863
      %1865 = vmax.xlane.f32.xlu0 %v1400
      %v1866 = vpop.xlane.xlu0 %1865
      %1867 = vmax.xlane.f32.xlu0 %v1405
      %v1868 = vpop.xlane.xlu0 %1867
      %1869 = vmax.xlane.f32.xlu0 %v1408
      %v1870 = vpop.xlane.xlu0 %1869
      %1871 = vmax.xlane.f32.xlu0 %v1413
      %v1872 = vpop.xlane.xlu0 %1871
      %1873 = vmax.xlane.f32.xlu0 %v1416
      %v1874 = vpop.xlane.xlu0 %1873
      %1875 = vmax.xlane.f32.xlu0 %v1421
      %v1876 = vpop.xlane.xlu0 %1875
      %1877 = vmax.xlane.f32.xlu0 %v1424
      %v1878 = vpop.xlane.xlu0 %1877
      %1879 = vmax.xlane.f32.xlu0 %v1429
      %v1880 = vpop.xlane.xlu0 %1879
      %1881 = vmax.xlane.f32.xlu0 %v1432
      %v1882 = vpop.xlane.xlu0 %1881
      %1883 = vmax.xlane.f32.xlu0 %v1437
      %v1884 = vpop.xlane.xlu0 %1883
      %1885 = vmax.xlane.f32.xlu0 %v1440
      %v1886 = vpop.xlane.xlu0 %1885
      %1887 = vmax.xlane.f32.xlu0 %v1445
      %v1888 = vpop.xlane.xlu0 %1887
      %1889 = vmax.xlane.f32.xlu0 %v1448
      %v1890 = vpop.xlane.xlu0 %1889
      %1891 = vmax.xlane.f32.xlu0 %v1453
      %v1892 = vpop.xlane.xlu0 %1891
      %1893 = vmax.xlane.f32.xlu0 %v1456
      %v1894 = vpop.xlane.xlu0 %1893
      %1895 = vmax.xlane.f32.xlu0 %v1461
      %v1896 = vpop.xlane.xlu0 %1895
      %1897 = vmax.xlane.f32.xlu0 %v1464
      %v1898 = vpop.xlane.xlu0 %1897
      %1899 = vmax.xlane.f32.xlu0 %v1469
      %v1900 = vpop.xlane.xlu0 %1899
      %1901 = vmax.xlane.f32.xlu0 %v1472
      %v1902 = vpop.xlane.xlu0 %1901
      %1903 = vmax.xlane.f32.xlu0 %v1477
      %v1904 = vpop.xlane.xlu0 %1903
      %1905 = vmax.xlane.f32.xlu0 %v1480
      %v1906 = vpop.xlane.xlu0 %1905
      %1907 = vmax.xlane.f32.xlu0 %v1485
      %v1908 = vpop.xlane.xlu0 %1907
      %1909 = vmax.xlane.f32.xlu0 %v1488
      %v1910 = vpop.xlane.xlu0 %1909
      %1911 = vmax.xlane.f32.xlu0 %v1493
      %v1912 = vpop.xlane.xlu0 %1911
      %1913 = vmax.xlane.f32.xlu0 %v1496
      %v1914 = vpop.xlane.xlu0 %1913
      %1915 = vmax.xlane.f32.xlu0 %v1501
      %v1916 = vpop.xlane.xlu0 %1915
      %1917 = vmax.xlane.f32.xlu0 %v1504
      %v1918 = vpop.xlane.xlu0 %1917
      %1919 = vmax.xlane.f32.xlu0 %v1509
      %v1920 = vpop.xlane.xlu0 %1919
      %1921 = vmax.xlane.f32.xlu0 %v1512
      %v1922 = vpop.xlane.xlu0 %1921
      %1923 = vmax.xlane.f32.xlu0 %v1517
      %v1924 = vpop.xlane.xlu0 %1923
      %1925 = vmax.xlane.f32.xlu0 %v1520
      %v1926 = vpop.xlane.xlu0 %1925
      %1927 = vmax.xlane.f32.xlu0 %v1525
      %v1928 = vpop.xlane.xlu0 %1927
      %1929 = vmax.xlane.f32.xlu0 %v1528
      %v1930 = vpop.xlane.xlu0 %1929
      %1931 = vmax.xlane.f32.xlu0 %v1533
      %v1932 = vpop.xlane.xlu0 %1931
      %1933 = vmax.xlane.f32.xlu0 %v1536
      %v1934 = vpop.xlane.xlu0 %1933
      %1935 = vmax.xlane.f32.xlu0 %v1541
      %v1936 = vpop.xlane.xlu0 %1935
      %1937 = vmax.xlane.f32.xlu0 %v1544
      %v1938 = vpop.xlane.xlu0 %1937
      %1939 = vmax.xlane.f32.xlu0 %v1549
      %v1940 = vpop.xlane.xlu0 %1939
      %1941 = vmax.xlane.f32.xlu0 %v1552
      %v1942 = vpop.xlane.xlu0 %1941
      %1943 = vmax.xlane.f32.xlu0 %v1557
      %v1944 = vpop.xlane.xlu0 %1943
      %1945 = vmax.xlane.f32.xlu0 %v1560
      %v1946 = vpop.xlane.xlu0 %1945
      %1947 = vmax.xlane.f32.xlu0 %v1565
      %v1948 = vpop.xlane.xlu0 %1947
      %1949 = vmax.xlane.f32.xlu0 %v1568
      %v1950 = vpop.xlane.xlu0 %1949
      %1951 = vmax.xlane.f32.xlu0 %v1573
      %v1952 = vpop.xlane.xlu0 %1951
      %1953 = vmax.xlane.f32.xlu0 %v1576
      %v1954 = vpop.xlane.xlu0 %1953
      %1955 = vmax.xlane.f32.xlu0 %v1581
      %v1956 = vpop.xlane.xlu0 %1955
      %1957 = vmax.xlane.f32.xlu0 %v1584
      %v1958 = vpop.xlane.xlu0 %1957
      %1959 = vmax.xlane.f32.xlu0 %v1589
      %v1960 = vpop.xlane.xlu0 %1959
      %1961 = vmax.xlane.f32.xlu0 %v1592
      %v1962 = vpop.xlane.xlu0 %1961
      %1963 = vmax.xlane.f32.xlu0 %v1597
      %v1964 = vpop.xlane.xlu0 %1963
      %1965 = vmax.xlane.f32.xlu0 %v1600
      %v1966 = vpop.xlane.xlu0 %1965
      %1967 = vmax.xlane.f32.xlu0 %v1605
      %v1968 = vpop.xlane.xlu0 %1967
      %1969 = vmax.xlane.f32.xlu0 %v1608
      %v1970 = vpop.xlane.xlu0 %1969
      %1971 = vmax.xlane.f32.xlu0 %v1613
      %v1972 = vpop.xlane.xlu0 %1971
      %1973 = vmax.xlane.f32.xlu0 %v1616
      %v1974 = vpop.xlane.xlu0 %1973
      %1975 = vmax.xlane.f32.xlu0 %v1621
      %v1976 = vpop.xlane.xlu0 %1975
      %1977 = vmax.xlane.f32.xlu0 %v1624
      %v1978 = vpop.xlane.xlu0 %1977
      %1979 = vmax.xlane.f32.xlu0 %v1629
      %v1980 = vpop.xlane.xlu0 %1979
      %1981 = vmax.xlane.f32.xlu0 %v1632
      %v1982 = vpop.xlane.xlu0 %1981
      %1983 = vmax.xlane.f32.xlu0 %v1637
      %v1984 = vpop.xlane.xlu0 %1983
      %1985 = vmax.xlane.f32.xlu0 %v1640
      %v1986 = vpop.xlane.xlu0 %1985
      %1987 = vmax.xlane.f32.xlu0 %v1645
      %v1988 = vpop.xlane.xlu0 %1987
      %1989 = vmax.xlane.f32.xlu0 %v1648
      %v1990 = vpop.xlane.xlu0 %1989
      %1991 = vmax.xlane.f32.xlu0 %v1653
      %v1992 = vpop.xlane.xlu0 %1991
      %1993 = vmax.xlane.f32.xlu0 %v1656
      %v1994 = vpop.xlane.xlu0 %1993
      %1995 = vmax.xlane.f32.xlu0 %v1661
      %v1996 = vpop.xlane.xlu0 %1995
      %1997 = vmax.xlane.f32.xlu0 %v1664
      %v1998 = vpop.xlane.xlu0 %1997
      %1999 = vmax.xlane.f32.xlu0 %v1669
      %v2000 = vpop.xlane.xlu0 %1999
      %2001 = vmax.xlane.f32.xlu0 %v1672
      %v2002 = vpop.xlane.xlu0 %2001
      %2003 = vmax.xlane.f32.xlu0 %v1677
      %v2004 = vpop.xlane.xlu0 %2003
      %2005 = vmax.xlane.f32.xlu0 %v1680
      %v2006 = vpop.xlane.xlu0 %2005
      %2007 = vmax.xlane.f32.xlu0 %v1685
      %v2008 = vpop.xlane.xlu0 %2007
      %2009 = vmax.xlane.f32.xlu0 %v1688
      %v2010 = vpop.xlane.xlu0 %2009
      %2011 = vmax.xlane.f32.xlu0 %v1693
      %v2012 = vpop.xlane.xlu0 %2011
      %2013 = vmax.xlane.f32.xlu0 %v1696
      %v2014 = vpop.xlane.xlu0 %2013
      %2015 = vmax.xlane.f32.xlu0 %v1701
      %v2016 = vpop.xlane.xlu0 %2015
      %2017 = vmax.xlane.f32.xlu0 %v1704
      %v2018 = vpop.xlane.xlu0 %2017
      %2019 = vmax.xlane.f32.xlu0 %v1709
      %v2020 = vpop.xlane.xlu0 %2019
      %2021 = vmax.xlane.f32.xlu0 %v1712
      %v2022 = vpop.xlane.xlu0 %2021
      %2023 = vmax.xlane.f32.xlu0 %v1717
      %v2024 = vpop.xlane.xlu0 %2023
      %2025 = vmax.xlane.f32.xlu0 %v1720
      %v2026 = vpop.xlane.xlu0 %2025
      %2027 = vmax.xlane.f32.xlu0 %v1725
      %v2028 = vpop.xlane.xlu0 %2027
      %2029 = vmax.xlane.f32.xlu0 %v1728
      %v2030 = vpop.xlane.xlu0 %2029
      %2031 = vmax.xlane.f32.xlu0 %v1733
      %v2032 = vpop.xlane.xlu0 %2031
      %2033 = vmax.xlane.f32.xlu0 %v1736
      %v2034 = vpop.xlane.xlu0 %2033
      %2035 = vmax.xlane.f32.xlu0 %v1741
      %v2036 = vpop.xlane.xlu0 %2035
      %2037 = vmax.xlane.f32.xlu0 %v1744
      %v2038 = vpop.xlane.xlu0 %2037
      %2039 = vmax.xlane.f32.xlu0 %v1749
      %v2040 = vpop.xlane.xlu0 %2039
      %2041 = vmax.xlane.f32.xlu0 %v1752
      %v2042 = vpop.xlane.xlu0 %2041
      %2043 = vmax.xlane.f32.xlu0 %v1757
      %v2044 = vpop.xlane.xlu0 %2043
      %2045 = vmax.xlane.f32.xlu0 %v1760
      %v2046 = vpop.xlane.xlu0 %2045
      %2047 = vmax.xlane.f32.xlu0 %v1765
      %v2048 = vpop.xlane.xlu0 %2047
      %2049 = vmax.xlane.f32.xlu0 %v1768
      %v2050 = vpop.xlane.xlu0 %2049
      %2051 = vmax.xlane.f32.xlu0 %v1773
      %v2052 = vpop.xlane.xlu0 %2051
      %2053 = vmax.xlane.f32.xlu0 %v1776
      %v2054 = vpop.xlane.xlu0 %2053
      %2055 = vmax.xlane.f32.xlu0 %v1781
      %v2056 = vpop.xlane.xlu0 %2055
      %2057 = vmax.xlane.f32.xlu0 %v1784
      %v2058 = vpop.xlane.xlu0 %2057
      %2059 = vmax.xlane.f32.xlu0 %v1789
      %v2060 = vpop.xlane.xlu0 %2059
      %2061 = vmax.xlane.f32.xlu0 %v1792
      %v2062 = vpop.xlane.xlu0 %2061
      %2063 = vmax.xlane.f32.xlu0 %v1797
      %v2064 = vpop.xlane.xlu0 %2063
      %2065 = vmax.xlane.f32.xlu0 %v1800
      %v2066 = vpop.xlane.xlu0 %2065
      %2067 = vmax.xlane.f32.xlu0 %v1805
      %v2068 = vpop.xlane.xlu0 %2067
      %2069 = vmax.xlane.f32.xlu0 %v1808
      %v2070 = vpop.xlane.xlu0 %2069
      %2071 = vmax.xlane.f32.xlu0 %v1813
      %v2072 = vpop.xlane.xlu0 %2071
      %2073 = vmax.xlane.f32.xlu0 %v1816
      %v2074 = vpop.xlane.xlu0 %2073
      %v2075 = vsub.f32 %v1309, %v1820
      %v2076 = vsub.f32 %v1312, %v1822
      %v2077 = vsub.f32 %v1317, %v1824
      %v2078 = vsub.f32 %v1320, %v1826
      %v2079 = vsub.f32 %v1325, %v1828
      %v2080 = vsub.f32 %v1328, %v1830
      %v2081 = vsub.f32 %v1333, %v1832
      %v2082 = vsub.f32 %v1336, %v1834
      %v2083 = vsub.f32 %v1341, %v1836
      %v2084 = vsub.f32 %v1344, %v1838
      %v2085 = vsub.f32 %v1349, %v1840
      %v2086 = vsub.f32 %v1352, %v1842
      %v2087 = vsub.f32 %v1357, %v1844
      %v2088 = vsub.f32 %v1360, %v1846
      %v2089 = vsub.f32 %v1365, %v1848
      %v2090 = vsub.f32 %v1368, %v1850
      %v2091 = vsub.f32 %v1373, %v1852
      %v2092 = vsub.f32 %v1376, %v1854
      %v2093 = vsub.f32 %v1381, %v1856
      %v2094 = vsub.f32 %v1384, %v1858
      %v2095 = vsub.f32 %v1389, %v1860
      %v2096 = vsub.f32 %v1392, %v1862
      %v2097 = vsub.f32 %v1397, %v1864
      %v2098 = vsub.f32 %v1400, %v1866
      %v2099 = vsub.f32 %v1405, %v1868
      %v2100 = vsub.f32 %v1408, %v1870
      %v2101 = vsub.f32 %v1413, %v1872
      %v2102 = vsub.f32 %v1416, %v1874
      %v2103 = vsub.f32 %v1421, %v1876
      %v2104 = vsub.f32 %v1424, %v1878
      %v2105 = vsub.f32 %v1429, %v1880
      %v2106 = vsub.f32 %v1432, %v1882
      %v2107 = vsub.f32 %v1437, %v1884
      %v2108 = vsub.f32 %v1440, %v1886
      %v2109 = vsub.f32 %v1445, %v1888
      %v2110 = vsub.f32 %v1448, %v1890
      %v2111 = vsub.f32 %v1453, %v1892
      %v2112 = vsub.f32 %v1456, %v1894
      %v2113 = vsub.f32 %v1461, %v1896
      %v2114 = vsub.f32 %v1464, %v1898
      %v2115 = vsub.f32 %v1469, %v1900
      %v2116 = vsub.f32 %v1472, %v1902
      %v2117 = vsub.f32 %v1477, %v1904
      %v2118 = vsub.f32 %v1480, %v1906
      %v2119 = vsub.f32 %v1485, %v1908
      %v2120 = vsub.f32 %v1488, %v1910
      %v2121 = vsub.f32 %v1493, %v1912
      %v2122 = vsub.f32 %v1496, %v1914
      %v2123 = vsub.f32 %v1501, %v1916
      %v2124 = vsub.f32 %v1504, %v1918
      %v2125 = vsub.f32 %v1509, %v1920
      %v2126 = vsub.f32 %v1512, %v1922
      %v2127 = vsub.f32 %v1517, %v1924
      %v2128 = vsub.f32 %v1520, %v1926
      %v2129 = vsub.f32 %v1525, %v1928
      %v2130 = vsub.f32 %v1528, %v1930
      %v2131 = vsub.f32 %v1533, %v1932
      %v2132 = vsub.f32 %v1536, %v1934
      %v2133 = vsub.f32 %v1541, %v1936
      %v2134 = vsub.f32 %v1544, %v1938
      %v2135 = vsub.f32 %v1549, %v1940
      %v2136 = vsub.f32 %v1552, %v1942
      %v2137 = vsub.f32 %v1557, %v1944
      %v2138 = vsub.f32 %v1560, %v1946
      %v2139 = vsub.f32 %v1565, %v1948
      %v2140 = vsub.f32 %v1568, %v1950
      %v2141 = vsub.f32 %v1573, %v1952
      %v2142 = vsub.f32 %v1576, %v1954
      %v2143 = vsub.f32 %v1581, %v1956
      %v2144 = vsub.f32 %v1584, %v1958
      %v2145 = vsub.f32 %v1589, %v1960
      %v2146 = vsub.f32 %v1592, %v1962
      %v2147 = vsub.f32 %v1597, %v1964
      %v2148 = vsub.f32 %v1600, %v1966
      %v2149 = vsub.f32 %v1605, %v1968
      %v2150 = vsub.f32 %v1608, %v1970
      %v2151 = vsub.f32 %v1613, %v1972
      %v2152 = vsub.f32 %v1616, %v1974
      %v2153 = vsub.f32 %v1621, %v1976
      %v2154 = vsub.f32 %v1624, %v1978
      %v2155 = vsub.f32 %v1629, %v1980
      %v2156 = vsub.f32 %v1632, %v1982
      %v2157 = vsub.f32 %v1637, %v1984
      %v2158 = vsub.f32 %v1640, %v1986
      %v2159 = vsub.f32 %v1645, %v1988
      %v2160 = vsub.f32 %v1648, %v1990
      %v2161 = vsub.f32 %v1653, %v1992
      %v2162 = vsub.f32 %v1656, %v1994
      %v2163 = vsub.f32 %v1661, %v1996
      %v2164 = vsub.f32 %v1664, %v1998
      %v2165 = vsub.f32 %v1669, %v2000
      %v2166 = vsub.f32 %v1672, %v2002
      %v2167 = vsub.f32 %v1677, %v2004
      %v2168 = vsub.f32 %v1680, %v2006
      %v2169 = vsub.f32 %v1685, %v2008
      %v2170 = vsub.f32 %v1688, %v2010
      %v2171 = vsub.f32 %v1693, %v2012
      %v2172 = vsub.f32 %v1696, %v2014
      %v2173 = vsub.f32 %v1701, %v2016
      %v2174 = vsub.f32 %v1704, %v2018
      %v2175 = vsub.f32 %v1709, %v2020
      %v2176 = vsub.f32 %v1712, %v2022
      %v2177 = vsub.f32 %v1717, %v2024
      %v2178 = vsub.f32 %v1720, %v2026
      %v2179 = vsub.f32 %v1725, %v2028
      %v2180 = vsub.f32 %v1728, %v2030
      %v2181 = vsub.f32 %v1733, %v2032
      %v2182 = vsub.f32 %v1736, %v2034
      %v2183 = vsub.f32 %v1741, %v2036
      %v2184 = vsub.f32 %v1744, %v2038
      %v2185 = vsub.f32 %v1749, %v2040
      %v2186 = vsub.f32 %v1752, %v2042
      %v2187 = vsub.f32 %v1757, %v2044
      %v2188 = vsub.f32 %v1760, %v2046
      %v2189 = vsub.f32 %v1765, %v2048
      %v2190 = vsub.f32 %v1768, %v2050
      %v2191 = vsub.f32 %v1773, %v2052
      %v2192 = vsub.f32 %v1776, %v2054
      %v2193 = vsub.f32 %v1781, %v2056
      %v2194 = vsub.f32 %v1784, %v2058
      %v2195 = vsub.f32 %v1789, %v2060
      %v2196 = vsub.f32 %v1792, %v2062
      %v2197 = vsub.f32 %v1797, %v2064
      %v2198 = vsub.f32 %v1800, %v2066
      %v2199 = vsub.f32 %v1805, %v2068
      %v2200 = vsub.f32 %v1808, %v2070
      %v2201 = vsub.f32 %v1813, %v2072
      %v2202 = vsub.f32 %v1816, %v2074
      %v2203 = vmul.f32 %v2075, 1.442695
      %v2204 = vpow.pop %v2203
      %v2205 = vmul.f32 %v2076, 1.442695
      %v2206 = vpow.pop %v2205
      %v2207 = vmul.f32 %v2077, 1.442695
      %v2208 = vpow.pop %v2207
      %v2209 = vmul.f32 %v2078, 1.442695
      %v2210 = vpow.pop %v2209
      %v2211 = vmul.f32 %v2079, 1.442695
      %v2212 = vpow.pop %v2211
      %v2213 = vmul.f32 %v2080, 1.442695
      %v2214 = vpow.pop %v2213
      %v2215 = vmul.f32 %v2081, 1.442695
      %v2216 = vpow.pop %v2215
      %v2217 = vmul.f32 %v2082, 1.442695
      %v2218 = vpow.pop %v2217
      %v2219 = vmul.f32 %v2083, 1.442695
      %v2220 = vpow.pop %v2219
      %v2221 = vmul.f32 %v2084, 1.442695
      %v2222 = vpow.pop %v2221
      %v2223 = vmul.f32 %v2085, 1.442695
      %v2224 = vpow.pop %v2223
      %v2225 = vmul.f32 %v2086, 1.442695
      %v2226 = vpow.pop %v2225
      %v2227 = vmul.f32 %v2087, 1.442695
      %v2228 = vpow.pop %v2227
      %v2229 = vmul.f32 %v2088, 1.442695
      %v2230 = vpow.pop %v2229
      %v2231 = vmul.f32 %v2089, 1.442695
      %v2232 = vpow.pop %v2231
      %v2233 = vmul.f32 %v2090, 1.442695
      %v2234 = vpow.pop %v2233
      %v2235 = vmul.f32 %v2091, 1.442695
      %v2236 = vpow.pop %v2235
      %v2237 = vmul.f32 %v2092, 1.442695
      %v2238 = vpow.pop %v2237
      %v2239 = vmul.f32 %v2093, 1.442695
      %v2240 = vpow.pop %v2239
      %v2241 = vmul.f32 %v2094, 1.442695
      %v2242 = vpow.pop %v2241
      %v2243 = vmul.f32 %v2095, 1.442695
      %v2244 = vpow.pop %v2243
      %v2245 = vmul.f32 %v2096, 1.442695
      %v2246 = vpow.pop %v2245
      %v2247 = vmul.f32 %v2097, 1.442695
      %v2248 = vpow.pop %v2247
      %v2249 = vmul.f32 %v2098, 1.442695
      %v2250 = vpow.pop %v2249
      %v2251 = vmul.f32 %v2099, 1.442695
      %v2252 = vpow.pop %v2251
      %v2253 = vmul.f32 %v2100, 1.442695
      %v2254 = vpow.pop %v2253
      %v2255 = vmul.f32 %v2101, 1.442695
      %v2256 = vpow.pop %v2255
      %v2257 = vmul.f32 %v2102, 1.442695
      %v2258 = vpow.pop %v2257
      %v2259 = vmul.f32 %v2103, 1.442695
      %v2260 = vpow.pop %v2259
      %v2261 = vmul.f32 %v2104, 1.442695
      %v2262 = vpow.pop %v2261
      %v2263 = vmul.f32 %v2105, 1.442695
      %v2264 = vpow.pop %v2263
      %v2265 = vmul.f32 %v2106, 1.442695
      %v2266 = vpow.pop %v2265
      %v2267 = vmul.f32 %v2107, 1.442695
      %v2268 = vpow.pop %v2267
      %v2269 = vmul.f32 %v2108, 1.442695
      %v2270 = vpow.pop %v2269
      %v2271 = vmul.f32 %v2109, 1.442695
      %v2272 = vpow.pop %v2271
      %v2273 = vmul.f32 %v2110, 1.442695
      %v2274 = vpow.pop %v2273
      %v2275 = vmul.f32 %v2111, 1.442695
      %v2276 = vpow.pop %v2275
      %v2277 = vmul.f32 %v2112, 1.442695
      %v2278 = vpow.pop %v2277
      %v2279 = vmul.f32 %v2113, 1.442695
      %v2280 = vpow.pop %v2279
      %v2281 = vmul.f32 %v2114, 1.442695
      %v2282 = vpow.pop %v2281
      %v2283 = vmul.f32 %v2115, 1.442695
      %v2284 = vpow.pop %v2283
      %v2285 = vmul.f32 %v2116, 1.442695
      %v2286 = vpow.pop %v2285
      %v2287 = vmul.f32 %v2117, 1.442695
      %v2288 = vpow.pop %v2287
      %v2289 = vmul.f32 %v2118, 1.442695
      %v2290 = vpow.pop %v2289
      %v2291 = vmul.f32 %v2119, 1.442695
      %v2292 = vpow.pop %v2291
      %v2293 = vmul.f32 %v2120, 1.442695
      %v2294 = vpow.pop %v2293
      %v2295 = vmul.f32 %v2121, 1.442695
      %v2296 = vpow.pop %v2295
      %v2297 = vmul.f32 %v2122, 1.442695
      %v2298 = vpow.pop %v2297
      %v2299 = vmul.f32 %v2123, 1.442695
      %v2300 = vpow.pop %v2299
      %v2301 = vmul.f32 %v2124, 1.442695
      %v2302 = vpow.pop %v2301
      %v2303 = vmul.f32 %v2125, 1.442695
      %v2304 = vpow.pop %v2303
      %v2305 = vmul.f32 %v2126, 1.442695
      %v2306 = vpow.pop %v2305
      %v2307 = vmul.f32 %v2127, 1.442695
      %v2308 = vpow.pop %v2307
      %v2309 = vmul.f32 %v2128, 1.442695
      %v2310 = vpow.pop %v2309
      %v2311 = vmul.f32 %v2129, 1.442695
      %v2312 = vpow.pop %v2311
      %v2313 = vmul.f32 %v2130, 1.442695
      %v2314 = vpow.pop %v2313
      %v2315 = vmul.f32 %v2131, 1.442695
      %v2316 = vpow.pop %v2315
      %v2317 = vmul.f32 %v2132, 1.442695
      %v2318 = vpow.pop %v2317
      %v2319 = vmul.f32 %v2133, 1.442695
      %v2320 = vpow.pop %v2319
      %v2321 = vmul.f32 %v2134, 1.442695
      %v2322 = vpow.pop %v2321
      %v2323 = vmul.f32 %v2135, 1.442695
      %v2324 = vpow.pop %v2323
      %v2325 = vmul.f32 %v2136, 1.442695
      %v2326 = vpow.pop %v2325
      %v2327 = vmul.f32 %v2137, 1.442695
      %v2328 = vpow.pop %v2327
      %v2329 = vmul.f32 %v2138, 1.442695
      %v2330 = vpow.pop %v2329
      %v2331 = vmul.f32 %v2139, 1.442695
      %v2332 = vpow.pop %v2331
      %v2333 = vmul.f32 %v2140, 1.442695
      %v2334 = vpow.pop %v2333
      %v2335 = vmul.f32 %v2141, 1.442695
      %v2336 = vpow.pop %v2335
      %v2337 = vmul.f32 %v2142, 1.442695
      %v2338 = vpow.pop %v2337
      %v2339 = vmul.f32 %v2143, 1.442695
      %v2340 = vpow.pop %v2339
      %v2341 = vmul.f32 %v2144, 1.442695
      %v2342 = vpow.pop %v2341
      %v2343 = vmul.f32 %v2145, 1.442695
      %v2344 = vpow.pop %v2343
      %v2345 = vmul.f32 %v2146, 1.442695
      %v2346 = vpow.pop %v2345
      %v2347 = vmul.f32 %v2147, 1.442695
      %v2348 = vpow.pop %v2347
      %v2349 = vmul.f32 %v2148, 1.442695
      %v2350 = vpow.pop %v2349
      %v2351 = vmul.f32 %v2149, 1.442695
      %v2352 = vpow.pop %v2351
      %v2353 = vmul.f32 %v2150, 1.442695
      %v2354 = vpow.pop %v2353
      %v2355 = vmul.f32 %v2151, 1.442695
      %v2356 = vpow.pop %v2355
      %v2357 = vmul.f32 %v2152, 1.442695
      %v2358 = vpow.pop %v2357
      %v2359 = vmul.f32 %v2153, 1.442695
      %v2360 = vpow.pop %v2359
      %v2361 = vmul.f32 %v2154, 1.442695
      %v2362 = vpow.pop %v2361
      %v2363 = vmul.f32 %v2155, 1.442695
      %v2364 = vpow.pop %v2363
      %v2365 = vmul.f32 %v2156, 1.442695
      %v2366 = vpow.pop %v2365
      %v2367 = vmul.f32 %v2157, 1.442695
      %v2368 = vpow.pop %v2367
      %v2369 = vmul.f32 %v2158, 1.442695
      %v2370 = vpow.pop %v2369
      %v2371 = vmul.f32 %v2159, 1.442695
      %v2372 = vpow.pop %v2371
      %v2373 = vmul.f32 %v2160, 1.442695
      %v2374 = vpow.pop %v2373
      %v2375 = vmul.f32 %v2161, 1.442695
      %v2376 = vpow.pop %v2375
      %v2377 = vmul.f32 %v2162, 1.442695
      %v2378 = vpow.pop %v2377
      %v2379 = vmul.f32 %v2163, 1.442695
      %v2380 = vpow.pop %v2379
      %v2381 = vmul.f32 %v2164, 1.442695
      %v2382 = vpow.pop %v2381
      %v2383 = vmul.f32 %v2165, 1.442695
      %v2384 = vpow.pop %v2383
      %v2385 = vmul.f32 %v2166, 1.442695
      %v2386 = vpow.pop %v2385
      %v2387 = vmul.f32 %v2167, 1.442695
      %v2388 = vpow.pop %v2387
      %v2389 = vmul.f32 %v2168, 1.442695
      %v2390 = vpow.pop %v2389
      %v2391 = vmul.f32 %v2169, 1.442695
      %v2392 = vpow.pop %v2391
      %v2393 = vmul.f32 %v2170, 1.442695
      %v2394 = vpow.pop %v2393
      %v2395 = vmul.f32 %v2171, 1.442695
      %v2396 = vpow.pop %v2395
      %v2397 = vmul.f32 %v2172, 1.442695
      %v2398 = vpow.pop %v2397
      %v2399 = vmul.f32 %v2173, 1.442695
      %v2400 = vpow.pop %v2399
      %v2401 = vmul.f32 %v2174, 1.442695
      %v2402 = vpow.pop %v2401
      %v2403 = vmul.f32 %v2175, 1.442695
      %v2404 = vpow.pop %v2403
      %v2405 = vmul.f32 %v2176, 1.442695
      %v2406 = vpow.pop %v2405
      %v2407 = vmul.f32 %v2177, 1.442695
      %v2408 = vpow.pop %v2407
      %v2409 = vmul.f32 %v2178, 1.442695
      %v2410 = vpow.pop %v2409
      %v2411 = vmul.f32 %v2179, 1.442695
      %v2412 = vpow.pop %v2411
      %v2413 = vmul.f32 %v2180, 1.442695
      %v2414 = vpow.pop %v2413
      %v2415 = vmul.f32 %v2181, 1.442695
      %v2416 = vpow.pop %v2415
      %v2417 = vmul.f32 %v2182, 1.442695
      %v2418 = vpow.pop %v2417
      %v2419 = vmul.f32 %v2183, 1.442695
      %v2420 = vpow.pop %v2419
      %v2421 = vmul.f32 %v2184, 1.442695
      %v2422 = vpow.pop %v2421
      %v2423 = vmul.f32 %v2185, 1.442695
      %v2424 = vpow.pop %v2423
      %v2425 = vmul.f32 %v2186, 1.442695
      %v2426 = vpow.pop %v2425
      %v2427 = vmul.f32 %v2187, 1.442695
      %v2428 = vpow.pop %v2427
      %v2429 = vmul.f32 %v2188, 1.442695
      %v2430 = vpow.pop %v2429
      %v2431 = vmul.f32 %v2189, 1.442695
      %v2432 = vpow.pop %v2431
      %v2433 = vmul.f32 %v2190, 1.442695
      %v2434 = vpow.pop %v2433
      %v2435 = vmul.f32 %v2191, 1.442695
      %v2436 = vpow.pop %v2435
      %v2437 = vmul.f32 %v2192, 1.442695
      %v2438 = vpow.pop %v2437
      %v2439 = vmul.f32 %v2193, 1.442695
      %v2440 = vpow.pop %v2439
      %v2441 = vmul.f32 %v2194, 1.442695
      %v2442 = vpow.pop %v2441
      %v2443 = vmul.f32 %v2195, 1.442695
      %v2444 = vpow.pop %v2443
      %v2445 = vmul.f32 %v2196, 1.442695
      %v2446 = vpow.pop %v2445
      %v2447 = vmul.f32 %v2197, 1.442695
      %v2448 = vpow.pop %v2447
      %v2449 = vmul.f32 %v2198, 1.442695
      %v2450 = vpow.pop %v2449
      %v2451 = vmul.f32 %v2199, 1.442695
      %v2452 = vpow.pop %v2451
      %v2453 = vmul.f32 %v2200, 1.442695
      %v2454 = vpow.pop %v2453
      %v2455 = vmul.f32 %v2201, 1.442695
      %v2456 = vpow.pop %v2455
      %v2457 = vmul.f32 %v2202, 1.442695
      %v2458 = vpow.pop %v2457
      %2459 = vadd.xlane.f32.xlu0 %v2204
      %v2460 = vpop.xlane.xlu0 %2459
      %2461 = vadd.xlane.f32.xlu0 %v2206
      %v2462 = vpop.xlane.xlu0 %2461
      %2463 = vadd.xlane.f32.xlu0 %v2208
      %v2464 = vpop.xlane.xlu0 %2463
      %2465 = vadd.xlane.f32.xlu0 %v2210
      %v2466 = vpop.xlane.xlu0 %2465
      %2467 = vadd.xlane.f32.xlu0 %v2212
      %v2468 = vpop.xlane.xlu0 %2467
      %2469 = vadd.xlane.f32.xlu0 %v2214
      %v2470 = vpop.xlane.xlu0 %2469
      %2471 = vadd.xlane.f32.xlu0 %v2216
      %v2472 = vpop.xlane.xlu0 %2471
      %2473 = vadd.xlane.f32.xlu0 %v2218
      %v2474 = vpop.xlane.xlu0 %2473
      %2475 = vadd.xlane.f32.xlu0 %v2220
      %v2476 = vpop.xlane.xlu0 %2475
      %2477 = vadd.xlane.f32.xlu0 %v2222
      %v2478 = vpop.xlane.xlu0 %2477
      %2479 = vadd.xlane.f32.xlu0 %v2224
      %v2480 = vpop.xlane.xlu0 %2479
      %2481 = vadd.xlane.f32.xlu0 %v2226
      %v2482 = vpop.xlane.xlu0 %2481
      %2483 = vadd.xlane.f32.xlu0 %v2228
      %v2484 = vpop.xlane.xlu0 %2483
      %2485 = vadd.xlane.f32.xlu0 %v2230
      %v2486 = vpop.xlane.xlu0 %2485
      %2487 = vadd.xlane.f32.xlu0 %v2232
      %v2488 = vpop.xlane.xlu0 %2487
      %2489 = vadd.xlane.f32.xlu0 %v2234
      %v2490 = vpop.xlane.xlu0 %2489
      %2491 = vadd.xlane.f32.xlu0 %v2236
      %v2492 = vpop.xlane.xlu0 %2491
      %2493 = vadd.xlane.f32.xlu0 %v2238
      %v2494 = vpop.xlane.xlu0 %2493
      %2495 = vadd.xlane.f32.xlu0 %v2240
      %v2496 = vpop.xlane.xlu0 %2495
      %2497 = vadd.xlane.f32.xlu0 %v2242
      %v2498 = vpop.xlane.xlu0 %2497
      %2499 = vadd.xlane.f32.xlu0 %v2244
      %v2500 = vpop.xlane.xlu0 %2499
      %2501 = vadd.xlane.f32.xlu0 %v2246
      %v2502 = vpop.xlane.xlu0 %2501
      %2503 = vadd.xlane.f32.xlu0 %v2248
      %v2504 = vpop.xlane.xlu0 %2503
      %2505 = vadd.xlane.f32.xlu0 %v2250
      %v2506 = vpop.xlane.xlu0 %2505
      %2507 = vadd.xlane.f32.xlu0 %v2252
      %v2508 = vpop.xlane.xlu0 %2507
      %2509 = vadd.xlane.f32.xlu0 %v2254
      %v2510 = vpop.xlane.xlu0 %2509
      %2511 = vadd.xlane.f32.xlu0 %v2256
      %v2512 = vpop.xlane.xlu0 %2511
      %2513 = vadd.xlane.f32.xlu0 %v2258
      %v2514 = vpop.xlane.xlu0 %2513
      %2515 = vadd.xlane.f32.xlu0 %v2260
      %v2516 = vpop.xlane.xlu0 %2515
      %2517 = vadd.xlane.f32.xlu0 %v2262
      %v2518 = vpop.xlane.xlu0 %2517
      %2519 = vadd.xlane.f32.xlu0 %v2264
      %v2520 = vpop.xlane.xlu0 %2519
      %2521 = vadd.xlane.f32.xlu0 %v2266
      %v2522 = vpop.xlane.xlu0 %2521
      %2523 = vadd.xlane.f32.xlu0 %v2268
      %v2524 = vpop.xlane.xlu0 %2523
      %2525 = vadd.xlane.f32.xlu0 %v2270
      %v2526 = vpop.xlane.xlu0 %2525
      %2527 = vadd.xlane.f32.xlu0 %v2272
      %v2528 = vpop.xlane.xlu0 %2527
      %2529 = vadd.xlane.f32.xlu0 %v2274
      %v2530 = vpop.xlane.xlu0 %2529
      %2531 = vadd.xlane.f32.xlu0 %v2276
      %v2532 = vpop.xlane.xlu0 %2531
      %2533 = vadd.xlane.f32.xlu0 %v2278
      %v2534 = vpop.xlane.xlu0 %2533
      %2535 = vadd.xlane.f32.xlu0 %v2280
      %v2536 = vpop.xlane.xlu0 %2535
      %2537 = vadd.xlane.f32.xlu0 %v2282
      %v2538 = vpop.xlane.xlu0 %2537
      %2539 = vadd.xlane.f32.xlu0 %v2284
      %v2540 = vpop.xlane.xlu0 %2539
      %2541 = vadd.xlane.f32.xlu0 %v2286
      %v2542 = vpop.xlane.xlu0 %2541
      %2543 = vadd.xlane.f32.xlu0 %v2288
      %v2544 = vpop.xlane.xlu0 %2543
      %2545 = vadd.xlane.f32.xlu0 %v2290
      %v2546 = vpop.xlane.xlu0 %2545
      %2547 = vadd.xlane.f32.xlu0 %v2292
      %v2548 = vpop.xlane.xlu0 %2547
      %2549 = vadd.xlane.f32.xlu0 %v2294
      %v2550 = vpop.xlane.xlu0 %2549
      %2551 = vadd.xlane.f32.xlu0 %v2296
      %v2552 = vpop.xlane.xlu0 %2551
      %2553 = vadd.xlane.f32.xlu0 %v2298
      %v2554 = vpop.xlane.xlu0 %2553
      %2555 = vadd.xlane.f32.xlu0 %v2300
      %v2556 = vpop.xlane.xlu0 %2555
      %2557 = vadd.xlane.f32.xlu0 %v2302
      %v2558 = vpop.xlane.xlu0 %2557
      %2559 = vadd.xlane.f32.xlu0 %v2304
      %v2560 = vpop.xlane.xlu0 %2559
      %2561 = vadd.xlane.f32.xlu0 %v2306
      %v2562 = vpop.xlane.xlu0 %2561
      %2563 = vadd.xlane.f32.xlu0 %v2308
      %v2564 = vpop.xlane.xlu0 %2563
      %2565 = vadd.xlane.f32.xlu0 %v2310
      %v2566 = vpop.xlane.xlu0 %2565
      %2567 = vadd.xlane.f32.xlu0 %v2312
      %v2568 = vpop.xlane.xlu0 %2567
      %2569 = vadd.xlane.f32.xlu0 %v2314
      %v2570 = vpop.xlane.xlu0 %2569
      %2571 = vadd.xlane.f32.xlu0 %v2316
      %v2572 = vpop.xlane.xlu0 %2571
      %2573 = vadd.xlane.f32.xlu0 %v2318
      %v2574 = vpop.xlane.xlu0 %2573
      %2575 = vadd.xlane.f32.xlu0 %v2320
      %v2576 = vpop.xlane.xlu0 %2575
      %2577 = vadd.xlane.f32.xlu0 %v2322
      %v2578 = vpop.xlane.xlu0 %2577
      %2579 = vadd.xlane.f32.xlu0 %v2324
      %v2580 = vpop.xlane.xlu0 %2579
      %2581 = vadd.xlane.f32.xlu0 %v2326
      %v2582 = vpop.xlane.xlu0 %2581
      %2583 = vadd.xlane.f32.xlu0 %v2328
      %v2584 = vpop.xlane.xlu0 %2583
      %2585 = vadd.xlane.f32.xlu0 %v2330
      %v2586 = vpop.xlane.xlu0 %2585
      %2587 = vadd.xlane.f32.xlu0 %v2332
      %v2588 = vpop.xlane.xlu0 %2587
      %2589 = vadd.xlane.f32.xlu0 %v2334
      %v2590 = vpop.xlane.xlu0 %2589
      %2591 = vadd.xlane.f32.xlu0 %v2336
      %v2592 = vpop.xlane.xlu0 %2591
      %2593 = vadd.xlane.f32.xlu0 %v2338
      %v2594 = vpop.xlane.xlu0 %2593
      %2595 = vadd.xlane.f32.xlu0 %v2340
      %v2596 = vpop.xlane.xlu0 %2595
      %2597 = vadd.xlane.f32.xlu0 %v2342
      %v2598 = vpop.xlane.xlu0 %2597
      %2599 = vadd.xlane.f32.xlu0 %v2344
      %v2600 = vpop.xlane.xlu0 %2599
      %2601 = vadd.xlane.f32.xlu0 %v2346
      %v2602 = vpop.xlane.xlu0 %2601
      %2603 = vadd.xlane.f32.xlu0 %v2348
      %v2604 = vpop.xlane.xlu0 %2603
      %2605 = vadd.xlane.f32.xlu0 %v2350
      %v2606 = vpop.xlane.xlu0 %2605
      %2607 = vadd.xlane.f32.xlu0 %v2352
      %v2608 = vpop.xlane.xlu0 %2607
      %2609 = vadd.xlane.f32.xlu0 %v2354
      %v2610 = vpop.xlane.xlu0 %2609
      %2611 = vadd.xlane.f32.xlu0 %v2356
      %v2612 = vpop.xlane.xlu0 %2611
      %2613 = vadd.xlane.f32.xlu0 %v2358
      %v2614 = vpop.xlane.xlu0 %2613
      %2615 = vadd.xlane.f32.xlu0 %v2360
      %v2616 = vpop.xlane.xlu0 %2615
      %2617 = vadd.xlane.f32.xlu0 %v2362
      %v2618 = vpop.xlane.xlu0 %2617
      %2619 = vadd.xlane.f32.xlu0 %v2364
      %v2620 = vpop.xlane.xlu0 %2619
      %2621 = vadd.xlane.f32.xlu0 %v2366
      %v2622 = vpop.xlane.xlu0 %2621
      %2623 = vadd.xlane.f32.xlu0 %v2368
      %v2624 = vpop.xlane.xlu0 %2623
      %2625 = vadd.xlane.f32.xlu0 %v2370
      %v2626 = vpop.xlane.xlu0 %2625
      %2627 = vadd.xlane.f32.xlu0 %v2372
      %v2628 = vpop.xlane.xlu0 %2627
      %2629 = vadd.xlane.f32.xlu0 %v2374
      %v2630 = vpop.xlane.xlu0 %2629
      %2631 = vadd.xlane.f32.xlu0 %v2376
      %v2632 = vpop.xlane.xlu0 %2631
      %2633 = vadd.xlane.f32.xlu0 %v2378
      %v2634 = vpop.xlane.xlu0 %2633
      %2635 = vadd.xlane.f32.xlu0 %v2380
      %v2636 = vpop.xlane.xlu0 %2635
      %2637 = vadd.xlane.f32.xlu0 %v2382
      %v2638 = vpop.xlane.xlu0 %2637
      %2639 = vadd.xlane.f32.xlu0 %v2384
      %v2640 = vpop.xlane.xlu0 %2639
      %2641 = vadd.xlane.f32.xlu0 %v2386
      %v2642 = vpop.xlane.xlu0 %2641
      %2643 = vadd.xlane.f32.xlu0 %v2388
      %v2644 = vpop.xlane.xlu0 %2643
      %2645 = vadd.xlane.f32.xlu0 %v2390
      %v2646 = vpop.xlane.xlu0 %2645
      %2647 = vadd.xlane.f32.xlu0 %v2392
      %v2648 = vpop.xlane.xlu0 %2647
      %2649 = vadd.xlane.f32.xlu0 %v2394
      %v2650 = vpop.xlane.xlu0 %2649
      %2651 = vadd.xlane.f32.xlu0 %v2396
      %v2652 = vpop.xlane.xlu0 %2651
      %2653 = vadd.xlane.f32.xlu0 %v2398
      %v2654 = vpop.xlane.xlu0 %2653
      %2655 = vadd.xlane.f32.xlu0 %v2400
      %v2656 = vpop.xlane.xlu0 %2655
      %2657 = vadd.xlane.f32.xlu0 %v2402
      %v2658 = vpop.xlane.xlu0 %2657
      %2659 = vadd.xlane.f32.xlu0 %v2404
      %v2660 = vpop.xlane.xlu0 %2659
      %2661 = vadd.xlane.f32.xlu0 %v2406
      %v2662 = vpop.xlane.xlu0 %2661
      %2663 = vadd.xlane.f32.xlu0 %v2408
      %v2664 = vpop.xlane.xlu0 %2663
      %2665 = vadd.xlane.f32.xlu0 %v2410
      %v2666 = vpop.xlane.xlu0 %2665
      %2667 = vadd.xlane.f32.xlu0 %v2412
      %v2668 = vpop.xlane.xlu0 %2667
      %2669 = vadd.xlane.f32.xlu0 %v2414
      %v2670 = vpop.xlane.xlu0 %2669
      %2671 = vadd.xlane.f32.xlu0 %v2416
      %v2672 = vpop.xlane.xlu0 %2671
      %2673 = vadd.xlane.f32.xlu0 %v2418
      %v2674 = vpop.xlane.xlu0 %2673
      %2675 = vadd.xlane.f32.xlu0 %v2420
      %v2676 = vpop.xlane.xlu0 %2675
      %2677 = vadd.xlane.f32.xlu0 %v2422
      %v2678 = vpop.xlane.xlu0 %2677
      %2679 = vadd.xlane.f32.xlu0 %v2424
      %v2680 = vpop.xlane.xlu0 %2679
      %2681 = vadd.xlane.f32.xlu0 %v2426
      %v2682 = vpop.xlane.xlu0 %2681
      %2683 = vadd.xlane.f32.xlu0 %v2428
      %v2684 = vpop.xlane.xlu0 %2683
      %2685 = vadd.xlane.f32.xlu0 %v2430
      %v2686 = vpop.xlane.xlu0 %2685
      %2687 = vadd.xlane.f32.xlu0 %v2432
      %v2688 = vpop.xlane.xlu0 %2687
      %2689 = vadd.xlane.f32.xlu0 %v2434
      %v2690 = vpop.xlane.xlu0 %2689
      %2691 = vadd.xlane.f32.xlu0 %v2436
      %v2692 = vpop.xlane.xlu0 %2691
      %2693 = vadd.xlane.f32.xlu0 %v2438
      %v2694 = vpop.xlane.xlu0 %2693
      %2695 = vadd.xlane.f32.xlu0 %v2440
      %v2696 = vpop.xlane.xlu0 %2695
      %2697 = vadd.xlane.f32.xlu0 %v2442
      %v2698 = vpop.xlane.xlu0 %2697
      %2699 = vadd.xlane.f32.xlu0 %v2444
      %v2700 = vpop.xlane.xlu0 %2699
      %2701 = vadd.xlane.f32.xlu0 %v2446
      %v2702 = vpop.xlane.xlu0 %2701
      %2703 = vadd.xlane.f32.xlu0 %v2448
      %v2704 = vpop.xlane.xlu0 %2703
      %2705 = vadd.xlane.f32.xlu0 %v2450
      %v2706 = vpop.xlane.xlu0 %2705
      %2707 = vadd.xlane.f32.xlu0 %v2452
      %v2708 = vpop.xlane.xlu0 %2707
      %2709 = vadd.xlane.f32.xlu0 %v2454
      %v2710 = vpop.xlane.xlu0 %2709
      %2711 = vadd.xlane.f32.xlu0 %v2456
      %v2712 = vpop.xlane.xlu0 %2711
      %2713 = vadd.xlane.f32.xlu0 %v2458
      %v2714 = vpop.xlane.xlu0 %2713
      %v2715 = vlog2.pop %v2460
      %v2716 = vmul.f32 %v2715, 0.6931472
      %v2717 = vlog2.pop %v2462
      %v2718 = vmul.f32 %v2717, 0.6931472
      %v2719 = vlog2.pop %v2464
      %v2720 = vmul.f32 %v2719, 0.6931472
      %v2721 = vlog2.pop %v2466
      %v2722 = vmul.f32 %v2721, 0.6931472
      %v2723 = vlog2.pop %v2468
      %v2724 = vmul.f32 %v2723, 0.6931472
      %v2725 = vlog2.pop %v2470
      %v2726 = vmul.f32 %v2725, 0.6931472
      %v2727 = vlog2.pop %v2472
      %v2728 = vmul.f32 %v2727, 0.6931472
      %v2729 = vlog2.pop %v2474
      %v2730 = vmul.f32 %v2729, 0.6931472
      %v2731 = vlog2.pop %v2476
      %v2732 = vmul.f32 %v2731, 0.6931472
      %v2733 = vlog2.pop %v2478
      %v2734 = vmul.f32 %v2733, 0.6931472
      %v2735 = vlog2.pop %v2480
      %v2736 = vmul.f32 %v2735, 0.6931472
      %v2737 = vlog2.pop %v2482
      %v2738 = vmul.f32 %v2737, 0.6931472
      %v2739 = vlog2.pop %v2484
      %v2740 = vmul.f32 %v2739, 0.6931472
      %v2741 = vlog2.pop %v2486
      %v2742 = vmul.f32 %v2741, 0.6931472
      %v2743 = vlog2.pop %v2488
      %v2744 = vmul.f32 %v2743, 0.6931472
      %v2745 = vlog2.pop %v2490
      %v2746 = vmul.f32 %v2745, 0.6931472
      %v2747 = vlog2.pop %v2492
      %v2748 = vmul.f32 %v2747, 0.6931472
      %v2749 = vlog2.pop %v2494
      %v2750 = vmul.f32 %v2749, 0.6931472
      %v2751 = vlog2.pop %v2496
      %v2752 = vmul.f32 %v2751, 0.6931472
      %v2753 = vlog2.pop %v2498
      %v2754 = vmul.f32 %v2753, 0.6931472
      %v2755 = vlog2.pop %v2500
      %v2756 = vmul.f32 %v2755, 0.6931472
      %v2757 = vlog2.pop %v2502
      %v2758 = vmul.f32 %v2757, 0.6931472
      %v2759 = vlog2.pop %v2504
      %v2760 = vmul.f32 %v2759, 0.6931472
      %v2761 = vlog2.pop %v2506
      %v2762 = vmul.f32 %v2761, 0.6931472
      %v2763 = vlog2.pop %v2508
      %v2764 = vmul.f32 %v2763, 0.6931472
      %v2765 = vlog2.pop %v2510
      %v2766 = vmul.f32 %v2765, 0.6931472
      %v2767 = vlog2.pop %v2512
      %v2768 = vmul.f32 %v2767, 0.6931472
      %v2769 = vlog2.pop %v2514
      %v2770 = vmul.f32 %v2769, 0.6931472
      %v2771 = vlog2.pop %v2516
      %v2772 = vmul.f32 %v2771, 0.6931472
      %v2773 = vlog2.pop %v2518
      %v2774 = vmul.f32 %v2773, 0.6931472
      %v2775 = vlog2.pop %v2520
      %v2776 = vmul.f32 %v2775, 0.6931472
      %v2777 = vlog2.pop %v2522
      %v2778 = vmul.f32 %v2777, 0.6931472
      %v2779 = vlog2.pop %v2524
      %v2780 = vmul.f32 %v2779, 0.6931472
      %v2781 = vlog2.pop %v2526
      %v2782 = vmul.f32 %v2781, 0.6931472
      %v2783 = vlog2.pop %v2528
      %v2784 = vmul.f32 %v2783, 0.6931472
      %v2785 = vlog2.pop %v2530
      %v2786 = vmul.f32 %v2785, 0.6931472
      %v2787 = vlog2.pop %v2532
      %v2788 = vmul.f32 %v2787, 0.6931472
      %v2789 = vlog2.pop %v2534
      %v2790 = vmul.f32 %v2789, 0.6931472
      %v2791 = vlog2.pop %v2536
      %v2792 = vmul.f32 %v2791, 0.6931472
      %v2793 = vlog2.pop %v2538
      %v2794 = vmul.f32 %v2793, 0.6931472
      %v2795 = vlog2.pop %v2540
      %v2796 = vmul.f32 %v2795, 0.6931472
      %v2797 = vlog2.pop %v2542
      %v2798 = vmul.f32 %v2797, 0.6931472
      %v2799 = vlog2.pop %v2544
      %v2800 = vmul.f32 %v2799, 0.6931472
      %v2801 = vlog2.pop %v2546
      %v2802 = vmul.f32 %v2801, 0.6931472
      %v2803 = vlog2.pop %v2548
      %v2804 = vmul.f32 %v2803, 0.6931472
      %v2805 = vlog2.pop %v2550
      %v2806 = vmul.f32 %v2805, 0.6931472
      %v2807 = vlog2.pop %v2552
      %v2808 = vmul.f32 %v2807, 0.6931472
      %v2809 = vlog2.pop %v2554
      %v2810 = vmul.f32 %v2809, 0.6931472
      %v2811 = vlog2.pop %v2556
      %v2812 = vmul.f32 %v2811, 0.6931472
      %v2813 = vlog2.pop %v2558
      %v2814 = vmul.f32 %v2813, 0.6931472
      %v2815 = vlog2.pop %v2560
      %v2816 = vmul.f32 %v2815, 0.6931472
      %v2817 = vlog2.pop %v2562
      %v2818 = vmul.f32 %v2817, 0.6931472
      %v2819 = vlog2.pop %v2564
      %v2820 = vmul.f32 %v2819, 0.6931472
      %v2821 = vlog2.pop %v2566
      %v2822 = vmul.f32 %v2821, 0.6931472
      %v2823 = vlog2.pop %v2568
      %v2824 = vmul.f32 %v2823, 0.6931472
      %v2825 = vlog2.pop %v2570
      %v2826 = vmul.f32 %v2825, 0.6931472
      %v2827 = vlog2.pop %v2572
      %v2828 = vmul.f32 %v2827, 0.6931472
      %v2829 = vlog2.pop %v2574
      %v2830 = vmul.f32 %v2829, 0.6931472
      %v2831 = vlog2.pop %v2576
      %v2832 = vmul.f32 %v2831, 0.6931472
      %v2833 = vlog2.pop %v2578
      %v2834 = vmul.f32 %v2833, 0.6931472
      %v2835 = vlog2.pop %v2580
      %v2836 = vmul.f32 %v2835, 0.6931472
      %v2837 = vlog2.pop %v2582
      %v2838 = vmul.f32 %v2837, 0.6931472
      %v2839 = vlog2.pop %v2584
      %v2840 = vmul.f32 %v2839, 0.6931472
      %v2841 = vlog2.pop %v2586
      %v2842 = vmul.f32 %v2841, 0.6931472
      %v2843 = vlog2.pop %v2588
      %v2844 = vmul.f32 %v2843, 0.6931472
      %v2845 = vlog2.pop %v2590
      %v2846 = vmul.f32 %v2845, 0.6931472
      %v2847 = vlog2.pop %v2592
      %v2848 = vmul.f32 %v2847, 0.6931472
      %v2849 = vlog2.pop %v2594
      %v2850 = vmul.f32 %v2849, 0.6931472
      %v2851 = vlog2.pop %v2596
      %v2852 = vmul.f32 %v2851, 0.6931472
      %v2853 = vlog2.pop %v2598
      %v2854 = vmul.f32 %v2853, 0.6931472
      %v2855 = vlog2.pop %v2600
      %v2856 = vmul.f32 %v2855, 0.6931472
      %v2857 = vlog2.pop %v2602
      %v2858 = vmul.f32 %v2857, 0.6931472
      %v2859 = vlog2.pop %v2604
      %v2860 = vmul.f32 %v2859, 0.6931472
      %v2861 = vlog2.pop %v2606
      %v2862 = vmul.f32 %v2861, 0.6931472
      %v2863 = vlog2.pop %v2608
      %v2864 = vmul.f32 %v2863, 0.6931472
      %v2865 = vlog2.pop %v2610
      %v2866 = vmul.f32 %v2865, 0.6931472
      %v2867 = vlog2.pop %v2612
      %v2868 = vmul.f32 %v2867, 0.6931472
      %v2869 = vlog2.pop %v2614
      %v2870 = vmul.f32 %v2869, 0.6931472
      %v2871 = vlog2.pop %v2616
      %v2872 = vmul.f32 %v2871, 0.6931472
      %v2873 = vlog2.pop %v2618
      %v2874 = vmul.f32 %v2873, 0.6931472
      %v2875 = vlog2.pop %v2620
      %v2876 = vmul.f32 %v2875, 0.6931472
      %v2877 = vlog2.pop %v2622
      %v2878 = vmul.f32 %v2877, 0.6931472
      %v2879 = vlog2.pop %v2624
      %v2880 = vmul.f32 %v2879, 0.6931472
      %v2881 = vlog2.pop %v2626
      %v2882 = vmul.f32 %v2881, 0.6931472
      %v2883 = vlog2.pop %v2628
      %v2884 = vmul.f32 %v2883, 0.6931472
      %v2885 = vlog2.pop %v2630
      %v2886 = vmul.f32 %v2885, 0.6931472
      %v2887 = vlog2.pop %v2632
      %v2888 = vmul.f32 %v2887, 0.6931472
      %v2889 = vlog2.pop %v2634
      %v2890 = vmul.f32 %v2889, 0.6931472
      %v2891 = vlog2.pop %v2636
      %v2892 = vmul.f32 %v2891, 0.6931472
      %v2893 = vlog2.pop %v2638
      %v2894 = vmul.f32 %v2893, 0.6931472
      %v2895 = vlog2.pop %v2640
      %v2896 = vmul.f32 %v2895, 0.6931472
      %v2897 = vlog2.pop %v2642
      %v2898 = vmul.f32 %v2897, 0.6931472
      %v2899 = vlog2.pop %v2644
      %v2900 = vmul.f32 %v2899, 0.6931472
      %v2901 = vlog2.pop %v2646
      %v2902 = vmul.f32 %v2901, 0.6931472
      %v2903 = vlog2.pop %v2648
      %v2904 = vmul.f32 %v2903, 0.6931472
      %v2905 = vlog2.pop %v2650
      %v2906 = vmul.f32 %v2905, 0.6931472
      %v2907 = vlog2.pop %v2652
      %v2908 = vmul.f32 %v2907, 0.6931472
      %v2909 = vlog2.pop %v2654
      %v2910 = vmul.f32 %v2909, 0.6931472
      %v2911 = vlog2.pop %v2656
      %v2912 = vmul.f32 %v2911, 0.6931472
      %v2913 = vlog2.pop %v2658
      %v2914 = vmul.f32 %v2913, 0.6931472
      %v2915 = vlog2.pop %v2660
      %v2916 = vmul.f32 %v2915, 0.6931472
      %v2917 = vlog2.pop %v2662
      %v2918 = vmul.f32 %v2917, 0.6931472
      %v2919 = vlog2.pop %v2664
      %v2920 = vmul.f32 %v2919, 0.6931472
      %v2921 = vlog2.pop %v2666
      %v2922 = vmul.f32 %v2921, 0.6931472
      %v2923 = vlog2.pop %v2668
      %v2924 = vmul.f32 %v2923, 0.6931472
      %v2925 = vlog2.pop %v2670
      %v2926 = vmul.f32 %v2925, 0.6931472
      %v2927 = vlog2.pop %v2672
      %v2928 = vmul.f32 %v2927, 0.6931472
      %v2929 = vlog2.pop %v2674
      %v2930 = vmul.f32 %v2929, 0.6931472
      %v2931 = vlog2.pop %v2676
      %v2932 = vmul.f32 %v2931, 0.6931472
      %v2933 = vlog2.pop %v2678
      %v2934 = vmul.f32 %v2933, 0.6931472
      %v2935 = vlog2.pop %v2680
      %v2936 = vmul.f32 %v2935, 0.6931472
      %v2937 = vlog2.pop %v2682
      %v2938 = vmul.f32 %v2937, 0.6931472
      %v2939 = vlog2.pop %v2684
      %v2940 = vmul.f32 %v2939, 0.6931472
      %v2941 = vlog2.pop %v2686
      %v2942 = vmul.f32 %v2941, 0.6931472
      %v2943 = vlog2.pop %v2688
      %v2944 = vmul.f32 %v2943, 0.6931472
      %v2945 = vlog2.pop %v2690
      %v2946 = vmul.f32 %v2945, 0.6931472
      %v2947 = vlog2.pop %v2692
      %v2948 = vmul.f32 %v2947, 0.6931472
      %v2949 = vlog2.pop %v2694
      %v2950 = vmul.f32 %v2949, 0.6931472
      %v2951 = vlog2.pop %v2696
      %v2952 = vmul.f32 %v2951, 0.6931472
      %v2953 = vlog2.pop %v2698
      %v2954 = vmul.f32 %v2953, 0.6931472
      %v2955 = vlog2.pop %v2700
      %v2956 = vmul.f32 %v2955, 0.6931472
      %v2957 = vlog2.pop %v2702
      %v2958 = vmul.f32 %v2957, 0.6931472
      %v2959 = vlog2.pop %v2704
      %v2960 = vmul.f32 %v2959, 0.6931472
      %v2961 = vlog2.pop %v2706
      %v2962 = vmul.f32 %v2961, 0.6931472
      %v2963 = vlog2.pop %v2708
      %v2964 = vmul.f32 %v2963, 0.6931472
      %v2965 = vlog2.pop %v2710
      %v2966 = vmul.f32 %v2965, 0.6931472
      %v2967 = vlog2.pop %v2712
      %v2968 = vmul.f32 %v2967, 0.6931472
      %v2969 = vlog2.pop %v2714
      %v2970 = vmul.f32 %v2969, 0.6931472
      %v2971 = vadd.f32 %v2716, %v1820
      %v2972 = vadd.f32 %v2718, %v1822
      %v2973 = vadd.f32 %v2720, %v1824
      %v2974 = vadd.f32 %v2722, %v1826
      %v2975 = vadd.f32 %v2724, %v1828
      %v2976 = vadd.f32 %v2726, %v1830
      %v2977 = vadd.f32 %v2728, %v1832
      %v2978 = vadd.f32 %v2730, %v1834
      %v2979 = vadd.f32 %v2732, %v1836
      %v2980 = vadd.f32 %v2734, %v1838
      %v2981 = vadd.f32 %v2736, %v1840
      %v2982 = vadd.f32 %v2738, %v1842
      %v2983 = vadd.f32 %v2740, %v1844
      %v2984 = vadd.f32 %v2742, %v1846
      %v2985 = vadd.f32 %v2744, %v1848
      %v2986 = vadd.f32 %v2746, %v1850
      %v2987 = vadd.f32 %v2748, %v1852
      %v2988 = vadd.f32 %v2750, %v1854
      %v2989 = vadd.f32 %v2752, %v1856
      %v2990 = vadd.f32 %v2754, %v1858
      %v2991 = vadd.f32 %v2756, %v1860
      %v2992 = vadd.f32 %v2758, %v1862
      %v2993 = vadd.f32 %v2760, %v1864
      %v2994 = vadd.f32 %v2762, %v1866
      %v2995 = vadd.f32 %v2764, %v1868
      %v2996 = vadd.f32 %v2766, %v1870
      %v2997 = vadd.f32 %v2768, %v1872
      %v2998 = vadd.f32 %v2770, %v1874
      %v2999 = vadd.f32 %v2772, %v1876
      %v3000 = vadd.f32 %v2774, %v1878
      %v3001 = vadd.f32 %v2776, %v1880
      %v3002 = vadd.f32 %v2778, %v1882
      %v3003 = vadd.f32 %v2780, %v1884
      %v3004 = vadd.f32 %v2782, %v1886
      %v3005 = vadd.f32 %v2784, %v1888
      %v3006 = vadd.f32 %v2786, %v1890
      %v3007 = vadd.f32 %v2788, %v1892
      %v3008 = vadd.f32 %v2790, %v1894
      %v3009 = vadd.f32 %v2792, %v1896
      %v3010 = vadd.f32 %v2794, %v1898
      %v3011 = vadd.f32 %v2796, %v1900
      %v3012 = vadd.f32 %v2798, %v1902
      %v3013 = vadd.f32 %v2800, %v1904
      %v3014 = vadd.f32 %v2802, %v1906
      %v3015 = vadd.f32 %v2804, %v1908
      %v3016 = vadd.f32 %v2806, %v1910
      %v3017 = vadd.f32 %v2808, %v1912
      %v3018 = vadd.f32 %v2810, %v1914
      %v3019 = vadd.f32 %v2812, %v1916
      %v3020 = vadd.f32 %v2814, %v1918
      %v3021 = vadd.f32 %v2816, %v1920
      %v3022 = vadd.f32 %v2818, %v1922
      %v3023 = vadd.f32 %v2820, %v1924
      %v3024 = vadd.f32 %v2822, %v1926
      %v3025 = vadd.f32 %v2824, %v1928
      %v3026 = vadd.f32 %v2826, %v1930
      %v3027 = vadd.f32 %v2828, %v1932
      %v3028 = vadd.f32 %v2830, %v1934
      %v3029 = vadd.f32 %v2832, %v1936
      %v3030 = vadd.f32 %v2834, %v1938
      %v3031 = vadd.f32 %v2836, %v1940
      %v3032 = vadd.f32 %v2838, %v1942
      %v3033 = vadd.f32 %v2840, %v1944
      %v3034 = vadd.f32 %v2842, %v1946
      %v3035 = vadd.f32 %v2844, %v1948
      %v3036 = vadd.f32 %v2846, %v1950
      %v3037 = vadd.f32 %v2848, %v1952
      %v3038 = vadd.f32 %v2850, %v1954
      %v3039 = vadd.f32 %v2852, %v1956
      %v3040 = vadd.f32 %v2854, %v1958
      %v3041 = vadd.f32 %v2856, %v1960
      %v3042 = vadd.f32 %v2858, %v1962
      %v3043 = vadd.f32 %v2860, %v1964
      %v3044 = vadd.f32 %v2862, %v1966
      %v3045 = vadd.f32 %v2864, %v1968
      %v3046 = vadd.f32 %v2866, %v1970
      %v3047 = vadd.f32 %v2868, %v1972
      %v3048 = vadd.f32 %v2870, %v1974
      %v3049 = vadd.f32 %v2872, %v1976
      %v3050 = vadd.f32 %v2874, %v1978
      %v3051 = vadd.f32 %v2876, %v1980
      %v3052 = vadd.f32 %v2878, %v1982
      %v3053 = vadd.f32 %v2880, %v1984
      %v3054 = vadd.f32 %v2882, %v1986
      %v3055 = vadd.f32 %v2884, %v1988
      %v3056 = vadd.f32 %v2886, %v1990
      %v3057 = vadd.f32 %v2888, %v1992
      %v3058 = vadd.f32 %v2890, %v1994
      %v3059 = vadd.f32 %v2892, %v1996
      %v3060 = vadd.f32 %v2894, %v1998
      %v3061 = vadd.f32 %v2896, %v2000
      %v3062 = vadd.f32 %v2898, %v2002
      %v3063 = vadd.f32 %v2900, %v2004
      %v3064 = vadd.f32 %v2902, %v2006
      %v3065 = vadd.f32 %v2904, %v2008
      %v3066 = vadd.f32 %v2906, %v2010
      %v3067 = vadd.f32 %v2908, %v2012
      %v3068 = vadd.f32 %v2910, %v2014
      %v3069 = vadd.f32 %v2912, %v2016
      %v3070 = vadd.f32 %v2914, %v2018
      %v3071 = vadd.f32 %v2916, %v2020
      %v3072 = vadd.f32 %v2918, %v2022
      %v3073 = vadd.f32 %v2920, %v2024
      %v3074 = vadd.f32 %v2922, %v2026
      %v3075 = vadd.f32 %v2924, %v2028
      %v3076 = vadd.f32 %v2926, %v2030
      %v3077 = vadd.f32 %v2928, %v2032
      %v3078 = vadd.f32 %v2930, %v2034
      %v3079 = vadd.f32 %v2932, %v2036
      %v3080 = vadd.f32 %v2934, %v2038
      %v3081 = vadd.f32 %v2936, %v2040
      %v3082 = vadd.f32 %v2938, %v2042
      %v3083 = vadd.f32 %v2940, %v2044
      %v3084 = vadd.f32 %v2942, %v2046
      %v3085 = vadd.f32 %v2944, %v2048
      %v3086 = vadd.f32 %v2946, %v2050
      %v3087 = vadd.f32 %v2948, %v2052
      %v3088 = vadd.f32 %v2950, %v2054
      %v3089 = vadd.f32 %v2952, %v2056
      %v3090 = vadd.f32 %v2954, %v2058
      %v3091 = vadd.f32 %v2956, %v2060
      %v3092 = vadd.f32 %v2958, %v2062
      %v3093 = vadd.f32 %v2960, %v2064
      %v3094 = vadd.f32 %v2962, %v2066
      %v3095 = vadd.f32 %v2964, %v2068
      %v3096 = vadd.f32 %v2966, %v2070
      %v3097 = vadd.f32 %v2968, %v2072
      %v3098 = vadd.f32 %v2970, %v2074
      %v3099 = vsub.f32 %v1309, %v2971
      %v3100 = vsub.f32 %v1312, %v2972
      %v3101 = vsub.f32 %v1317, %v2973
      %v3102 = vsub.f32 %v1320, %v2974
      %v3103 = vsub.f32 %v1325, %v2975
      %v3104 = vsub.f32 %v1328, %v2976
      %v3105 = vsub.f32 %v1333, %v2977
      %v3106 = vsub.f32 %v1336, %v2978
      %v3107 = vsub.f32 %v1341, %v2979
      %v3108 = vsub.f32 %v1344, %v2980
      %v3109 = vsub.f32 %v1349, %v2981
      %v3110 = vsub.f32 %v1352, %v2982
      %v3111 = vsub.f32 %v1357, %v2983
      %v3112 = vsub.f32 %v1360, %v2984
      %v3113 = vsub.f32 %v1365, %v2985
      %v3114 = vsub.f32 %v1368, %v2986
      %v3115 = vsub.f32 %v1373, %v2987
      %v3116 = vsub.f32 %v1376, %v2988
      %v3117 = vsub.f32 %v1381, %v2989
      %v3118 = vsub.f32 %v1384, %v2990
      %v3119 = vsub.f32 %v1389, %v2991
      %v3120 = vsub.f32 %v1392, %v2992
      %v3121 = vsub.f32 %v1397, %v2993
      %v3122 = vsub.f32 %v1400, %v2994
      %v3123 = vsub.f32 %v1405, %v2995
      %v3124 = vsub.f32 %v1408, %v2996
      %v3125 = vsub.f32 %v1413, %v2997
      %v3126 = vsub.f32 %v1416, %v2998
      %v3127 = vsub.f32 %v1421, %v2999
      %v3128 = vsub.f32 %v1424, %v3000
      %v3129 = vsub.f32 %v1429, %v3001
      %v3130 = vsub.f32 %v1432, %v3002
      %v3131 = vsub.f32 %v1437, %v3003
      %v3132 = vsub.f32 %v1440, %v3004
      %v3133 = vsub.f32 %v1445, %v3005
      %v3134 = vsub.f32 %v1448, %v3006
      %v3135 = vsub.f32 %v1453, %v3007
      %v3136 = vsub.f32 %v1456, %v3008
      %v3137 = vsub.f32 %v1461, %v3009
      %v3138 = vsub.f32 %v1464, %v3010
      %v3139 = vsub.f32 %v1469, %v3011
      %v3140 = vsub.f32 %v1472, %v3012
      %v3141 = vsub.f32 %v1477, %v3013
      %v3142 = vsub.f32 %v1480, %v3014
      %v3143 = vsub.f32 %v1485, %v3015
      %v3144 = vsub.f32 %v1488, %v3016
      %v3145 = vsub.f32 %v1493, %v3017
      %v3146 = vsub.f32 %v1496, %v3018
      %v3147 = vsub.f32 %v1501, %v3019
      %v3148 = vsub.f32 %v1504, %v3020
      %v3149 = vsub.f32 %v1509, %v3021
      %v3150 = vsub.f32 %v1512, %v3022
      %v3151 = vsub.f32 %v1517, %v3023
      %v3152 = vsub.f32 %v1520, %v3024
      %v3153 = vsub.f32 %v1525, %v3025
      %v3154 = vsub.f32 %v1528, %v3026
      %v3155 = vsub.f32 %v1533, %v3027
      %v3156 = vsub.f32 %v1536, %v3028
      %v3157 = vsub.f32 %v1541, %v3029
      %v3158 = vsub.f32 %v1544, %v3030
      %v3159 = vsub.f32 %v1549, %v3031
      %v3160 = vsub.f32 %v1552, %v3032
      %v3161 = vsub.f32 %v1557, %v3033
      %v3162 = vsub.f32 %v1560, %v3034
      %v3163 = vsub.f32 %v1565, %v3035
      %v3164 = vsub.f32 %v1568, %v3036
      %v3165 = vsub.f32 %v1573, %v3037
      %v3166 = vsub.f32 %v1576, %v3038
      %v3167 = vsub.f32 %v1581, %v3039
      %v3168 = vsub.f32 %v1584, %v3040
      %v3169 = vsub.f32 %v1589, %v3041
      %v3170 = vsub.f32 %v1592, %v3042
      %v3171 = vsub.f32 %v1597, %v3043
      %v3172 = vsub.f32 %v1600, %v3044
      %v3173 = vsub.f32 %v1605, %v3045
      %v3174 = vsub.f32 %v1608, %v3046
      %v3175 = vsub.f32 %v1613, %v3047
      %v3176 = vsub.f32 %v1616, %v3048
      %v3177 = vsub.f32 %v1621, %v3049
      %v3178 = vsub.f32 %v1624, %v3050
      %v3179 = vsub.f32 %v1629, %v3051
      %v3180 = vsub.f32 %v1632, %v3052
      %v3181 = vsub.f32 %v1637, %v3053
      %v3182 = vsub.f32 %v1640, %v3054
      %v3183 = vsub.f32 %v1645, %v3055
      %v3184 = vsub.f32 %v1648, %v3056
      %v3185 = vsub.f32 %v1653, %v3057
      %v3186 = vsub.f32 %v1656, %v3058
      %v3187 = vsub.f32 %v1661, %v3059
      %v3188 = vsub.f32 %v1664, %v3060
      %v3189 = vsub.f32 %v1669, %v3061
      %v3190 = vsub.f32 %v1672, %v3062
      %v3191 = vsub.f32 %v1677, %v3063
      %v3192 = vsub.f32 %v1680, %v3064
      %v3193 = vsub.f32 %v1685, %v3065
      %v3194 = vsub.f32 %v1688, %v3066
      %v3195 = vsub.f32 %v1693, %v3067
      %v3196 = vsub.f32 %v1696, %v3068
      %v3197 = vsub.f32 %v1701, %v3069
      %v3198 = vsub.f32 %v1704, %v3070
      %v3199 = vsub.f32 %v1709, %v3071
      %v3200 = vsub.f32 %v1712, %v3072
      %v3201 = vsub.f32 %v1717, %v3073
      %v3202 = vsub.f32 %v1720, %v3074
      %v3203 = vsub.f32 %v1725, %v3075
      %v3204 = vsub.f32 %v1728, %v3076
      %v3205 = vsub.f32 %v1733, %v3077
      %v3206 = vsub.f32 %v1736, %v3078
      %v3207 = vsub.f32 %v1741, %v3079
      %v3208 = vsub.f32 %v1744, %v3080
      %v3209 = vsub.f32 %v1749, %v3081
      %v3210 = vsub.f32 %v1752, %v3082
      %v3211 = vsub.f32 %v1757, %v3083
      %v3212 = vsub.f32 %v1760, %v3084
      %v3213 = vsub.f32 %v1765, %v3085
      %v3214 = vsub.f32 %v1768, %v3086
      %v3215 = vsub.f32 %v1773, %v3087
      %v3216 = vsub.f32 %v1776, %v3088
      %v3217 = vsub.f32 %v1781, %v3089
      %v3218 = vsub.f32 %v1784, %v3090
      %v3219 = vsub.f32 %v1789, %v3091
      %v3220 = vsub.f32 %v1792, %v3092
      %v3221 = vsub.f32 %v1797, %v3093
      %v3222 = vsub.f32 %v1800, %v3094
      %v3223 = vsub.f32 %v1805, %v3095
      %v3224 = vsub.f32 %v1808, %v3096
      %v3225 = vsub.f32 %v1813, %v3097
      %v3226 = vsub.f32 %v1816, %v3098
      %3355 = vset.pattern.permute.xlu0 0
      %3356 = vperm.xlu0 %3355, %v3099
      %v3357 = vpop.permute.xlu0 %3356
      %3358 = vset.pattern.permute.xlu0 0
      %3359 = vperm.xlu0 %3358, %v3100
      %v3360 = vpop.permute.xlu0 %3359
      %3361 = vset.pattern.permute.xlu0 0
      %3362 = vperm.xlu0 %3361, %v3101
      %v3363 = vpop.permute.xlu0 %3362
      %3364 = vset.pattern.permute.xlu0 0
      %3365 = vperm.xlu0 %3364, %v3102
      %v3366 = vpop.permute.xlu0 %3365
      %3367 = vset.pattern.permute.xlu0 0
      %3368 = vperm.xlu0 %3367, %v3103
      %v3369 = vpop.permute.xlu0 %3368
      %3370 = vset.pattern.permute.xlu0 0
      %3371 = vperm.xlu0 %3370, %v3104
      %v3372 = vpop.permute.xlu0 %3371
      %3373 = vset.pattern.permute.xlu0 0
      %3374 = vperm.xlu0 %3373, %v3105
      %v3375 = vpop.permute.xlu0 %3374
      %3376 = vset.pattern.permute.xlu0 0
      %3377 = vperm.xlu0 %3376, %v3106
      %v3378 = vpop.permute.xlu0 %3377
      %3379 = vset.pattern.permute.xlu0 0
      %3380 = vperm.xlu0 %3379, %v3107
      %v3381 = vpop.permute.xlu0 %3380
      %3382 = vset.pattern.permute.xlu0 0
      %3383 = vperm.xlu0 %3382, %v3108
      %v3384 = vpop.permute.xlu0 %3383
      %3385 = vset.pattern.permute.xlu0 0
      %3386 = vperm.xlu0 %3385, %v3109
      %v3387 = vpop.permute.xlu0 %3386
      %3388 = vset.pattern.permute.xlu0 0
      %3389 = vperm.xlu0 %3388, %v3110
      %v3390 = vpop.permute.xlu0 %3389
      %3391 = vset.pattern.permute.xlu0 0
      %3392 = vperm.xlu0 %3391, %v3111
      %v3393 = vpop.permute.xlu0 %3392
      %3394 = vset.pattern.permute.xlu0 0
      %3395 = vperm.xlu0 %3394, %v3112
      %v3396 = vpop.permute.xlu0 %3395
      %3397 = vset.pattern.permute.xlu0 0
      %3398 = vperm.xlu0 %3397, %v3113
      %v3399 = vpop.permute.xlu0 %3398
      %3400 = vset.pattern.permute.xlu0 0
      %3401 = vperm.xlu0 %3400, %v3114
      %v3402 = vpop.permute.xlu0 %3401
      %3403 = vset.pattern.permute.xlu0 0
      %3404 = vperm.xlu0 %3403, %v3115
      %v3405 = vpop.permute.xlu0 %3404
      %3406 = vset.pattern.permute.xlu0 0
      %3407 = vperm.xlu0 %3406, %v3116
      %v3408 = vpop.permute.xlu0 %3407
      %3409 = vset.pattern.permute.xlu0 0
      %3410 = vperm.xlu0 %3409, %v3117
      %v3411 = vpop.permute.xlu0 %3410
      %3412 = vset.pattern.permute.xlu0 0
      %3413 = vperm.xlu0 %3412, %v3118
      %v3414 = vpop.permute.xlu0 %3413
      %3415 = vset.pattern.permute.xlu0 0
      %3416 = vperm.xlu0 %3415, %v3119
      %v3417 = vpop.permute.xlu0 %3416
      %3418 = vset.pattern.permute.xlu0 0
      %3419 = vperm.xlu0 %3418, %v3120
      %v3420 = vpop.permute.xlu0 %3419
      %3421 = vset.pattern.permute.xlu0 0
      %3422 = vperm.xlu0 %3421, %v3121
      %v3423 = vpop.permute.xlu0 %3422
      %3424 = vset.pattern.permute.xlu0 0
      %3425 = vperm.xlu0 %3424, %v3122
      %v3426 = vpop.permute.xlu0 %3425
      %3427 = vset.pattern.permute.xlu0 0
      %3428 = vperm.xlu0 %3427, %v3123
      %v3429 = vpop.permute.xlu0 %3428
      %3430 = vset.pattern.permute.xlu0 0
      %3431 = vperm.xlu0 %3430, %v3124
      %v3432 = vpop.permute.xlu0 %3431
      %3433 = vset.pattern.permute.xlu0 0
      %3434 = vperm.xlu0 %3433, %v3125
      %v3435 = vpop.permute.xlu0 %3434
      %3436 = vset.pattern.permute.xlu0 0
      %3437 = vperm.xlu0 %3436, %v3126
      %v3438 = vpop.permute.xlu0 %3437
      %3439 = vset.pattern.permute.xlu0 0
      %3440 = vperm.xlu0 %3439, %v3127
      %v3441 = vpop.permute.xlu0 %3440
      %3442 = vset.pattern.permute.xlu0 0
      %3443 = vperm.xlu0 %3442, %v3128
      %v3444 = vpop.permute.xlu0 %3443
      %3445 = vset.pattern.permute.xlu0 0
      %3446 = vperm.xlu0 %3445, %v3129
      %v3447 = vpop.permute.xlu0 %3446
      %3448 = vset.pattern.permute.xlu0 0
      %3449 = vperm.xlu0 %3448, %v3130
      %v3450 = vpop.permute.xlu0 %3449
      %3451 = vset.pattern.permute.xlu0 0
      %3452 = vperm.xlu0 %3451, %v3131
      %v3453 = vpop.permute.xlu0 %3452
      %3454 = vset.pattern.permute.xlu0 0
      %3455 = vperm.xlu0 %3454, %v3132
      %v3456 = vpop.permute.xlu0 %3455
      %3457 = vset.pattern.permute.xlu0 0
      %3458 = vperm.xlu0 %3457, %v3133
      %v3459 = vpop.permute.xlu0 %3458
      %3460 = vset.pattern.permute.xlu0 0
      %3461 = vperm.xlu0 %3460, %v3134
      %v3462 = vpop.permute.xlu0 %3461
      %3463 = vset.pattern.permute.xlu0 0
      %3464 = vperm.xlu0 %3463, %v3135
      %v3465 = vpop.permute.xlu0 %3464
      %3466 = vset.pattern.permute.xlu0 0
      %3467 = vperm.xlu0 %3466, %v3136
      %v3468 = vpop.permute.xlu0 %3467
      %3469 = vset.pattern.permute.xlu0 0
      %3470 = vperm.xlu0 %3469, %v3137
      %v3471 = vpop.permute.xlu0 %3470
      %3472 = vset.pattern.permute.xlu0 0
      %3473 = vperm.xlu0 %3472, %v3138
      %v3474 = vpop.permute.xlu0 %3473
      %3475 = vset.pattern.permute.xlu0 0
      %3476 = vperm.xlu0 %3475, %v3139
      %v3477 = vpop.permute.xlu0 %3476
      %3478 = vset.pattern.permute.xlu0 0
      %3479 = vperm.xlu0 %3478, %v3140
      %v3480 = vpop.permute.xlu0 %3479
      %3481 = vset.pattern.permute.xlu0 0
      %3482 = vperm.xlu0 %3481, %v3141
      %v3483 = vpop.permute.xlu0 %3482
      %3484 = vset.pattern.permute.xlu0 0
      %3485 = vperm.xlu0 %3484, %v3142
      %v3486 = vpop.permute.xlu0 %3485
      %3487 = vset.pattern.permute.xlu0 0
      %3488 = vperm.xlu0 %3487, %v3143
      %v3489 = vpop.permute.xlu0 %3488
      %3490 = vset.pattern.permute.xlu0 0
      %3491 = vperm.xlu0 %3490, %v3144
      %v3492 = vpop.permute.xlu0 %3491
      %3493 = vset.pattern.permute.xlu0 0
      %3494 = vperm.xlu0 %3493, %v3145
      %v3495 = vpop.permute.xlu0 %3494
      %3496 = vset.pattern.permute.xlu0 0
      %3497 = vperm.xlu0 %3496, %v3146
      %v3498 = vpop.permute.xlu0 %3497
      %3499 = vset.pattern.permute.xlu0 0
      %3500 = vperm.xlu0 %3499, %v3147
      %v3501 = vpop.permute.xlu0 %3500
      %3502 = vset.pattern.permute.xlu0 0
      %3503 = vperm.xlu0 %3502, %v3148
      %v3504 = vpop.permute.xlu0 %3503
      %3505 = vset.pattern.permute.xlu0 0
      %3506 = vperm.xlu0 %3505, %v3149
      %v3507 = vpop.permute.xlu0 %3506
      %3508 = vset.pattern.permute.xlu0 0
      %3509 = vperm.xlu0 %3508, %v3150
      %v3510 = vpop.permute.xlu0 %3509
      %3511 = vset.pattern.permute.xlu0 0
      %3512 = vperm.xlu0 %3511, %v3151
      %v3513 = vpop.permute.xlu0 %3512
      %3514 = vset.pattern.permute.xlu0 0
      %3515 = vperm.xlu0 %3514, %v3152
      %v3516 = vpop.permute.xlu0 %3515
      %3517 = vset.pattern.permute.xlu0 0
      %3518 = vperm.xlu0 %3517, %v3153
      %v3519 = vpop.permute.xlu0 %3518
      %3520 = vset.pattern.permute.xlu0 0
      %3521 = vperm.xlu0 %3520, %v3154
      %v3522 = vpop.permute.xlu0 %3521
      %3523 = vset.pattern.permute.xlu0 0
      %3524 = vperm.xlu0 %3523, %v3155
      %v3525 = vpop.permute.xlu0 %3524
      %3526 = vset.pattern.permute.xlu0 0
      %3527 = vperm.xlu0 %3526, %v3156
      %v3528 = vpop.permute.xlu0 %3527
      %3529 = vset.pattern.permute.xlu0 0
      %3530 = vperm.xlu0 %3529, %v3157
      %v3531 = vpop.permute.xlu0 %3530
      %3532 = vset.pattern.permute.xlu0 0
      %3533 = vperm.xlu0 %3532, %v3158
      %v3534 = vpop.permute.xlu0 %3533
      %3535 = vset.pattern.permute.xlu0 0
      %3536 = vperm.xlu0 %3535, %v3159
      %v3537 = vpop.permute.xlu0 %3536
      %3538 = vset.pattern.permute.xlu0 0
      %3539 = vperm.xlu0 %3538, %v3160
      %v3540 = vpop.permute.xlu0 %3539
      %3541 = vset.pattern.permute.xlu0 0
      %3542 = vperm.xlu0 %3541, %v3161
      %v3543 = vpop.permute.xlu0 %3542
      %3544 = vset.pattern.permute.xlu0 0
      %3545 = vperm.xlu0 %3544, %v3162
      %v3546 = vpop.permute.xlu0 %3545
      %3547 = vset.pattern.permute.xlu0 0
      %3548 = vperm.xlu0 %3547, %v3163
      %v3549 = vpop.permute.xlu0 %3548
      %3550 = vset.pattern.permute.xlu0 0
      %3551 = vperm.xlu0 %3550, %v3164
      %v3552 = vpop.permute.xlu0 %3551
      %3553 = vset.pattern.permute.xlu0 0
      %3554 = vperm.xlu0 %3553, %v3165
      %v3555 = vpop.permute.xlu0 %3554
      %3556 = vset.pattern.permute.xlu0 0
      %3557 = vperm.xlu0 %3556, %v3166
      %v3558 = vpop.permute.xlu0 %3557
      %3559 = vset.pattern.permute.xlu0 0
      %3560 = vperm.xlu0 %3559, %v3167
      %v3561 = vpop.permute.xlu0 %3560
      %3562 = vset.pattern.permute.xlu0 0
      %3563 = vperm.xlu0 %3562, %v3168
      %v3564 = vpop.permute.xlu0 %3563
      %3565 = vset.pattern.permute.xlu0 0
      %3566 = vperm.xlu0 %3565, %v3169
      %v3567 = vpop.permute.xlu0 %3566
      %3568 = vset.pattern.permute.xlu0 0
      %3569 = vperm.xlu0 %3568, %v3170
      %v3570 = vpop.permute.xlu0 %3569
      %3571 = vset.pattern.permute.xlu0 0
      %3572 = vperm.xlu0 %3571, %v3171
      %v3573 = vpop.permute.xlu0 %3572
      %3574 = vset.pattern.permute.xlu0 0
      %3575 = vperm.xlu0 %3574, %v3172
      %v3576 = vpop.permute.xlu0 %3575
      %3577 = vset.pattern.permute.xlu0 0
      %3578 = vperm.xlu0 %3577, %v3173
      %v3579 = vpop.permute.xlu0 %3578
      %3580 = vset.pattern.permute.xlu0 0
      %3581 = vperm.xlu0 %3580, %v3174
      %v3582 = vpop.permute.xlu0 %3581
      %3583 = vset.pattern.permute.xlu0 0
      %3584 = vperm.xlu0 %3583, %v3175
      %v3585 = vpop.permute.xlu0 %3584
      %3586 = vset.pattern.permute.xlu0 0
      %3587 = vperm.xlu0 %3586, %v3176
      %v3588 = vpop.permute.xlu0 %3587
      %3589 = vset.pattern.permute.xlu0 0
      %3590 = vperm.xlu0 %3589, %v3177
      %v3591 = vpop.permute.xlu0 %3590
      %3592 = vset.pattern.permute.xlu0 0
      %3593 = vperm.xlu0 %3592, %v3178
      %v3594 = vpop.permute.xlu0 %3593
      %3595 = vset.pattern.permute.xlu0 0
      %3596 = vperm.xlu0 %3595, %v3179
      %v3597 = vpop.permute.xlu0 %3596
      %3598 = vset.pattern.permute.xlu0 0
      %3599 = vperm.xlu0 %3598, %v3180
      %v3600 = vpop.permute.xlu0 %3599
      %3601 = vset.pattern.permute.xlu0 0
      %3602 = vperm.xlu0 %3601, %v3181
      %v3603 = vpop.permute.xlu0 %3602
      %3604 = vset.pattern.permute.xlu0 0
      %3605 = vperm.xlu0 %3604, %v3182
      %v3606 = vpop.permute.xlu0 %3605
      %3607 = vset.pattern.permute.xlu0 0
      %3608 = vperm.xlu0 %3607, %v3183
      %v3609 = vpop.permute.xlu0 %3608
      %3610 = vset.pattern.permute.xlu0 0
      %3611 = vperm.xlu0 %3610, %v3184
      %v3612 = vpop.permute.xlu0 %3611
      %3613 = vset.pattern.permute.xlu0 0
      %3614 = vperm.xlu0 %3613, %v3185
      %v3615 = vpop.permute.xlu0 %3614
      %3616 = vset.pattern.permute.xlu0 0
      %3617 = vperm.xlu0 %3616, %v3186
      %v3618 = vpop.permute.xlu0 %3617
      %3619 = vset.pattern.permute.xlu0 0
      %3620 = vperm.xlu0 %3619, %v3187
      %v3621 = vpop.permute.xlu0 %3620
      %3622 = vset.pattern.permute.xlu0 0
      %3623 = vperm.xlu0 %3622, %v3188
      %v3624 = vpop.permute.xlu0 %3623
      %3625 = vset.pattern.permute.xlu0 0
      %3626 = vperm.xlu0 %3625, %v3189
      %v3627 = vpop.permute.xlu0 %3626
      %3628 = vset.pattern.permute.xlu0 0
      %3629 = vperm.xlu0 %3628, %v3190
      %v3630 = vpop.permute.xlu0 %3629
      %3631 = vset.pattern.permute.xlu0 0
      %3632 = vperm.xlu0 %3631, %v3191
      %v3633 = vpop.permute.xlu0 %3632
      %3634 = vset.pattern.permute.xlu0 0
      %3635 = vperm.xlu0 %3634, %v3192
      %v3636 = vpop.permute.xlu0 %3635
      %3637 = vset.pattern.permute.xlu0 0
      %3638 = vperm.xlu0 %3637, %v3193
      %v3639 = vpop.permute.xlu0 %3638
      %3640 = vset.pattern.permute.xlu0 0
      %3641 = vperm.xlu0 %3640, %v3194
      %v3642 = vpop.permute.xlu0 %3641
      %3643 = vset.pattern.permute.xlu0 0
      %3644 = vperm.xlu0 %3643, %v3195
      %v3645 = vpop.permute.xlu0 %3644
      %3646 = vset.pattern.permute.xlu0 0
      %3647 = vperm.xlu0 %3646, %v3196
      %v3648 = vpop.permute.xlu0 %3647
      %3649 = vset.pattern.permute.xlu0 0
      %3650 = vperm.xlu0 %3649, %v3197
      %v3651 = vpop.permute.xlu0 %3650
      %3652 = vset.pattern.permute.xlu0 0
      %3653 = vperm.xlu0 %3652, %v3198
      %v3654 = vpop.permute.xlu0 %3653
      %3655 = vset.pattern.permute.xlu0 0
      %3656 = vperm.xlu0 %3655, %v3199
      %v3657 = vpop.permute.xlu0 %3656
      %3658 = vset.pattern.permute.xlu0 0
      %3659 = vperm.xlu0 %3658, %v3200
      %v3660 = vpop.permute.xlu0 %3659
      %3661 = vset.pattern.permute.xlu0 0
      %3662 = vperm.xlu0 %3661, %v3201
      %v3663 = vpop.permute.xlu0 %3662
      %3664 = vset.pattern.permute.xlu0 0
      %3665 = vperm.xlu0 %3664, %v3202
      %v3666 = vpop.permute.xlu0 %3665
      %3667 = vset.pattern.permute.xlu0 0
      %3668 = vperm.xlu0 %3667, %v3203
      %v3669 = vpop.permute.xlu0 %3668
      %3670 = vset.pattern.permute.xlu0 0
      %3671 = vperm.xlu0 %3670, %v3204
      %v3672 = vpop.permute.xlu0 %3671
      %3673 = vset.pattern.permute.xlu0 0
      %3674 = vperm.xlu0 %3673, %v3205
      %v3675 = vpop.permute.xlu0 %3674
      %3676 = vset.pattern.permute.xlu0 0
      %3677 = vperm.xlu0 %3676, %v3206
      %v3678 = vpop.permute.xlu0 %3677
      %3679 = vset.pattern.permute.xlu0 0
      %3680 = vperm.xlu0 %3679, %v3207
      %v3681 = vpop.permute.xlu0 %3680
      %3682 = vset.pattern.permute.xlu0 0
      %3683 = vperm.xlu0 %3682, %v3208
      %v3684 = vpop.permute.xlu0 %3683
      %3685 = vset.pattern.permute.xlu0 0
      %3686 = vperm.xlu0 %3685, %v3209
      %v3687 = vpop.permute.xlu0 %3686
      %3688 = vset.pattern.permute.xlu0 0
      %3689 = vperm.xlu0 %3688, %v3210
      %v3690 = vpop.permute.xlu0 %3689
      %3691 = vset.pattern.permute.xlu0 0
      %3692 = vperm.xlu0 %3691, %v3211
      %v3693 = vpop.permute.xlu0 %3692
      %3694 = vset.pattern.permute.xlu0 0
      %3695 = vperm.xlu0 %3694, %v3212
      %v3696 = vpop.permute.xlu0 %3695
      %3697 = vset.pattern.permute.xlu0 0
      %3698 = vperm.xlu0 %3697, %v3213
      %v3699 = vpop.permute.xlu0 %3698
      %3700 = vset.pattern.permute.xlu0 0
      %3701 = vperm.xlu0 %3700, %v3214
      %v3702 = vpop.permute.xlu0 %3701
      %3703 = vset.pattern.permute.xlu0 0
      %3704 = vperm.xlu0 %3703, %v3215
      %v3705 = vpop.permute.xlu0 %3704
      %3706 = vset.pattern.permute.xlu0 0
      %3707 = vperm.xlu0 %3706, %v3216
      %v3708 = vpop.permute.xlu0 %3707
      %3709 = vset.pattern.permute.xlu0 0
      %3710 = vperm.xlu0 %3709, %v3217
      %v3711 = vpop.permute.xlu0 %3710
      %3712 = vset.pattern.permute.xlu0 0
      %3713 = vperm.xlu0 %3712, %v3218
      %v3714 = vpop.permute.xlu0 %3713
      %3715 = vset.pattern.permute.xlu0 0
      %3716 = vperm.xlu0 %3715, %v3219
      %v3717 = vpop.permute.xlu0 %3716
      %3718 = vset.pattern.permute.xlu0 0
      %3719 = vperm.xlu0 %3718, %v3220
      %v3720 = vpop.permute.xlu0 %3719
      %3721 = vset.pattern.permute.xlu0 0
      %3722 = vperm.xlu0 %3721, %v3221
      %v3723 = vpop.permute.xlu0 %3722
      %3724 = vset.pattern.permute.xlu0 0
      %3725 = vperm.xlu0 %3724, %v3222
      %v3726 = vpop.permute.xlu0 %3725
      %3727 = vset.pattern.permute.xlu0 0
      %3728 = vperm.xlu0 %3727, %v3223
      %v3729 = vpop.permute.xlu0 %3728
      %3730 = vset.pattern.permute.xlu0 0
      %3731 = vperm.xlu0 %3730, %v3224
      %v3732 = vpop.permute.xlu0 %3731
      %3733 = vset.pattern.permute.xlu0 0
      %3734 = vperm.xlu0 %3733, %v3225
      %v3735 = vpop.permute.xlu0 %3734
      %3736 = vset.pattern.permute.xlu0 0
      %3737 = vperm.xlu0 %3736, %v3226
      %v3738 = vpop.permute.xlu0 %3737
      %v3739 = vlaneseq
      %v3740 = vand.u32 %v3739, 127
      %v3741 = vlaneseq
      %v3742 = vshrl.u32 %v3741, 7
      %v3743 = vsub.s32 %v3740, %v3742
      %v3744 = vrot.slane %v3357, %v3743
      %v3745 = vadd.s32 %v3740, 4294967288
      %v3746 = vlaneseq
      %v3747 = vshrl.u32 %v3746, 7
      %v3748 = vsub.s32 %v3745, %v3747
      %v3749 = vrot.slane %v3360, %v3748
      %vm3750 = vcmask 130112
      %v3751 = vsel %vm3750, %v3749, %v3744
      %v3752 = vadd.s32 %v3740, 4294967280
      %v3753 = vlaneseq
      %v3754 = vshrl.u32 %v3753, 7
      %v3755 = vsub.s32 %v3752, %v3754
      %v3756 = vrot.slane %v3363, %v3755
      %vm3757 = vcmask 195712
      %v3758 = vsel %vm3757, %v3756, %v3751
      %v3759 = vadd.s32 %v3740, 4294967272
      %v3760 = vlaneseq
      %v3761 = vshrl.u32 %v3760, 7
      %v3762 = vsub.s32 %v3759, %v3761
      %v3763 = vrot.slane %v3366, %v3762
      %vm3764 = vcmask 261312
      %v3765 = vsel %vm3764, %v3763, %v3758
      %v3766 = vadd.s32 %v3740, 4294967264
      %v3767 = vlaneseq
      %v3768 = vshrl.u32 %v3767, 7
      %v3769 = vsub.s32 %v3766, %v3768
      %v3770 = vrot.slane %v3369, %v3769
      %vm3771 = vcmask 326912
      %v3772 = vsel %vm3771, %v3770, %v3765
      %v3773 = vadd.s32 %v3740, 4294967256
      %v3774 = vlaneseq
      %v3775 = vshrl.u32 %v3774, 7
      %v3776 = vsub.s32 %v3773, %v3775
      %v3777 = vrot.slane %v3372, %v3776
      %vm3778 = vcmask 392512
      %v3779 = vsel %vm3778, %v3777, %v3772
      %v3780 = vadd.s32 %v3740, 4294967248
      %v3781 = vlaneseq
      %v3782 = vshrl.u32 %v3781, 7
      %v3783 = vsub.s32 %v3780, %v3782
      %v3784 = vrot.slane %v3375, %v3783
      %vm3785 = vcmask 458112
      %v3786 = vsel %vm3785, %v3784, %v3779
      %v3787 = vadd.s32 %v3740, 4294967240
      %v3788 = vlaneseq
      %v3789 = vshrl.u32 %v3788, 7
      %v3790 = vsub.s32 %v3787, %v3789
      %v3791 = vrot.slane %v3378, %v3790
      %vm3792 = vcmask 523712
      %v3793 = vsel %vm3792, %v3791, %v3786
      %v3794 = vadd.s32 %v3740, 4294967232
      %v3795 = vlaneseq
      %v3796 = vshrl.u32 %v3795, 7
      %v3797 = vsub.s32 %v3794, %v3796
      %v3798 = vrot.slane %v3381, %v3797
      %vm3799 = vcmask 589312
      %v3800 = vsel %vm3799, %v3798, %v3793
      %v3801 = vadd.s32 %v3740, 4294967224
      %v3802 = vlaneseq
      %v3803 = vshrl.u32 %v3802, 7
      %v3804 = vsub.s32 %v3801, %v3803
      %v3805 = vrot.slane %v3384, %v3804
      %vm3806 = vcmask 654912
      %v3807 = vsel %vm3806, %v3805, %v3800
      %v3808 = vadd.s32 %v3740, 4294967216
      %v3809 = vlaneseq
      %v3810 = vshrl.u32 %v3809, 7
      %v3811 = vsub.s32 %v3808, %v3810
      %v3812 = vrot.slane %v3387, %v3811
      %vm3813 = vcmask 720512
      %v3814 = vsel %vm3813, %v3812, %v3807
      %v3815 = vadd.s32 %v3740, 4294967208
      %v3816 = vlaneseq
      %v3817 = vshrl.u32 %v3816, 7
      %v3818 = vsub.s32 %v3815, %v3817
      %v3819 = vrot.slane %v3390, %v3818
      %vm3820 = vcmask 786112
      %v3821 = vsel %vm3820, %v3819, %v3814
      %v3822 = vadd.s32 %v3740, 4294967200
      %v3823 = vlaneseq
      %v3824 = vshrl.u32 %v3823, 7
      %v3825 = vsub.s32 %v3822, %v3824
      %v3826 = vrot.slane %v3393, %v3825
      %vm3827 = vcmask 851712
      %v3828 = vsel %vm3827, %v3826, %v3821
      %v3829 = vadd.s32 %v3740, 4294967192
      %v3830 = vlaneseq
      %v3831 = vshrl.u32 %v3830, 7
      %v3832 = vsub.s32 %v3829, %v3831
      %v3833 = vrot.slane %v3396, %v3832
      %vm3834 = vcmask 917312
      %v3835 = vsel %vm3834, %v3833, %v3828
      %v3836 = vadd.s32 %v3740, 4294967184
      %v3837 = vlaneseq
      %v3838 = vshrl.u32 %v3837, 7
      %v3839 = vsub.s32 %v3836, %v3838
      %v3840 = vrot.slane %v3399, %v3839
      %vm3841 = vcmask 982912
      %v3842 = vsel %vm3841, %v3840, %v3835
      %v3843 = vadd.s32 %v3740, 4294967176
      %v3844 = vlaneseq
      %v3845 = vshrl.u32 %v3844, 7
      %v3846 = vsub.s32 %v3843, %v3845
      %v3847 = vrot.slane %v3402, %v3846
      %vm3848 = vcmask 1048512
      %v3849 = vsel %vm3848, %v3847, %v3842
      %v3850 = vlaneseq
      %v3851 = vshrl.u32 %v3850, 7
      %v3852 = vsub.s32 %v3740, %v3851
      %v3853 = vrot.slane %v3405, %v3852
      %v3854 = vlaneseq
      %v3855 = vshrl.u32 %v3854, 7
      %v3856 = vsub.s32 %v3745, %v3855
      %v3857 = vrot.slane %v3408, %v3856
      %v3858 = vsel %vm3750, %v3857, %v3853
      %v3859 = vlaneseq
      %v3860 = vshrl.u32 %v3859, 7
      %v3861 = vsub.s32 %v3752, %v3860
      %v3862 = vrot.slane %v3411, %v3861
      %v3863 = vsel %vm3757, %v3862, %v3858
      %v3864 = vlaneseq
      %v3865 = vshrl.u32 %v3864, 7
      %v3866 = vsub.s32 %v3759, %v3865
      %v3867 = vrot.slane %v3414, %v3866
      %v3868 = vsel %vm3764, %v3867, %v3863
      %v3869 = vlaneseq
      %v3870 = vshrl.u32 %v3869, 7
      %v3871 = vsub.s32 %v3766, %v3870
      %v3872 = vrot.slane %v3417, %v3871
      %v3873 = vsel %vm3771, %v3872, %v3868
      %v3874 = vlaneseq
      %v3875 = vshrl.u32 %v3874, 7
      %v3876 = vsub.s32 %v3773, %v3875
      %v3877 = vrot.slane %v3420, %v3876
      %v3878 = vsel %vm3778, %v3877, %v3873
      %v3879 = vlaneseq
      %v3880 = vshrl.u32 %v3879, 7
      %v3881 = vsub.s32 %v3780, %v3880
      %v3882 = vrot.slane %v3423, %v3881
      %v3883 = vsel %vm3785, %v3882, %v3878
      %v3884 = vlaneseq
      %v3885 = vshrl.u32 %v3884, 7
      %v3886 = vsub.s32 %v3787, %v3885
      %v3887 = vrot.slane %v3426, %v3886
      %v3888 = vsel %vm3792, %v3887, %v3883
      %v3889 = vlaneseq
      %v3890 = vshrl.u32 %v3889, 7
      %v3891 = vsub.s32 %v3794, %v3890
      %v3892 = vrot.slane %v3429, %v3891
      %v3893 = vsel %vm3799, %v3892, %v3888
      %v3894 = vlaneseq
      %v3895 = vshrl.u32 %v3894, 7
      %v3896 = vsub.s32 %v3801, %v3895
      %v3897 = vrot.slane %v3432, %v3896
      %v3898 = vsel %vm3806, %v3897, %v3893
      %v3899 = vlaneseq
      %v3900 = vshrl.u32 %v3899, 7
      %v3901 = vsub.s32 %v3808, %v3900
      %v3902 = vrot.slane %v3435, %v3901
      %v3903 = vsel %vm3813, %v3902, %v3898
      %v3904 = vlaneseq
      %v3905 = vshrl.u32 %v3904, 7
      %v3906 = vsub.s32 %v3815, %v3905
      %v3907 = vrot.slane %v3438, %v3906
      %v3908 = vsel %vm3820, %v3907, %v3903
      %v3909 = vlaneseq
      %v3910 = vshrl.u32 %v3909, 7
      %v3911 = vsub.s32 %v3822, %v3910
      %v3912 = vrot.slane %v3441, %v3911
      %v3913 = vsel %vm3827, %v3912, %v3908
      %v3914 = vlaneseq
      %v3915 = vshrl.u32 %v3914, 7
      %v3916 = vsub.s32 %v3829, %v3915
      %v3917 = vrot.slane %v3444, %v3916
      %v3918 = vsel %vm3834, %v3917, %v3913
      %v3919 = vlaneseq
      %v3920 = vshrl.u32 %v3919, 7
      %v3921 = vsub.s32 %v3836, %v3920
      %v3922 = vrot.slane %v3447, %v3921
      %v3923 = vsel %vm3841, %v3922, %v3918
      %v3924 = vlaneseq
      %v3925 = vshrl.u32 %v3924, 7
      %v3926 = vsub.s32 %v3843, %v3925
      %v3927 = vrot.slane %v3450, %v3926
      %v3928 = vsel %vm3848, %v3927, %v3923
      %v3929 = vlaneseq
      %v3930 = vshrl.u32 %v3929, 7
      %v3931 = vsub.s32 %v3740, %v3930
      %v3932 = vrot.slane %v3453, %v3931
      %v3933 = vlaneseq
      %v3934 = vshrl.u32 %v3933, 7
      %v3935 = vsub.s32 %v3745, %v3934
      %v3936 = vrot.slane %v3456, %v3935
      %v3937 = vsel %vm3750, %v3936, %v3932
      %v3938 = vlaneseq
      %v3939 = vshrl.u32 %v3938, 7
      %v3940 = vsub.s32 %v3752, %v3939
      %v3941 = vrot.slane %v3459, %v3940
      %v3942 = vsel %vm3757, %v3941, %v3937
      %v3943 = vlaneseq
      %v3944 = vshrl.u32 %v3943, 7
      %v3945 = vsub.s32 %v3759, %v3944
      %v3946 = vrot.slane %v3462, %v3945
      %v3947 = vsel %vm3764, %v3946, %v3942
      %v3948 = vlaneseq
      %v3949 = vshrl.u32 %v3948, 7
      %v3950 = vsub.s32 %v3766, %v3949
      %v3951 = vrot.slane %v3465, %v3950
      %v3952 = vsel %vm3771, %v3951, %v3947
      %v3953 = vlaneseq
      %v3954 = vshrl.u32 %v3953, 7
      %v3955 = vsub.s32 %v3773, %v3954
      %v3956 = vrot.slane %v3468, %v3955
      %v3957 = vsel %vm3778, %v3956, %v3952
      %v3958 = vlaneseq
      %v3959 = vshrl.u32 %v3958, 7
      %v3960 = vsub.s32 %v3780, %v3959
      %v3961 = vrot.slane %v3471, %v3960
      %v3962 = vsel %vm3785, %v3961, %v3957
      %v3963 = vlaneseq
      %v3964 = vshrl.u32 %v3963, 7
      %v3965 = vsub.s32 %v3787, %v3964
      %v3966 = vrot.slane %v3474, %v3965
      %v3967 = vsel %vm3792, %v3966, %v3962
      %v3968 = vlaneseq
      %v3969 = vshrl.u32 %v3968, 7
      %v3970 = vsub.s32 %v3794, %v3969
      %v3971 = vrot.slane %v3477, %v3970
      %v3972 = vsel %vm3799, %v3971, %v3967
      %v3973 = vlaneseq
      %v3974 = vshrl.u32 %v3973, 7
      %v3975 = vsub.s32 %v3801, %v3974
      %v3976 = vrot.slane %v3480, %v3975
      %v3977 = vsel %vm3806, %v3976, %v3972
      %v3978 = vlaneseq
      %v3979 = vshrl.u32 %v3978, 7
      %v3980 = vsub.s32 %v3808, %v3979
      %v3981 = vrot.slane %v3483, %v3980
      %v3982 = vsel %vm3813, %v3981, %v3977
      %v3983 = vlaneseq
      %v3984 = vshrl.u32 %v3983, 7
      %v3985 = vsub.s32 %v3815, %v3984
      %v3986 = vrot.slane %v3486, %v3985
      %v3987 = vsel %vm3820, %v3986, %v3982
      %v3988 = vlaneseq
      %v3989 = vshrl.u32 %v3988, 7
      %v3990 = vsub.s32 %v3822, %v3989
      %v3991 = vrot.slane %v3489, %v3990
      %v3992 = vsel %vm3827, %v3991, %v3987
      %v3993 = vlaneseq
      %v3994 = vshrl.u32 %v3993, 7
      %v3995 = vsub.s32 %v3829, %v3994
      %v3996 = vrot.slane %v3492, %v3995
      %v3997 = vsel %vm3834, %v3996, %v3992
      %v3998 = vlaneseq
      %v3999 = vshrl.u32 %v3998, 7
      %v4000 = vsub.s32 %v3836, %v3999
      %v4001 = vrot.slane %v3495, %v4000
      %v4002 = vsel %vm3841, %v4001, %v3997
      %v4003 = vlaneseq
      %v4004 = vshrl.u32 %v4003, 7
      %v4005 = vsub.s32 %v3843, %v4004
      %v4006 = vrot.slane %v3498, %v4005
      %v4007 = vsel %vm3848, %v4006, %v4002
      %v4008 = vlaneseq
      %v4009 = vshrl.u32 %v4008, 7
      %v4010 = vsub.s32 %v3740, %v4009
      %v4011 = vrot.slane %v3501, %v4010
      %v4012 = vlaneseq
      %v4013 = vshrl.u32 %v4012, 7
      %v4014 = vsub.s32 %v3745, %v4013
      %v4015 = vrot.slane %v3504, %v4014
      %v4016 = vsel %vm3750, %v4015, %v4011
      %v4017 = vlaneseq
      %v4018 = vshrl.u32 %v4017, 7
      %v4019 = vsub.s32 %v3752, %v4018
      %v4020 = vrot.slane %v3507, %v4019
      %v4021 = vsel %vm3757, %v4020, %v4016
      %v4022 = vlaneseq
      %v4023 = vshrl.u32 %v4022, 7
      %v4024 = vsub.s32 %v3759, %v4023
      %v4025 = vrot.slane %v3510, %v4024
      %v4026 = vsel %vm3764, %v4025, %v4021
      %v4027 = vlaneseq
      %v4028 = vshrl.u32 %v4027, 7
      %v4029 = vsub.s32 %v3766, %v4028
      %v4030 = vrot.slane %v3513, %v4029
      %v4031 = vsel %vm3771, %v4030, %v4026
      %v4032 = vlaneseq
      %v4033 = vshrl.u32 %v4032, 7
      %v4034 = vsub.s32 %v3773, %v4033
      %v4035 = vrot.slane %v3516, %v4034
      %v4036 = vsel %vm3778, %v4035, %v4031
      %v4037 = vlaneseq
      %v4038 = vshrl.u32 %v4037, 7
      %v4039 = vsub.s32 %v3780, %v4038
      %v4040 = vrot.slane %v3519, %v4039
      %v4041 = vsel %vm3785, %v4040, %v4036
      %v4042 = vlaneseq
      %v4043 = vshrl.u32 %v4042, 7
      %v4044 = vsub.s32 %v3787, %v4043
      %v4045 = vrot.slane %v3522, %v4044
      %v4046 = vsel %vm3792, %v4045, %v4041
      %v4047 = vlaneseq
      %v4048 = vshrl.u32 %v4047, 7
      %v4049 = vsub.s32 %v3794, %v4048
      %v4050 = vrot.slane %v3525, %v4049
      %v4051 = vsel %vm3799, %v4050, %v4046
      %v4052 = vlaneseq
      %v4053 = vshrl.u32 %v4052, 7
      %v4054 = vsub.s32 %v3801, %v4053
      %v4055 = vrot.slane %v3528, %v4054
      %v4056 = vsel %vm3806, %v4055, %v4051
      %v4057 = vlaneseq
      %v4058 = vshrl.u32 %v4057, 7
      %v4059 = vsub.s32 %v3808, %v4058
      %v4060 = vrot.slane %v3531, %v4059
      %v4061 = vsel %vm3813, %v4060, %v4056
      %v4062 = vlaneseq
      %v4063 = vshrl.u32 %v4062, 7
      %v4064 = vsub.s32 %v3815, %v4063
      %v4065 = vrot.slane %v3534, %v4064
      %v4066 = vsel %vm3820, %v4065, %v4061
      %v4067 = vlaneseq
      %v4068 = vshrl.u32 %v4067, 7
      %v4069 = vsub.s32 %v3822, %v4068
      %v4070 = vrot.slane %v3537, %v4069
      %v4071 = vsel %vm3827, %v4070, %v4066
      %v4072 = vlaneseq
      %v4073 = vshrl.u32 %v4072, 7
      %v4074 = vsub.s32 %v3829, %v4073
      %v4075 = vrot.slane %v3540, %v4074
      %v4076 = vsel %vm3834, %v4075, %v4071
      %v4077 = vlaneseq
      %v4078 = vshrl.u32 %v4077, 7
      %v4079 = vsub.s32 %v3836, %v4078
      %v4080 = vrot.slane %v3543, %v4079
      %v4081 = vsel %vm3841, %v4080, %v4076
      %v4082 = vlaneseq
      %v4083 = vshrl.u32 %v4082, 7
      %v4084 = vsub.s32 %v3843, %v4083
      %v4085 = vrot.slane %v3546, %v4084
      %v4086 = vsel %vm3848, %v4085, %v4081
      %v4087 = vlaneseq
      %v4088 = vshrl.u32 %v4087, 7
      %v4089 = vsub.s32 %v3740, %v4088
      %v4090 = vrot.slane %v3549, %v4089
      %v4091 = vlaneseq
      %v4092 = vshrl.u32 %v4091, 7
      %v4093 = vsub.s32 %v3745, %v4092
      %v4094 = vrot.slane %v3552, %v4093
      %v4095 = vsel %vm3750, %v4094, %v4090
      %v4096 = vlaneseq
      %v4097 = vshrl.u32 %v4096, 7
      %v4098 = vsub.s32 %v3752, %v4097
      %v4099 = vrot.slane %v3555, %v4098
      %v4100 = vsel %vm3757, %v4099, %v4095
      %v4101 = vlaneseq
      %v4102 = vshrl.u32 %v4101, 7
      %v4103 = vsub.s32 %v3759, %v4102
      %v4104 = vrot.slane %v3558, %v4103
      %v4105 = vsel %vm3764, %v4104, %v4100
      %v4106 = vlaneseq
      %v4107 = vshrl.u32 %v4106, 7
      %v4108 = vsub.s32 %v3766, %v4107
      %v4109 = vrot.slane %v3561, %v4108
      %v4110 = vsel %vm3771, %v4109, %v4105
      %v4111 = vlaneseq
      %v4112 = vshrl.u32 %v4111, 7
      %v4113 = vsub.s32 %v3773, %v4112
      %v4114 = vrot.slane %v3564, %v4113
      %v4115 = vsel %vm3778, %v4114, %v4110
      %v4116 = vlaneseq
      %v4117 = vshrl.u32 %v4116, 7
      %v4118 = vsub.s32 %v3780, %v4117
      %v4119 = vrot.slane %v3567, %v4118
      %v4120 = vsel %vm3785, %v4119, %v4115
      %v4121 = vlaneseq
      %v4122 = vshrl.u32 %v4121, 7
      %v4123 = vsub.s32 %v3787, %v4122
      %v4124 = vrot.slane %v3570, %v4123
      %v4125 = vsel %vm3792, %v4124, %v4120
      %v4126 = vlaneseq
      %v4127 = vshrl.u32 %v4126, 7
      %v4128 = vsub.s32 %v3794, %v4127
      %v4129 = vrot.slane %v3573, %v4128
      %v4130 = vsel %vm3799, %v4129, %v4125
      %v4131 = vlaneseq
      %v4132 = vshrl.u32 %v4131, 7
      %v4133 = vsub.s32 %v3801, %v4132
      %v4134 = vrot.slane %v3576, %v4133
      %v4135 = vsel %vm3806, %v4134, %v4130
      %v4136 = vlaneseq
      %v4137 = vshrl.u32 %v4136, 7
      %v4138 = vsub.s32 %v3808, %v4137
      %v4139 = vrot.slane %v3579, %v4138
      %v4140 = vsel %vm3813, %v4139, %v4135
      %v4141 = vlaneseq
      %v4142 = vshrl.u32 %v4141, 7
      %v4143 = vsub.s32 %v3815, %v4142
      %v4144 = vrot.slane %v3582, %v4143
      %v4145 = vsel %vm3820, %v4144, %v4140
      %v4146 = vlaneseq
      %v4147 = vshrl.u32 %v4146, 7
      %v4148 = vsub.s32 %v3822, %v4147
      %v4149 = vrot.slane %v3585, %v4148
      %v4150 = vsel %vm3827, %v4149, %v4145
      %v4151 = vlaneseq
      %v4152 = vshrl.u32 %v4151, 7
      %v4153 = vsub.s32 %v3829, %v4152
      %v4154 = vrot.slane %v3588, %v4153
      %v4155 = vsel %vm3834, %v4154, %v4150
      %v4156 = vlaneseq
      %v4157 = vshrl.u32 %v4156, 7
      %v4158 = vsub.s32 %v3836, %v4157
      %v4159 = vrot.slane %v3591, %v4158
      %v4160 = vsel %vm3841, %v4159, %v4155
      %v4161 = vlaneseq
      %v4162 = vshrl.u32 %v4161, 7
      %v4163 = vsub.s32 %v3843, %v4162
      %v4164 = vrot.slane %v3594, %v4163
      %v4165 = vsel %vm3848, %v4164, %v4160
      %v4166 = vlaneseq
      %v4167 = vshrl.u32 %v4166, 7
      %v4168 = vsub.s32 %v3740, %v4167
      %v4169 = vrot.slane %v3597, %v4168
      %v4170 = vlaneseq
      %v4171 = vshrl.u32 %v4170, 7
      %v4172 = vsub.s32 %v3745, %v4171
      %v4173 = vrot.slane %v3600, %v4172
      %v4174 = vsel %vm3750, %v4173, %v4169
      %v4175 = vlaneseq
      %v4176 = vshrl.u32 %v4175, 7
      %v4177 = vsub.s32 %v3752, %v4176
      %v4178 = vrot.slane %v3603, %v4177
      %v4179 = vsel %vm3757, %v4178, %v4174
      %v4180 = vlaneseq
      %v4181 = vshrl.u32 %v4180, 7
      %v4182 = vsub.s32 %v3759, %v4181
      %v4183 = vrot.slane %v3606, %v4182
      %v4184 = vsel %vm3764, %v4183, %v4179
      %v4185 = vlaneseq
      %v4186 = vshrl.u32 %v4185, 7
      %v4187 = vsub.s32 %v3766, %v4186
      %v4188 = vrot.slane %v3609, %v4187
      %v4189 = vsel %vm3771, %v4188, %v4184
      %v4190 = vlaneseq
      %v4191 = vshrl.u32 %v4190, 7
      %v4192 = vsub.s32 %v3773, %v4191
      %v4193 = vrot.slane %v3612, %v4192
      %v4194 = vsel %vm3778, %v4193, %v4189
      %v4195 = vlaneseq
      %v4196 = vshrl.u32 %v4195, 7
      %v4197 = vsub.s32 %v3780, %v4196
      %v4198 = vrot.slane %v3615, %v4197
      %v4199 = vsel %vm3785, %v4198, %v4194
      %v4200 = vlaneseq
      %v4201 = vshrl.u32 %v4200, 7
      %v4202 = vsub.s32 %v3787, %v4201
      %v4203 = vrot.slane %v3618, %v4202
      %v4204 = vsel %vm3792, %v4203, %v4199
      %v4205 = vlaneseq
      %v4206 = vshrl.u32 %v4205, 7
      %v4207 = vsub.s32 %v3794, %v4206
      %v4208 = vrot.slane %v3621, %v4207
      %v4209 = vsel %vm3799, %v4208, %v4204
      %v4210 = vlaneseq
      %v4211 = vshrl.u32 %v4210, 7
      %v4212 = vsub.s32 %v3801, %v4211
      %v4213 = vrot.slane %v3624, %v4212
      %v4214 = vsel %vm3806, %v4213, %v4209
      %v4215 = vlaneseq
      %v4216 = vshrl.u32 %v4215, 7
      %v4217 = vsub.s32 %v3808, %v4216
      %v4218 = vrot.slane %v3627, %v4217
      %v4219 = vsel %vm3813, %v4218, %v4214
      %v4220 = vlaneseq
      %v4221 = vshrl.u32 %v4220, 7
      %v4222 = vsub.s32 %v3815, %v4221
      %v4223 = vrot.slane %v3630, %v4222
      %v4224 = vsel %vm3820, %v4223, %v4219
      %v4225 = vlaneseq
      %v4226 = vshrl.u32 %v4225, 7
      %v4227 = vsub.s32 %v3822, %v4226
      %v4228 = vrot.slane %v3633, %v4227
      %v4229 = vsel %vm3827, %v4228, %v4224
      %v4230 = vlaneseq
      %v4231 = vshrl.u32 %v4230, 7
      %v4232 = vsub.s32 %v3829, %v4231
      %v4233 = vrot.slane %v3636, %v4232
      %v4234 = vsel %vm3834, %v4233, %v4229
      %v4235 = vlaneseq
      %v4236 = vshrl.u32 %v4235, 7
      %v4237 = vsub.s32 %v3836, %v4236
      %v4238 = vrot.slane %v3639, %v4237
      %v4239 = vsel %vm3841, %v4238, %v4234
      %v4240 = vlaneseq
      %v4241 = vshrl.u32 %v4240, 7
      %v4242 = vsub.s32 %v3843, %v4241
      %v4243 = vrot.slane %v3642, %v4242
      %v4244 = vsel %vm3848, %v4243, %v4239
      %v4245 = vlaneseq
      %v4246 = vshrl.u32 %v4245, 7
      %v4247 = vsub.s32 %v3740, %v4246
      %v4248 = vrot.slane %v3645, %v4247
      %v4249 = vlaneseq
      %v4250 = vshrl.u32 %v4249, 7
      %v4251 = vsub.s32 %v3745, %v4250
      %v4252 = vrot.slane %v3648, %v4251
      %v4253 = vsel %vm3750, %v4252, %v4248
      %v4254 = vlaneseq
      %v4255 = vshrl.u32 %v4254, 7
      %v4256 = vsub.s32 %v3752, %v4255
      %v4257 = vrot.slane %v3651, %v4256
      %v4258 = vsel %vm3757, %v4257, %v4253
      %v4259 = vlaneseq
      %v4260 = vshrl.u32 %v4259, 7
      %v4261 = vsub.s32 %v3759, %v4260
      %v4262 = vrot.slane %v3654, %v4261
      %v4263 = vsel %vm3764, %v4262, %v4258
      %v4264 = vlaneseq
      %v4265 = vshrl.u32 %v4264, 7
      %v4266 = vsub.s32 %v3766, %v4265
      %v4267 = vrot.slane %v3657, %v4266
      %v4268 = vsel %vm3771, %v4267, %v4263
      %v4269 = vlaneseq
      %v4270 = vshrl.u32 %v4269, 7
      %v4271 = vsub.s32 %v3773, %v4270
      %v4272 = vrot.slane %v3660, %v4271
      %v4273 = vsel %vm3778, %v4272, %v4268
      %v4274 = vlaneseq
      %v4275 = vshrl.u32 %v4274, 7
      %v4276 = vsub.s32 %v3780, %v4275
      %v4277 = vrot.slane %v3663, %v4276
      %v4278 = vsel %vm3785, %v4277, %v4273
      %v4279 = vlaneseq
      %v4280 = vshrl.u32 %v4279, 7
      %v4281 = vsub.s32 %v3787, %v4280
      %v4282 = vrot.slane %v3666, %v4281
      %v4283 = vsel %vm3792, %v4282, %v4278
      %v4284 = vlaneseq
      %v4285 = vshrl.u32 %v4284, 7
      %v4286 = vsub.s32 %v3794, %v4285
      %v4287 = vrot.slane %v3669, %v4286
      %v4288 = vsel %vm3799, %v4287, %v4283
      %v4289 = vlaneseq
      %v4290 = vshrl.u32 %v4289, 7
      %v4291 = vsub.s32 %v3801, %v4290
      %v4292 = vrot.slane %v3672, %v4291
      %v4293 = vsel %vm3806, %v4292, %v4288
      %v4294 = vlaneseq
      %v4295 = vshrl.u32 %v4294, 7
      %v4296 = vsub.s32 %v3808, %v4295
      %v4297 = vrot.slane %v3675, %v4296
      %v4298 = vsel %vm3813, %v4297, %v4293
      %v4299 = vlaneseq
      %v4300 = vshrl.u32 %v4299, 7
      %v4301 = vsub.s32 %v3815, %v4300
      %v4302 = vrot.slane %v3678, %v4301
      %v4303 = vsel %vm3820, %v4302, %v4298
      %v4304 = vlaneseq
      %v4305 = vshrl.u32 %v4304, 7
      %v4306 = vsub.s32 %v3822, %v4305
      %v4307 = vrot.slane %v3681, %v4306
      %v4308 = vsel %vm3827, %v4307, %v4303
      %v4309 = vlaneseq
      %v4310 = vshrl.u32 %v4309, 7
      %v4311 = vsub.s32 %v3829, %v4310
      %v4312 = vrot.slane %v3684, %v4311
      %v4313 = vsel %vm3834, %v4312, %v4308
      %v4314 = vlaneseq
      %v4315 = vshrl.u32 %v4314, 7
      %v4316 = vsub.s32 %v3836, %v4315
      %v4317 = vrot.slane %v3687, %v4316
      %v4318 = vsel %vm3841, %v4317, %v4313
      %v4319 = vlaneseq
      %v4320 = vshrl.u32 %v4319, 7
      %v4321 = vsub.s32 %v3843, %v4320
      %v4322 = vrot.slane %v3690, %v4321
      %v4323 = vsel %vm3848, %v4322, %v4318
      %v4324 = vlaneseq
      %v4325 = vshrl.u32 %v4324, 7
      %v4326 = vsub.s32 %v3740, %v4325
      %v4327 = vrot.slane %v3693, %v4326
      %v4328 = vlaneseq
      %v4329 = vshrl.u32 %v4328, 7
      %v4330 = vsub.s32 %v3745, %v4329
      %v4331 = vrot.slane %v3696, %v4330
      %v4332 = vsel %vm3750, %v4331, %v4327
      %v4333 = vlaneseq
      %v4334 = vshrl.u32 %v4333, 7
      %v4335 = vsub.s32 %v3752, %v4334
      %v4336 = vrot.slane %v3699, %v4335
      %v4337 = vsel %vm3757, %v4336, %v4332
      %v4338 = vlaneseq
      %v4339 = vshrl.u32 %v4338, 7
      %v4340 = vsub.s32 %v3759, %v4339
      %v4341 = vrot.slane %v3702, %v4340
      %v4342 = vsel %vm3764, %v4341, %v4337
      %v4343 = vlaneseq
      %v4344 = vshrl.u32 %v4343, 7
      %v4345 = vsub.s32 %v3766, %v4344
      %v4346 = vrot.slane %v3705, %v4345
      %v4347 = vsel %vm3771, %v4346, %v4342
      %v4348 = vlaneseq
      %v4349 = vshrl.u32 %v4348, 7
      %v4350 = vsub.s32 %v3773, %v4349
      %v4351 = vrot.slane %v3708, %v4350
      %v4352 = vsel %vm3778, %v4351, %v4347
      %v4353 = vlaneseq
      %v4354 = vshrl.u32 %v4353, 7
      %v4355 = vsub.s32 %v3780, %v4354
      %v4356 = vrot.slane %v3711, %v4355
      %v4357 = vsel %vm3785, %v4356, %v4352
      %v4358 = vlaneseq
      %v4359 = vshrl.u32 %v4358, 7
      %v4360 = vsub.s32 %v3787, %v4359
      %v4361 = vrot.slane %v3714, %v4360
      %v4362 = vsel %vm3792, %v4361, %v4357
      %v4363 = vlaneseq
      %v4364 = vshrl.u32 %v4363, 7
      %v4365 = vsub.s32 %v3794, %v4364
      %v4366 = vrot.slane %v3717, %v4365
      %v4367 = vsel %vm3799, %v4366, %v4362
      %v4368 = vlaneseq
      %v4369 = vshrl.u32 %v4368, 7
      %v4370 = vsub.s32 %v3801, %v4369
      %v4371 = vrot.slane %v3720, %v4370
      %v4372 = vsel %vm3806, %v4371, %v4367
      %v4373 = vlaneseq
      %v4374 = vshrl.u32 %v4373, 7
      %v4375 = vsub.s32 %v3808, %v4374
      %v4376 = vrot.slane %v3723, %v4375
      %v4377 = vsel %vm3813, %v4376, %v4372
      %v4378 = vlaneseq
      %v4379 = vshrl.u32 %v4378, 7
      %v4380 = vsub.s32 %v3815, %v4379
      %v4381 = vrot.slane %v3726, %v4380
      %v4382 = vsel %vm3820, %v4381, %v4377
      %v4383 = vlaneseq
      %v4384 = vshrl.u32 %v4383, 7
      %v4385 = vsub.s32 %v3822, %v4384
      %v4386 = vrot.slane %v3729, %v4385
      %v4387 = vsel %vm3827, %v4386, %v4382
      %v4388 = vlaneseq
      %v4389 = vshrl.u32 %v4388, 7
      %v4390 = vsub.s32 %v3829, %v4389
      %v4391 = vrot.slane %v3732, %v4390
      %v4392 = vsel %vm3834, %v4391, %v4387
      %v4393 = vlaneseq
      %v4394 = vshrl.u32 %v4393, 7
      %v4395 = vsub.s32 %v3836, %v4394
      %v4396 = vrot.slane %v3735, %v4395
      %v4397 = vsel %vm3841, %v4396, %v4392
      %v4398 = vlaneseq
      %v4399 = vshrl.u32 %v4398, 7
      %v4400 = vsub.s32 %v3843, %v4399
      %v4401 = vrot.slane %v3738, %v4400
      %v4402 = vsel %vm3848, %v4401, %v4397
      %vm4403 = vcmask 1041409
      %v4404 = vsel %vm4403, %v3928, %v3849
      %vm4405 = vcmask 1042434
      %v4406 = vsel %vm4405, %v4007, %v4404
      %vm4407 = vcmask 1043459
      %v4408 = vsel %vm4407, %v4086, %v4406
      %vm4409 = vcmask 1044484
      %v4410 = vsel %vm4409, %v4165, %v4408
      %vm4411 = vcmask 1045509
      %v4412 = vsel %vm4411, %v4244, %v4410
      %vm4413 = vcmask 1046534
      %v4414 = vsel %vm4413, %v4323, %v4412
      %vm4415 = vcmask 1047559
      %v4416 = vsel %vm4415, %v4402, %v4414
      %4418 = vst [vmem:[%s354] sm:$0xff] %v4416
      %v4419 = vsub.f32 %v891, %v2971
      %v4420 = vsub.f32 %v893, %v2972
      %v4421 = vsub.f32 %v895, %v2973
      %v4422 = vsub.f32 %v897, %v2974
      %v4423 = vsub.f32 %v899, %v2975
      %v4424 = vsub.f32 %v901, %v2976
      %v4425 = vsub.f32 %v903, %v2977
      %v4426 = vsub.f32 %v905, %v2978
      %v4427 = vsub.f32 %v907, %v2979
      %v4428 = vsub.f32 %v909, %v2980
      %v4429 = vsub.f32 %v911, %v2981
      %v4430 = vsub.f32 %v913, %v2982
      %v4431 = vsub.f32 %v915, %v2983
      %v4432 = vsub.f32 %v917, %v2984
      %v4433 = vsub.f32 %v919, %v2985
      %v4434 = vsub.f32 %v921, %v2986
      %v4435 = vsub.f32 %v923, %v2987
      %v4436 = vsub.f32 %v925, %v2988
      %v4437 = vsub.f32 %v927, %v2989
      %v4438 = vsub.f32 %v929, %v2990
      %v4439 = vsub.f32 %v931, %v2991
      %v4440 = vsub.f32 %v933, %v2992
      %v4441 = vsub.f32 %v935, %v2993
      %v4442 = vsub.f32 %v937, %v2994
      %v4443 = vsub.f32 %v939, %v2995
      %v4444 = vsub.f32 %v941, %v2996
      %v4445 = vsub.f32 %v943, %v2997
      %v4446 = vsub.f32 %v945, %v2998
      %v4447 = vsub.f32 %v947, %v2999
      %v4448 = vsub.f32 %v949, %v3000
      %v4449 = vsub.f32 %v951, %v3001
      %v4450 = vsub.f32 %v953, %v3002
      %v4451 = vsub.f32 %v955, %v3003
      %v4452 = vsub.f32 %v957, %v3004
      %v4453 = vsub.f32 %v959, %v3005
      %v4454 = vsub.f32 %v961, %v3006
      %v4455 = vsub.f32 %v963, %v3007
      %v4456 = vsub.f32 %v965, %v3008
      %v4457 = vsub.f32 %v967, %v3009
      %v4458 = vsub.f32 %v969, %v3010
      %v4459 = vsub.f32 %v971, %v3011
      %v4460 = vsub.f32 %v973, %v3012
      %v4461 = vsub.f32 %v975, %v3013
      %v4462 = vsub.f32 %v977, %v3014
      %v4463 = vsub.f32 %v979, %v3015
      %v4464 = vsub.f32 %v981, %v3016
      %v4465 = vsub.f32 %v983, %v3017
      %v4466 = vsub.f32 %v985, %v3018
      %v4467 = vsub.f32 %v987, %v3019
      %v4468 = vsub.f32 %v989, %v3020
      %v4469 = vsub.f32 %v991, %v3021
      %v4470 = vsub.f32 %v993, %v3022
      %v4471 = vsub.f32 %v995, %v3023
      %v4472 = vsub.f32 %v997, %v3024
      %v4473 = vsub.f32 %v999, %v3025
      %v4474 = vsub.f32 %v1001, %v3026
      %v4475 = vsub.f32 %v1003, %v3027
      %v4476 = vsub.f32 %v1005, %v3028
      %v4477 = vsub.f32 %v1007, %v3029
      %v4478 = vsub.f32 %v1009, %v3030
      %v4479 = vsub.f32 %v1011, %v3031
      %v4480 = vsub.f32 %v1013, %v3032
      %v4481 = vsub.f32 %v1015, %v3033
      %v4482 = vsub.f32 %v1017, %v3034
      %v4483 = vsub.f32 %v1019, %v3035
      %v4484 = vsub.f32 %v1021, %v3036
      %v4485 = vsub.f32 %v1023, %v3037
      %v4486 = vsub.f32 %v1025, %v3038
      %v4487 = vsub.f32 %v1027, %v3039
      %v4488 = vsub.f32 %v1029, %v3040
      %v4489 = vsub.f32 %v1031, %v3041
      %v4490 = vsub.f32 %v1033, %v3042
      %v4491 = vsub.f32 %v1035, %v3043
      %v4492 = vsub.f32 %v1037, %v3044
      %v4493 = vsub.f32 %v1039, %v3045
      %v4494 = vsub.f32 %v1041, %v3046
      %v4495 = vsub.f32 %v1043, %v3047
      %v4496 = vsub.f32 %v1045, %v3048
      %v4497 = vsub.f32 %v1047, %v3049
      %v4498 = vsub.f32 %v1049, %v3050
      %v4499 = vsub.f32 %v1051, %v3051
      %v4500 = vsub.f32 %v1053, %v3052
      %v4501 = vsub.f32 %v1055, %v3053
      %v4502 = vsub.f32 %v1057, %v3054
      %v4503 = vsub.f32 %v1059, %v3055
      %v4504 = vsub.f32 %v1061, %v3056
      %v4505 = vsub.f32 %v1063, %v3057
      %v4506 = vsub.f32 %v1065, %v3058
      %v4507 = vsub.f32 %v1067, %v3059
      %v4508 = vsub.f32 %v1069, %v3060
      %v4509 = vsub.f32 %v1071, %v3061
      %v4510 = vsub.f32 %v1073, %v3062
      %v4511 = vsub.f32 %v1075, %v3063
      %v4512 = vsub.f32 %v1077, %v3064
      %v4513 = vsub.f32 %v1079, %v3065
      %v4514 = vsub.f32 %v1081, %v3066
      %v4515 = vsub.f32 %v1083, %v3067
      %v4516 = vsub.f32 %v1085, %v3068
      %v4517 = vsub.f32 %v1087, %v3069
      %v4518 = vsub.f32 %v1089, %v3070
      %v4519 = vsub.f32 %v1091, %v3071
      %v4520 = vsub.f32 %v1093, %v3072
      %v4521 = vsub.f32 %v1095, %v3073
      %v4522 = vsub.f32 %v1097, %v3074
      %v4523 = vsub.f32 %v1099, %v3075
      %v4524 = vsub.f32 %v1101, %v3076
      %v4525 = vsub.f32 %v1103, %v3077
      %v4526 = vsub.f32 %v1105, %v3078
      %v4527 = vsub.f32 %v1107, %v3079
      %v4528 = vsub.f32 %v1109, %v3080
      %v4529 = vsub.f32 %v1111, %v3081
      %v4530 = vsub.f32 %v1113, %v3082
      %v4531 = vsub.f32 %v1115, %v3083
      %v4532 = vsub.f32 %v1117, %v3084
      %v4533 = vsub.f32 %v1119, %v3085
      %v4534 = vsub.f32 %v1121, %v3086
      %v4535 = vsub.f32 %v1123, %v3087
      %v4536 = vsub.f32 %v1125, %v3088
      %v4537 = vsub.f32 %v1127, %v3089
      %v4538 = vsub.f32 %v1129, %v3090
      %v4539 = vsub.f32 %v1131, %v3091
      %v4540 = vsub.f32 %v1133, %v3092
      %v4541 = vsub.f32 %v1135, %v3093
      %v4542 = vsub.f32 %v1137, %v3094
      %v4543 = vsub.f32 %v1139, %v3095
      %v4544 = vsub.f32 %v1141, %v3096
      %v4545 = vsub.f32 %v1143, %v3097
      %v4546 = vsub.f32 %v1145, %v3098
      %v4675 = vlaneseq
      %v4676 = vshrl.u32 %v4675, 7
      %v4677 = vsub.s32 %v3740, %v4676
      %v4678 = vrot.slane %v4419, %v4677
      %v4679 = vlaneseq
      %v4680 = vshrl.u32 %v4679, 7
      %v4681 = vsub.s32 %v3745, %v4680
      %v4682 = vrot.slane %v4420, %v4681
      %v4683 = vsel %vm3750, %v4682, %v4678
      %v4684 = vlaneseq
      %v4685 = vshrl.u32 %v4684, 7
      %v4686 = vsub.s32 %v3752, %v4685
      %v4687 = vrot.slane %v4421, %v4686
      %v4688 = vsel %vm3757, %v4687, %v4683
      %v4689 = vlaneseq
      %v4690 = vshrl.u32 %v4689, 7
      %v4691 = vsub.s32 %v3759, %v4690
      %v4692 = vrot.slane %v4422, %v4691
      %v4693 = vsel %vm3764, %v4692, %v4688
      %v4694 = vlaneseq
      %v4695 = vshrl.u32 %v4694, 7
      %v4696 = vsub.s32 %v3766, %v4695
      %v4697 = vrot.slane %v4423, %v4696
      %v4698 = vsel %vm3771, %v4697, %v4693
      %v4699 = vlaneseq
      %v4700 = vshrl.u32 %v4699, 7
      %v4701 = vsub.s32 %v3773, %v4700
      %v4702 = vrot.slane %v4424, %v4701
      %v4703 = vsel %vm3778, %v4702, %v4698
      %v4704 = vlaneseq
      %v4705 = vshrl.u32 %v4704, 7
      %v4706 = vsub.s32 %v3780, %v4705
      %v4707 = vrot.slane %v4425, %v4706
      %v4708 = vsel %vm3785, %v4707, %v4703
      %v4709 = vlaneseq
      %v4710 = vshrl.u32 %v4709, 7
      %v4711 = vsub.s32 %v3787, %v4710
      %v4712 = vrot.slane %v4426, %v4711
      %v4713 = vsel %vm3792, %v4712, %v4708
      %v4714 = vlaneseq
      %v4715 = vshrl.u32 %v4714, 7
      %v4716 = vsub.s32 %v3794, %v4715
      %v4717 = vrot.slane %v4427, %v4716
      %v4718 = vsel %vm3799, %v4717, %v4713
      %v4719 = vlaneseq
      %v4720 = vshrl.u32 %v4719, 7
      %v4721 = vsub.s32 %v3801, %v4720
      %v4722 = vrot.slane %v4428, %v4721
      %v4723 = vsel %vm3806, %v4722, %v4718
      %v4724 = vlaneseq
      %v4725 = vshrl.u32 %v4724, 7
      %v4726 = vsub.s32 %v3808, %v4725
      %v4727 = vrot.slane %v4429, %v4726
      %v4728 = vsel %vm3813, %v4727, %v4723
      %v4729 = vlaneseq
      %v4730 = vshrl.u32 %v4729, 7
      %v4731 = vsub.s32 %v3815, %v4730
      %v4732 = vrot.slane %v4430, %v4731
      %v4733 = vsel %vm3820, %v4732, %v4728
      %v4734 = vlaneseq
      %v4735 = vshrl.u32 %v4734, 7
      %v4736 = vsub.s32 %v3822, %v4735
      %v4737 = vrot.slane %v4431, %v4736
      %v4738 = vsel %vm3827, %v4737, %v4733
      %v4739 = vlaneseq
      %v4740 = vshrl.u32 %v4739, 7
      %v4741 = vsub.s32 %v3829, %v4740
      %v4742 = vrot.slane %v4432, %v4741
      %v4743 = vsel %vm3834, %v4742, %v4738
      %v4744 = vlaneseq
      %v4745 = vshrl.u32 %v4744, 7
      %v4746 = vsub.s32 %v3836, %v4745
      %v4747 = vrot.slane %v4433, %v4746
      %v4748 = vsel %vm3841, %v4747, %v4743
      %v4749 = vlaneseq
      %v4750 = vshrl.u32 %v4749, 7
      %v4751 = vsub.s32 %v3843, %v4750
      %v4752 = vrot.slane %v4434, %v4751
      %v4753 = vsel %vm3848, %v4752, %v4748
      %v4754 = vlaneseq
      %v4755 = vshrl.u32 %v4754, 7
      %v4756 = vsub.s32 %v3740, %v4755
      %v4757 = vrot.slane %v4435, %v4756
      %v4758 = vlaneseq
      %v4759 = vshrl.u32 %v4758, 7
      %v4760 = vsub.s32 %v3745, %v4759
      %v4761 = vrot.slane %v4436, %v4760
      %v4762 = vsel %vm3750, %v4761, %v4757
      %v4763 = vlaneseq
      %v4764 = vshrl.u32 %v4763, 7
      %v4765 = vsub.s32 %v3752, %v4764
      %v4766 = vrot.slane %v4437, %v4765
      %v4767 = vsel %vm3757, %v4766, %v4762
      %v4768 = vlaneseq
      %v4769 = vshrl.u32 %v4768, 7
      %v4770 = vsub.s32 %v3759, %v4769
      %v4771 = vrot.slane %v4438, %v4770
      %v4772 = vsel %vm3764, %v4771, %v4767
      %v4773 = vlaneseq
      %v4774 = vshrl.u32 %v4773, 7
      %v4775 = vsub.s32 %v3766, %v4774
      %v4776 = vrot.slane %v4439, %v4775
      %v4777 = vsel %vm3771, %v4776, %v4772
      %v4778 = vlaneseq
      %v4779 = vshrl.u32 %v4778, 7
      %v4780 = vsub.s32 %v3773, %v4779
      %v4781 = vrot.slane %v4440, %v4780
      %v4782 = vsel %vm3778, %v4781, %v4777
      %v4783 = vlaneseq
      %v4784 = vshrl.u32 %v4783, 7
      %v4785 = vsub.s32 %v3780, %v4784
      %v4786 = vrot.slane %v4441, %v4785
      %v4787 = vsel %vm3785, %v4786, %v4782
      %v4788 = vlaneseq
      %v4789 = vshrl.u32 %v4788, 7
      %v4790 = vsub.s32 %v3787, %v4789
      %v4791 = vrot.slane %v4442, %v4790
      %v4792 = vsel %vm3792, %v4791, %v4787
      %v4793 = vlaneseq
      %v4794 = vshrl.u32 %v4793, 7
      %v4795 = vsub.s32 %v3794, %v4794
      %v4796 = vrot.slane %v4443, %v4795
      %v4797 = vsel %vm3799, %v4796, %v4792
      %v4798 = vlaneseq
      %v4799 = vshrl.u32 %v4798, 7
      %v4800 = vsub.s32 %v3801, %v4799
      %v4801 = vrot.slane %v4444, %v4800
      %v4802 = vsel %vm3806, %v4801, %v4797
      %v4803 = vlaneseq
      %v4804 = vshrl.u32 %v4803, 7
      %v4805 = vsub.s32 %v3808, %v4804
      %v4806 = vrot.slane %v4445, %v4805
      %v4807 = vsel %vm3813, %v4806, %v4802
      %v4808 = vlaneseq
      %v4809 = vshrl.u32 %v4808, 7
      %v4810 = vsub.s32 %v3815, %v4809
      %v4811 = vrot.slane %v4446, %v4810
      %v4812 = vsel %vm3820, %v4811, %v4807
      %v4813 = vlaneseq
      %v4814 = vshrl.u32 %v4813, 7
      %v4815 = vsub.s32 %v3822, %v4814
      %v4816 = vrot.slane %v4447, %v4815
      %v4817 = vsel %vm3827, %v4816, %v4812
      %v4818 = vlaneseq
      %v4819 = vshrl.u32 %v4818, 7
      %v4820 = vsub.s32 %v3829, %v4819
      %v4821 = vrot.slane %v4448, %v4820
      %v4822 = vsel %vm3834, %v4821, %v4817
      %v4823 = vlaneseq
      %v4824 = vshrl.u32 %v4823, 7
      %v4825 = vsub.s32 %v3836, %v4824
      %v4826 = vrot.slane %v4449, %v4825
      %v4827 = vsel %vm3841, %v4826, %v4822
      %v4828 = vlaneseq
      %v4829 = vshrl.u32 %v4828, 7
      %v4830 = vsub.s32 %v3843, %v4829
      %v4831 = vrot.slane %v4450, %v4830
      %v4832 = vsel %vm3848, %v4831, %v4827
      %v4833 = vlaneseq
      %v4834 = vshrl.u32 %v4833, 7
      %v4835 = vsub.s32 %v3740, %v4834
      %v4836 = vrot.slane %v4451, %v4835
      %v4837 = vlaneseq
      %v4838 = vshrl.u32 %v4837, 7
      %v4839 = vsub.s32 %v3745, %v4838
      %v4840 = vrot.slane %v4452, %v4839
      %v4841 = vsel %vm3750, %v4840, %v4836
      %v4842 = vlaneseq
      %v4843 = vshrl.u32 %v4842, 7
      %v4844 = vsub.s32 %v3752, %v4843
      %v4845 = vrot.slane %v4453, %v4844
      %v4846 = vsel %vm3757, %v4845, %v4841
      %v4847 = vlaneseq
      %v4848 = vshrl.u32 %v4847, 7
      %v4849 = vsub.s32 %v3759, %v4848
      %v4850 = vrot.slane %v4454, %v4849
      %v4851 = vsel %vm3764, %v4850, %v4846
      %v4852 = vlaneseq
      %v4853 = vshrl.u32 %v4852, 7
      %v4854 = vsub.s32 %v3766, %v4853
      %v4855 = vrot.slane %v4455, %v4854
      %v4856 = vsel %vm3771, %v4855, %v4851
      %v4857 = vlaneseq
      %v4858 = vshrl.u32 %v4857, 7
      %v4859 = vsub.s32 %v3773, %v4858
      %v4860 = vrot.slane %v4456, %v4859
      %v4861 = vsel %vm3778, %v4860, %v4856
      %v4862 = vlaneseq
      %v4863 = vshrl.u32 %v4862, 7
      %v4864 = vsub.s32 %v3780, %v4863
      %v4865 = vrot.slane %v4457, %v4864
      %v4866 = vsel %vm3785, %v4865, %v4861
      %v4867 = vlaneseq
      %v4868 = vshrl.u32 %v4867, 7
      %v4869 = vsub.s32 %v3787, %v4868
      %v4870 = vrot.slane %v4458, %v4869
      %v4871 = vsel %vm3792, %v4870, %v4866
      %v4872 = vlaneseq
      %v4873 = vshrl.u32 %v4872, 7
      %v4874 = vsub.s32 %v3794, %v4873
      %v4875 = vrot.slane %v4459, %v4874
      %v4876 = vsel %vm3799, %v4875, %v4871
      %v4877 = vlaneseq
      %v4878 = vshrl.u32 %v4877, 7
      %v4879 = vsub.s32 %v3801, %v4878
      %v4880 = vrot.slane %v4460, %v4879
      %v4881 = vsel %vm3806, %v4880, %v4876
      %v4882 = vlaneseq
      %v4883 = vshrl.u32 %v4882, 7
      %v4884 = vsub.s32 %v3808, %v4883
      %v4885 = vrot.slane %v4461, %v4884
      %v4886 = vsel %vm3813, %v4885, %v4881
      %v4887 = vlaneseq
      %v4888 = vshrl.u32 %v4887, 7
      %v4889 = vsub.s32 %v3815, %v4888
      %v4890 = vrot.slane %v4462, %v4889
      %v4891 = vsel %vm3820, %v4890, %v4886
      %v4892 = vlaneseq
      %v4893 = vshrl.u32 %v4892, 7
      %v4894 = vsub.s32 %v3822, %v4893
      %v4895 = vrot.slane %v4463, %v4894
      %v4896 = vsel %vm3827, %v4895, %v4891
      %v4897 = vlaneseq
      %v4898 = vshrl.u32 %v4897, 7
      %v4899 = vsub.s32 %v3829, %v4898
      %v4900 = vrot.slane %v4464, %v4899
      %v4901 = vsel %vm3834, %v4900, %v4896
      %v4902 = vlaneseq
      %v4903 = vshrl.u32 %v4902, 7
      %v4904 = vsub.s32 %v3836, %v4903
      %v4905 = vrot.slane %v4465, %v4904
      %v4906 = vsel %vm3841, %v4905, %v4901
      %v4907 = vlaneseq
      %v4908 = vshrl.u32 %v4907, 7
      %v4909 = vsub.s32 %v3843, %v4908
      %v4910 = vrot.slane %v4466, %v4909
      %v4911 = vsel %vm3848, %v4910, %v4906
      %v4912 = vlaneseq
      %v4913 = vshrl.u32 %v4912, 7
      %v4914 = vsub.s32 %v3740, %v4913
      %v4915 = vrot.slane %v4467, %v4914
      %v4916 = vlaneseq
      %v4917 = vshrl.u32 %v4916, 7
      %v4918 = vsub.s32 %v3745, %v4917
      %v4919 = vrot.slane %v4468, %v4918
      %v4920 = vsel %vm3750, %v4919, %v4915
      %v4921 = vlaneseq
      %v4922 = vshrl.u32 %v4921, 7
      %v4923 = vsub.s32 %v3752, %v4922
      %v4924 = vrot.slane %v4469, %v4923
      %v4925 = vsel %vm3757, %v4924, %v4920
      %v4926 = vlaneseq
      %v4927 = vshrl.u32 %v4926, 7
      %v4928 = vsub.s32 %v3759, %v4927
      %v4929 = vrot.slane %v4470, %v4928
      %v4930 = vsel %vm3764, %v4929, %v4925
      %v4931 = vlaneseq
      %v4932 = vshrl.u32 %v4931, 7
      %v4933 = vsub.s32 %v3766, %v4932
      %v4934 = vrot.slane %v4471, %v4933
      %v4935 = vsel %vm3771, %v4934, %v4930
      %v4936 = vlaneseq
      %v4937 = vshrl.u32 %v4936, 7
      %v4938 = vsub.s32 %v3773, %v4937
      %v4939 = vrot.slane %v4472, %v4938
      %v4940 = vsel %vm3778, %v4939, %v4935
      %v4941 = vlaneseq
      %v4942 = vshrl.u32 %v4941, 7
      %v4943 = vsub.s32 %v3780, %v4942
      %v4944 = vrot.slane %v4473, %v4943
      %v4945 = vsel %vm3785, %v4944, %v4940
      %v4946 = vlaneseq
      %v4947 = vshrl.u32 %v4946, 7
      %v4948 = vsub.s32 %v3787, %v4947
      %v4949 = vrot.slane %v4474, %v4948
      %v4950 = vsel %vm3792, %v4949, %v4945
      %v4951 = vlaneseq
      %v4952 = vshrl.u32 %v4951, 7
      %v4953 = vsub.s32 %v3794, %v4952
      %v4954 = vrot.slane %v4475, %v4953
      %v4955 = vsel %vm3799, %v4954, %v4950
      %v4956 = vlaneseq
      %v4957 = vshrl.u32 %v4956, 7
      %v4958 = vsub.s32 %v3801, %v4957
      %v4959 = vrot.slane %v4476, %v4958
      %v4960 = vsel %vm3806, %v4959, %v4955
      %v4961 = vlaneseq
      %v4962 = vshrl.u32 %v4961, 7
      %v4963 = vsub.s32 %v3808, %v4962
      %v4964 = vrot.slane %v4477, %v4963
      %v4965 = vsel %vm3813, %v4964, %v4960
      %v4966 = vlaneseq
      %v4967 = vshrl.u32 %v4966, 7
      %v4968 = vsub.s32 %v3815, %v4967
      %v4969 = vrot.slane %v4478, %v4968
      %v4970 = vsel %vm3820, %v4969, %v4965
      %v4971 = vlaneseq
      %v4972 = vshrl.u32 %v4971, 7
      %v4973 = vsub.s32 %v3822, %v4972
      %v4974 = vrot.slane %v4479, %v4973
      %v4975 = vsel %vm3827, %v4974, %v4970
      %v4976 = vlaneseq
      %v4977 = vshrl.u32 %v4976, 7
      %v4978 = vsub.s32 %v3829, %v4977
      %v4979 = vrot.slane %v4480, %v4978
      %v4980 = vsel %vm3834, %v4979, %v4975
      %v4981 = vlaneseq
      %v4982 = vshrl.u32 %v4981, 7
      %v4983 = vsub.s32 %v3836, %v4982
      %v4984 = vrot.slane %v4481, %v4983
      %v4985 = vsel %vm3841, %v4984, %v4980
      %v4986 = vlaneseq
      %v4987 = vshrl.u32 %v4986, 7
      %v4988 = vsub.s32 %v3843, %v4987
      %v4989 = vrot.slane %v4482, %v4988
      %v4990 = vsel %vm3848, %v4989, %v4985
      %v4991 = vlaneseq
      %v4992 = vshrl.u32 %v4991, 7
      %v4993 = vsub.s32 %v3740, %v4992
      %v4994 = vrot.slane %v4483, %v4993
      %v4995 = vlaneseq
      %v4996 = vshrl.u32 %v4995, 7
      %v4997 = vsub.s32 %v3745, %v4996
      %v4998 = vrot.slane %v4484, %v4997
      %v4999 = vsel %vm3750, %v4998, %v4994
      %v5000 = vlaneseq
      %v5001 = vshrl.u32 %v5000, 7
      %v5002 = vsub.s32 %v3752, %v5001
      %v5003 = vrot.slane %v4485, %v5002
      %v5004 = vsel %vm3757, %v5003, %v4999
      %v5005 = vlaneseq
      %v5006 = vshrl.u32 %v5005, 7
      %v5007 = vsub.s32 %v3759, %v5006
      %v5008 = vrot.slane %v4486, %v5007
      %v5009 = vsel %vm3764, %v5008, %v5004
      %v5010 = vlaneseq
      %v5011 = vshrl.u32 %v5010, 7
      %v5012 = vsub.s32 %v3766, %v5011
      %v5013 = vrot.slane %v4487, %v5012
      %v5014 = vsel %vm3771, %v5013, %v5009
      %v5015 = vlaneseq
      %v5016 = vshrl.u32 %v5015, 7
      %v5017 = vsub.s32 %v3773, %v5016
      %v5018 = vrot.slane %v4488, %v5017
      %v5019 = vsel %vm3778, %v5018, %v5014
      %v5020 = vlaneseq
      %v5021 = vshrl.u32 %v5020, 7
      %v5022 = vsub.s32 %v3780, %v5021
      %v5023 = vrot.slane %v4489, %v5022
      %v5024 = vsel %vm3785, %v5023, %v5019
      %v5025 = vlaneseq
      %v5026 = vshrl.u32 %v5025, 7
      %v5027 = vsub.s32 %v3787, %v5026
      %v5028 = vrot.slane %v4490, %v5027
      %v5029 = vsel %vm3792, %v5028, %v5024
      %v5030 = vlaneseq
      %v5031 = vshrl.u32 %v5030, 7
      %v5032 = vsub.s32 %v3794, %v5031
      %v5033 = vrot.slane %v4491, %v5032
      %v5034 = vsel %vm3799, %v5033, %v5029
      %v5035 = vlaneseq
      %v5036 = vshrl.u32 %v5035, 7
      %v5037 = vsub.s32 %v3801, %v5036
      %v5038 = vrot.slane %v4492, %v5037
      %v5039 = vsel %vm3806, %v5038, %v5034
      %v5040 = vlaneseq
      %v5041 = vshrl.u32 %v5040, 7
      %v5042 = vsub.s32 %v3808, %v5041
      %v5043 = vrot.slane %v4493, %v5042
      %v5044 = vsel %vm3813, %v5043, %v5039
      %v5045 = vlaneseq
      %v5046 = vshrl.u32 %v5045, 7
      %v5047 = vsub.s32 %v3815, %v5046
      %v5048 = vrot.slane %v4494, %v5047
      %v5049 = vsel %vm3820, %v5048, %v5044
      %v5050 = vlaneseq
      %v5051 = vshrl.u32 %v5050, 7
      %v5052 = vsub.s32 %v3822, %v5051
      %v5053 = vrot.slane %v4495, %v5052
      %v5054 = vsel %vm3827, %v5053, %v5049
      %v5055 = vlaneseq
      %v5056 = vshrl.u32 %v5055, 7
      %v5057 = vsub.s32 %v3829, %v5056
      %v5058 = vrot.slane %v4496, %v5057
      %v5059 = vsel %vm3834, %v5058, %v5054
      %v5060 = vlaneseq
      %v5061 = vshrl.u32 %v5060, 7
      %v5062 = vsub.s32 %v3836, %v5061
      %v5063 = vrot.slane %v4497, %v5062
      %v5064 = vsel %vm3841, %v5063, %v5059
      %v5065 = vlaneseq
      %v5066 = vshrl.u32 %v5065, 7
      %v5067 = vsub.s32 %v3843, %v5066
      %v5068 = vrot.slane %v4498, %v5067
      %v5069 = vsel %vm3848, %v5068, %v5064
      %v5070 = vlaneseq
      %v5071 = vshrl.u32 %v5070, 7
      %v5072 = vsub.s32 %v3740, %v5071
      %v5073 = vrot.slane %v4499, %v5072
      %v5074 = vlaneseq
      %v5075 = vshrl.u32 %v5074, 7
      %v5076 = vsub.s32 %v3745, %v5075
      %v5077 = vrot.slane %v4500, %v5076
      %v5078 = vsel %vm3750, %v5077, %v5073
      %v5079 = vlaneseq
      %v5080 = vshrl.u32 %v5079, 7
      %v5081 = vsub.s32 %v3752, %v5080
      %v5082 = vrot.slane %v4501, %v5081
      %v5083 = vsel %vm3757, %v5082, %v5078
      %v5084 = vlaneseq
      %v5085 = vshrl.u32 %v5084, 7
      %v5086 = vsub.s32 %v3759, %v5085
      %v5087 = vrot.slane %v4502, %v5086
      %v5088 = vsel %vm3764, %v5087, %v5083
      %v5089 = vlaneseq
      %v5090 = vshrl.u32 %v5089, 7
      %v5091 = vsub.s32 %v3766, %v5090
      %v5092 = vrot.slane %v4503, %v5091
      %v5093 = vsel %vm3771, %v5092, %v5088
      %v5094 = vlaneseq
      %v5095 = vshrl.u32 %v5094, 7
      %v5096 = vsub.s32 %v3773, %v5095
      %v5097 = vrot.slane %v4504, %v5096
      %v5098 = vsel %vm3778, %v5097, %v5093
      %v5099 = vlaneseq
      %v5100 = vshrl.u32 %v5099, 7
      %v5101 = vsub.s32 %v3780, %v5100
      %v5102 = vrot.slane %v4505, %v5101
      %v5103 = vsel %vm3785, %v5102, %v5098
      %v5104 = vlaneseq
      %v5105 = vshrl.u32 %v5104, 7
      %v5106 = vsub.s32 %v3787, %v5105
      %v5107 = vrot.slane %v4506, %v5106
      %v5108 = vsel %vm3792, %v5107, %v5103
      %v5109 = vlaneseq
      %v5110 = vshrl.u32 %v5109, 7
      %v5111 = vsub.s32 %v3794, %v5110
      %v5112 = vrot.slane %v4507, %v5111
      %v5113 = vsel %vm3799, %v5112, %v5108
      %v5114 = vlaneseq
      %v5115 = vshrl.u32 %v5114, 7
      %v5116 = vsub.s32 %v3801, %v5115
      %v5117 = vrot.slane %v4508, %v5116
      %v5118 = vsel %vm3806, %v5117, %v5113
      %v5119 = vlaneseq
      %v5120 = vshrl.u32 %v5119, 7
      %v5121 = vsub.s32 %v3808, %v5120
      %v5122 = vrot.slane %v4509, %v5121
      %v5123 = vsel %vm3813, %v5122, %v5118
      %v5124 = vlaneseq
      %v5125 = vshrl.u32 %v5124, 7
      %v5126 = vsub.s32 %v3815, %v5125
      %v5127 = vrot.slane %v4510, %v5126
      %v5128 = vsel %vm3820, %v5127, %v5123
      %v5129 = vlaneseq
      %v5130 = vshrl.u32 %v5129, 7
      %v5131 = vsub.s32 %v3822, %v5130
      %v5132 = vrot.slane %v4511, %v5131
      %v5133 = vsel %vm3827, %v5132, %v5128
      %v5134 = vlaneseq
      %v5135 = vshrl.u32 %v5134, 7
      %v5136 = vsub.s32 %v3829, %v5135
      %v5137 = vrot.slane %v4512, %v5136
      %v5138 = vsel %vm3834, %v5137, %v5133
      %v5139 = vlaneseq
      %v5140 = vshrl.u32 %v5139, 7
      %v5141 = vsub.s32 %v3836, %v5140
      %v5142 = vrot.slane %v4513, %v5141
      %v5143 = vsel %vm3841, %v5142, %v5138
      %v5144 = vlaneseq
      %v5145 = vshrl.u32 %v5144, 7
      %v5146 = vsub.s32 %v3843, %v5145
      %v5147 = vrot.slane %v4514, %v5146
      %v5148 = vsel %vm3848, %v5147, %v5143
      %v5149 = vlaneseq
      %v5150 = vshrl.u32 %v5149, 7
      %v5151 = vsub.s32 %v3740, %v5150
      %v5152 = vrot.slane %v4515, %v5151
      %v5153 = vlaneseq
      %v5154 = vshrl.u32 %v5153, 7
      %v5155 = vsub.s32 %v3745, %v5154
      %v5156 = vrot.slane %v4516, %v5155
      %v5157 = vsel %vm3750, %v5156, %v5152
      %v5158 = vlaneseq
      %v5159 = vshrl.u32 %v5158, 7
      %v5160 = vsub.s32 %v3752, %v5159
      %v5161 = vrot.slane %v4517, %v5160
      %v5162 = vsel %vm3757, %v5161, %v5157
      %v5163 = vlaneseq
      %v5164 = vshrl.u32 %v5163, 7
      %v5165 = vsub.s32 %v3759, %v5164
      %v5166 = vrot.slane %v4518, %v5165
      %v5167 = vsel %vm3764, %v5166, %v5162
      %v5168 = vlaneseq
      %v5169 = vshrl.u32 %v5168, 7
      %v5170 = vsub.s32 %v3766, %v5169
      %v5171 = vrot.slane %v4519, %v5170
      %v5172 = vsel %vm3771, %v5171, %v5167
      %v5173 = vlaneseq
      %v5174 = vshrl.u32 %v5173, 7
      %v5175 = vsub.s32 %v3773, %v5174
      %v5176 = vrot.slane %v4520, %v5175
      %v5177 = vsel %vm3778, %v5176, %v5172
      %v5178 = vlaneseq
      %v5179 = vshrl.u32 %v5178, 7
      %v5180 = vsub.s32 %v3780, %v5179
      %v5181 = vrot.slane %v4521, %v5180
      %v5182 = vsel %vm3785, %v5181, %v5177
      %v5183 = vlaneseq
      %v5184 = vshrl.u32 %v5183, 7
      %v5185 = vsub.s32 %v3787, %v5184
      %v5186 = vrot.slane %v4522, %v5185
      %v5187 = vsel %vm3792, %v5186, %v5182
      %v5188 = vlaneseq
      %v5189 = vshrl.u32 %v5188, 7
      %v5190 = vsub.s32 %v3794, %v5189
      %v5191 = vrot.slane %v4523, %v5190
      %v5192 = vsel %vm3799, %v5191, %v5187
      %v5193 = vlaneseq
      %v5194 = vshrl.u32 %v5193, 7
      %v5195 = vsub.s32 %v3801, %v5194
      %v5196 = vrot.slane %v4524, %v5195
      %v5197 = vsel %vm3806, %v5196, %v5192
      %v5198 = vlaneseq
      %v5199 = vshrl.u32 %v5198, 7
      %v5200 = vsub.s32 %v3808, %v5199
      %v5201 = vrot.slane %v4525, %v5200
      %v5202 = vsel %vm3813, %v5201, %v5197
      %v5203 = vlaneseq
      %v5204 = vshrl.u32 %v5203, 7
      %v5205 = vsub.s32 %v3815, %v5204
      %v5206 = vrot.slane %v4526, %v5205
      %v5207 = vsel %vm3820, %v5206, %v5202
      %v5208 = vlaneseq
      %v5209 = vshrl.u32 %v5208, 7
      %v5210 = vsub.s32 %v3822, %v5209
      %v5211 = vrot.slane %v4527, %v5210
      %v5212 = vsel %vm3827, %v5211, %v5207
      %v5213 = vlaneseq
      %v5214 = vshrl.u32 %v5213, 7
      %v5215 = vsub.s32 %v3829, %v5214
      %v5216 = vrot.slane %v4528, %v5215
      %v5217 = vsel %vm3834, %v5216, %v5212
      %v5218 = vlaneseq
      %v5219 = vshrl.u32 %v5218, 7
      %v5220 = vsub.s32 %v3836, %v5219
      %v5221 = vrot.slane %v4529, %v5220
      %v5222 = vsel %vm3841, %v5221, %v5217
      %v5223 = vlaneseq
      %v5224 = vshrl.u32 %v5223, 7
      %v5225 = vsub.s32 %v3843, %v5224
      %v5226 = vrot.slane %v4530, %v5225
      %v5227 = vsel %vm3848, %v5226, %v5222
      %v5228 = vlaneseq
      %v5229 = vshrl.u32 %v5228, 7
      %v5230 = vsub.s32 %v3740, %v5229
      %v5231 = vrot.slane %v4531, %v5230
      %v5232 = vlaneseq
      %v5233 = vshrl.u32 %v5232, 7
      %v5234 = vsub.s32 %v3745, %v5233
      %v5235 = vrot.slane %v4532, %v5234
      %v5236 = vsel %vm3750, %v5235, %v5231
      %v5237 = vlaneseq
      %v5238 = vshrl.u32 %v5237, 7
      %v5239 = vsub.s32 %v3752, %v5238
      %v5240 = vrot.slane %v4533, %v5239
      %v5241 = vsel %vm3757, %v5240, %v5236
      %v5242 = vlaneseq
      %v5243 = vshrl.u32 %v5242, 7
      %v5244 = vsub.s32 %v3759, %v5243
      %v5245 = vrot.slane %v4534, %v5244
      %v5246 = vsel %vm3764, %v5245, %v5241
      %v5247 = vlaneseq
      %v5248 = vshrl.u32 %v5247, 7
      %v5249 = vsub.s32 %v3766, %v5248
      %v5250 = vrot.slane %v4535, %v5249
      %v5251 = vsel %vm3771, %v5250, %v5246
      %v5252 = vlaneseq
      %v5253 = vshrl.u32 %v5252, 7
      %v5254 = vsub.s32 %v3773, %v5253
      %v5255 = vrot.slane %v4536, %v5254
      %v5256 = vsel %vm3778, %v5255, %v5251
      %v5257 = vlaneseq
      %v5258 = vshrl.u32 %v5257, 7
      %v5259 = vsub.s32 %v3780, %v5258
      %v5260 = vrot.slane %v4537, %v5259
      %v5261 = vsel %vm3785, %v5260, %v5256
      %v5262 = vlaneseq
      %v5263 = vshrl.u32 %v5262, 7
      %v5264 = vsub.s32 %v3787, %v5263
      %v5265 = vrot.slane %v4538, %v5264
      %v5266 = vsel %vm3792, %v5265, %v5261
      %v5267 = vlaneseq
      %v5268 = vshrl.u32 %v5267, 7
      %v5269 = vsub.s32 %v3794, %v5268
      %v5270 = vrot.slane %v4539, %v5269
      %v5271 = vsel %vm3799, %v5270, %v5266
      %v5272 = vlaneseq
      %v5273 = vshrl.u32 %v5272, 7
      %v5274 = vsub.s32 %v3801, %v5273
      %v5275 = vrot.slane %v4540, %v5274
      %v5276 = vsel %vm3806, %v5275, %v5271
      %v5277 = vlaneseq
      %v5278 = vshrl.u32 %v5277, 7
      %v5279 = vsub.s32 %v3808, %v5278
      %v5280 = vrot.slane %v4541, %v5279
      %v5281 = vsel %vm3813, %v5280, %v5276
      %v5282 = vlaneseq
      %v5283 = vshrl.u32 %v5282, 7
      %v5284 = vsub.s32 %v3815, %v5283
      %v5285 = vrot.slane %v4542, %v5284
      %v5286 = vsel %vm3820, %v5285, %v5281
      %v5287 = vlaneseq
      %v5288 = vshrl.u32 %v5287, 7
      %v5289 = vsub.s32 %v3822, %v5288
      %v5290 = vrot.slane %v4543, %v5289
      %v5291 = vsel %vm3827, %v5290, %v5286
      %v5292 = vlaneseq
      %v5293 = vshrl.u32 %v5292, 7
      %v5294 = vsub.s32 %v3829, %v5293
      %v5295 = vrot.slane %v4544, %v5294
      %v5296 = vsel %vm3834, %v5295, %v5291
      %v5297 = vlaneseq
      %v5298 = vshrl.u32 %v5297, 7
      %v5299 = vsub.s32 %v3836, %v5298
      %v5300 = vrot.slane %v4545, %v5299
      %v5301 = vsel %vm3841, %v5300, %v5296
      %v5302 = vlaneseq
      %v5303 = vshrl.u32 %v5302, 7
      %v5304 = vsub.s32 %v3843, %v5303
      %v5305 = vrot.slane %v4546, %v5304
      %v5306 = vsel %vm3848, %v5305, %v5301
      %v5307 = vsel %vm4403, %v4832, %v4753
      %v5308 = vsel %vm4405, %v4911, %v5307
      %v5309 = vsel %vm4407, %v4990, %v5308
      %v5310 = vsel %vm4409, %v5069, %v5309
      %v5311 = vsel %vm4411, %v5148, %v5310
      %v5312 = vsel %vm4413, %v5227, %v5311
      %v5313 = vsel %vm4415, %v5306, %v5312
      %5315 = vst [vmem:[%s364] sm:$0xff] %v5313
      %p5316 = scmp.lt.s32.totalorder %s22, 1
      %s5317 = scalar_select %p5316, %s22, 1
      %p5318 = scmp.lt.s32.totalorder %s23, 0
      %s5319 = scalar_select %p5318, %s23, 0
      %p5320 = scmp.lt.s32.totalorder %s24, 0
      %s5321 = scalar_select %p5320, %s24, 0
      %s5322 = sadd.s32 %s5321, %s5319
      %s5323 = sadd.s32 %s5322, %s5317
      %s5324 = smul.addr %s5323, 8
      %s5325 = scalar_lea.vmem %s4, %s5324
      %p5326 = scmp.lt.s32.totalorder %s22, 1
      %s5327 = scalar_select %p5326, %s22, 1
      %p5328 = scmp.lt.s32.totalorder %s23, 0
      %s5329 = scalar_select %p5328, %s23, 0
      %p5330 = scmp.lt.s32.totalorder %s24, 0
      %s5331 = scalar_select %p5330, %s24, 0
      %s5332 = sadd.s32 %s5331, %s5329
      %s5333 = sadd.s32 %s5332, %s5327
      %s5334 = smul.addr %s5333, 8
      %s5335 = scalar_lea.vmem %s5, %s5334
      // Predicated region
      $region37: #{transducer_forward.6} parent=35 // pred_check
        %p5336 = pneg %p163
      $region38: #{transducer_forward.6} parent=35 // pred_check_branch
        %5338 = sbr.rel (%p5336) target = $region40
      $region39: #{transducer_forward.6} parent=35 // pred_region
        _
      $region40: #{transducer_forward.6} parent=35 // pred_fallthru
        _
      // Predicated region
      $region41: #{transducer_forward.6} parent=35 // pred_check
        %p5339 = pneg %p193
      $region42: #{transducer_forward.6} parent=35 // pred_check_branch
        %5341 = sbr.rel (%p5339) target = $region44
      $region43: #{transducer_forward.6} parent=35 // pred_region
        _
      $region44: #{transducer_forward.6} parent=35 // pred_fallthru
        _
    $region36: #{transducer_forward.6} parent=5 // pred_fallthru
      _
    %p5342 = scmp.le.s32.totalorder 2, %s12
    // Predicated region
    $region45: #{transducer_forward.6} parent=5 // pred_check
      %p5343 = pneg %p5342
    $region46: #{transducer_forward.6} parent=5 // pred_check_branch
      %5345 = sbr.rel (%p5343) target = $region48
    $region47: #{transducer_forward.6} parent=5 // pred_region
      %s5346 = ssub.s32 %s12, 2
      // Predicated region
      $region49: #{transducer_forward.6} parent=47 // pred_check
        %p5347 = pneg %p169
      $region50: #{transducer_forward.6} parent=47 // pred_check_branch
        %5349 = sbr.rel (%p5347) target = $region52
      $region51: #{transducer_forward.6} parent=47 // pred_region
        %p5350 = scmp.lt.s32.totalorder %s25, 1
        %s5351 = scalar_select %p5350, %s25, 1
        %p5352 = scmp.lt.s32.totalorder %s26, 0
        %s5353 = scalar_select %p5352, %s26, 0
        %p5354 = scmp.lt.s32.totalorder %s27, 0
        %s5355 = scalar_select %p5354, %s27, 0
        %s5356 = sadd.s32 %s5355, %s5353
        %s5357 = sadd.s32 %s5356, %s5351
        %s5358 = smul.addr %s5357, 8
        %s5359 = scalar_lea.vmem %s4, %s5358
      $region52: #{transducer_forward.6} parent=47 // pred_fallthru
        _
      // Predicated region
      $region53: #{transducer_forward.6} parent=47 // pred_check
        %p5360 = pneg %p199
      $region54: #{transducer_forward.6} parent=47 // pred_check_branch
        %5362 = sbr.rel (%p5360) target = $region56
      $region55: #{transducer_forward.6} parent=47 // pred_region
        %p5363 = scmp.lt.s32.totalorder %s25, 1
        %s5364 = scalar_select %p5363, %s25, 1
        %p5365 = scmp.lt.s32.totalorder %s26, 0
        %s5366 = scalar_select %p5365, %s26, 0
        %p5367 = scmp.lt.s32.totalorder %s27, 0
        %s5368 = scalar_select %p5367, %s27, 0
        %s5369 = sadd.s32 %s5368, %s5366
        %s5370 = sadd.s32 %s5369, %s5364
        %s5371 = smul.addr %s5370, 8
        %s5372 = scalar_lea.vmem %s5, %s5371
      $region56: #{transducer_forward.6} parent=47 // pred_fallthru
        _
    $region48: #{transducer_forward.6} parent=5 // pred_fallthru
      _
  $region6: #{transducer_forward.6} parent=0 // loop_footer
    %s16 = sadd.s32 1, %s12
  $region7: #{transducer_forward.6} parent=0 // loop_footer_branch
    %11 = sbr.rel target = $region3
  $region8: #{transducer_forward.6} parent=0 // loop_exit
    _

// kernel: transducer_forward.7
$region0: #{transducer_forward.7}
  #allocation0 [shape = 'u32[]', space=smem, size = 0x4, offset = 0x4, fixed_abs, tag = 'smem constant byte address 0x4 - core index']
  #allocation1 [shape = 'u32[144,128]{1,0:T(1,128)}', space=vmem, size = 0x12000, scoped, tag = 'internal scratch']
  #allocation2 [shape = 'f32[136,128]{1,0:T(8,128)}', space=vmem, size = 0x11000, scoped, tag = 'scratch operand']
  #allocation3 [shape = 'f32[136,128]{1,0:T(8,128)}', space=vmem, size = 0x11000, scoped, tag = 'scratch operand']
  #allocation4 [shape = 's32[1]{0}', space=sflag, size = 0x4, scoped, tag = 'scoped memory for transducer_forward.7']
  #allocation5 [shape = 'u8[512]{0}', space=smem, size = 0x200, scoped, tag = 'prefetched SMEM operand 0']
  #allocation6 [shape = 'u8[512]{0}', space=smem, size = 0x200, scoped, tag = 'prefetched SMEM operand 1']
  %s0 = inlined_call_operand.vmem [shape: s32[2], index: 0, kind: input, shape index: {}]
  %s1 = inlined_call_operand.vmem [shape: s32[2], index: 1, kind: input, shape index: {}]
  %s2 = inlined_call_operand.vmem [shape: f32[2,8,128], index: 2, kind: input, shape index: {}]
  %s3 = inlined_call_operand.vmem [shape: f32[2,8,128], index: 3, kind: input, shape index: {}]
  %s4 = inlined_call_operand.vmem [shape: f32[2,1,128], index: 4, kind: output, shape index: {}]
  %s5 = sld [smem:[#allocation0]]
  $region48: #{transducer_forward.7} parent=0
    _
  %s7 = ssub.s32 1, %s5
  %s8 = scalar_select 0, %s7, %s5
  %s9 = sshll.u32 %s0, 4
  %s10 = int_to_ptr.vmem [resolvable:$true] %s9
  %12 = dma.vmem_to_smem %s10, 16, [#allocation5], [#allocation4]
  %s13 = sshll.u32 %s1, 4
  %s14 = int_to_ptr.vmem [resolvable:$true] %s13
  %16 = dma.vmem_to_smem %s14, 16, [#allocation6], [#allocation4]
  %17 = dma.done [#allocation4], 32
  %18 = sfence
  loop: start=0, step=1, limit=4
  $region2: #{transducer_forward.7} parent=0 // loop_pre_header
    _
  $region3: #{transducer_forward.7} parent=0 // loop_header
    %s20 = sphi 0, %s24
    %p21 = scmp.ge.s32.totalorder %s20, 4
    %s30 = sphi 0, %s32
    %s33 = sphi 0, %s30
    %s34 = sphi 0, %s33
    %s50 = sphi 0, %s34
    %s56 = sphi 0, %s58
    %s59 = sphi 0, %s56
    %s60 = sphi 0, %s59
    %s76 = sphi 0, %s60
    %s82 = sphi 0, %s84
    %s85 = sphi 0, %s82
    %s86 = sphi 0, %s85
    %s102 = sphi 0, %s86
  $region4: #{transducer_forward.7} parent=0 // loop_header_branch
    %23 = sbr.rel (%p21) target = $region8
  $region5: #{transducer_forward.7} parent=0 // loop_body
    %s25 = ssub.s32 %s20, 1
    %s26 = ssub.s32 %s20, 2
    %s27 = sadd.s32 %s20, 1
    %s28 = ssub.s32 %s20, %s27
    %p29 = scmp.eq.s32.totalorder %s28, 0
    %s31 = sadd.s32 %s30, 1
    %s32 = scalar_select %p29, %s30, %s31
    %p35 = pneg %p29
    %p36 = scmp.eq.s32.totalorder %s20, 1
    %p37 = por %p35, %p36
    %p38 = scmp.ne.s32.totalorder %s30, %s33
    %p39 = scmp.eq.s32.totalorder %s20, 0
    %p40 = por %p38, %p39
    %p41 = scmp.ne.s32.totalorder %s30, %s33
    %p42 = scmp.eq.s32.totalorder %s25, 1
    %p43 = por %p41, %p42
    %p44 = scmp.ne.s32.totalorder %s33, %s34
    %p45 = scmp.eq.s32.totalorder %s25, 0
    %p46 = por %p44, %p45
    %p47 = scmp.ne.s32.totalorder %s33, %s34
    %p48 = scmp.eq.s32.totalorder %s26, 1
    %p49 = por %p47, %p48
    %p51 = scmp.ne.s32.totalorder %s34, %s50
    %p52 = scmp.eq.s32.totalorder %s26, 0
    %p53 = por %p51, %p52
    %s54 = ssub.s32 %s20, %s27
    %p55 = scmp.eq.s32.totalorder %s54, 0
    %s57 = sadd.s32 %s56, 1
    %s58 = scalar_select %p55, %s56, %s57
    %p61 = pneg %p55
    %p62 = scmp.eq.s32.totalorder %s20, 1
    %p63 = por %p61, %p62
    %p64 = scmp.ne.s32.totalorder %s56, %s59
    %p65 = scmp.eq.s32.totalorder %s20, 0
    %p66 = por %p64, %p65
    %p67 = scmp.ne.s32.totalorder %s56, %s59
    %p68 = scmp.eq.s32.totalorder %s25, 1
    %p69 = por %p67, %p68
    %p70 = scmp.ne.s32.totalorder %s59, %s60
    %p71 = scmp.eq.s32.totalorder %s25, 0
    %p72 = por %p70, %p71
    %p73 = scmp.ne.s32.totalorder %s59, %s60
    %p74 = scmp.eq.s32.totalorder %s26, 1
    %p75 = por %p73, %p74
    %p77 = scmp.ne.s32.totalorder %s60, %s76
    %p78 = scmp.eq.s32.totalorder %s26, 0
    %p79 = por %p77, %p78
    %s80 = ssub.s32 %s20, %s27
    %p81 = scmp.eq.s32.totalorder %s80, 0
    %s83 = sadd.s32 %s82, 1
    %s84 = scalar_select %p81, %s82, %s83
    %p87 = pneg %p81
    %p88 = scmp.eq.s32.totalorder %s20, 1
    %p89 = por %p87, %p88
    %p90 = scmp.ne.s32.totalorder %s82, %s85
    %p91 = scmp.eq.s32.totalorder %s20, 0
    %p92 = por %p90, %p91
    %p93 = scmp.ne.s32.totalorder %s82, %s85
    %p94 = scmp.eq.s32.totalorder %s25, 1
    %p95 = por %p93, %p94
    %p96 = scmp.ne.s32.totalorder %s85, %s86
    %p97 = scmp.eq.s32.totalorder %s25, 0
    %p98 = por %p96, %p97
    %p99 = scmp.ne.s32.totalorder %s85, %s86
    %p100 = scmp.eq.s32.totalorder %s26, 1
    %p101 = por %p99, %p100
    %p103 = scmp.ne.s32.totalorder %s86, %s102
    %p104 = scmp.eq.s32.totalorder %s26, 0
    %p105 = por %p103, %p104
    %p106 = scmp.le.s32.totalorder 1, %s20
    %p107 = scmp.lt.s32.totalorder %s20, 3
    %p108 = pnand %p106, %p107
    %p109 = pneg %p108
    // Predicated region
    $region9: #{transducer_forward.7} parent=5 // pred_check
      _
    $region10: #{transducer_forward.7} parent=5 // pred_check_branch
      %111 = sbr.rel (%p108) target = $region12
    $region11: #{transducer_forward.7} parent=5 // pred_region
      %s112 = ssub.s32 %s20, 1
    $region12: #{transducer_forward.7} parent=5 // pred_fallthru
      _
    %p113 = scmp.lt.s32.totalorder %s20, 2
    // Predicated region
    $region13: #{transducer_forward.7} parent=5 // pred_check
      %p114 = pneg %p113
    $region14: #{transducer_forward.7} parent=5 // pred_check_branch
      %116 = sbr.rel (%p114) target = $region16
    $region15: #{transducer_forward.7} parent=5 // pred_region
      // Predicated region
      $region17: #{transducer_forward.7} parent=15 // pred_check
        %p117 = pneg %p40
      $region18: #{transducer_forward.7} parent=15 // pred_check_branch
        %119 = sbr.rel (%p117) target = $region20
      $region19: #{transducer_forward.7} parent=15 // pred_region
        %p120 = scmp.lt.s32.totalorder %s20, 1
        %s121 = scalar_select %p120, %s20, 1
        %s122 = smul.addr %s121, 8
        %s123 = scalar_lea.vmem %s2, %s122
      $region20: #{transducer_forward.7} parent=15 // pred_fallthru
        _
      // Predicated region
      $region21: #{transducer_forward.7} parent=15 // pred_check
        %p124 = pneg %p66
      $region22: #{transducer_forward.7} parent=15 // pred_check_branch
        %126 = sbr.rel (%p124) target = $region24
      $region23: #{transducer_forward.7} parent=15 // pred_region
        %p127 = scmp.lt.s32.totalorder %s20, 1
        %s128 = scalar_select %p127, %s20, 1
        %s129 = smul.addr %s128, 8
        %s130 = scalar_lea.vmem %s3, %s129
      $region24: #{transducer_forward.7} parent=15 // pred_fallthru
        _
    $region16: #{transducer_forward.7} parent=5 // pred_fallthru
      _
    %p131 = scmp.le.s32.totalorder 1, %s20
    %p132 = scmp.lt.s32.totalorder %s20, 3
    %p133 = pnand %p131, %p132
    %p134 = pneg %p133
    // Predicated region
    $region25: #{transducer_forward.7} parent=5 // pred_check
      _
    $region26: #{transducer_forward.7} parent=5 // pred_check_branch
      %136 = sbr.rel (%p133) target = $region28
    $region27: #{transducer_forward.7} parent=5 // pred_region
      %s137 = ssub.s32 %s20, 1
      %p138 = scmp.lt.s32.totalorder %s25, 1
      %s139 = scalar_select %p138, %s25, 1
      %s140 = smul.addr %s139, 8
      %s141 = scalar_lea.vmem %s2, %s140
      %p142 = pneg %p46
      %p143 = pneg %p43
      %p144 = scmp.lt.s32.totalorder %s25, 1
      %s145 = scalar_select %p144, %s25, 1
      %s146 = smul.addr %s145, 8
      %s147 = scalar_lea.vmem %s3, %s146
      %p148 = pneg %p72
      %p149 = pneg %p69
      %p150 = pneg %p98
      %p151 = pneg %p95
      %p152 = scmp.lt.s32.totalorder %s25, 1
      %s153 = scalar_select %p152, %s25, 1
      %s154 = scalar_lea.vmem %s4, %s153
      %p155 = scmp.lt.s32.totalorder %s25, 1
      %s156 = scalar_select %p155, %s25, 1
      %s157 = smul.addr %s156, 8
      %s158 = scalar_lea.vmem %s2, %s157
      %p159 = scmp.lt.s32.totalorder %s25, 1
      %s160 = scalar_select %p159, %s25, 1
      %s161 = smul.addr %s160, 8
      %s162 = scalar_lea.vmem %s3, %s161
      %p163 = scmp.lt.s32.totalorder %s25, 1
      %s164 = scalar_select %p163, %s25, 1
      %s165 = scalar_lea.vmem %s4, %s164
      %v166 = vld [vmem:[%s158] sm:$0xff]
      %167 = vst [vmem:[#allocation2] sm:$0xff] %v166
      %168 = vst [vmem:[#allocation2 + $0x8] sm:$0xff] -1e+30
      %169 = vst [vmem:[#allocation2 + $0x10] sm:$0xff] -1e+30
      %170 = vst [vmem:[#allocation2 + $0x18] sm:$0xff] -1e+30
      %171 = vst [vmem:[#allocation2 + $0x20] sm:$0xff] -1e+30
      %172 = vst [vmem:[#allocation2 + $0x28] sm:$0xff] -1e+30
      %173 = vst [vmem:[#allocation2 + $0x30] sm:$0xff] -1e+30
      %174 = vst [vmem:[#allocation2 + $0x38] sm:$0xff] -1e+30
      %175 = vst [vmem:[#allocation2 + $0x40] sm:$0xff] -1e+30
      %176 = vst [vmem:[#allocation2 + $0x48] sm:$0xff] -1e+30
      %177 = vst [vmem:[#allocation2 + $0x50] sm:$0xff] -1e+30
      %178 = vst [vmem:[#allocation2 + $0x58] sm:$0xff] -1e+30
      %179 = vst [vmem:[#allocation2 + $0x60] sm:$0xff] -1e+30
      %180 = vst [vmem:[#allocation2 + $0x68] sm:$0xff] -1e+30
      %181 = vst [vmem:[#allocation2 + $0x70] sm:$0xff] -1e+30
      %182 = vst [vmem:[#allocation2 + $0x78] sm:$0xff] -1e+30
      %183 = vst [vmem:[#allocation2 + $0x80] sm:$0xff] -1e+30
      %v184 = vld [vmem:[%s162] sm:$0xff]
      %185 = vst [vmem:[#allocation3] sm:$0xff] %v184
      %186 = vst [vmem:[#allocation3 + $0x8] sm:$0xff] -1e+30
      %187 = vst [vmem:[#allocation3 + $0x10] sm:$0xff] -1e+30
      %188 = vst [vmem:[#allocation3 + $0x18] sm:$0xff] -1e+30
      %189 = vst [vmem:[#allocation3 + $0x20] sm:$0xff] -1e+30
      %190 = vst [vmem:[#allocation3 + $0x28] sm:$0xff] -1e+30
      %191 = vst [vmem:[#allocation3 + $0x30] sm:$0xff] -1e+30
      %192 = vst [vmem:[#allocation3 + $0x38] sm:$0xff] -1e+30
      %193 = vst [vmem:[#allocation3 + $0x40] sm:$0xff] -1e+30
      %194 = vst [vmem:[#allocation3 + $0x48] sm:$0xff] -1e+30
      %195 = vst [vmem:[#allocation3 + $0x50] sm:$0xff] -1e+30
      %196 = vst [vmem:[#allocation3 + $0x58] sm:$0xff] -1e+30
      %197 = vst [vmem:[#allocation3 + $0x60] sm:$0xff] -1e+30
      %198 = vst [vmem:[#allocation3 + $0x68] sm:$0xff] -1e+30
      %199 = vst [vmem:[#allocation3 + $0x70] sm:$0xff] -1e+30
      %200 = vst [vmem:[#allocation3 + $0x78] sm:$0xff] -1e+30
      %201 = vst [vmem:[#allocation3 + $0x80] sm:$0xff] -1e+30
      %v202 = vlaneseq
      %v203 = vand.u32 %v202, 127
      %v204 = vand.u32 %v203, 1
      %vm205 = vcmp.eq.s32.totalorder %v204, 1
      %v206 = vld [vmem:[#allocation2] sm:$0xff]
      %v207 = vld [vmem:[#allocation2 + $0x8] sm:$0xff]
      %v208 = vld [vmem:[#allocation2 + $0x10] sm:$0xff]
      %v209 = vld [vmem:[#allocation2 + $0x18] sm:$0xff]
      %v210 = vld [vmem:[#allocation2 + $0x20] sm:$0xff]
      %v211 = vld [vmem:[#allocation2 + $0x28] sm:$0xff]
      %v212 = vld [vmem:[#allocation2 + $0x30] sm:$0xff]
      %v213 = vld [vmem:[#allocation2 + $0x38] sm:$0xff]
      %v214 = vld [vmem:[#allocation2 + $0x40] sm:$0xff]
      %v215 = vld [vmem:[#allocation2 + $0x48] sm:$0xff]
      %v216 = vld [vmem:[#allocation2 + $0x50] sm:$0xff]
      %v217 = vld [vmem:[#allocation2 + $0x58] sm:$0xff]
      %v218 = vld [vmem:[#allocation2 + $0x60] sm:$0xff]
      %v219 = vld [vmem:[#allocation2 + $0x68] sm:$0xff]
      %v220 = vld [vmem:[#allocation2 + $0x70] sm:$0xff]
      %v221 = vld [vmem:[#allocation2 + $0x78] sm:$0xff]
      %v222 = vld [vmem:[#allocation2 + $0x80] sm:$0xff]
      %vm240 = vcmask 1040384
      %v241 = vrot.slane %v206, 7
      %v242 = vrot.slane %v207, 7
      %v243 = vsel %vm240, %v241, %v242
      %v244 = vrot.slane %v208, 7
      %v245 = vsel %vm240, %v242, %v244
      %v246 = vrot.slane %v209, 7
      %v247 = vsel %vm240, %v244, %v246
      %v248 = vrot.slane %v210, 7
      %v249 = vsel %vm240, %v246, %v248
      %v250 = vrot.slane %v211, 7
      %v251 = vsel %vm240, %v248, %v250
      %v252 = vrot.slane %v212, 7
      %v253 = vsel %vm240, %v250, %v252
      %v254 = vrot.slane %v213, 7
      %v255 = vsel %vm240, %v252, %v254
      %v256 = vrot.slane %v214, 7
      %v257 = vsel %vm240, %v254, %v256
      %v258 = vrot.slane %v215, 7
      %v259 = vsel %vm240, %v256, %v258
      %v260 = vrot.slane %v216, 7
      %v261 = vsel %vm240, %v258, %v260
      %v262 = vrot.slane %v217, 7
      %v263 = vsel %vm240, %v260, %v262
      %v264 = vrot.slane %v218, 7
      %v265 = vsel %vm240, %v262, %v264
      %v266 = vrot.slane %v219, 7
      %v267 = vsel %vm240, %v264, %v266
      %v268 = vrot.slane %v220, 7
      %v269 = vsel %vm240, %v266, %v268
      %v270 = vrot.slane %v221, 7
      %v271 = vsel %vm240, %v268, %v270
      %v272 = vrot.slane %v222, 7
      %v273 = vsel %vm240, %v270, %v272
      %v291 = vsel %vm240, -1e+30, %v241
      %v292 = vsel %vm205, %v291, %v206
      %v293 = vsel %vm205, %v243, %v207
      %v294 = vsel %vm205, %v245, %v208
      %v295 = vsel %vm205, %v247, %v209
      %v296 = vsel %vm205, %v249, %v210
      %v297 = vsel %vm205, %v251, %v211
      %v298 = vsel %vm205, %v253, %v212
      %v299 = vsel %vm205, %v255, %v213
      %v300 = vsel %vm205, %v257, %v214
      %v301 = vsel %vm205, %v259, %v215
      %v302 = vsel %vm205, %v261, %v216
      %v303 = vsel %vm205, %v263, %v217
      %v304 = vsel %vm205, %v265, %v218
      %v305 = vsel %vm205, %v267, %v219
      %v306 = vsel %vm205, %v269, %v220
      %v307 = vsel %vm205, %v271, %v221
      %v308 = vsel %vm205, %v273, %v222
      %309 = vst [vmem:[#allocation2] sm:$0xff] %v292
      %310 = vst [vmem:[#allocation2 + $0x8] sm:$0xff] %v293
      %311 = vst [vmem:[#allocation2 + $0x10] sm:$0xff] %v294
      %312 = vst [vmem:[#allocation2 + $0x18] sm:$0xff] %v295
      %313 = vst [vmem:[#allocation2 + $0x20] sm:$0xff] %v296
      %314 = vst [vmem:[#allocation2 + $0x28] sm:$0xff] %v297
      %315 = vst [vmem:[#allocation2 + $0x30] sm:$0xff] %v298
      %316 = vst [vmem:[#allocation2 + $0x38] sm:$0xff] %v299
      %317 = vst [vmem:[#allocation2 + $0x40] sm:$0xff] %v300
      %318 = vst [vmem:[#allocation2 + $0x48] sm:$0xff] %v301
      %319 = vst [vmem:[#allocation2 + $0x50] sm:$0xff] %v302
      %320 = vst [vmem:[#allocation2 + $0x58] sm:$0xff] %v303
      %321 = vst [vmem:[#allocation2 + $0x60] sm:$0xff] %v304
      %322 = vst [vmem:[#allocation2 + $0x68] sm:$0xff] %v305
      %323 = vst [vmem:[#allocation2 + $0x70] sm:$0xff] %v306
      %324 = vst [vmem:[#allocation2 + $0x78] sm:$0xff] %v307
      %325 = vst [vmem:[#allocation2 + $0x80] sm:$0xff] %v308
      %v326 = vld [vmem:[#allocation3] sm:$0xff]
      %v327 = vld [vmem:[#allocation3 + $0x8] sm:$0xff]
      %v328 = vld [vmem:[#allocation3 + $0x10] sm:$0xff]
      %v329 = vld [vmem:[#allocation3 + $0x18] sm:$0xff]
      %v330 = vld [vmem:[#allocation3 + $0x20] sm:$0xff]
      %v331 = vld [vmem:[#allocation3 + $0x28] sm:$0xff]
      %v332 = vld [vmem:[#allocation3 + $0x30] sm:$0xff]
      %v333 = vld [vmem:[#allocation3 + $0x38] sm:$0xff]
      %v334 = vld [vmem:[#allocation3 + $0x40] sm:$0xff]
      %v335 = vld [vmem:[#allocation3 + $0x48] sm:$0xff]
      %v336 = vld [vmem:[#allocation3 + $0x50] sm:$0xff]
      %v337 = vld [vmem:[#allocation3 + $0x58] sm:$0xff]
      %v338 = vld [vmem:[#allocation3 + $0x60] sm:$0xff]
      %v339 = vld [vmem:[#allocation3 + $0x68] sm:$0xff]
      %v340 = vld [vmem:[#allocation3 + $0x70] sm:$0xff]
      %v341 = vld [vmem:[#allocation3 + $0x78] sm:$0xff]
      %v342 = vld [vmem:[#allocation3 + $0x80] sm:$0xff]
      %v360 = vrot.slane %v326, 7
      %v361 = vrot.slane %v327, 7
      %v362 = vsel %vm240, %v360, %v361
      %v363 = vrot.slane %v328, 7
      %v364 = vsel %vm240, %v361, %v363
      %v365 = vrot.slane %v329, 7
      %v366 = vsel %vm240, %v363, %v365
      %v367 = vrot.slane %v330, 7
      %v368 = vsel %vm240, %v365, %v367
      %v369 = vrot.slane %v331, 7
      %v370 = vsel %vm240, %v367, %v369
      %v371 = vrot.slane %v332, 7
      %v372 = vsel %vm240, %v369, %v371
      %v373 = vrot.slane %v333, 7
      %v374 = vsel %vm240, %v371, %v373
      %v375 = vrot.slane %v334, 7
      %v376 = vsel %vm240, %v373, %v375
      %v377 = vrot.slane %v335, 7
      %v378 = vsel %vm240, %v375, %v377
      %v379 = vrot.slane %v336, 7
      %v380 = vsel %vm240, %v377, %v379
      %v381 = vrot.slane %v337, 7
      %v382 = vsel %vm240, %v379, %v381
      %v383 = vrot.slane %v338, 7
      %v384 = vsel %vm240, %v381, %v383
      %v385 = vrot.slane %v339, 7
      %v386 = vsel %vm240, %v383, %v385
      %v387 = vrot.slane %v340, 7
      %v388 = vsel %vm240, %v385, %v387
      %v389 = vrot.slane %v341, 7
      %v390 = vsel %vm240, %v387, %v389
      %v391 = vrot.slane %v342, 7
      %v392 = vsel %vm240, %v389, %v391
      %v410 = vsel %vm240, -1e+30, %v360
      %v411 = vsel %vm205, %v410, %v326
      %v412 = vsel %vm205, %v362, %v327
      %v413 = vsel %vm205, %v364, %v328
      %v414 = vsel %vm205, %v366, %v329
      %v415 = vsel %vm205, %v368, %v330
      %v416 = vsel %vm205, %v370, %v331
      %v417 = vsel %vm205, %v372, %v332
      %v418 = vsel %vm205, %v374, %v333
      %v419 = vsel %vm205, %v376, %v334
      %v420 = vsel %vm205, %v378, %v335
      %v421 = vsel %vm205, %v380, %v336
      %v422 = vsel %vm205, %v382, %v337
      %v423 = vsel %vm205, %v384, %v338
      %v424 = vsel %vm205, %v386, %v339
      %v425 = vsel %vm205, %v388, %v340
      %v426 = vsel %vm205, %v390, %v341
      %v427 = vsel %vm205, %v392, %v342
      %428 = vst [vmem:[#allocation3] sm:$0xff] %v411
      %429 = vst [vmem:[#allocation3 + $0x8] sm:$0xff] %v412
      %430 = vst [vmem:[#allocation3 + $0x10] sm:$0xff] %v413
      %431 = vst [vmem:[#allocation3 + $0x18] sm:$0xff] %v414
      %432 = vst [vmem:[#allocation3 + $0x20] sm:$0xff] %v415
      %433 = vst [vmem:[#allocation3 + $0x28] sm:$0xff] %v416
      %434 = vst [vmem:[#allocation3 + $0x30] sm:$0xff] %v417
      %435 = vst [vmem:[#allocation3 + $0x38] sm:$0xff] %v418
      %436 = vst [vmem:[#allocation3 + $0x40] sm:$0xff] %v419
      %437 = vst [vmem:[#allocation3 + $0x48] sm:$0xff] %v420
      %438 = vst [vmem:[#allocation3 + $0x50] sm:$0xff] %v421
      %439 = vst [vmem:[#allocation3 + $0x58] sm:$0xff] %v422
      %440 = vst [vmem:[#allocation3 + $0x60] sm:$0xff] %v423
      %441 = vst [vmem:[#allocation3 + $0x68] sm:$0xff] %v424
      %442 = vst [vmem:[#allocation3 + $0x70] sm:$0xff] %v425
      %443 = vst [vmem:[#allocation3 + $0x78] sm:$0xff] %v426
      %444 = vst [vmem:[#allocation3 + $0x80] sm:$0xff] %v427
      %v445 = vshra.s32 %v203, 1
      %v446 = vand.u32 %v445, 1
      %vm447 = vcmp.eq.s32.totalorder %v446, 1
      %v448 = vld [vmem:[#allocation2] sm:$0xff]
      %v449 = vld [vmem:[#allocation2 + $0x8] sm:$0xff]
      %v450 = vld [vmem:[#allocation2 + $0x10] sm:$0xff]
      %v451 = vld [vmem:[#allocation2 + $0x18] sm:$0xff]
      %v452 = vld [vmem:[#allocation2 + $0x20] sm:$0xff]
      %v453 = vld [vmem:[#allocation2 + $0x28] sm:$0xff]
      %v454 = vld [vmem:[#allocation2 + $0x30] sm:$0xff]
      %v455 = vld [vmem:[#allocation2 + $0x38] sm:$0xff]
      %v456 = vld [vmem:[#allocation2 + $0x40] sm:$0xff]
      %v457 = vld [vmem:[#allocation2 + $0x48] sm:$0xff]
      %v458 = vld [vmem:[#allocation2 + $0x50] sm:$0xff]
      %v459 = vld [vmem:[#allocation2 + $0x58] sm:$0xff]
      %v460 = vld [vmem:[#allocation2 + $0x60] sm:$0xff]
      %v461 = vld [vmem:[#allocation2 + $0x68] sm:$0xff]
      %v462 = vld [vmem:[#allocation2 + $0x70] sm:$0xff]
      %v463 = vld [vmem:[#allocation2 + $0x78] sm:$0xff]
      %v464 = vld [vmem:[#allocation2 + $0x80] sm:$0xff]
      %vm482 = vcmask 1041408
      %v483 = vrot.slane %v448, 6
      %v484 = vrot.slane %v449, 6
      %v485 = vsel %vm482, %v483, %v484
      %v486 = vrot.slane %v450, 6
      %v487 = vsel %vm482, %v484, %v486
      %v488 = vrot.slane %v451, 6
      %v489 = vsel %vm482, %v486, %v488
      %v490 = vrot.slane %v452, 6
      %v491 = vsel %vm482, %v488, %v490
      %v492 = vrot.slane %v453, 6
      %v493 = vsel %vm482, %v490, %v492
      %v494 = vrot.slane %v454, 6
      %v495 = vsel %vm482, %v492, %v494
      %v496 = vrot.slane %v455, 6
      %v497 = vsel %vm482, %v494, %v496
      %v498 = vrot.slane %v456, 6
      %v499 = vsel %vm482, %v496, %v498
      %v500 = vrot.slane %v457, 6
      %v501 = vsel %vm482, %v498, %v500
      %v502 = vrot.slane %v458, 6
      %v503 = vsel %vm482, %v500, %v502
      %v504 = vrot.slane %v459, 6
      %v505 = vsel %vm482, %v502, %v504
      %v506 = vrot.slane %v460, 6
      %v507 = vsel %vm482, %v504, %v506
      %v508 = vrot.slane %v461, 6
      %v509 = vsel %vm482, %v506, %v508
      %v510 = vrot.slane %v462, 6
      %v511 = vsel %vm482, %v508, %v510
      %v512 = vrot.slane %v463, 6
      %v513 = vsel %vm482, %v510, %v512
      %v514 = vrot.slane %v464, 6
      %v515 = vsel %vm482, %v512, %v514
      %v533 = vsel %vm482, -1e+30, %v483
      %v534 = vsel %vm447, %v533, %v448
      %v535 = vsel %vm447, %v485, %v449
      %v536 = vsel %vm447, %v487, %v450
      %v537 = vsel %vm447, %v489, %v451
      %v538 = vsel %vm447, %v491, %v452
      %v539 = vsel %vm447, %v493, %v453
      %v540 = vsel %vm447, %v495, %v454
      %v541 = vsel %vm447, %v497, %v455
      %v542 = vsel %vm447, %v499, %v456
      %v543 = vsel %vm447, %v501, %v457
      %v544 = vsel %vm447, %v503, %v458
      %v545 = vsel %vm447, %v505, %v459
      %v546 = vsel %vm447, %v507, %v460
      %v547 = vsel %vm447, %v509, %v461
      %v548 = vsel %vm447, %v511, %v462
      %v549 = vsel %vm447, %v513, %v463
      %v550 = vsel %vm447, %v515, %v464
      %551 = vst [vmem:[#allocation2] sm:$0xff] %v534
      %552 = vst [vmem:[#allocation2 + $0x8] sm:$0xff] %v535
      %553 = vst [vmem:[#allocation2 + $0x10] sm:$0xff] %v536
      %554 = vst [vmem:[#allocation2 + $0x18] sm:$0xff] %v537
      %555 = vst [vmem:[#allocation2 + $0x20] sm:$0xff] %v538
      %556 = vst [vmem:[#allocation2 + $0x28] sm:$0xff] %v539
      %557 = vst [vmem:[#allocation2 + $0x30] sm:$0xff] %v540
      %558 = vst [vmem:[#allocation2 + $0x38] sm:$0xff] %v541
      %559 = vst [vmem:[#allocation2 + $0x40] sm:$0xff] %v542
      %560 = vst [vmem:[#allocation2 + $0x48] sm:$0xff] %v543
      %561 = vst [vmem:[#allocation2 + $0x50] sm:$0xff] %v544
      %562 = vst [vmem:[#allocation2 + $0x58] sm:$0xff] %v545
      %563 = vst [vmem:[#allocation2 + $0x60] sm:$0xff] %v546
      %564 = vst [vmem:[#allocation2 + $0x68] sm:$0xff] %v547
      %565 = vst [vmem:[#allocation2 + $0x70] sm:$0xff] %v548
      %566 = vst [vmem:[#allocation2 + $0x78] sm:$0xff] %v549
      %567 = vst [vmem:[#allocation2 + $0x80] sm:$0xff] %v550
      %v568 = vld [vmem:[#allocation3] sm:$0xff]
      %v569 = vld [vmem:[#allocation3 + $0x8] sm:$0xff]
      %v570 = vld [vmem:[#allocation3 + $0x10] sm:$0xff]
      %v571 = vld [vmem:[#allocation3 + $0x18] sm:$0xff]
      %v572 = vld [vmem:[#allocation3 + $0x20] sm:$0xff]
      %v573 = vld [vmem:[#allocation3 + $0x28] sm:$0xff]
      %v574 = vld [vmem:[#allocation3 + $0x30] sm:$0xff]
      %v575 = vld [vmem:[#allocation3 + $0x38] sm:$0xff]
      %v576 = vld [vmem:[#allocation3 + $0x40] sm:$0xff]
      %v577 = vld [vmem:[#allocation3 + $0x48] sm:$0xff]
      %v578 = vld [vmem:[#allocation3 + $0x50] sm:$0xff]
      %v579 = vld [vmem:[#allocation3 + $0x58] sm:$0xff]
      %v580 = vld [vmem:[#allocation3 + $0x60] sm:$0xff]
      %v581 = vld [vmem:[#allocation3 + $0x68] sm:$0xff]
      %v582 = vld [vmem:[#allocation3 + $0x70] sm:$0xff]
      %v583 = vld [vmem:[#allocation3 + $0x78] sm:$0xff]
      %v584 = vld [vmem:[#allocation3 + $0x80] sm:$0xff]
      %v602 = vrot.slane %v568, 6
      %v603 = vrot.slane %v569, 6
      %v604 = vsel %vm482, %v602, %v603
      %v605 = vrot.slane %v570, 6
      %v606 = vsel %vm482, %v603, %v605
      %v607 = vrot.slane %v571, 6
      %v608 = vsel %vm482, %v605, %v607
      %v609 = vrot.slane %v572, 6
      %v610 = vsel %vm482, %v607, %v609
      %v611 = vrot.slane %v573, 6
      %v612 = vsel %vm482, %v609, %v611
      %v613 = vrot.slane %v574, 6
      %v614 = vsel %vm482, %v611, %v613
      %v615 = vrot.slane %v575, 6
      %v616 = vsel %vm482, %v613, %v615
      %v617 = vrot.slane %v576, 6
      %v618 = vsel %vm482, %v615, %v617
      %v619 = vrot.slane %v577, 6
      %v620 = vsel %vm482, %v617, %v619
      %v621 = vrot.slane %v578, 6
      %v622 = vsel %vm482, %v619, %v621
      %v623 = vrot.slane %v579, 6
      %v624 = vsel %vm482, %v621, %v623
      %v625 = vrot.slane %v580, 6
      %v626 = vsel %vm482, %v623, %v625
      %v627 = vrot.slane %v581, 6
      %v628 = vsel %vm482, %v625, %v627
      %v629 = vrot.slane %v582, 6
      %v630 = vsel %vm482, %v627, %v629
      %v631 = vrot.slane %v583, 6
      %v632 = vsel %vm482, %v629, %v631
      %v633 = vrot.slane %v584, 6
      %v634 = vsel %vm482, %v631, %v633
      %v652 = vsel %vm482, -1e+30, %v602
      %v653 = vsel %vm447, %v652, %v568
      %v654 = vsel %vm447, %v604, %v569
      %v655 = vsel %vm447, %v606, %v570
      %v656 = vsel %vm447, %v608, %v571
      %v657 = vsel %vm447, %v610, %v572
      %v658 = vsel %vm447, %v612, %v573
      %v659 = vsel %vm447, %v614, %v574
      %v660 = vsel %vm447, %v616, %v575
      %v661 = vsel %vm447, %v618, %v576
      %v662 = vsel %vm447, %v620, %v577
      %v663 = vsel %vm447, %v622, %v578
      %v664 = vsel %vm447, %v624, %v579
      %v665 = vsel %vm447, %v626, %v580
      %v666 = vsel %vm447, %v628, %v581
      %v667 = vsel %vm447, %v630, %v582
      %v668 = vsel %vm447, %v632, %v583
      %v669 = vsel %vm447, %v634, %v584
      %670 = vst [vmem:[#allocation3] sm:$0xff] %v653
      %671 = vst [vmem:[#allocation3 + $0x8] sm:$0xff] %v654
      %672 = vst [vmem:[#allocation3 + $0x10] sm:$0xff] %v655
      %673 = vst [vmem:[#allocation3 + $0x18] sm:$0xff] %v656
      %674 = vst [vmem:[#allocation3 + $0x20] sm:$0xff] %v657
      %675 = vst [vmem:[#allocation3 + $0x28] sm:$0xff] %v658
      %676 = vst [vmem:[#allocation3 + $0x30] sm:$0xff] %v659
      %677 = vst [vmem:[#allocation3 + $0x38] sm:$0xff] %v660
      %678 = vst [vmem:[#allocation3 + $0x40] sm:$0xff] %v661
      %679 = vst [vmem:[#allocation3 + $0x48] sm:$0xff] %v662
      %680 = vst [vmem:[#allocation3 + $0x50] sm:$0xff] %v663
      %681 = vst [vmem:[#allocation3 + $0x58] sm:$0xff] %v664
      %682 = vst [vmem:[#allocation3 + $0x60] sm:$0xff] %v665
      %683 = vst [vmem:[#allocation3 + $0x68] sm:$0xff] %v666
      %684 = vst [vmem:[#allocation3 + $0x70] sm:$0xff] %v667
      %685 = vst [vmem:[#allocation3 + $0x78] sm:$0xff] %v668
      %686 = vst [vmem:[#allocation3 + $0x80] sm:$0xff] %v669
      %v687 = vshra.s32 %v203, 2
      %v688 = vand.u32 %v687, 1
      %vm689 = vcmp.eq.s32.totalorder %v688, 1
      %v690 = vld [vmem:[#allocation2] sm:$0xff]
      %v691 = vld [vmem:[#allocation2 + $0x8] sm:$0xff]
      %v692 = vld [vmem:[#allocation2 + $0x10] sm:$0xff]
      %v693 = vld [vmem:[#allocation2 + $0x18] sm:$0xff]
      %v694 = vld [vmem:[#allocation2 + $0x20] sm:$0xff]
      %v695 = vld [vmem:[#allocation2 + $0x28] sm:$0xff]
      %v696 = vld [vmem:[#allocation2 + $0x30] sm:$0xff]
      %v697 = vld [vmem:[#allocation2 + $0x38] sm:$0xff]
      %v698 = vld [vmem:[#allocation2 + $0x40] sm:$0xff]
      %v699 = vld [vmem:[#allocation2 + $0x48] sm:$0xff]
      %v700 = vld [vmem:[#allocation2 + $0x50] sm:$0xff]
      %v701 = vld [vmem:[#allocation2 + $0x58] sm:$0xff]
      %v702 = vld [vmem:[#allocation2 + $0x60] sm:$0xff]
      %v703 = vld [vmem:[#allocation2 + $0x68] sm:$0xff]
      %v704 = vld [vmem:[#allocation2 + $0x70] sm:$0xff]
      %v705 = vld [vmem:[#allocation2 + $0x78] sm:$0xff]
      %v706 = vld [vmem:[#allocation2 + $0x80] sm:$0xff]
      %vm724 = vcmask 1043456
      %v725 = vrot.slane %v690, 4
      %v726 = vrot.slane %v691, 4
      %v727 = vsel %vm724, %v725, %v726
      %v728 = vrot.slane %v692, 4
      %v729 = vsel %vm724, %v726, %v728
      %v730 = vrot.slane %v693, 4
      %v731 = vsel %vm724, %v728, %v730
      %v732 = vrot.slane %v694, 4
      %v733 = vsel %vm724, %v730, %v732
      %v734 = vrot.slane %v695, 4
      %v735 = vsel %vm724, %v732, %v734
      %v736 = vrot.slane %v696, 4
      %v737 = vsel %vm724, %v734, %v736
      %v738 = vrot.slane %v697, 4
      %v739 = vsel %vm724, %v736, %v738
      %v740 = vrot.slane %v698, 4
      %v741 = vsel %vm724, %v738, %v740
      %v742 = vrot.slane %v699, 4
      %v743 = vsel %vm724, %v740, %v742
      %v744 = vrot.slane %v700, 4
      %v745 = vsel %vm724, %v742, %v744
      %v746 = vrot.slane %v701, 4
      %v747 = vsel %vm724, %v744, %v746
      %v748 = vrot.slane %v702, 4
      %v749 = vsel %vm724, %v746, %v748
      %v750 = vrot.slane %v703, 4
      %v751 = vsel %vm724, %v748, %v750
      %v752 = vrot.slane %v704, 4
      %v753 = vsel %vm724, %v750, %v752
      %v754 = vrot.slane %v705, 4
      %v755 = vsel %vm724, %v752, %v754
      %v756 = vrot.slane %v706, 4
      %v757 = vsel %vm724, %v754, %v756
      %v775 = vsel %vm724, -1e+30, %v725
      %v776 = vsel %vm689, %v775, %v690
      %v777 = vsel %vm689, %v727, %v691
      %v778 = vsel %vm689, %v729, %v692
      %v779 = vsel %vm689, %v731, %v693
      %v780 = vsel %vm689, %v733, %v694
      %v781 = vsel %vm689, %v735, %v695
      %v782 = vsel %vm689, %v737, %v696
      %v783 = vsel %vm689, %v739, %v697
      %v784 = vsel %vm689, %v741, %v698
      %v785 = vsel %vm689, %v743, %v699
      %v786 = vsel %vm689, %v745, %v700
      %v787 = vsel %vm689, %v747, %v701
      %v788 = vsel %vm689, %v749, %v702
      %v789 = vsel %vm689, %v751, %v703
      %v790 = vsel %vm689, %v753, %v704
      %v791 = vsel %vm689, %v755, %v705
      %v792 = vsel %vm689, %v757, %v706
      %793 = vst [vmem:[#allocation2] sm:$0xff] %v776
      %794 = vst [vmem:[#allocation2 + $0x8] sm:$0xff] %v777
      %795 = vst [vmem:[#allocation2 + $0x10] sm:$0xff] %v778
      %796 = vst [vmem:[#allocation2 + $0x18] sm:$0xff] %v779
      %797 = vst [vmem:[#allocation2 + $0x20] sm:$0xff] %v780
      %798 = vst [vmem:[#allocation2 + $0x28] sm:$0xff] %v781
      %799 = vst [vmem:[#allocation2 + $0x30] sm:$0xff] %v782
      %800 = vst [vmem:[#allocation2 + $0x38] sm:$0xff] %v783
      %801 = vst [vmem:[#allocation2 + $0x40] sm:$0xff] %v784
      %802 = vst [vmem:[#allocation2 + $0x48] sm:$0xff] %v785
      %803 = vst [vmem:[#allocation2 + $0x50] sm:$0xff] %v786
      %804 = vst [vmem:[#allocation2 + $0x58] sm:$0xff] %v787
      %805 = vst [vmem:[#allocation2 + $0x60] sm:$0xff] %v788
      %806 = vst [vmem:[#allocation2 + $0x68] sm:$0xff] %v789
      %807 = vst [vmem:[#allocation2 + $0x70] sm:$0xff] %v790
      %808 = vst [vmem:[#allocation2 + $0x78] sm:$0xff] %v791
      %809 = vst [vmem:[#allocation2 + $0x80] sm:$0xff] %v792
      %v810 = vld [vmem:[#allocation3] sm:$0xff]
      %v811 = vld [vmem:[#allocation3 + $0x8] sm:$0xff]
      %v812 = vld [vmem:[#allocation3 + $0x10] sm:$0xff]
      %v813 = vld [vmem:[#allocation3 + $0x18] sm:$0xff]
      %v814 = vld [vmem:[#allocation3 + $0x20] sm:$0xff]
      %v815 = vld [vmem:[#allocation3 + $0x28] sm:$0xff]
      %v816 = vld [vmem:[#allocation3 + $0x30] sm:$0xff]
      %v817 = vld [vmem:[#allocation3 + $0x38] sm:$0xff]
      %v818 = vld [vmem:[#allocation3 + $0x40] sm:$0xff]
      %v819 = vld [vmem:[#allocation3 + $0x48] sm:$0xff]
      %v820 = vld [vmem:[#allocation3 + $0x50] sm:$0xff]
      %v821 = vld [vmem:[#allocation3 + $0x58] sm:$0xff]
      %v822 = vld [vmem:[#allocation3 + $0x60] sm:$0xff]
      %v823 = vld [vmem:[#allocation3 + $0x68] sm:$0xff]
      %v824 = vld [vmem:[#allocation3 + $0x70] sm:$0xff]
      %v825 = vld [vmem:[#allocation3 + $0x78] sm:$0xff]
      %v826 = vld [vmem:[#allocation3 + $0x80] sm:$0xff]
      %v844 = vrot.slane %v810, 4
      %v845 = vrot.slane %v811, 4
      %v846 = vsel %vm724, %v844, %v845
      %v847 = vrot.slane %v812, 4
      %v848 = vsel %vm724, %v845, %v847
      %v849 = vrot.slane %v813, 4
      %v850 = vsel %vm724, %v847, %v849
      %v851 = vrot.slane %v814, 4
      %v852 = vsel %vm724, %v849, %v851
      %v853 = vrot.slane %v815, 4
      %v854 = vsel %vm724, %v851, %v853
      %v855 = vrot.slane %v816, 4
      %v856 = vsel %vm724, %v853, %v855
      %v857 = vrot.slane %v817, 4
      %v858 = vsel %vm724, %v855, %v857
      %v859 = vrot.slane %v818, 4
      %v860 = vsel %vm724, %v857, %v859
      %v861 = vrot.slane %v819, 4
      %v862 = vsel %vm724, %v859, %v861
      %v863 = vrot.slane %v820, 4
      %v864 = vsel %vm724, %v861, %v863
      %v865 = vrot.slane %v821, 4
      %v866 = vsel %vm724, %v863, %v865
      %v867 = vrot.slane %v822, 4
      %v868 = vsel %vm724, %v865, %v867
      %v869 = vrot.slane %v823, 4
      %v870 = vsel %vm724, %v867, %v869
      %v871 = vrot.slane %v824, 4
      %v872 = vsel %vm724, %v869, %v871
      %v873 = vrot.slane %v825, 4
      %v874 = vsel %vm724, %v871, %v873
      %v875 = vrot.slane %v826, 4
      %v876 = vsel %vm724, %v873, %v875
      %v894 = vsel %vm724, -1e+30, %v844
      %v895 = vsel %vm689, %v894, %v810
      %v896 = vsel %vm689, %v846, %v811
      %v897 = vsel %vm689, %v848, %v812
      %v898 = vsel %vm689, %v850, %v813
      %v899 = vsel %vm689, %v852, %v814
      %v900 = vsel %vm689, %v854, %v815
      %v901 = vsel %vm689, %v856, %v816
      %v902 = vsel %vm689, %v858, %v817
      %v903 = vsel %vm689, %v860, %v818
      %v904 = vsel %vm689, %v862, %v819
      %v905 = vsel %vm689, %v864, %v820
      %v906 = vsel %vm689, %v866, %v821
      %v907 = vsel %vm689, %v868, %v822
      %v908 = vsel %vm689, %v870, %v823
      %v909 = vsel %vm689, %v872, %v824
      %v910 = vsel %vm689, %v874, %v825
      %v911 = vsel %vm689, %v876, %v826
      %912 = vst [vmem:[#allocation3] sm:$0xff] %v895
      %913 = vst [vmem:[#allocation3 + $0x8] sm:$0xff] %v896
      %914 = vst [vmem:[#allocation3 + $0x10] sm:$0xff] %v897
      %915 = vst [vmem:[#allocation3 + $0x18] sm:$0xff] %v898
      %916 = vst [vmem:[#allocation3 + $0x20] sm:$0xff] %v899
      %917 = vst [vmem:[#allocation3 + $0x28] sm:$0xff] %v900
      %918 = vst [vmem:[#allocation3 + $0x30] sm:$0xff] %v901
      %919 = vst [vmem:[#allocation3 + $0x38] sm:$0xff] %v902
      %920 = vst [vmem:[#allocation3 + $0x40] sm:$0xff] %v903
      %921 = vst [vmem:[#allocation3 + $0x48] sm:$0xff] %v904
      %922 = vst [vmem:[#allocation3 + $0x50] sm:$0xff] %v905
      %923 = vst [vmem:[#allocation3 + $0x58] sm:$0xff] %v906
      %924 = vst [vmem:[#allocation3 + $0x60] sm:$0xff] %v907
      %925 = vst [vmem:[#allocation3 + $0x68] sm:$0xff] %v908
      %926 = vst [vmem:[#allocation3 + $0x70] sm:$0xff] %v909
      %927 = vst [vmem:[#allocation3 + $0x78] sm:$0xff] %v910
      %928 = vst [vmem:[#allocation3 + $0x80] sm:$0xff] %v911
      %v929 = vshra.s32 %v203, 3
      %v930 = vand.u32 %v929, 1
      %vm931 = vcmp.eq.s32.totalorder %v930, 1
      %v932 = vld [vmem:[#allocation2] sm:$0xff]
      %v933 = vld [vmem:[#allocation2 + $0x8] sm:$0xff]
      %v934 = vld [vmem:[#allocation2 + $0x10] sm:$0xff]
      %v935 = vld [vmem:[#allocation2 + $0x18] sm:$0xff]
      %v936 = vld [vmem:[#allocation2 + $0x20] sm:$0xff]
      %v937 = vld [vmem:[#allocation2 + $0x28] sm:$0xff]
      %v938 = vld [vmem:[#allocation2 + $0x30] sm:$0xff]
      %v939 = vld [vmem:[#allocation2 + $0x38] sm:$0xff]
      %v940 = vld [vmem:[#allocation2 + $0x40] sm:$0xff]
      %v941 = vld [vmem:[#allocation2 + $0x48] sm:$0xff]
      %v942 = vld [vmem:[#allocation2 + $0x50] sm:$0xff]
      %v943 = vld [vmem:[#allocation2 + $0x58] sm:$0xff]
      %v944 = vld [vmem:[#allocation2 + $0x60] sm:$0xff]
      %v945 = vld [vmem:[#allocation2 + $0x68] sm:$0xff]
      %v946 = vld [vmem:[#allocation2 + $0x70] sm:$0xff]
      %v947 = vld [vmem:[#allocation2 + $0x78] sm:$0xff]
      %v948 = vld [vmem:[#allocation2 + $0x80] sm:$0xff]
      %v949 = vsel %vm931, -1e+30, %v932
      %v950 = vsel %vm931, %v932, %v933
      %v951 = vsel %vm931, %v933, %v934
      %v952 = vsel %vm931, %v934, %v935
      %v953 = vsel %vm931, %v935, %v936
      %v954 = vsel %vm931, %v936, %v937
      %v955 = vsel %vm931, %v937, %v938
      %v956 = vsel %vm931, %v938, %v939
      %v957 = vsel %vm931, %v939, %v940
      %v958 = vsel %vm931, %v940, %v941
      %v959 = vsel %vm931, %v941, %v942
      %v960 = vsel %vm931, %v942, %v943
      %v961 = vsel %vm931, %v943, %v944
      %v962 = vsel %vm931, %v944, %v945
      %v963 = vsel %vm931, %v945, %v946
      %v964 = vsel %vm931, %v946, %v947
      %v965 = vsel %vm931, %v947, %v948
      %966 = vst [vmem:[#allocation2] sm:$0xff] %v949
      %967 = vst [vmem:[#allocation2 + $0x8] sm:$0xff] %v950
      %968 = vst [vmem:[#allocation2 + $0x10] sm:$0xff] %v951
      %969 = vst [vmem:[#allocation2 + $0x18] sm:$0xff] %v952
      %970 = vst [vmem:[#allocation2 + $0x20] sm:$0xff] %v953
      %971 = vst [vmem:[#allocation2 + $0x28] sm:$0xff] %v954
      %972 = vst [vmem:[#allocation2 + $0x30] sm:$0xff] %v955
      %973 = vst [vmem:[#allocation2 + $0x38] sm:$0xff] %v956
      %974 = vst [vmem:[#allocation2 + $0x40] sm:$0xff] %v957
      %975 = vst [vmem:[#allocation2 + $0x48] sm:$0xff] %v958
      %976 = vst [vmem:[#allocation2 + $0x50] sm:$0xff] %v959
      %977 = vst [vmem:[#allocation2 + $0x58] sm:$0xff] %v960
      %978 = vst [vmem:[#allocation2 + $0x60] sm:$0xff] %v961
      %979 = vst [vmem:[#allocation2 + $0x68] sm:$0xff] %v962
      %980 = vst [vmem:[#allocation2 + $0x70] sm:$0xff] %v963
      %981 = vst [vmem:[#allocation2 + $0x78] sm:$0xff] %v964
      %982 = vst [vmem:[#allocation2 + $0x80] sm:$0xff] %v965
      %v983 = vld [vmem:[#allocation3] sm:$0xff]
      %v984 = vld [vmem:[#allocation3 + $0x8] sm:$0xff]
      %v985 = vld [vmem:[#allocation3 + $0x10] sm:$0xff]
      %v986 = vld [vmem:[#allocation3 + $0x18] sm:$0xff]
      %v987 = vld [vmem:[#allocation3 + $0x20] sm:$0xff]
      %v988 = vld [vmem:[#allocation3 + $0x28] sm:$0xff]
      %v989 = vld [vmem:[#allocation3 + $0x30] sm:$0xff]
      %v990 = vld [vmem:[#allocation3 + $0x38] sm:$0xff]
      %v991 = vld [vmem:[#allocation3 + $0x40] sm:$0xff]
      %v992 = vld [vmem:[#allocation3 + $0x48] sm:$0xff]
      %v993 = vld [vmem:[#allocation3 + $0x50] sm:$0xff]
      %v994 = vld [vmem:[#allocation3 + $0x58] sm:$0xff]
      %v995 = vld [vmem:[#allocation3 + $0x60] sm:$0xff]
      %v996 = vld [vmem:[#allocation3 + $0x68] sm:$0xff]
      %v997 = vld [vmem:[#allocation3 + $0x70] sm:$0xff]
      %v998 = vld [vmem:[#allocation3 + $0x78] sm:$0xff]
      %v999 = vld [vmem:[#allocation3 + $0x80] sm:$0xff]
      %v1000 = vsel %vm931, -1e+30, %v983
      %v1001 = vsel %vm931, %v983, %v984
      %v1002 = vsel %vm931, %v984, %v985
      %v1003 = vsel %vm931, %v985, %v986
      %v1004 = vsel %vm931, %v986, %v987
      %v1005 = vsel %vm931, %v987, %v988
      %v1006 = vsel %vm931, %v988, %v989
      %v1007 = vsel %vm931, %v989, %v990
      %v1008 = vsel %vm931, %v990, %v991
      %v1009 = vsel %vm931, %v991, %v992
      %v1010 = vsel %vm931, %v992, %v993
      %v1011 = vsel %vm931, %v993, %v994
      %v1012 = vsel %vm931, %v994, %v995
      %v1013 = vsel %vm931, %v995, %v996
      %v1014 = vsel %vm931, %v996, %v997
      %v1015 = vsel %vm931, %v997, %v998
      %v1016 = vsel %vm931, %v998, %v999
      %1017 = vst [vmem:[#allocation3] sm:$0xff] %v1000
      %1018 = vst [vmem:[#allocation3 + $0x8] sm:$0xff] %v1001
      %1019 = vst [vmem:[#allocation3 + $0x10] sm:$0xff] %v1002
      %1020 = vst [vmem:[#allocation3 + $0x18] sm:$0xff] %v1003
      %1021 = vst [vmem:[#allocation3 + $0x20] sm:$0xff] %v1004
      %1022 = vst [vmem:[#allocation3 + $0x28] sm:$0xff] %v1005
      %1023 = vst [vmem:[#allocation3 + $0x30] sm:$0xff] %v1006
      %1024 = vst [vmem:[#allocation3 + $0x38] sm:$0xff] %v1007
      %1025 = vst [vmem:[#allocation3 + $0x40] sm:$0xff] %v1008
      %1026 = vst [vmem:[#allocation3 + $0x48] sm:$0xff] %v1009
      %1027 = vst [vmem:[#allocation3 + $0x50] sm:$0xff] %v1010
      %1028 = vst [vmem:[#allocation3 + $0x58] sm:$0xff] %v1011
      %1029 = vst [vmem:[#allocation3 + $0x60] sm:$0xff] %v1012
      %1030 = vst [vmem:[#allocation3 + $0x68] sm:$0xff] %v1013
      %1031 = vst [vmem:[#allocation3 + $0x70] sm:$0xff] %v1014
      %1032 = vst [vmem:[#allocation3 + $0x78] sm:$0xff] %v1015
      %1033 = vst [vmem:[#allocation3 + $0x80] sm:$0xff] %v1016
      %v1034 = vshra.s32 %v203, 4
      %v1035 = vand.u32 %v1034, 1
      %vm1036 = vcmp.eq.s32.totalorder %v1035, 1
      %v1037 = vld [vmem:[#allocation2] sm:$0xff]
      %v1038 = vld [vmem:[#allocation2 + $0x8] sm:$0xff]
      %v1039 = vld [vmem:[#allocation2 + $0x10] sm:$0xff]
      %v1040 = vld [vmem:[#allocation2 + $0x18] sm:$0xff]
      %v1041 = vld [vmem:[#allocation2 + $0x20] sm:$0xff]
      %v1042 = vld [vmem:[#allocation2 + $0x28] sm:$0xff]
      %v1043 = vld [vmem:[#allocation2 + $0x30] sm:$0xff]
      %v1044 = vld [vmem:[#allocation2 + $0x38] sm:$0xff]
      %v1045 = vld [vmem:[#allocation2 + $0x40] sm:$0xff]
      %v1046 = vld [vmem:[#allocation2 + $0x48] sm:$0xff]
      %v1047 = vld [vmem:[#allocation2 + $0x50] sm:$0xff]
      %v1048 = vld [vmem:[#allocation2 + $0x58] sm:$0xff]
      %v1049 = vld [vmem:[#allocation2 + $0x60] sm:$0xff]
      %v1050 = vld [vmem:[#allocation2 + $0x68] sm:$0xff]
      %v1051 = vld [vmem:[#allocation2 + $0x70] sm:$0xff]
      %v1052 = vld [vmem:[#allocation2 + $0x78] sm:$0xff]
      %v1053 = vld [vmem:[#allocation2 + $0x80] sm:$0xff]
      %v1054 = vsel %vm1036, -1e+30, %v1037
      %v1055 = vsel %vm1036, -1e+30, %v1038
      %v1056 = vsel %vm1036, %v1037, %v1039
      %v1057 = vsel %vm1036, %v1038, %v1040
      %v1058 = vsel %vm1036, %v1039, %v1041
      %v1059 = vsel %vm1036, %v1040, %v1042
      %v1060 = vsel %vm1036, %v1041, %v1043
      %v1061 = vsel %vm1036, %v1042, %v1044
      %v1062 = vsel %vm1036, %v1043, %v1045
      %v1063 = vsel %vm1036, %v1044, %v1046
      %v1064 = vsel %vm1036, %v1045, %v1047
      %v1065 = vsel %vm1036, %v1046, %v1048
      %v1066 = vsel %vm1036, %v1047, %v1049
      %v1067 = vsel %vm1036, %v1048, %v1050
      %v1068 = vsel %vm1036, %v1049, %v1051
      %v1069 = vsel %vm1036, %v1050, %v1052
      %v1070 = vsel %vm1036, %v1051, %v1053
      %1071 = vst [vmem:[#allocation2] sm:$0xff] %v1054
      %1072 = vst [vmem:[#allocation2 + $0x8] sm:$0xff] %v1055
      %1073 = vst [vmem:[#allocation2 + $0x10] sm:$0xff] %v1056
      %1074 = vst [vmem:[#allocation2 + $0x18] sm:$0xff] %v1057
      %1075 = vst [vmem:[#allocation2 + $0x20] sm:$0xff] %v1058
      %1076 = vst [vmem:[#allocation2 + $0x28] sm:$0xff] %v1059
      %1077 = vst [vmem:[#allocation2 + $0x30] sm:$0xff] %v1060
      %1078 = vst [vmem:[#allocation2 + $0x38] sm:$0xff] %v1061
      %1079 = vst [vmem:[#allocation2 + $0x40] sm:$0xff] %v1062
      %1080 = vst [vmem:[#allocation2 + $0x48] sm:$0xff] %v1063
      %1081 = vst [vmem:[#allocation2 + $0x50] sm:$0xff] %v1064
      %1082 = vst [vmem:[#allocation2 + $0x58] sm:$0xff] %v1065
      %1083 = vst [vmem:[#allocation2 + $0x60] sm:$0xff] %v1066
      %1084 = vst [vmem:[#allocation2 + $0x68] sm:$0xff] %v1067
      %1085 = vst [vmem:[#allocation2 + $0x70] sm:$0xff] %v1068
      %1086 = vst [vmem:[#allocation2 + $0x78] sm:$0xff] %v1069
      %1087 = vst [vmem:[#allocation2 + $0x80] sm:$0xff] %v1070
      %v1088 = vld [vmem:[#allocation3] sm:$0xff]
      %v1089 = vld [vmem:[#allocation3 + $0x8] sm:$0xff]
      %v1090 = vld [vmem:[#allocation3 + $0x10] sm:$0xff]
      %v1091 = vld [vmem:[#allocation3 + $0x18] sm:$0xff]
      %v1092 = vld [vmem:[#allocation3 + $0x20] sm:$0xff]
      %v1093 = vld [vmem:[#allocation3 + $0x28] sm:$0xff]
      %v1094 = vld [vmem:[#allocation3 + $0x30] sm:$0xff]
      %v1095 = vld [vmem:[#allocation3 + $0x38] sm:$0xff]
      %v1096 = vld [vmem:[#allocation3 + $0x40] sm:$0xff]
      %v1097 = vld [vmem:[#allocation3 + $0x48] sm:$0xff]
      %v1098 = vld [vmem:[#allocation3 + $0x50] sm:$0xff]
      %v1099 = vld [vmem:[#allocation3 + $0x58] sm:$0xff]
      %v1100 = vld [vmem:[#allocation3 + $0x60] sm:$0xff]
      %v1101 = vld [vmem:[#allocation3 + $0x68] sm:$0xff]
      %v1102 = vld [vmem:[#allocation3 + $0x70] sm:$0xff]
      %v1103 = vld [vmem:[#allocation3 + $0x78] sm:$0xff]
      %v1104 = vld [vmem:[#allocation3 + $0x80] sm:$0xff]
      %v1105 = vsel %vm1036, -1e+30, %v1088
      %v1106 = vsel %vm1036, -1e+30, %v1089
      %v1107 = vsel %vm1036, %v1088, %v1090
      %v1108 = vsel %vm1036, %v1089, %v1091
      %v1109 = vsel %vm1036, %v1090, %v1092
      %v1110 = vsel %vm1036, %v1091, %v1093
      %v1111 = vsel %vm1036, %v1092, %v1094
      %v1112 = vsel %vm1036, %v1093, %v1095
      %v1113 = vsel %vm1036, %v1094, %v1096
      %v1114 = vsel %vm1036, %v1095, %v1097
      %v1115 = vsel %vm1036, %v1096, %v1098
      %v1116 = vsel %vm1036, %v1097, %v1099
      %v1117 = vsel %vm1036, %v1098, %v1100
      %v1118 = vsel %vm1036, %v1099, %v1101
      %v1119 = vsel %vm1036, %v1100, %v1102
      %v1120 = vsel %vm1036, %v1101, %v1103
      %v1121 = vsel %vm1036, %v1102, %v1104
      %1122 = vst [vmem:[#allocation3] sm:$0xff] %v1105
      %1123 = vst [vmem:[#allocation3 + $0x8] sm:$0xff] %v1106
      %1124 = vst [vmem:[#allocation3 + $0x10] sm:$0xff] %v1107
      %1125 = vst [vmem:[#allocation3 + $0x18] sm:$0xff] %v1108
      %1126 = vst [vmem:[#allocation3 + $0x20] sm:$0xff] %v1109
      %1127 = vst [vmem:[#allocation3 + $0x28] sm:$0xff] %v1110
      %1128 = vst [vmem:[#allocation3 + $0x30] sm:$0xff] %v1111
      %1129 = vst [vmem:[#allocation3 + $0x38] sm:$0xff] %v1112
      %1130 = vst [vmem:[#allocation3 + $0x40] sm:$0xff] %v1113
      %1131 = vst [vmem:[#allocation3 + $0x48] sm:$0xff] %v1114
      %1132 = vst [vmem:[#allocation3 + $0x50] sm:$0xff] %v1115
      %1133 = vst [vmem:[#allocation3 + $0x58] sm:$0xff] %v1116
      %1134 = vst [vmem:[#allocation3 + $0x60] sm:$0xff] %v1117
      %1135 = vst [vmem:[#allocation3 + $0x68] sm:$0xff] %v1118
      %1136 = vst [vmem:[#allocation3 + $0x70] sm:$0xff] %v1119
      %1137 = vst [vmem:[#allocation3 + $0x78] sm:$0xff] %v1120
      %1138 = vst [vmem:[#allocation3 + $0x80] sm:$0xff] %v1121
      %v1139 = vshra.s32 %v203, 5
      %v1140 = vand.u32 %v1139, 1
      %vm1141 = vcmp.eq.s32.totalorder %v1140, 1
      %v1142 = vld [vmem:[#allocation2] sm:$0xff]
      %v1143 = vld [vmem:[#allocation2 + $0x8] sm:$0xff]
      %v1144 = vld [vmem:[#allocation2 + $0x10] sm:$0xff]
      %v1145 = vld [vmem:[#allocation2 + $0x18] sm:$0xff]
      %v1146 = vld [vmem:[#allocation2 + $0x20] sm:$0xff]
      %v1147 = vld [vmem:[#allocation2 + $0x28] sm:$0xff]
      %v1148 = vld [vmem:[#allocation2 + $0x30] sm:$0xff]
      %v1149 = vld [vmem:[#allocation2 + $0x38] sm:$0xff]
      %v1150 = vld [vmem:[#allocation2 + $0x40] sm:$0xff]
      %v1151 = vld [vmem:[#allocation2 + $0x48] sm:$0xff]
      %v1152 = vld [vmem:[#allocation2 + $0x50] sm:$0xff]
      %v1153 = vld [vmem:[#allocation2 + $0x58] sm:$0xff]
      %v1154 = vld [vmem:[#allocation2 + $0x60] sm:$0xff]
      %v1155 = vld [vmem:[#allocation2 + $0x68] sm:$0xff]
      %v1156 = vld [vmem:[#allocation2 + $0x70] sm:$0xff]
      %v1157 = vld [vmem:[#allocation2 + $0x78] sm:$0xff]
      %v1158 = vld [vmem:[#allocation2 + $0x80] sm:$0xff]
      %v1159 = vsel %vm1141, -1e+30, %v1142
      %v1160 = vsel %vm1141, -1e+30, %v1143
      %v1161 = vsel %vm1141, -1e+30, %v1144
      %v1162 = vsel %vm1141, -1e+30, %v1145
      %v1163 = vsel %vm1141, %v1142, %v1146
      %v1164 = vsel %vm1141, %v1143, %v1147
      %v1165 = vsel %vm1141, %v1144, %v1148
      %v1166 = vsel %vm1141, %v1145, %v1149
      %v1167 = vsel %vm1141, %v1146, %v1150
      %v1168 = vsel %vm1141, %v1147, %v1151
      %v1169 = vsel %vm1141, %v1148, %v1152
      %v1170 = vsel %vm1141, %v1149, %v1153
      %v1171 = vsel %vm1141, %v1150, %v1154
      %v1172 = vsel %vm1141, %v1151, %v1155
      %v1173 = vsel %vm1141, %v1152, %v1156
      %v1174 = vsel %vm1141, %v1153, %v1157
      %v1175 = vsel %vm1141, %v1154, %v1158
      %1176 = vst [vmem:[#allocation2] sm:$0xff] %v1159
      %1177 = vst [vmem:[#allocation2 + $0x8] sm:$0xff] %v1160
      %1178 = vst [vmem:[#allocation2 + $0x10] sm:$0xff] %v1161
      %1179 = vst [vmem:[#allocation2 + $0x18] sm:$0xff] %v1162
      %1180 = vst [vmem:[#allocation2 + $0x20] sm:$0xff] %v1163
      %1181 = vst [vmem:[#allocation2 + $0x28] sm:$0xff] %v1164
      %1182 = vst [vmem:[#allocation2 + $0x30] sm:$0xff] %v1165
      %1183 = vst [vmem:[#allocation2 + $0x38] sm:$0xff] %v1166
      %1184 = vst [vmem:[#allocation2 + $0x40] sm:$0xff] %v1167
      %1185 = vst [vmem:[#allocation2 + $0x48] sm:$0xff] %v1168
      %1186 = vst [vmem:[#allocation2 + $0x50] sm:$0xff] %v1169
      %1187 = vst [vmem:[#allocation2 + $0x58] sm:$0xff] %v1170
      %1188 = vst [vmem:[#allocation2 + $0x60] sm:$0xff] %v1171
      %1189 = vst [vmem:[#allocation2 + $0x68] sm:$0xff] %v1172
      %1190 = vst [vmem:[#allocation2 + $0x70] sm:$0xff] %v1173
      %1191 = vst [vmem:[#allocation2 + $0x78] sm:$0xff] %v1174
      %1192 = vst [vmem:[#allocation2 + $0x80] sm:$0xff] %v1175
      %v1193 = vld [vmem:[#allocation3] sm:$0xff]
      %v1194 = vld [vmem:[#allocation3 + $0x8] sm:$0xff]
      %v1195 = vld [vmem:[#allocation3 + $0x10] sm:$0xff]
      %v1196 = vld [vmem:[#allocation3 + $0x18] sm:$0xff]
      %v1197 = vld [vmem:[#allocation3 + $0x20] sm:$0xff]
      %v1198 = vld [vmem:[#allocation3 + $0x28] sm:$0xff]
      %v1199 = vld [vmem:[#allocation3 + $0x30] sm:$0xff]
      %v1200 = vld [vmem:[#allocation3 + $0x38] sm:$0xff]
      %v1201 = vld [vmem:[#allocation3 + $0x40] sm:$0xff]
      %v1202 = vld [vmem:[#allocation3 + $0x48] sm:$0xff]
      %v1203 = vld [vmem:[#allocation3 + $0x50] sm:$0xff]
      %v1204 = vld [vmem:[#allocation3 + $0x58] sm:$0xff]
      %v1205 = vld [vmem:[#allocation3 + $0x60] sm:$0xff]
      %v1206 = vld [vmem:[#allocation3 + $0x68] sm:$0xff]
      %v1207 = vld [vmem:[#allocation3 + $0x70] sm:$0xff]
      %v1208 = vld [vmem:[#allocation3 + $0x78] sm:$0xff]
      %v1209 = vld [vmem:[#allocation3 + $0x80] sm:$0xff]
      %v1210 = vsel %vm1141, -1e+30, %v1193
      %v1211 = vsel %vm1141, -1e+30, %v1194
      %v1212 = vsel %vm1141, -1e+30, %v1195
      %v1213 = vsel %vm1141, -1e+30, %v1196
      %v1214 = vsel %vm1141, %v1193, %v1197
      %v1215 = vsel %vm1141, %v1194, %v1198
      %v1216 = vsel %vm1141, %v1195, %v1199
      %v1217 = vsel %vm1141, %v1196, %v1200
      %v1218 = vsel %vm1141, %v1197, %v1201
      %v1219 = vsel %vm1141, %v1198, %v1202
      %v1220 = vsel %vm1141, %v1199, %v1203
      %v1221 = vsel %vm1141, %v1200, %v1204
      %v1222 = vsel %vm1141, %v1201, %v1205
      %v1223 = vsel %vm1141, %v1202, %v1206
      %v1224 = vsel %vm1141, %v1203, %v1207
      %v1225 = vsel %vm1141, %v1204, %v1208
      %v1226 = vsel %vm1141, %v1205, %v1209
      %1227 = vst [vmem:[#allocation3] sm:$0xff] %v1210
      %1228 = vst [vmem:[#allocation3 + $0x8] sm:$0xff] %v1211
      %1229 = vst [vmem:[#allocation3 + $0x10] sm:$0xff] %v1212
      %1230 = vst [vmem:[#allocation3 + $0x18] sm:$0xff] %v1213
      %1231 = vst [vmem:[#allocation3 + $0x20] sm:$0xff] %v1214
      %1232 = vst [vmem:[#allocation3 + $0x28] sm:$0xff] %v1215
      %1233 = vst [vmem:[#allocation3 + $0x30] sm:$0xff] %v1216
      %1234 = vst [vmem:[#allocation3 + $0x38] sm:$0xff] %v1217
      %1235 = vst [vmem:[#allocation3 + $0x40] sm:$0xff] %v1218
      %1236 = vst [vmem:[#allocation3 + $0x48] sm:$0xff] %v1219
      %1237 = vst [vmem:[#allocation3 + $0x50] sm:$0xff] %v1220
      %1238 = vst [vmem:[#allocation3 + $0x58] sm:$0xff] %v1221
      %1239 = vst [vmem:[#allocation3 + $0x60] sm:$0xff] %v1222
      %1240 = vst [vmem:[#allocation3 + $0x68] sm:$0xff] %v1223
      %1241 = vst [vmem:[#allocation3 + $0x70] sm:$0xff] %v1224
      %1242 = vst [vmem:[#allocation3 + $0x78] sm:$0xff] %v1225
      %1243 = vst [vmem:[#allocation3 + $0x80] sm:$0xff] %v1226
      %v1244 = vshra.s32 %v203, 6
      %v1245 = vand.u32 %v1244, 1
      %vm1246 = vcmp.eq.s32.totalorder %v1245, 1
      %v1247 = vld [vmem:[#allocation2] sm:$0xff]
      %v1248 = vld [vmem:[#allocation2 + $0x8] sm:$0xff]
      %v1249 = vld [vmem:[#allocation2 + $0x10] sm:$0xff]
      %v1250 = vld [vmem:[#allocation2 + $0x18] sm:$0xff]
      %v1251 = vld [vmem:[#allocation2 + $0x20] sm:$0xff]
      %v1252 = vld [vmem:[#allocation2 + $0x28] sm:$0xff]
      %v1253 = vld [vmem:[#allocation2 + $0x30] sm:$0xff]
      %v1254 = vld [vmem:[#allocation2 + $0x38] sm:$0xff]
      %v1255 = vld [vmem:[#allocation2 + $0x40] sm:$0xff]
      %v1256 = vld [vmem:[#allocation2 + $0x48] sm:$0xff]
      %v1257 = vld [vmem:[#allocation2 + $0x50] sm:$0xff]
      %v1258 = vld [vmem:[#allocation2 + $0x58] sm:$0xff]
      %v1259 = vld [vmem:[#allocation2 + $0x60] sm:$0xff]
      %v1260 = vld [vmem:[#allocation2 + $0x68] sm:$0xff]
      %v1261 = vld [vmem:[#allocation2 + $0x70] sm:$0xff]
      %v1262 = vld [vmem:[#allocation2 + $0x78] sm:$0xff]
      %v1263 = vld [vmem:[#allocation2 + $0x80] sm:$0xff]
      %v1264 = vsel %vm1246, -1e+30, %v1247
      %v1265 = vsel %vm1246, -1e+30, %v1248
      %v1266 = vsel %vm1246, -1e+30, %v1249
      %v1267 = vsel %vm1246, -1e+30, %v1250
      %v1268 = vsel %vm1246, -1e+30, %v1251
      %v1269 = vsel %vm1246, -1e+30, %v1252
      %v1270 = vsel %vm1246, -1e+30, %v1253
      %v1271 = vsel %vm1246, -1e+30, %v1254
      %v1272 = vsel %vm1246, %v1247, %v1255
      %v1273 = vsel %vm1246, %v1248, %v1256
      %v1274 = vsel %vm1246, %v1249, %v1257
      %v1275 = vsel %vm1246, %v1250, %v1258
      %v1276 = vsel %vm1246, %v1251, %v1259
      %v1277 = vsel %vm1246, %v1252, %v1260
      %v1278 = vsel %vm1246, %v1253, %v1261
      %v1279 = vsel %vm1246, %v1254, %v1262
      %v1280 = vsel %vm1246, %v1255, %v1263
      %1281 = vst [vmem:[#allocation2] sm:$0xff] %v1264
      %1282 = vst [vmem:[#allocation2 + $0x8] sm:$0xff] %v1265
      %1283 = vst [vmem:[#allocation2 + $0x10] sm:$0xff] %v1266
      %1284 = vst [vmem:[#allocation2 + $0x18] sm:$0xff] %v1267
      %1285 = vst [vmem:[#allocation2 + $0x20] sm:$0xff] %v1268
      %1286 = vst [vmem:[#allocation2 + $0x28] sm:$0xff] %v1269
      %1287 = vst [vmem:[#allocation2 + $0x30] sm:$0xff] %v1270
      %1288 = vst [vmem:[#allocation2 + $0x38] sm:$0xff] %v1271
      %1289 = vst [vmem:[#allocation2 + $0x40] sm:$0xff] %v1272
      %1290 = vst [vmem:[#allocation2 + $0x48] sm:$0xff] %v1273
      %1291 = vst [vmem:[#allocation2 + $0x50] sm:$0xff] %v1274
      %1292 = vst [vmem:[#allocation2 + $0x58] sm:$0xff] %v1275
      %1293 = vst [vmem:[#allocation2 + $0x60] sm:$0xff] %v1276
      %1294 = vst [vmem:[#allocation2 + $0x68] sm:$0xff] %v1277
      %1295 = vst [vmem:[#allocation2 + $0x70] sm:$0xff] %v1278
      %1296 = vst [vmem:[#allocation2 + $0x78] sm:$0xff] %v1279
      %1297 = vst [vmem:[#allocation2 + $0x80] sm:$0xff] %v1280
      %v1298 = vld [vmem:[#allocation3] sm:$0xff]
      %v1299 = vld [vmem:[#allocation3 + $0x8] sm:$0xff]
      %v1300 = vld [vmem:[#allocation3 + $0x10] sm:$0xff]
      %v1301 = vld [vmem:[#allocation3 + $0x18] sm:$0xff]
      %v1302 = vld [vmem:[#allocation3 + $0x20] sm:$0xff]
      %v1303 = vld [vmem:[#allocation3 + $0x28] sm:$0xff]
      %v1304 = vld [vmem:[#allocation3 + $0x30] sm:$0xff]
      %v1305 = vld [vmem:[#allocation3 + $0x38] sm:$0xff]
      %v1306 = vld [vmem:[#allocation3 + $0x40] sm:$0xff]
      %v1307 = vld [vmem:[#allocation3 + $0x48] sm:$0xff]
      %v1308 = vld [vmem:[#allocation3 + $0x50] sm:$0xff]
      %v1309 = vld [vmem:[#allocation3 + $0x58] sm:$0xff]
      %v1310 = vld [vmem:[#allocation3 + $0x60] sm:$0xff]
      %v1311 = vld [vmem:[#allocation3 + $0x68] sm:$0xff]
      %v1312 = vld [vmem:[#allocation3 + $0x70] sm:$0xff]
      %v1313 = vld [vmem:[#allocation3 + $0x78] sm:$0xff]
      %v1314 = vld [vmem:[#allocation3 + $0x80] sm:$0xff]
      %v1315 = vsel %vm1246, -1e+30, %v1298
      %v1316 = vsel %vm1246, -1e+30, %v1299
      %v1317 = vsel %vm1246, -1e+30, %v1300
      %v1318 = vsel %vm1246, -1e+30, %v1301
      %v1319 = vsel %vm1246, -1e+30, %v1302
      %v1320 = vsel %vm1246, -1e+30, %v1303
      %v1321 = vsel %vm1246, -1e+30, %v1304
      %v1322 = vsel %vm1246, -1e+30, %v1305
      %v1323 = vsel %vm1246, %v1298, %v1306
      %v1324 = vsel %vm1246, %v1299, %v1307
      %v1325 = vsel %vm1246, %v1300, %v1308
      %v1326 = vsel %vm1246, %v1301, %v1309
      %v1327 = vsel %vm1246, %v1302, %v1310
      %v1328 = vsel %vm1246, %v1303, %v1311
      %v1329 = vsel %vm1246, %v1304, %v1312
      %v1330 = vsel %vm1246, %v1305, %v1313
      %v1331 = vsel %vm1246, %v1306, %v1314
      %1332 = vst [vmem:[#allocation3] sm:$0xff] %v1315
      %1333 = vst [vmem:[#allocation3 + $0x8] sm:$0xff] %v1316
      %1334 = vst [vmem:[#allocation3 + $0x10] sm:$0xff] %v1317
      %1335 = vst [vmem:[#allocation3 + $0x18] sm:$0xff] %v1318
      %1336 = vst [vmem:[#allocation3 + $0x20] sm:$0xff] %v1319
      %1337 = vst [vmem:[#allocation3 + $0x28] sm:$0xff] %v1320
      %1338 = vst [vmem:[#allocation3 + $0x30] sm:$0xff] %v1321
      %1339 = vst [vmem:[#allocation3 + $0x38] sm:$0xff] %v1322
      %1340 = vst [vmem:[#allocation3 + $0x40] sm:$0xff] %v1323
      %1341 = vst [vmem:[#allocation3 + $0x48] sm:$0xff] %v1324
      %1342 = vst [vmem:[#allocation3 + $0x50] sm:$0xff] %v1325
      %1343 = vst [vmem:[#allocation3 + $0x58] sm:$0xff] %v1326
      %1344 = vst [vmem:[#allocation3 + $0x60] sm:$0xff] %v1327
      %1345 = vst [vmem:[#allocation3 + $0x68] sm:$0xff] %v1328
      %1346 = vst [vmem:[#allocation3 + $0x70] sm:$0xff] %v1329
      %1347 = vst [vmem:[#allocation3 + $0x78] sm:$0xff] %v1330
      %1348 = vst [vmem:[#allocation3 + $0x80] sm:$0xff] %v1331
      %s1349 = sld [smem:[#allocation5 + %s25]]
      %s1350 = sld [smem:[#allocation6 + %s25]]
      %s1351 = ssub.s32 %s1349, 1
      %s1352 = sadd.s32 %s1351, %s1350
      %vm1353 = vcmp.eq.s32.totalorder %v203, 0
      %v1354 = vsel %vm1353, 0.0, -1e+30
      %p1355 = scmp.eq.s32.totalorder %s1352, 0
      %s1356 = scalar_select %p1355, 0.0, -1e+30
      loop: start=1, step=1, limit=135
      $region29: #{transducer_forward.7} parent=27 // loop_pre_header
        _
      $region30: #{transducer_forward.7} parent=27 // loop_header
        %s1358 = sphi 1, %s1362
        %p1359 = scmp.ge.s32.totalorder %s1358, 135
        %v1363 = vphi %v1354, %v1385
        %s1364 = sphi %s1356, %s1400
      $region31: #{transducer_forward.7} parent=27 // loop_header_branch
        %1361 = sbr.rel (%p1359) target = $region35
      $region32: #{transducer_forward.7} parent=27 // loop_body
        %s1365 = ssub.s32 %s1358, 1
        %s1366 = scalar_lea.vmem [#allocation2], %s1365
        %v1367 = vld [vmem:[%s1366] sm:$0x1]
        %s1368 = scalar_lea.vmem [#allocation3], %s1365
        %v1369 = vld [vmem:[%s1368] sm:$0x1]
        %v1370 = vadd.f32 %v1363, %v1367
        %v1371 = vadd.f32 %v1363, %v1369
        %1372 = vrot.lane.b32.xlu0 %v1371, 1
        %v1373 = vpop.permute.xlu0 %1372
        %v1374 = vsel %vm1353, -1e+30, %v1373
        %v1375 = vmax.f32 %v1370, %v1374
        %v1376 = vsub.f32 %v1370, %v1375
        %v1377 = vmul.f32 %v1376, 1.442695
        %v1378 = vpow.pop %v1377
        %v1379 = vsub.f32 %v1374, %v1375
        %v1380 = vmul.f32 %v1379, 1.442695
        %v1381 = vpow.pop %v1380
        %v1382 = vadd.f32 %v1378, %v1381
        %v1383 = vlog2.pop %v1382
        %v1384 = vmul.f32 %v1383, 0.6931472
        %v1385 = vadd.f32 %v1375, %v1384
        %v1386 = vstv %s1350
        %vm1387 = vcmp.eq.s32.totalorder %v203, %v1386
        %v1388 = vsel %vm1387, %v1385, -1e+30
        %v1389 = vsel %vm240, %v1388, -inf
        %1390 = vmax.xlane.f32.xlu0 %v1389
        %v1391 = vpop.xlane.xlu0 %1390
        %v1392 = vrot.slane %v1391, 4
        %v1393 = vmax.f32 %v1391, %v1392
        %v1394 = vrot.slane %v1393, 2
        %v1395 = vmax.f32 %v1393, %v1394
        %v1396 = vrot.slane %v1395, 1
        %v1397 = vmax.f32 %v1395, %v1396
        %s1398 = vtos %v1397
        %p1399 = scmp.eq.s32.totalorder %s1358, %s1352
        %s1400 = scalar_select %p1399, %s1398, %s1364
      $region33: #{transducer_forward.7} parent=27 // loop_footer
        %s1362 = sadd.s32 1, %s1358
      $region34: #{transducer_forward.7} parent=27 // loop_footer_branch
        %1357 = sbr.rel target = $region30
      $region35: #{transducer_forward.7} parent=27 // loop_exit
        _
      %s1401 = scalar_lea.vmem [#allocation2], %s1352
      %v1402 = vld [vmem:[%s1401] sm:$0x1]
      %v1403 = vstv %s1350
      %vm1404 = vcmp.eq.s32.totalorder %v203, %v1403
      %v1405 = vsel %vm1404, %v1402, -1e+30
      %v1406 = vsel %vm240, %v1405, -inf
      %1407 = vmax.xlane.f32.xlu0 %v1406
      %v1408 = vpop.xlane.xlu0 %1407
      %v1409 = vrot.slane %v1408, 4
      %v1410 = vmax.f32 %v1408, %v1409
      %v1411 = vrot.slane %v1410, 2
      %v1412 = vmax.f32 %v1410, %v1411
      %v1413 = vrot.slane %v1412, 1
      %v1414 = vmax.f32 %v1412, %v1413
      %s1415 = vtos %v1414
      %s1416 = sadd.f32 %s1364, %s1415
      %s1417 = ssub.f32 0.0, %s1416
      %v1418 = vstv %s1417
      %1419 = vst [vmem:[%s165] sm:$0x1] %v1418
      %p1420 = scmp.lt.s32.totalorder %s25, 1
      %s1421 = scalar_select %p1420, %s25, 1
      %s1422 = scalar_lea.vmem %s4, %s1421
      // Predicated region
      $region36: #{transducer_forward.7} parent=27 // pred_check
        %p1423 = pneg %p95
      $region37: #{transducer_forward.7} parent=27 // pred_check_branch
        %1425 = sbr.rel (%p1423) target = $region39
      $region38: #{transducer_forward.7} parent=27 // pred_region
        _
      $region39: #{transducer_forward.7} parent=27 // pred_fallthru
        _
    $region28: #{transducer_forward.7} parent=5 // pred_fallthru
      _
    %p1426 = scmp.le.s32.totalorder 2, %s20
    // Predicated region
    $region40: #{transducer_forward.7} parent=5 // pred_check
      %p1427 = pneg %p1426
    $region41: #{transducer_forward.7} parent=5 // pred_check_branch
      %1429 = sbr.rel (%p1427) target = $region43
    $region42: #{transducer_forward.7} parent=5 // pred_region
      %s1430 = ssub.s32 %s20, 2
      // Predicated region
      $region44: #{transducer_forward.7} parent=42 // pred_check
        %p1431 = pneg %p101
      $region45: #{transducer_forward.7} parent=42 // pred_check_branch
        %1433 = sbr.rel (%p1431) target = $region47
      $region46: #{transducer_forward.7} parent=42 // pred_region
        %p1434 = scmp.lt.s32.totalorder %s26, 1
        %s1435 = scalar_select %p1434, %s26, 1
        %s1436 = scalar_lea.vmem %s4, %s1435
      $region47: #{transducer_forward.7} parent=42 // pred_fallthru
        _
    $region43: #{transducer_forward.7} parent=5 // pred_fallthru
      _
  $region6: #{transducer_forward.7} parent=0 // loop_footer
    %s24 = sadd.s32 1, %s20
  $region7: #{transducer_forward.7} parent=0 // loop_footer_branch
    %19 = sbr.rel target = $region3
  $region8: #{transducer_forward.7} parent=0 // loop_exit
    _

</llo_original>
